<compile_context>
chip_gen: v7x
topology: tpu7x:2x2x1
jax: 0.10.0
libtpu: 0.0.40
codegen_flags: <defaults>
</compile_context>

<pallas_src>
import functools
import math

import jax
import jax.numpy as jnp
from jax.experimental import pallas as pl
from jax.experimental.pallas import tpu as pltpu


def _round_up(x, m):
    return (x + m - 1) // m * m


def _nbytes(shape, dtype):
    n = 1
    for d in shape:
        n *= int(d)
    return n * jnp.dtype(dtype).itemsize


# ----------------------------------------------------------------------------
# Fused ViT kernel: patch-embed + cls/pos add + L encoder blocks + classifier.
# Grid = (batch_tile, layer); TB images' tokens stay resident in VMEM scratch
# across the layer axis so each layer's weights are loaded once per TB images.
# ----------------------------------------------------------------------------
def _vit_kernel(patches_ref, patch_w_ref, pos_ref,
                wqkv_ref, wo3_ref, w1_ref, w2_ref, vecs_ref,
                cls_ln_ref, head_w_ref, head_b_ref,
                o_ref, x_scr,
                *, s_true, inv_e, scale, eps):
    l = pl.program_id(1)
    n_layers = pl.num_programs(1)
    tb, s_pad, e_pad = x_scr.shape
    n_tok = tb * s_pad
    nbr_heads = wo3_ref.shape[1]
    dh_pad = wo3_ref.shape[2]
    m_pad = w1_ref.shape[2]
    d_pad = patches_ref.shape[2]
    wdt = wqkv_ref.dtype                       # matmul (weight) dtype, bf16

    def layernorm(xv, g, b):
        # Feature dim is zero-padded to e_pad; statistics use the true width.
        mu = jnp.sum(xv, axis=-1, keepdims=True) * inv_e
        ms = jnp.sum(xv * xv, axis=-1, keepdims=True) * inv_e
        var = jnp.maximum(ms - mu * mu, 0.0)
        return (xv - mu) * jax.lax.rsqrt(var + eps) * g + b

    # --- steps 1-4 (layer 0 only): patch embed + class token + pos-emb. ------
    # pos_ref has the class token folded into row 0 and the patch-projection
    # bias folded into the patch rows (wrapper-side constant packing), so one
    # matmul + add materializes the padded token grid.  Embedding dropout is
    # identity at inference.
    @pl.when(l == 0)
    def _embed():
        pr = patches_ref[...].reshape(n_tok, d_pad)
        emb = jnp.dot(pr, patch_w_ref[...], preferred_element_type=jnp.float32)
        x_scr[...] = emb.reshape(tb, s_pad, e_pad) + pos_ref[...][None]

    x3 = x_scr[...]                            # (tb, s_pad, e_pad) f32 tokens
    xf = x3.reshape(n_tok, e_pad)              # flattened for dense matmuls

    vecs = vecs_ref[0]                         # (8, W) packed per-layer vectors
    ln1_g, ln1_b = vecs[0:1, :e_pad], vecs[1:2, :e_pad]
    ln2_g, ln2_b = vecs[2:3, :e_pad], vecs[3:4, :e_pad]
    attn_b, mlp_b2 = vecs[4:5, :e_pad], vecs[5:6, :e_pad]
    qkv_b = vecs[6:7, :3 * e_pad]
    b1_row = vecs[7:8, :m_pad]

    # --- Multi-head self-attention (pre-LN, fused QKV projection) ------------
    xn = layernorm(xf, ln1_g, ln1_b).astype(wdt)
    qkv = (jnp.dot(xn, wqkv_ref[0], preferred_element_type=jnp.float32)
           + qkv_b)                            # (n_tok, 3*e_pad), f32

    key_ok = jax.lax.broadcasted_iota(jnp.int32, (1, 1, s_pad), 2) < s_true

    # Per-head static loop: the output projection of each head is accumulated
    # directly into a single f32 (n_tok, e_pad) accumulator (fused projection
    # + head reduction); no H x (s, e) intermediate, no stack/concatenate.
    attn = None
    for h in range(nbr_heads):
        q3 = (qkv[:, h * dh_pad:(h + 1) * dh_pad]
              .reshape(tb, s_pad, dh_pad).astype(wdt))
        k3 = (qkv[:, e_pad + h * dh_pad:e_pad + (h + 1) * dh_pad]
              .reshape(tb, s_pad, dh_pad).astype(wdt))
        v3 = (qkv[:, 2 * e_pad + h * dh_pad:2 * e_pad + (h + 1) * dh_pad]
              .reshape(tb, s_pad, dh_pad).astype(wdt))
        s = jnp.einsum("bqd,bkd->bqk", q3, k3,
                       preferred_element_type=jnp.float32) * scale
        s = jnp.where(key_ok, s, -1e30)        # mask padded key tokens
        s = s - jnp.max(s, axis=-1, keepdims=True)
        p = jnp.exp(s)
        p = p * pl.reciprocal(jnp.sum(p, axis=-1, keepdims=True), approx=True)
        ctx = jnp.einsum("bqk,bkd->bqd", p.astype(wdt), v3,
                         preferred_element_type=jnp.float32)
        d = jnp.dot(ctx.reshape(n_tok, dh_pad).astype(wdt), wo3_ref[0, h],
                    preferred_element_type=jnp.float32)
        attn = d if attn is None else attn + d

    xf = xf + attn + attn_b                    # dropout_attention = identity

    # --- MLP block (pre-LN) ---------------------------------------------------
    xn2 = layernorm(xf, ln2_g, ln2_b).astype(wdt)
    h1 = jnp.dot(xn2, w1_ref[0], preferred_element_type=jnp.float32) + b1_row
    # TODO(synk): torch.nn.GELU default is exact erf-GELU; tanh approximation
    # used for robust Mosaic lowering (difference < 1e-3 numerically).
    h1 = jax.nn.gelu(h1, approximate=True).astype(wdt)
    h2 = jnp.dot(h1, w2_ref[0], preferred_element_type=jnp.float32) + mlp_b2
    xf = xf + h2                               # dropout_mlp = identity

    # Keep padded token rows exactly zero so they never leak into later layers.
    x3 = xf.reshape(tb, s_pad, e_pad)
    row_ok = jax.lax.broadcasted_iota(jnp.int32, (1, s_pad, 1), 1) < s_true
    x3 = jnp.where(row_ok, x3, 0.0)
    x_scr[...] = x3

    # --- steps 6-7 (last layer only): class token -> LayerNorm + Linear ------
    @pl.when(l == n_layers - 1)
    def _head():
        cls_tok = jnp.concatenate([x3[i, 0:1, :] for i in range(tb)], axis=0)
        cl = cls_ln_ref[...]                   # (2, e_pad): [gamma, beta]
        cn = layernorm(cls_tok, cl[0:1], cl[1:2]).astype(wdt)
        logits = (jnp.dot(cn, head_w_ref[...],
                          preferred_element_type=jnp.float32)
                  + head_b_ref[...])           # (tb, c_pad)
        o_ref[0] = logits.astype(o_ref.dtype)


# ----------------------------------------------------------------------------
# Parameter initialization in natural (PyTorch-like, unpadded) shapes.
# ----------------------------------------------------------------------------
def init_vit_params(key, *, color_channels, patch_size, embedding_size,
                    nbr_encoder_blocks, mlp_units, nbr_classes, nbr_patches):
    C, P, E, M = color_channels, patch_size, embedding_size, mlp_units
    D = C * P * P
    sc = 0.02
    keys = jax.random.split(key, 4 + nbr_encoder_blocks)

    params = {
        # ImageTokenizer: Conv2d(C, E, kernel=P, stride=P) as a matmul over
        # flattened (C, P, P) patches.
        "patch_w": jax.random.normal(keys[0], (D, E), jnp.float32) * sc,
        "patch_b": jnp.zeros((E,), jnp.float32),
        "class_token": jax.random.normal(keys[1], (E,), jnp.float32) * sc,
        "pos_emb": jax.random.normal(keys[2], (nbr_patches + 1, E),
                                     jnp.float32) * sc,
        "cls_ln_g": jnp.ones((E,), jnp.float32),
        "cls_ln_b": jnp.zeros((E,), jnp.float32),
        "head_w": jax.random.normal(keys[3], (E, nbr_classes), jnp.float32) * sc,
        "head_b": jnp.zeros((nbr_classes,), jnp.float32),
        "blocks": [],
    }
    for i in range(nbr_encoder_blocks):
        bk = jax.random.split(keys[4 + i], 6)
        params["blocks"].append({
            "ln1_g": jnp.ones((E,), jnp.float32),
            "ln1_b": jnp.zeros((E,), jnp.float32),
            "wq": jax.random.normal(bk[0], (E, E), jnp.float32) * sc,
            "bq": jnp.zeros((E,), jnp.float32),
            "wk": jax.random.normal(bk[1], (E, E), jnp.float32) * sc,
            "bk": jnp.zeros((E,), jnp.float32),
            "wv": jax.random.normal(bk[2], (E, E), jnp.float32) * sc,
            "bv": jnp.zeros((E,), jnp.float32),
            "wo": jax.random.normal(bk[3], (E, E), jnp.float32) * sc,
            "bo": jnp.zeros((E,), jnp.float32),
            "ln2_g": jnp.ones((E,), jnp.float32),
            "ln2_b": jnp.zeros((E,), jnp.float32),
            "w1": jax.random.normal(bk[4], (E, M), jnp.float32) * sc,
            "b1": jnp.zeros((M,), jnp.float32),
            "w2": jax.random.normal(bk[5], (M, E), jnp.float32) * sc,
            "b2": jnp.zeros((E,), jnp.float32),
        })
    return params


# ----------------------------------------------------------------------------
# Pack natural params into padded / fused / layer-stacked kernel operands.
# ----------------------------------------------------------------------------
def pack_vit_params(params, *, nbr_heads, patch_size, nbr_patches,
                    weight_dtype=jnp.bfloat16):
    # TODO(synk): on v7x an fp8 weight format (int8 on v5e/v6e) would halve the
    # per-layer weight stream if still HBM-bound at production scale.
    blocks = params["blocks"]
    L = len(blocks)
    D, E = params["patch_w"].shape
    M = blocks[0]["w1"].shape[1]
    n_cls = params["head_w"].shape[1]
    H = nbr_heads
    assert E % H == 0, "embedding_size must be divisible by nbr_heads"
    dh = E // H
    s_true = nbr_patches + 1

    # Padded sizes: lane-dense (multiple-of-128) feature dims, 128-padded token
    # dim (lane axis of the attention scores), head dim padded so that
    # e_pad = H * dh_pad is also 128-dense.
    dh_pad = _round_up(dh, 128 // math.gcd(H, 128))
    e_pad = H * dh_pad
    d_pad = _round_up(D, 128)
    m_pad = _round_up(M, 128)
    c_pad = _round_up(n_cls, 128)
    s_pad = _round_up(s_true, 128)
    vec_w = max(3 * e_pad, m_pad)          # width of the packed per-layer slab

    def pad2(a, r, c):
        return jnp.pad(a, ((0, r - a.shape[0]), (0, c - a.shape[1])))

    def pad1(a, n):
        return jnp.pad(a, ((0, n - a.shape[0]),))

    def row(v):                            # pad 1-D vector to the slab width
        return jnp.pad(v, ((0, vec_w - v.shape[0]),))

    def pack_in_proj(w):          # (E, E): output cols head-blocked, dh padded
        w3 = w.reshape(E, H, dh)
        w3 = jnp.pad(w3, ((0, e_pad - E), (0, 0), (0, dh_pad - dh)))
        return w3.reshape(e_pad, e_pad)

    def pack_in_bias(b):          # (E,) -> (e_pad,) head-blocked
        b2 = b.reshape(H, dh)
        return jnp.pad(b2, ((0, 0), (0, dh_pad - dh))).reshape(e_pad)

    def pack_out_proj(w):         # (E, E) -> (H, dh_pad, e_pad)
        w3 = w.reshape(H, dh, E)
        return jnp.pad(w3, ((0, 0), (0, dh_pad - dh), (0, e_pad - E)))

    wqkv = jnp.stack([
        jnp.concatenate([pack_in_proj(b["wq"]), pack_in_proj(b["wk"]),
                         pack_in_proj(b["wv"])], axis=1) for b in blocks])
    wo3 = jnp.stack([pack_out_proj(b["wo"]) for b in blocks])
    w1 = jnp.stack([pad2(b["w1"], e_pad, m_pad) for b in blocks])
    w2 = jnp.stack([pad2(b["w2"], m_pad, e_pad) for b in blocks])

    # One (8, vec_w) slab per layer: LN gains/biases, attn/MLP output biases,
    # fused QKV bias and the MLP hidden bias -> a single small DMA per layer.
    layer_vecs = jnp.stack([
        jnp.stack([
            row(pad1(b["ln1_g"], e_pad)), row(pad1(b["ln1_b"], e_pad)),
            row(pad1(b["ln2_g"], e_pad)), row(pad1(b["ln2_b"], e_pad)),
            row(pad1(b["bo"], e_pad)), row(pad1(b["b2"], e_pad)),
            row(jnp.concatenate([pack_in_bias(b["bq"]), pack_in_bias(b["bk"]),
                                 pack_in_bias(b["bv"])])),
            row(pad1(b["b1"], m_pad)),
        ]) for b in blocks])

    # Constant token additive: row 0 = class token + pos[0]; patch rows get
    # pos[i] + patch-projection bias; padded rows/cols stay exactly zero.
    pos = pad2(params["pos_emb"], s_pad, e_pad)
    pos = pos.at[0].add(pad1(params["class_token"], e_pad))
    pos = pos.at[1:s_true].add(pad1(params["patch_b"], e_pad)[None, :])

    packed = {
        "patch_w": pad2(params["patch_w"], d_pad, e_pad).astype(weight_dtype),
        "pos_plus": pos,
        "wqkv": wqkv.astype(weight_dtype),
        "wo3": wo3.astype(weight_dtype),
        "w1": w1.astype(weight_dtype),
        "w2": w2.astype(weight_dtype),
        "layer_vecs": layer_vecs,
        "cls_ln": jnp.stack([pad1(params["cls_ln_g"], e_pad),
                             pad1(params["cls_ln_b"], e_pad)]),
        "head_w": pad2(params["head_w"], e_pad, c_pad).astype(weight_dtype),
        "head_b": pad1(params["head_b"], c_pad)[None, :],
    }
    cfg = dict(patch_size=patch_size, nbr_heads=H, dh=dh, dh_pad=dh_pad,
               E=E, e_pad=e_pad, d_pad=d_pad, m_pad=m_pad, c_pad=c_pad,
               s_true=s_true, s_pad=s_pad, vec_w=vec_w, n_layers=L,
               nbr_classes=n_cls)
    return packed, cfg


# ----------------------------------------------------------------------------
# Full forward pass (mirrors VisionTransformerClassifier.forward).
# ----------------------------------------------------------------------------
def vit_forward(x, packed, cfg, *, tile_batch=2):
    B, C, Himg, Wimg = x.shape
    P = cfg["patch_size"]
    Hp, Wp = Himg // P, Wimg // P
    Np = Hp * Wp
    D = C * P * P
    s_pad, e_pad, d_pad = cfg["s_pad"], cfg["e_pad"], cfg["d_pad"]
    m_pad, c_pad, L = cfg["m_pad"], cfg["c_pad"], cfg["n_layers"]
    H, dh_pad, W = cfg["nbr_heads"], cfg["dh_pad"], cfg["vec_w"]

    # TODO(synk): size tile_batch per generation at production scale:
    # ~4-8 images/step on v5e/v6e (128 MiB VMEM), 1-2 on v7x (64 MiB).
    tb = max(1, min(tile_batch, B))
    b_tiles = pl.cdiv(B, tb)
    b_pad = b_tiles * tb

    # Patch extraction (plain-JAX glue).  Row 0 of each image is a zero row
    # reserved for the class-token slot; trailing rows / lanes / images are
    # zero padding, so the kernel's single patch matmul directly produces the
    # padded token grid.
    patches = (x.reshape(B, C, Hp, P, Wp, P)
                .transpose(0, 2, 4, 1, 3, 5)
                .reshape(B, Np, D))
    patches = jnp.pad(patches, ((0, b_pad - B), (1, s_pad - 1 - Np),
                                (0, d_pad - D)))
    patches = patches.astype(packed["patch_w"].dtype)

    kernel = functools.partial(
        _vit_kernel,
        s_true=cfg["s_true"],
        inv_e=1.0 / cfg["E"],
        scale=1.0 / math.sqrt(cfg["dh"]),
        eps=1e-5,
    )

    # Explicit VMEM budget: double-buffered I/O blocks + resident token scratch
    # + big f32 intermediates, clamped to a v7x-safe 56 MiB.
    block_list = [
        ((tb, s_pad, d_pad), patches.dtype),
        (packed["patch_w"].shape, packed["patch_w"].dtype),
        (packed["pos_plus"].shape, packed["pos_plus"].dtype),
        ((1, e_pad, 3 * e_pad), packed["wqkv"].dtype),
        ((1, H, dh_pad, e_pad), packed["wo3"].dtype),
        ((1, e_pad, m_pad), packed["w1"].dtype),
        ((1, m_pad, e_pad), packed["w2"].dtype),
        ((1, 8, W), packed["layer_vecs"].dtype),
        (packed["cls_ln"].shape, packed["cls_ln"].dtype),
        (packed["head_w"].shape, packed["head_w"].dtype),
        (packed["head_b"].shape, packed["head_b"].dtype),
        ((1, tb, c_pad), jnp.float32),
    ]
    est = sum(2 * _nbytes(s, d) for s, d in block_list)
    est += _nbytes((tb, s_pad, e_pad), jnp.float32)          # token scratch
    est += _nbytes((tb * s_pad, 3 * e_pad), jnp.float32)     # fused QKV
    est += _nbytes((tb * s_pad, m_pad), jnp.float32)         # MLP hidden
    est += 2 * _nbytes((tb, s_pad, s_pad), jnp.float32)      # scores / probs
    est += 8 << 20                                           # compiler slack
    vmem_limit = int(min(56 << 20, max(32 << 20, est)))

    out = pl.pallas_call(
        kernel,
        out_shape=jax.ShapeDtypeStruct((b_tiles, tb, c_pad), jnp.float32),
        grid=(b_tiles, L),
        in_specs=[
            pl.BlockSpec((tb, s_pad, d_pad), lambda b, l: (b, 0, 0)),
            pl.BlockSpec(packed["patch_w"].shape, lambda b, l: (0, 0)),
            pl.BlockSpec(packed["pos_plus"].shape, lambda b, l: (0, 0)),
            pl.BlockSpec((1, e_pad, 3 * e_pad), lambda b, l: (l, 0, 0)),
            pl.BlockSpec((1, H, dh_pad, e_pad), lambda b, l: (l, 0, 0, 0)),
            pl.BlockSpec((1, e_pad, m_pad), lambda b, l: (l, 0, 0)),
            pl.BlockSpec((1, m_pad, e_pad), lambda b, l: (l, 0, 0)),
            pl.BlockSpec((1, 8, W), lambda b, l: (l, 0, 0)),
            pl.BlockSpec(packed["cls_ln"].shape, lambda b, l: (0, 0)),
            pl.BlockSpec(packed["head_w"].shape, lambda b, l: (0, 0)),
            pl.BlockSpec(packed["head_b"].shape, lambda b, l: (0, 0)),
        ],
        out_specs=pl.BlockSpec((1, tb, c_pad), lambda b, l: (b, 0, 0)),
        scratch_shapes=[pltpu.VMEM((tb, s_pad, e_pad), jnp.float32)],
        compiler_params=pltpu.CompilerParams(
            dimension_semantics=("parallel", "arbitrary"),
            vmem_limit_bytes=vmem_limit),
    )(patches, packed["patch_w"], packed["pos_plus"], packed["wqkv"],
      packed["wo3"], packed["w1"], packed["w2"], packed["layer_vecs"],
      packed["cls_ln"], packed["head_w"], packed["head_b"])

    return out.reshape(b_pad, c_pad)[:B, :cfg["nbr_classes"]]


# ----------------------------------------------------------------------------
if __name__ == "__main__":
    # Small, self-consistent configuration.
    B, C, Himg, Wimg = 4, 3, 16, 16
    patch_size = 8
    embedding_size = 32
    nbr_heads = 4
    nbr_encoder_blocks = 2
    mlp_units = 64
    nbr_classes = 10
    nbr_patches = (Himg * Wimg) // (patch_size ** 2)   # 4 -> sequence length 5

    key = jax.random.PRNGKey(0)
    k_img, k_param = jax.random.split(key)
    x = jax.random.normal(k_img, (B, C, Himg, Wimg), jnp.float32)

    params = init_vit_params(
        k_param,
        color_channels=C,
        patch_size=patch_size,
        embedding_size=embedding_size,
        nbr_encoder_blocks=nbr_encoder_blocks,
        mlp_units=mlp_units,
        nbr_classes=nbr_classes,
        nbr_patches=nbr_patches,
    )
    packed, cfg = pack_vit_params(
        params, nbr_heads=nbr_heads, patch_size=patch_size,
        nbr_patches=nbr_patches)

    fwd = jax.jit(functools.partial(vit_forward, cfg=cfg, tile_batch=2))
    logits = fwd(x, packed)
    logits = jax.block_until_ready(logits)
    assert logits.shape == (B, nbr_classes), logits.shape
    assert bool(jnp.all(jnp.isfinite(logits)))
    print("KERNEL_OK")
</pallas_src>

<mosaic_0001>
module attributes {stable_mosaic.version = 11 : i64} {
  func.func @_vit_kernel(%arg0: i32, %arg1: i32, %arg2: memref<2x128x256xbf16, #tpu.memory_space<vmem>>, %arg3: memref<256x128xbf16, #tpu.memory_space<vmem>>, %arg4: memref<128x128xf32, #tpu.memory_space<vmem>>, %arg5: memref<1x128x384xbf16, #tpu.memory_space<vmem>>, %arg6: memref<1x4x32x128xbf16, #tpu.memory_space<vmem>>, %arg7: memref<1x128x128xbf16, #tpu.memory_space<vmem>>, %arg8: memref<1x128x128xbf16, #tpu.memory_space<vmem>>, %arg9: memref<1x8x384xf32, #tpu.memory_space<vmem>>, %arg10: memref<2x128xf32, #tpu.memory_space<vmem>>, %arg11: memref<128x128xbf16, #tpu.memory_space<vmem>>, %arg12: memref<1x128xf32, #tpu.memory_space<vmem>>, %arg13: memref<1x2x128xf32, #tpu.memory_space<vmem>>, %arg14: memref<2x128x128xf32, #tpu.memory_space<vmem>>) attributes {dimension_semantics = [#tpu.dimension_semantics<parallel>, #tpu.dimension_semantics<arbitrary>], iteration_bounds = array<i64: 2, 2>, scalar_prefetch = 0 : i64, scratch_operands = 1 : i64, tpu.core_type = #tpu.core_type<tc>, window_params = [{transform_indices = @transform_0, window_bounds = array<i64: 2, 128, 256>}, {pipeline_mode = #tpu.pipeline_mode<synchronous>, transform_indices = @transform_1, window_bounds = array<i64: 256, 128>}, {pipeline_mode = #tpu.pipeline_mode<synchronous>, transform_indices = @transform_2, window_bounds = array<i64: 128, 128>}, {transform_indices = @transform_3, window_bounds = array<i64: 1, 128, 384>}, {transform_indices = @transform_4, window_bounds = array<i64: 1, 4, 32, 128>}, {transform_indices = @transform_5, window_bounds = array<i64: 1, 128, 128>}, {transform_indices = @transform_6, window_bounds = array<i64: 1, 128, 128>}, {transform_indices = @transform_7, window_bounds = array<i64: 1, 8, 384>}, {pipeline_mode = #tpu.pipeline_mode<synchronous>, transform_indices = @transform_8, window_bounds = array<i64: 2, 128>}, {pipeline_mode = #tpu.pipeline_mode<synchronous>, transform_indices = @transform_9, window_bounds = array<i64: 128, 128>}, {pipeline_mode = #tpu.pipeline_mode<synchronous>, transform_indices = @transform_10, window_bounds = array<i64: 1, 128>}, {transform_indices = @transform_11, window_bounds = array<i64: 1, 2, 128>}]} {
    %c0_i32 = arith.constant 0 : i32
    %0 = arith.cmpi eq, %arg1, %c0_i32 : i32
    %1 = arith.extui %0 : i1 to i32
    %c0_i32_0 = arith.constant 0 : i32
    %2 = arith.cmpi ne, %1, %c0_i32_0 : i32
    scf.if %2 {
      %c0_80 = arith.constant 0 : index
      %c0_81 = arith.constant 0 : index
      %c0_82 = arith.constant 0 : index
      %248 = vector.load %arg2[%c0_80, %c0_81, %c0_82] : memref<2x128x256xbf16, #tpu.memory_space<vmem>>, vector<2x128x256xbf16>
      %249 = vector.shape_cast %248 : vector<2x128x256xbf16> to vector<256x256xbf16>
      %c0_83 = arith.constant 0 : index
      %c0_84 = arith.constant 0 : index
      %250 = vector.load %arg3[%c0_83, %c0_84] : memref<256x128xbf16, #tpu.memory_space<vmem>>, vector<256x128xbf16>
      %cst_85 = arith.constant dense<0.000000e+00> : vector<256x128xf32>
      %251 = tpu.matmul %249, %250, %cst_85 {dimension_numbers = #tpu.dot_dimension_numbers<[1], [0], [0], [1], [0, 0, 1, 1], [], []>} : vector<256x256xbf16>, vector<256x128xbf16>, vector<256x128xf32> -> vector<256x128xf32>
      %252 = vector.shape_cast %251 : vector<256x128xf32> to vector<2x128x128xf32>
      %c0_86 = arith.constant 0 : index
      %c0_87 = arith.constant 0 : index
      %253 = vector.load %arg4[%c0_86, %c0_87] : memref<128x128xf32, #tpu.memory_space<vmem>>, vector<128x128xf32>
      %254 = vector.shape_cast %253 : vector<128x128xf32> to vector<1x128x128xf32>
      %255 = vector.broadcast %254 : vector<1x128x128xf32> to vector<2x128x128xf32>
      %256 = arith.addf %252, %255 : vector<2x128x128xf32>
      %c0_88 = arith.constant 0 : index
      %c0_89 = arith.constant 0 : index
      %c0_90 = arith.constant 0 : index
      %257 = vector.load %arg14[%c0_88, %c0_89, %c0_90] : memref<2x128x128xf32, #tpu.memory_space<vmem>>, vector<2x128x128xf32>
      tpu.vector_store %arg14[%c0_88, %c0_89, %c0_90], %256 {strides = array<i32>} : memref<2x128x128xf32, #tpu.memory_space<vmem>>, vector<2x128x128xf32>,
    } else {
    }
    %c0 = arith.constant 0 : index
    %c0_1 = arith.constant 0 : index
    %c0_2 = arith.constant 0 : index
    %3 = vector.load %arg14[%c0, %c0_1, %c0_2] : memref<2x128x128xf32, #tpu.memory_space<vmem>>, vector<2x128x128xf32>
    %4 = vector.shape_cast %3 : vector<2x128x128xf32> to vector<256x128xf32>
    %c0_3 = arith.constant 0 : index
    %c0_4 = arith.constant 0 : index
    %c0_5 = arith.constant 0 : index
    %5 = vector.load %arg9[%c0_3, %c0_4, %c0_5] : memref<1x8x384xf32, #tpu.memory_space<vmem>>, vector<1x8x384xf32>
    %6 = vector.shape_cast %5 : vector<1x8x384xf32> to vector<8x384xf32>
    %7 = vector.extract_strided_slice %6 {offsets = [0, 0], sizes = [1, 128], strides = [1, 1]} : vector<8x384xf32> to vector<1x128xf32>
    %8 = vector.extract_strided_slice %6 {offsets = [1, 0], sizes = [1, 128], strides = [1, 1]} : vector<8x384xf32> to vector<1x128xf32>
    %9 = vector.extract_strided_slice %6 {offsets = [2, 0], sizes = [1, 128], strides = [1, 1]} : vector<8x384xf32> to vector<1x128xf32>
    %10 = vector.extract_strided_slice %6 {offsets = [3, 0], sizes = [1, 128], strides = [1, 1]} : vector<8x384xf32> to vector<1x128xf32>
    %11 = vector.extract_strided_slice %6 {offsets = [4, 0], sizes = [1, 128], strides = [1, 1]} : vector<8x384xf32> to vector<1x128xf32>
    %12 = vector.extract_strided_slice %6 {offsets = [5, 0], sizes = [1, 128], strides = [1, 1]} : vector<8x384xf32> to vector<1x128xf32>
    %13 = vector.extract_strided_slice %6 {offsets = [6, 0], sizes = [1, 384], strides = [1, 1]} : vector<8x384xf32> to vector<1x384xf32>
    %14 = vector.extract_strided_slice %6 {offsets = [7, 0], sizes = [1, 128], strides = [1, 1]} : vector<8x384xf32> to vector<1x128xf32>
    %cst = arith.constant dense<0.000000e+00> : vector<256xf32>
    %15 = vector.multi_reduction <add>, %4, %cst [1] : vector<256x128xf32> to vector<256xf32>
    %16 = vector.shape_cast %15 : vector<256xf32> to vector<256x1xf32>
    %cst_6 = arith.constant 3.125000e-02 : f32
    %17 = vector.broadcast %cst_6 : f32 to vector<256x1xf32>
    %18 = arith.mulf %16, %17 : vector<256x1xf32>
    %19 = arith.mulf %4, %4 : vector<256x128xf32>
    %cst_7 = arith.constant dense<0.000000e+00> : vector<256xf32>
    %20 = vector.multi_reduction <add>, %19, %cst_7 [1] : vector<256x128xf32> to vector<256xf32>
    %21 = vector.shape_cast %20 : vector<256xf32> to vector<256x1xf32>
    %cst_8 = arith.constant 3.125000e-02 : f32
    %22 = vector.broadcast %cst_8 : f32 to vector<256x1xf32>
    %23 = arith.mulf %21, %22 : vector<256x1xf32>
    %24 = arith.mulf %18, %18 : vector<256x1xf32>
    %25 = arith.subf %23, %24 : vector<256x1xf32>
    %cst_9 = arith.constant 0.000000e+00 : f32
    %26 = vector.broadcast %cst_9 : f32 to vector<256x1xf32>
    %27 = arith.maximumf %25, %26 : vector<256x1xf32>
    %28 = vector.broadcast %18 : vector<256x1xf32> to vector<256x128xf32>
    %29 = arith.subf %4, %28 : vector<256x128xf32>
    %cst_10 = arith.constant 9.99999974E-6 : f32
    %30 = vector.broadcast %cst_10 : f32 to vector<256x1xf32>
    %31 = arith.addf %27, %30 : vector<256x1xf32>
    %32 = math.rsqrt %31 : vector<256x1xf32>
    %33 = vector.broadcast %32 : vector<256x1xf32> to vector<256x128xf32>
    %34 = arith.mulf %29, %33 : vector<256x128xf32>
    %35 = vector.broadcast %7 : vector<1x128xf32> to vector<256x128xf32>
    %36 = arith.mulf %34, %35 : vector<256x128xf32>
    %37 = vector.broadcast %8 : vector<1x128xf32> to vector<256x128xf32>
    %38 = arith.addf %36, %37 : vector<256x128xf32>
    %39 = arith.truncf %38 : vector<256x128xf32> to vector<256x128xbf16>
    %c0_11 = arith.constant 0 : index
    %c0_12 = arith.constant 0 : index
    %c0_13 = arith.constant 0 : index
    %40 = vector.load %arg5[%c0_11, %c0_12, %c0_13] : memref<1x128x384xbf16, #tpu.memory_space<vmem>>, vector<1x128x384xbf16>
    %41 = vector.shape_cast %40 : vector<1x128x384xbf16> to vector<128x384xbf16>
    %cst_14 = arith.constant dense<0.000000e+00> : vector<256x384xf32>
    %42 = tpu.matmul %39, %41, %cst_14 {dimension_numbers = #tpu.dot_dimension_numbers<[1], [0], [0], [1], [0, 0, 1, 1], [], []>} : vector<256x128xbf16>, vector<128x384xbf16>, vector<256x384xf32> -> vector<256x384xf32>
    %43 = vector.broadcast %13 : vector<1x384xf32> to vector<256x384xf32>
    %44 = arith.addf %42, %43 : vector<256x384xf32>
    %45 = tpu.iota {dimensions = array<i32: 2>} : vector<1x1x128xi32>
    %c5_i32 = arith.constant 5 : i32
    %46 = vector.broadcast %c5_i32 : i32 to vector<1x1x128xi32>
    %47 = arith.cmpi slt, %45, %46 : vector<1x1x128xi32>
    %48 = vector.extract_strided_slice %44 {offsets = [0, 0], sizes = [256, 32], strides = [1, 1]} : vector<256x384xf32> to vector<256x32xf32>
    %49 = vector.shape_cast %48 : vector<256x32xf32> to vector<2x128x32xf32>
    %50 = arith.truncf %49 : vector<2x128x32xf32> to vector<2x128x32xbf16>
    %51 = vector.extract_strided_slice %44 {offsets = [0, 128], sizes = [256, 32], strides = [1, 1]} : vector<256x384xf32> to vector<256x32xf32>
    %52 = vector.shape_cast %51 : vector<256x32xf32> to vector<2x128x32xf32>
    %53 = arith.truncf %52 : vector<2x128x32xf32> to vector<2x128x32xbf16>
    %54 = vector.extract_strided_slice %44 {offsets = [0, 256], sizes = [256, 32], strides = [1, 1]} : vector<256x384xf32> to vector<256x32xf32>
    %55 = vector.shape_cast %54 : vector<256x32xf32> to vector<2x128x32xf32>
    %56 = arith.truncf %55 : vector<2x128x32xf32> to vector<2x128x32xbf16>
    "tpu.trace_start"() <{level = 10 : i32, message = "bqd,bkd->bqk"}> : () -> ()
    %cst_15 = arith.constant dense<0.000000e+00> : vector<2x128x128xf32>
    %57 = tpu.matmul %50, %53, %cst_15 {dimension_numbers = #tpu.dot_dimension_numbers<[2], [2], [1], [1], [0, 0, 0, 1, 1, 1], [0], [0]>} : vector<2x128x32xbf16>, vector<2x128x32xbf16>, vector<2x128x128xf32> -> vector<2x128x128xf32>
    "tpu.trace_stop"() : () -> ()
    %cst_16 = arith.constant 0.353553385 : f32
    %58 = vector.broadcast %cst_16 : f32 to vector<2x128x128xf32>
    %59 = arith.mulf %57, %58 : vector<2x128x128xf32>
    %cst_17 = arith.constant -1.000000e+30 : f32
    %60 = vector.shape_cast %47 : vector<1x1x128xi1> to vector<1x1x128xi1>
    %61 = vector.broadcast %60 : vector<1x1x128xi1> to vector<2x128x128xi1>
    %62 = vector.broadcast %cst_17 : f32 to vector<2x128x128xf32>
    %63 = arith.select %61, %59, %62 : vector<2x128x128xi1>, vector<2x128x128xf32>
    %cst_18 = arith.constant dense<0xFF800000> : vector<2x128xf32>
    %64 = vector.multi_reduction <maximumf>, %63, %cst_18 [2] : vector<2x128x128xf32> to vector<2x128xf32>
    %65 = vector.shape_cast %64 : vector<2x128xf32> to vector<2x128x1xf32>
    %66 = vector.broadcast %65 : vector<2x128x1xf32> to vector<2x128x128xf32>
    %67 = arith.subf %63, %66 : vector<2x128x128xf32>
    %68 = math.exp %67 : vector<2x128x128xf32>
    %cst_19 = arith.constant dense<0.000000e+00> : vector<2x128xf32>
    %69 = vector.multi_reduction <add>, %68, %cst_19 [2] : vector<2x128x128xf32> to vector<2x128xf32>
    %70 = vector.shape_cast %69 : vector<2x128xf32> to vector<2x128x1xf32>
    %71 = tpu.reciprocal %70 {approx = true} : vector<2x128x1xf32> -> vector<2x128x1xf32>
    %72 = vector.broadcast %71 : vector<2x128x1xf32> to vector<2x128x128xf32>
    %73 = arith.mulf %68, %72 : vector<2x128x128xf32>
    %74 = arith.truncf %73 : vector<2x128x128xf32> to vector<2x128x128xbf16>
    "tpu.trace_start"() <{level = 10 : i32, message = "bqk,bkd->bqd"}> : () -> ()
    %cst_20 = arith.constant dense<0.000000e+00> : vector<2x128x32xf32>
    %75 = tpu.matmul %74, %56, %cst_20 {dimension_numbers = #tpu.dot_dimension_numbers<[2], [1], [1], [2], [0, 0, 0, 1, 1, 2], [0], [0]>} : vector<2x128x128xbf16>, vector<2x128x32xbf16>, vector<2x128x32xf32> -> vector<2x128x32xf32>
    "tpu.trace_stop"() : () -> ()
    %76 = vector.shape_cast %75 : vector<2x128x32xf32> to vector<256x32xf32>
    %77 = arith.truncf %76 : vector<256x32xf32> to vector<256x32xbf16>
    %c0_21 = arith.constant 0 : index
    %c0_22 = arith.constant 0 : index
    %c0_23 = arith.constant 0 : index
    %c0_24 = arith.constant 0 : index
    %78 = vector.load %arg6[%c0_21, %c0_22, %c0_23, %c0_24] : memref<1x4x32x128xbf16, #tpu.memory_space<vmem>>, vector<1x1x32x128xbf16>
    %79 = vector.shape_cast %78 : vector<1x1x32x128xbf16> to vector<32x128xbf16>
    %cst_25 = arith.constant dense<0.000000e+00> : vector<256x128xf32>
    %80 = tpu.matmul %77, %79, %cst_25 {dimension_numbers = #tpu.dot_dimension_numbers<[1], [0], [0], [1], [0, 0, 1, 1], [], []>} : vector<256x32xbf16>, vector<32x128xbf16>, vector<256x128xf32> -> vector<256x128xf32>
    %81 = vector.extract_strided_slice %44 {offsets = [0, 32], sizes = [256, 32], strides = [1, 1]} : vector<256x384xf32> to vector<256x32xf32>
    %82 = vector.shape_cast %81 : vector<256x32xf32> to vector<2x128x32xf32>
    %83 = arith.truncf %82 : vector<2x128x32xf32> to vector<2x128x32xbf16>
    %84 = vector.extract_strided_slice %44 {offsets = [0, 160], sizes = [256, 32], strides = [1, 1]} : vector<256x384xf32> to vector<256x32xf32>
    %85 = vector.shape_cast %84 : vector<256x32xf32> to vector<2x128x32xf32>
    %86 = arith.truncf %85 : vector<2x128x32xf32> to vector<2x128x32xbf16>
    %87 = vector.extract_strided_slice %44 {offsets = [0, 288], sizes = [256, 32], strides = [1, 1]} : vector<256x384xf32> to vector<256x32xf32>
    %88 = vector.shape_cast %87 : vector<256x32xf32> to vector<2x128x32xf32>
    %89 = arith.truncf %88 : vector<2x128x32xf32> to vector<2x128x32xbf16>
    "tpu.trace_start"() <{level = 10 : i32, message = "bqd,bkd->bqk"}> : () -> ()
    %cst_26 = arith.constant dense<0.000000e+00> : vector<2x128x128xf32>
    %90 = tpu.matmul %83, %86, %cst_26 {dimension_numbers = #tpu.dot_dimension_numbers<[2], [2], [1], [1], [0, 0, 0, 1, 1, 1], [0], [0]>} : vector<2x128x32xbf16>, vector<2x128x32xbf16>, vector<2x128x128xf32> -> vector<2x128x128xf32>
    "tpu.trace_stop"() : () -> ()
    %cst_27 = arith.constant 0.353553385 : f32
    %91 = vector.broadcast %cst_27 : f32 to vector<2x128x128xf32>
    %92 = arith.mulf %90, %91 : vector<2x128x128xf32>
    %cst_28 = arith.constant -1.000000e+30 : f32
    %93 = vector.shape_cast %47 : vector<1x1x128xi1> to vector<1x1x128xi1>
    %94 = vector.broadcast %93 : vector<1x1x128xi1> to vector<2x128x128xi1>
    %95 = vector.broadcast %cst_28 : f32 to vector<2x128x128xf32>
    %96 = arith.select %94, %92, %95 : vector<2x128x128xi1>, vector<2x128x128xf32>
    %cst_29 = arith.constant dense<0xFF800000> : vector<2x128xf32>
    %97 = vector.multi_reduction <maximumf>, %96, %cst_29 [2] : vector<2x128x128xf32> to vector<2x128xf32>
    %98 = vector.shape_cast %97 : vector<2x128xf32> to vector<2x128x1xf32>
    %99 = vector.broadcast %98 : vector<2x128x1xf32> to vector<2x128x128xf32>
    %100 = arith.subf %96, %99 : vector<2x128x128xf32>
    %101 = math.exp %100 : vector<2x128x128xf32>
    %cst_30 = arith.constant dense<0.000000e+00> : vector<2x128xf32>
    %102 = vector.multi_reduction <add>, %101, %cst_30 [2] : vector<2x128x128xf32> to vector<2x128xf32>
    %103 = vector.shape_cast %102 : vector<2x128xf32> to vector<2x128x1xf32>
    %104 = tpu.reciprocal %103 {approx = true} : vector<2x128x1xf32> -> vector<2x128x1xf32>
    %105 = vector.broadcast %104 : vector<2x128x1xf32> to vector<2x128x128xf32>
    %106 = arith.mulf %101, %105 : vector<2x128x128xf32>
    %107 = arith.truncf %106 : vector<2x128x128xf32> to vector<2x128x128xbf16>
    "tpu.trace_start"() <{level = 10 : i32, message = "bqk,bkd->bqd"}> : () -> ()
    %cst_31 = arith.constant dense<0.000000e+00> : vector<2x128x32xf32>
    %108 = tpu.matmul %107, %89, %cst_31 {dimension_numbers = #tpu.dot_dimension_numbers<[2], [1], [1], [2], [0, 0, 0, 1, 1, 2], [0], [0]>} : vector<2x128x128xbf16>, vector<2x128x32xbf16>, vector<2x128x32xf32> -> vector<2x128x32xf32>
    "tpu.trace_stop"() : () -> ()
    %109 = vector.shape_cast %108 : vector<2x128x32xf32> to vector<256x32xf32>
    %110 = arith.truncf %109 : vector<256x32xf32> to vector<256x32xbf16>
    %c0_32 = arith.constant 0 : index
    %c1 = arith.constant 1 : index
    %c0_33 = arith.constant 0 : index
    %c0_34 = arith.constant 0 : index
    %111 = vector.load %arg6[%c0_32, %c1, %c0_33, %c0_34] : memref<1x4x32x128xbf16, #tpu.memory_space<vmem>>, vector<1x1x32x128xbf16>
    %112 = vector.shape_cast %111 : vector<1x1x32x128xbf16> to vector<32x128xbf16>
    %cst_35 = arith.constant dense<0.000000e+00> : vector<256x128xf32>
    %113 = tpu.matmul %110, %112, %cst_35 {dimension_numbers = #tpu.dot_dimension_numbers<[1], [0], [0], [1], [0, 0, 1, 1], [], []>} : vector<256x32xbf16>, vector<32x128xbf16>, vector<256x128xf32> -> vector<256x128xf32>
    %114 = arith.addf %80, %113 : vector<256x128xf32>
    %115 = vector.extract_strided_slice %44 {offsets = [0, 64], sizes = [256, 32], strides = [1, 1]} : vector<256x384xf32> to vector<256x32xf32>
    %116 = vector.shape_cast %115 : vector<256x32xf32> to vector<2x128x32xf32>
    %117 = arith.truncf %116 : vector<2x128x32xf32> to vector<2x128x32xbf16>
    %118 = vector.extract_strided_slice %44 {offsets = [0, 192], sizes = [256, 32], strides = [1, 1]} : vector<256x384xf32> to vector<256x32xf32>
    %119 = vector.shape_cast %118 : vector<256x32xf32> to vector<2x128x32xf32>
    %120 = arith.truncf %119 : vector<2x128x32xf32> to vector<2x128x32xbf16>
    %121 = vector.extract_strided_slice %44 {offsets = [0, 320], sizes = [256, 32], strides = [1, 1]} : vector<256x384xf32> to vector<256x32xf32>
    %122 = vector.shape_cast %121 : vector<256x32xf32> to vector<2x128x32xf32>
    %123 = arith.truncf %122 : vector<2x128x32xf32> to vector<2x128x32xbf16>
    "tpu.trace_start"() <{level = 10 : i32, message = "bqd,bkd->bqk"}> : () -> ()
    %cst_36 = arith.constant dense<0.000000e+00> : vector<2x128x128xf32>
    %124 = tpu.matmul %117, %120, %cst_36 {dimension_numbers = #tpu.dot_dimension_numbers<[2], [2], [1], [1], [0, 0, 0, 1, 1, 1], [0], [0]>} : vector<2x128x32xbf16>, vector<2x128x32xbf16>, vector<2x128x128xf32> -> vector<2x128x128xf32>
    "tpu.trace_stop"() : () -> ()
    %cst_37 = arith.constant 0.353553385 : f32
    %125 = vector.broadcast %cst_37 : f32 to vector<2x128x128xf32>
    %126 = arith.mulf %124, %125 : vector<2x128x128xf32>
    %cst_38 = arith.constant -1.000000e+30 : f32
    %127 = vector.shape_cast %47 : vector<1x1x128xi1> to vector<1x1x128xi1>
    %128 = vector.broadcast %127 : vector<1x1x128xi1> to vector<2x128x128xi1>
    %129 = vector.broadcast %cst_38 : f32 to vector<2x128x128xf32>
    %130 = arith.select %128, %126, %129 : vector<2x128x128xi1>, vector<2x128x128xf32>
    %cst_39 = arith.constant dense<0xFF800000> : vector<2x128xf32>
    %131 = vector.multi_reduction <maximumf>, %130, %cst_39 [2] : vector<2x128x128xf32> to vector<2x128xf32>
    %132 = vector.shape_cast %131 : vector<2x128xf32> to vector<2x128x1xf32>
    %133 = vector.broadcast %132 : vector<2x128x1xf32> to vector<2x128x128xf32>
    %134 = arith.subf %130, %133 : vector<2x128x128xf32>
    %135 = math.exp %134 : vector<2x128x128xf32>
    %cst_40 = arith.constant dense<0.000000e+00> : vector<2x128xf32>
    %136 = vector.multi_reduction <add>, %135, %cst_40 [2] : vector<2x128x128xf32> to vector<2x128xf32>
    %137 = vector.shape_cast %136 : vector<2x128xf32> to vector<2x128x1xf32>
    %138 = tpu.reciprocal %137 {approx = true} : vector<2x128x1xf32> -> vector<2x128x1xf32>
    %139 = vector.broadcast %138 : vector<2x128x1xf32> to vector<2x128x128xf32>
    %140 = arith.mulf %135, %139 : vector<2x128x128xf32>
    %141 = arith.truncf %140 : vector<2x128x128xf32> to vector<2x128x128xbf16>
    "tpu.trace_start"() <{level = 10 : i32, message = "bqk,bkd->bqd"}> : () -> ()
    %cst_41 = arith.constant dense<0.000000e+00> : vector<2x128x32xf32>
    %142 = tpu.matmul %141, %123, %cst_41 {dimension_numbers = #tpu.dot_dimension_numbers<[2], [1], [1], [2], [0, 0, 0, 1, 1, 2], [0], [0]>} : vector<2x128x128xbf16>, vector<2x128x32xbf16>, vector<2x128x32xf32> -> vector<2x128x32xf32>
    "tpu.trace_stop"() : () -> ()
    %143 = vector.shape_cast %142 : vector<2x128x32xf32> to vector<256x32xf32>
    %144 = arith.truncf %143 : vector<256x32xf32> to vector<256x32xbf16>
    %c0_42 = arith.constant 0 : index
    %c2 = arith.constant 2 : index
    %c0_43 = arith.constant 0 : index
    %c0_44 = arith.constant 0 : index
    %145 = vector.load %arg6[%c0_42, %c2, %c0_43, %c0_44] : memref<1x4x32x128xbf16, #tpu.memory_space<vmem>>, vector<1x1x32x128xbf16>
    %146 = vector.shape_cast %145 : vector<1x1x32x128xbf16> to vector<32x128xbf16>
    %cst_45 = arith.constant dense<0.000000e+00> : vector<256x128xf32>
    %147 = tpu.matmul %144, %146, %cst_45 {dimension_numbers = #tpu.dot_dimension_numbers<[1], [0], [0], [1], [0, 0, 1, 1], [], []>} : vector<256x32xbf16>, vector<32x128xbf16>, vector<256x128xf32> -> vector<256x128xf32>
    %148 = arith.addf %114, %147 : vector<256x128xf32>
    %149 = vector.extract_strided_slice %44 {offsets = [0, 96], sizes = [256, 32], strides = [1, 1]} : vector<256x384xf32> to vector<256x32xf32>
    %150 = vector.shape_cast %149 : vector<256x32xf32> to vector<2x128x32xf32>
    %151 = arith.truncf %150 : vector<2x128x32xf32> to vector<2x128x32xbf16>
    %152 = vector.extract_strided_slice %44 {offsets = [0, 224], sizes = [256, 32], strides = [1, 1]} : vector<256x384xf32> to vector<256x32xf32>
    %153 = vector.shape_cast %152 : vector<256x32xf32> to vector<2x128x32xf32>
    %154 = arith.truncf %153 : vector<2x128x32xf32> to vector<2x128x32xbf16>
    %155 = vector.extract_strided_slice %44 {offsets = [0, 352], sizes = [256, 32], strides = [1, 1]} : vector<256x384xf32> to vector<256x32xf32>
    %156 = vector.shape_cast %155 : vector<256x32xf32> to vector<2x128x32xf32>
    %157 = arith.truncf %156 : vector<2x128x32xf32> to vector<2x128x32xbf16>
    "tpu.trace_start"() <{level = 10 : i32, message = "bqd,bkd->bqk"}> : () -> ()
    %cst_46 = arith.constant dense<0.000000e+00> : vector<2x128x128xf32>
    %158 = tpu.matmul %151, %154, %cst_46 {dimension_numbers = #tpu.dot_dimension_numbers<[2], [2], [1], [1], [0, 0, 0, 1, 1, 1], [0], [0]>} : vector<2x128x32xbf16>, vector<2x128x32xbf16>, vector<2x128x128xf32> -> vector<2x128x128xf32>
    "tpu.trace_stop"() : () -> ()
    %cst_47 = arith.constant 0.353553385 : f32
    %159 = vector.broadcast %cst_47 : f32 to vector<2x128x128xf32>
    %160 = arith.mulf %158, %159 : vector<2x128x128xf32>
    %cst_48 = arith.constant -1.000000e+30 : f32
    %161 = vector.shape_cast %47 : vector<1x1x128xi1> to vector<1x1x128xi1>
    %162 = vector.broadcast %161 : vector<1x1x128xi1> to vector<2x128x128xi1>
    %163 = vector.broadcast %cst_48 : f32 to vector<2x128x128xf32>
    %164 = arith.select %162, %160, %163 : vector<2x128x128xi1>, vector<2x128x128xf32>
    %cst_49 = arith.constant dense<0xFF800000> : vector<2x128xf32>
    %165 = vector.multi_reduction <maximumf>, %164, %cst_49 [2] : vector<2x128x128xf32> to vector<2x128xf32>
    %166 = vector.shape_cast %165 : vector<2x128xf32> to vector<2x128x1xf32>
    %167 = vector.broadcast %166 : vector<2x128x1xf32> to vector<2x128x128xf32>
    %168 = arith.subf %164, %167 : vector<2x128x128xf32>
    %169 = math.exp %168 : vector<2x128x128xf32>
    %cst_50 = arith.constant dense<0.000000e+00> : vector<2x128xf32>
    %170 = vector.multi_reduction <add>, %169, %cst_50 [2] : vector<2x128x128xf32> to vector<2x128xf32>
    %171 = vector.shape_cast %170 : vector<2x128xf32> to vector<2x128x1xf32>
    %172 = tpu.reciprocal %171 {approx = true} : vector<2x128x1xf32> -> vector<2x128x1xf32>
    %173 = vector.broadcast %172 : vector<2x128x1xf32> to vector<2x128x128xf32>
    %174 = arith.mulf %169, %173 : vector<2x128x128xf32>
    %175 = arith.truncf %174 : vector<2x128x128xf32> to vector<2x128x128xbf16>
    "tpu.trace_start"() <{level = 10 : i32, message = "bqk,bkd->bqd"}> : () -> ()
    %cst_51 = arith.constant dense<0.000000e+00> : vector<2x128x32xf32>
    %176 = tpu.matmul %175, %157, %cst_51 {dimension_numbers = #tpu.dot_dimension_numbers<[2], [1], [1], [2], [0, 0, 0, 1, 1, 2], [0], [0]>} : vector<2x128x128xbf16>, vector<2x128x32xbf16>, vector<2x128x32xf32> -> vector<2x128x32xf32>
    "tpu.trace_stop"() : () -> ()
    %177 = vector.shape_cast %176 : vector<2x128x32xf32> to vector<256x32xf32>
    %178 = arith.truncf %177 : vector<256x32xf32> to vector<256x32xbf16>
    %c0_52 = arith.constant 0 : index
    %c3 = arith.constant 3 : index
    %c0_53 = arith.constant 0 : index
    %c0_54 = arith.constant 0 : index
    %179 = vector.load %arg6[%c0_52, %c3, %c0_53, %c0_54] : memref<1x4x32x128xbf16, #tpu.memory_space<vmem>>, vector<1x1x32x128xbf16>
    %180 = vector.shape_cast %179 : vector<1x1x32x128xbf16> to vector<32x128xbf16>
    %cst_55 = arith.constant dense<0.000000e+00> : vector<256x128xf32>
    %181 = tpu.matmul %178, %180, %cst_55 {dimension_numbers = #tpu.dot_dimension_numbers<[1], [0], [0], [1], [0, 0, 1, 1], [], []>} : vector<256x32xbf16>, vector<32x128xbf16>, vector<256x128xf32> -> vector<256x128xf32>
    %182 = arith.addf %148, %181 : vector<256x128xf32>
    %183 = arith.addf %4, %182 : vector<256x128xf32>
    %184 = vector.broadcast %11 : vector<1x128xf32> to vector<256x128xf32>
    %185 = arith.addf %183, %184 : vector<256x128xf32>
    %cst_56 = arith.constant dense<0.000000e+00> : vector<256xf32>
    %186 = vector.multi_reduction <add>, %185, %cst_56 [1] : vector<256x128xf32> to vector<256xf32>
    %187 = vector.shape_cast %186 : vector<256xf32> to vector<256x1xf32>
    %cst_57 = arith.constant 3.125000e-02 : f32
    %188 = vector.broadcast %cst_57 : f32 to vector<256x1xf32>
    %189 = arith.mulf %187, %188 : vector<256x1xf32>
    %190 = arith.mulf %185, %185 : vector<256x128xf32>
    %cst_58 = arith.constant dense<0.000000e+00> : vector<256xf32>
    %191 = vector.multi_reduction <add>, %190, %cst_58 [1] : vector<256x128xf32> to vector<256xf32>
    %192 = vector.shape_cast %191 : vector<256xf32> to vector<256x1xf32>
    %cst_59 = arith.constant 3.125000e-02 : f32
    %193 = vector.broadcast %cst_59 : f32 to vector<256x1xf32>
    %194 = arith.mulf %192, %193 : vector<256x1xf32>
    %195 = arith.mulf %189, %189 : vector<256x1xf32>
    %196 = arith.subf %194, %195 : vector<256x1xf32>
    %cst_60 = arith.constant 0.000000e+00 : f32
    %197 = vector.broadcast %cst_60 : f32 to vector<256x1xf32>
    %198 = arith.maximumf %196, %197 : vector<256x1xf32>
    %199 = vector.broadcast %189 : vector<256x1xf32> to vector<256x128xf32>
    %200 = arith.subf %185, %199 : vector<256x128xf32>
    %cst_61 = arith.constant 9.99999974E-6 : f32
    %201 = vector.broadcast %cst_61 : f32 to vector<256x1xf32>
    %202 = arith.addf %198, %201 : vector<256x1xf32>
    %203 = math.rsqrt %202 : vector<256x1xf32>
    %204 = vector.broadcast %203 : vector<256x1xf32> to vector<256x128xf32>
    %205 = arith.mulf %200, %204 : vector<256x128xf32>
    %206 = vector.broadcast %9 : vector<1x128xf32> to vector<256x128xf32>
    %207 = arith.mulf %205, %206 : vector<256x128xf32>
    %208 = vector.broadcast %10 : vector<1x128xf32> to vector<256x128xf32>
    %209 = arith.addf %207, %208 : vector<256x128xf32>
    %210 = arith.truncf %209 : vector<256x128xf32> to vector<256x128xbf16>
    %c0_62 = arith.constant 0 : index
    %c0_63 = arith.constant 0 : index
    %c0_64 = arith.constant 0 : index
    %211 = vector.load %arg7[%c0_62, %c0_63, %c0_64] : memref<1x128x128xbf16, #tpu.memory_space<vmem>>, vector<1x128x128xbf16>
    %212 = vector.shape_cast %211 : vector<1x128x128xbf16> to vector<128x128xbf16>
    %cst_65 = arith.constant dense<0.000000e+00> : vector<256x128xf32>
    %213 = tpu.matmul %210, %212, %cst_65 {dimension_numbers = #tpu.dot_dimension_numbers<[1], [0], [0], [1], [0, 0, 1, 1], [], []>} : vector<256x128xbf16>, vector<128x128xbf16>, vector<256x128xf32> -> vector<256x128xf32>
    %214 = vector.broadcast %14 : vector<1x128xf32> to vector<256x128xf32>
    %215 = arith.addf %213, %214 : vector<256x128xf32>
    %216 = arith.mulf %215, %215 : vector<256x128xf32>
    %217 = arith.mulf %215, %216 : vector<256x128xf32>
    %cst_66 = arith.constant 4.471500e-02 : f32
    %218 = vector.broadcast %cst_66 : f32 to vector<256x128xf32>
    %219 = arith.mulf %218, %217 : vector<256x128xf32>
    %220 = arith.addf %215, %219 : vector<256x128xf32>
    %cst_67 = arith.constant 0.797884583 : f32
    %221 = vector.broadcast %cst_67 : f32 to vector<256x128xf32>
    %222 = arith.mulf %221, %220 : vector<256x128xf32>
    %223 = math.tanh %222 : vector<256x128xf32>
    %cst_68 = arith.constant 1.000000e+00 : f32
    %224 = vector.broadcast %cst_68 : f32 to vector<256x128xf32>
    %225 = arith.addf %224, %223 : vector<256x128xf32>
    %cst_69 = arith.constant 5.000000e-01 : f32
    %226 = vector.broadcast %cst_69 : f32 to vector<256x128xf32>
    %227 = arith.mulf %226, %225 : vector<256x128xf32>
    %228 = arith.mulf %215, %227 : vector<256x128xf32>
    %229 = arith.truncf %228 : vector<256x128xf32> to vector<256x128xbf16>
    %c0_70 = arith.constant 0 : index
    %c0_71 = arith.constant 0 : index
    %c0_72 = arith.constant 0 : index
    %230 = vector.load %arg8[%c0_70, %c0_71, %c0_72] : memref<1x128x128xbf16, #tpu.memory_space<vmem>>, vector<1x128x128xbf16>
    %231 = vector.shape_cast %230 : vector<1x128x128xbf16> to vector<128x128xbf16>
    %cst_73 = arith.constant dense<0.000000e+00> : vector<256x128xf32>
    %232 = tpu.matmul %229, %231, %cst_73 {dimension_numbers = #tpu.dot_dimension_numbers<[1], [0], [0], [1], [0, 0, 1, 1], [], []>} : vector<256x128xbf16>, vector<128x128xbf16>, vector<256x128xf32> -> vector<256x128xf32>
    %233 = vector.broadcast %12 : vector<1x128xf32> to vector<256x128xf32>
    %234 = arith.addf %232, %233 : vector<256x128xf32>
    %235 = arith.addf %185, %234 : vector<256x128xf32>
    %236 = vector.shape_cast %235 : vector<256x128xf32> to vector<2x128x128xf32>
    %237 = tpu.iota {dimensions = array<i32: 1>} : vector<1x128x1xi32>
    %c5_i32_74 = arith.constant 5 : i32
    %238 = vector.broadcast %c5_i32_74 : i32 to vector<1x128x1xi32>
    %239 = arith.cmpi slt, %237, %238 : vector<1x128x1xi32>
    %cst_75 = arith.constant 0.000000e+00 : f32
    %240 = vector.shape_cast %239 : vector<1x128x1xi1> to vector<1x128x1xi1>
    %241 = vector.broadcast %240 : vector<1x128x1xi1> to vector<2x128x128xi1>
    %242 = vector.broadcast %cst_75 : f32 to vector<2x128x128xf32>
    %243 = arith.select %241, %236, %242 : vector<2x128x128xi1>, vector<2x128x128xf32>
    %c0_76 = arith.constant 0 : index
    %c0_77 = arith.constant 0 : index
    %c0_78 = arith.constant 0 : index
    %244 = vector.load %arg14[%c0_76, %c0_77, %c0_78] : memref<2x128x128xf32, #tpu.memory_space<vmem>>, vector<2x128x128xf32>
    tpu.vector_store %arg14[%c0_76, %c0_77, %c0_78], %243 {strides = array<i32>} : memref<2x128x128xf32, #tpu.memory_space<vmem>>, vector<2x128x128xf32>,
    %c1_i32 = arith.constant 1 : i32
    %245 = arith.cmpi eq, %arg1, %c1_i32 : i32
    %246 = arith.extui %245 : i1 to i32
    %c0_i32_79 = arith.constant 0 : i32
    %247 = arith.cmpi ne, %246, %c0_i32_79 : i32
    scf.if %247 {
      %248 = vector.extract_strided_slice %243 {offsets = [0, 0, 0], sizes = [1, 1, 128], strides = [1, 1, 1]} : vector<2x128x128xf32> to vector<1x1x128xf32>
      %249 = vector.shape_cast %248 : vector<1x1x128xf32> to vector<1x128xf32>
      %250 = vector.extract_strided_slice %243 {offsets = [1, 0, 0], sizes = [1, 1, 128], strides = [1, 1, 1]} : vector<2x128x128xf32> to vector<1x1x128xf32>
      %251 = vector.shape_cast %250 : vector<1x1x128xf32> to vector<1x128xf32>
      %252 = tpu.concatenate %249, %251 in 0 : vector<1x128xf32>, vector<1x128xf32> -> vector<2x128xf32>
      %c0_80 = arith.constant 0 : index
      %c0_81 = arith.constant 0 : index
      %253 = vector.load %arg10[%c0_80, %c0_81] : memref<2x128xf32, #tpu.memory_space<vmem>>, vector<2x128xf32>
      %254 = vector.extract_strided_slice %253 {offsets = [0, 0], sizes = [1, 128], strides = [1, 1]} : vector<2x128xf32> to vector<1x128xf32>
      %255 = vector.extract_strided_slice %253 {offsets = [1, 0], sizes = [1, 128], strides = [1, 1]} : vector<2x128xf32> to vector<1x128xf32>
      %cst_82 = arith.constant dense<0.000000e+00> : vector<2xf32>
      %256 = vector.multi_reduction <add>, %252, %cst_82 [1] : vector<2x128xf32> to vector<2xf32>
      %257 = vector.shape_cast %256 : vector<2xf32> to vector<2x1xf32>
      %cst_83 = arith.constant 3.125000e-02 : f32
      %258 = vector.broadcast %cst_83 : f32 to vector<2x1xf32>
      %259 = arith.mulf %257, %258 : vector<2x1xf32>
      %260 = arith.mulf %252, %252 : vector<2x128xf32>
      %cst_84 = arith.constant dense<0.000000e+00> : vector<2xf32>
      %261 = vector.multi_reduction <add>, %260, %cst_84 [1] : vector<2x128xf32> to vector<2xf32>
      %262 = vector.shape_cast %261 : vector<2xf32> to vector<2x1xf32>
      %cst_85 = arith.constant 3.125000e-02 : f32
      %263 = vector.broadcast %cst_85 : f32 to vector<2x1xf32>
      %264 = arith.mulf %262, %263 : vector<2x1xf32>
      %265 = arith.mulf %259, %259 : vector<2x1xf32>
      %266 = arith.subf %264, %265 : vector<2x1xf32>
      %cst_86 = arith.constant 0.000000e+00 : f32
      %267 = vector.broadcast %cst_86 : f32 to vector<2x1xf32>
      %268 = arith.maximumf %266, %267 : vector<2x1xf32>
      %269 = vector.broadcast %259 : vector<2x1xf32> to vector<2x128xf32>
      %270 = arith.subf %252, %269 : vector<2x128xf32>
      %cst_87 = arith.constant 9.99999974E-6 : f32
      %271 = vector.broadcast %cst_87 : f32 to vector<2x1xf32>
      %272 = arith.addf %268, %271 : vector<2x1xf32>
      %273 = math.rsqrt %272 : vector<2x1xf32>
      %274 = vector.broadcast %273 : vector<2x1xf32> to vector<2x128xf32>
      %275 = arith.mulf %270, %274 : vector<2x128xf32>
      %276 = vector.broadcast %254 : vector<1x128xf32> to vector<2x128xf32>
      %277 = arith.mulf %275, %276 : vector<2x128xf32>
      %278 = vector.broadcast %255 : vector<1x128xf32> to vector<2x128xf32>
      %279 = arith.addf %277, %278 : vector<2x128xf32>
      %280 = arith.truncf %279 : vector<2x128xf32> to vector<2x128xbf16>
      %c0_88 = arith.constant 0 : index
      %c0_89 = arith.constant 0 : index
      %281 = vector.load %arg11[%c0_88, %c0_89] : memref<128x128xbf16, #tpu.memory_space<vmem>>, vector<128x128xbf16>
      %cst_90 = arith.constant dense<0.000000e+00> : vector<2x128xf32>
      %282 = tpu.matmul %280, %281, %cst_90 {dimension_numbers = #tpu.dot_dimension_numbers<[1], [0], [0], [1], [0, 0, 1, 1], [], []>} : vector<2x128xbf16>, vector<128x128xbf16>, vector<2x128xf32> -> vector<2x128xf32>
      %c0_91 = arith.constant 0 : index
      %c0_92 = arith.constant 0 : index
      %283 = vector.load %arg12[%c0_91, %c0_92] : memref<1x128xf32, #tpu.memory_space<vmem>>, vector<1x128xf32>
      %284 = vector.broadcast %283 : vector<1x128xf32> to vector<2x128xf32>
      %285 = arith.addf %282, %284 : vector<2x128xf32>
      %c0_93 = arith.constant 0 : index
      %c0_94 = arith.constant 0 : index
      %c0_95 = arith.constant 0 : index
      %286 = vector.load %arg13[%c0_93, %c0_94, %c0_95] : memref<1x2x128xf32, #tpu.memory_space<vmem>>, vector<1x2x128xf32>
      %287 = vector.shape_cast %286 : vector<1x2x128xf32> to vector<2x128xf32>
      %288 = vector.shape_cast %285 : vector<2x128xf32> to vector<1x2x128xf32>
      tpu.vector_store %arg13[%c0_93, %c0_94, %c0_95], %288 {strides = array<i32>} : memref<1x2x128xf32, #tpu.memory_space<vmem>>, vector<1x2x128xf32>,
    } else {
    }
    return
  }
  func.func @transform_0(%arg0: i32, %arg1: i32) -> (i32, i32, i32) {
    %c0_i32 = arith.constant 0 : i32
    %c0_i32_0 = arith.constant 0 : i32
    %c0_i32_1 = arith.constant 0 : i32
    return %arg0, %c0_i32, %c0_i32_0 : i32, i32, i32
  }
  func.func @transform_1(%arg0: i32, %arg1: i32) -> (i32, i32) {
    %c0_i32 = arith.constant 0 : i32
    %c0_i32_0 = arith.constant 0 : i32
    %c0_i32_1 = arith.constant 0 : i32
    return %c0_i32, %c0_i32_0 : i32, i32
  }
  func.func @transform_2(%arg0: i32, %arg1: i32) -> (i32, i32) {
    %c0_i32 = arith.constant 0 : i32
    %c0_i32_0 = arith.constant 0 : i32
    %c0_i32_1 = arith.constant 0 : i32
    return %c0_i32, %c0_i32_0 : i32, i32
  }
  func.func @transform_3(%arg0: i32, %arg1: i32) -> (i32, i32, i32) {
    %c0_i32 = arith.constant 0 : i32
    %c0_i32_0 = arith.constant 0 : i32
    %c0_i32_1 = arith.constant 0 : i32
    return %arg1, %c0_i32, %c0_i32_0 : i32, i32, i32
  }
  func.func @transform_4(%arg0: i32, %arg1: i32) -> (i32, i32, i32, i32) {
    %c0_i32 = arith.constant 0 : i32
    %c0_i32_0 = arith.constant 0 : i32
    %c0_i32_1 = arith.constant 0 : i32
    %c0_i32_2 = arith.constant 0 : i32
    return %arg1, %c0_i32, %c0_i32_0, %c0_i32_1 : i32, i32, i32, i32
  }
  func.func @transform_5(%arg0: i32, %arg1: i32) -> (i32, i32, i32) {
    %c0_i32 = arith.constant 0 : i32
    %c0_i32_0 = arith.constant 0 : i32
    %c0_i32_1 = arith.constant 0 : i32
    return %arg1, %c0_i32, %c0_i32_0 : i32, i32, i32
  }
  func.func @transform_6(%arg0: i32, %arg1: i32) -> (i32, i32, i32) {
    %c0_i32 = arith.constant 0 : i32
    %c0_i32_0 = arith.constant 0 : i32
    %c0_i32_1 = arith.constant 0 : i32
    return %arg1, %c0_i32, %c0_i32_0 : i32, i32, i32
  }
  func.func @transform_7(%arg0: i32, %arg1: i32) -> (i32, i32, i32) {
    %c0_i32 = arith.constant 0 : i32
    %c0_i32_0 = arith.constant 0 : i32
    %c0_i32_1 = arith.constant 0 : i32
    return %arg1, %c0_i32, %c0_i32_0 : i32, i32, i32
  }
  func.func @transform_8(%arg0: i32, %arg1: i32) -> (i32, i32) {
    %c0_i32 = arith.constant 0 : i32
    %c0_i32_0 = arith.constant 0 : i32
    %c0_i32_1 = arith.constant 0 : i32
    return %c0_i32, %c0_i32_0 : i32, i32
  }
  func.func @transform_9(%arg0: i32, %arg1: i32) -> (i32, i32) {
    %c0_i32 = arith.constant 0 : i32
    %c0_i32_0 = arith.constant 0 : i32
    %c0_i32_1 = arith.constant 0 : i32
    return %c0_i32, %c0_i32_0 : i32, i32
  }
  func.func @transform_10(%arg0: i32, %arg1: i32) -> (i32, i32) {
    %c0_i32 = arith.constant 0 : i32
    %c0_i32_0 = arith.constant 0 : i32
    %c0_i32_1 = arith.constant 0 : i32
    return %c0_i32, %c0_i32_0 : i32, i32
  }
  func.func @transform_11(%arg0: i32, %arg1: i32) -> (i32, i32, i32) {
    %c0_i32 = arith.constant 0 : i32
    %c0_i32_0 = arith.constant 0 : i32
    %c0_i32_1 = arith.constant 0 : i32
    return %arg0, %c0_i32, %c0_i32_0 : i32, i32, i32
  }
}

</mosaic_0001>

<llo_original>
// kernel: vit_forward.1
$region0: #{vit_forward.1}
  #allocation0 [shape = 'u32[]', space=smem, size = 0x4, offset = 0x4, fixed_abs, tag = 'smem constant byte address 0x4 - core index']
  #allocation1 [shape = 'u32[144,128]{1,0:T(1,128)}', space=vmem, size = 0x12000, scoped, tag = 'internal scratch']
  #allocation2 [shape = 'f32[2,128,128]{2,1,0:T(8,128)}', space=vmem, size = 0x20000, scoped, tag = 'scratch operand']
  %s0 = inlined_call_operand.vmem [shape: bf16[4,128,256], index: 0, kind: input, shape index: {}]
  %s1 = inlined_call_operand.vmem [shape: bf16[256,128], index: 1, kind: input, shape index: {}]
  %s2 = inlined_call_operand.vmem [shape: f32[128,128], index: 2, kind: input, shape index: {}]
  %s3 = inlined_call_operand.vmem [shape: bf16[2,128,384], index: 3, kind: input, shape index: {}]
  %s4 = inlined_call_operand.vmem [shape: bf16[2,4,32,128], index: 4, kind: input, shape index: {}]
  %s5 = inlined_call_operand.vmem [shape: bf16[2,128,128], index: 5, kind: input, shape index: {}]
  %s6 = inlined_call_operand.vmem [shape: bf16[2,128,128], index: 6, kind: input, shape index: {}]
  %s7 = inlined_call_operand.vmem [shape: f32[2,8,384], index: 7, kind: input, shape index: {}]
  %s8 = inlined_call_operand.vmem [shape: f32[2,128], index: 8, kind: input, shape index: {}]
  %s9 = inlined_call_operand.vmem [shape: bf16[128,128], index: 9, kind: input, shape index: {}]
  %s10 = inlined_call_operand.vmem [shape: f32[1,128], index: 10, kind: input, shape index: {}]
  %s11 = inlined_call_operand.hbm [shape: f32[2,2,128], index: 11, kind: output, shape index: {}]
  %s12 = sld [smem:[#allocation0]]
  $region85: #{vit_forward.1} parent=0
    _
  %s14 = ssub.s32 1, %s12
  %s15 = scalar_select 0, %s14, %s12
  $region1: #{vit_forward.1} parent=0
    #allocation3 [shape = 'u8[2048]{0}', space=vmem, size = 0x800, scoped, tag = 'output window, operand 0']
    #allocation4 [shape = 's32[2]{0}', space=sflag, size = 0x8, scoped, tag = 'scoped memory for vit_forward.1']
    %16 = vsyncpa [#allocation4], 0
    %s17 = scalar_lea.sflag [#allocation4], 1
    %18 = vsyncpa %s17, 0
    loop: start=0, step=1, limit=6
    $region2: #{vit_forward.1} parent=1 // loop_pre_header
      _
    $region3: #{vit_forward.1} parent=1 // loop_header
      %s20 = sphi 0, %s24
      %p21 = scmp.ge.s32.totalorder %s20, 6
      %s27 = sphi 0, %s39
      %s28 = sphi 0, %s35
      %s29 = sphi 0, %s27
      %s30 = sphi 0, %s28
      %s31 = sphi 0, %s29
      %s32 = sphi 0, %s30
      %s42 = sphi 0, %s44
      %s45 = sphi 0, %s42
      %s46 = sphi 0, %s45
      %s62 = sphi 0, %s46
      %s66 = sphi 0, %s66
      %s68 = sphi 0, %s66
      %s69 = sphi 0, %s68
      %s83 = sphi 0, %s69
      %s87 = sphi 0, %s87
      %s89 = sphi 0, %s87
      %s90 = sphi 0, %s89
      %s104 = sphi 0, %s90
      %s110 = sphi 0, %s112
      %s113 = sphi 0, %s110
      %s114 = sphi 0, %s113
      %s130 = sphi 0, %s114
      %s136 = sphi 0, %s138
      %s139 = sphi 0, %s136
      %s140 = sphi 0, %s139
      %s156 = sphi 0, %s140
      %s162 = sphi 0, %s164
      %s165 = sphi 0, %s162
      %s166 = sphi 0, %s165
      %s182 = sphi 0, %s166
      %s188 = sphi 0, %s190
      %s191 = sphi 0, %s188
      %s192 = sphi 0, %s191
      %s208 = sphi 0, %s192
      %s214 = sphi 0, %s216
      %s217 = sphi 0, %s214
      %s218 = sphi 0, %s217
      %s234 = sphi 0, %s218
      %s238 = sphi 0, %s238
      %s240 = sphi 0, %s238
      %s241 = sphi 0, %s240
      %s255 = sphi 0, %s241
      %s259 = sphi 0, %s259
      %s261 = sphi 0, %s259
      %s262 = sphi 0, %s261
      %s276 = sphi 0, %s262
      %s280 = sphi 0, %s280
      %s282 = sphi 0, %s280
      %s283 = sphi 0, %s282
      %s297 = sphi 0, %s283
      %s303 = sphi 0, %s305
      %s306 = sphi 0, %s303
      %s307 = sphi 0, %s306
      %s323 = sphi 0, %s307
    $region4: #{vit_forward.1} parent=1 // loop_header_branch
      %23 = sbr.rel (%p21) target = $region8
    $region5: #{vit_forward.1} parent=1 // loop_body
      %s25 = ssub.s32 %s20, 1
      %s26 = ssub.s32 %s20, 2
      %s33 = sadd.s32 1, %s28
      %p34 = scmp.ge.s32.totalorder %s33, 2
      %s35 = scalar_select %p34, 0, %s33
      %s36 = sadd.s32 1, %s27
      %s37 = scalar_select %p34, %s36, %s27
      %p38 = scmp.ge.s32.totalorder %s37, 2
      %s39 = scalar_select %p38, 0, %s37
      %s40 = ssub.s32 %s27, %s39
      %p41 = scmp.eq.s32.totalorder %s40, 0
      %s43 = sadd.s32 %s42, 1
      %s44 = scalar_select %p41, %s42, %s43
      %p47 = pneg %p41
      %p48 = scmp.eq.s32.totalorder %s20, 3
      %p49 = por %p47, %p48
      %p50 = scmp.ne.s32.totalorder %s42, %s45
      %p51 = scmp.eq.s32.totalorder %s20, 0
      %p52 = por %p50, %p51
      %p53 = scmp.ne.s32.totalorder %s42, %s45
      %p54 = scmp.eq.s32.totalorder %s25, 3
      %p55 = por %p53, %p54
      %p56 = scmp.ne.s32.totalorder %s45, %s46
      %p57 = scmp.eq.s32.totalorder %s25, 0
      %p58 = por %p56, %p57
      %p59 = scmp.ne.s32.totalorder %s45, %s46
      %p60 = scmp.eq.s32.totalorder %s26, 3
      %p61 = por %p59, %p60
      %p63 = scmp.ne.s32.totalorder %s46, %s62
      %p64 = scmp.eq.s32.totalorder %s26, 0
      %p65 = por %p63, %p64
      %s67 = sadd.s32 %s66, 1
      %p70 = scmp.eq.s32.totalorder %s20, 3
      %p71 = scmp.ne.s32.totalorder %s66, %s68
      %p72 = scmp.eq.s32.totalorder %s20, 0
      %p73 = por %p71, %p72
      %p74 = scmp.ne.s32.totalorder %s66, %s68
      %p75 = scmp.eq.s32.totalorder %s25, 3
      %p76 = por %p74, %p75
      %p77 = scmp.ne.s32.totalorder %s68, %s69
      %p78 = scmp.eq.s32.totalorder %s25, 0
      %p79 = por %p77, %p78
      %p80 = scmp.ne.s32.totalorder %s68, %s69
      %p81 = scmp.eq.s32.totalorder %s26, 3
      %p82 = por %p80, %p81
      %p84 = scmp.ne.s32.totalorder %s69, %s83
      %p85 = scmp.eq.s32.totalorder %s26, 0
      %p86 = por %p84, %p85
      %s88 = sadd.s32 %s87, 1
      %p91 = scmp.eq.s32.totalorder %s20, 3
      %p92 = scmp.ne.s32.totalorder %s87, %s89
      %p93 = scmp.eq.s32.totalorder %s20, 0
      %p94 = por %p92, %p93
      %p95 = scmp.ne.s32.totalorder %s87, %s89
      %p96 = scmp.eq.s32.totalorder %s25, 3
      %p97 = por %p95, %p96
      %p98 = scmp.ne.s32.totalorder %s89, %s90
      %p99 = scmp.eq.s32.totalorder %s25, 0
      %p100 = por %p98, %p99
      %p101 = scmp.ne.s32.totalorder %s89, %s90
      %p102 = scmp.eq.s32.totalorder %s26, 3
      %p103 = por %p101, %p102
      %p105 = scmp.ne.s32.totalorder %s90, %s104
      %p106 = scmp.eq.s32.totalorder %s26, 0
      %p107 = por %p105, %p106
      %s108 = ssub.s32 %s28, %s35
      %p109 = scmp.eq.s32.totalorder %s108, 0
      %s111 = sadd.s32 %s110, 1
      %s112 = scalar_select %p109, %s110, %s111
      %p115 = pneg %p109
      %p116 = scmp.eq.s32.totalorder %s20, 3
      %p117 = por %p115, %p116
      %p118 = scmp.ne.s32.totalorder %s110, %s113
      %p119 = scmp.eq.s32.totalorder %s20, 0
      %p120 = por %p118, %p119
      %p121 = scmp.ne.s32.totalorder %s110, %s113
      %p122 = scmp.eq.s32.totalorder %s25, 3
      %p123 = por %p121, %p122
      %p124 = scmp.ne.s32.totalorder %s113, %s114
      %p125 = scmp.eq.s32.totalorder %s25, 0
      %p126 = por %p124, %p125
      %p127 = scmp.ne.s32.totalorder %s113, %s114
      %p128 = scmp.eq.s32.totalorder %s26, 3
      %p129 = por %p127, %p128
      %p131 = scmp.ne.s32.totalorder %s114, %s130
      %p132 = scmp.eq.s32.totalorder %s26, 0
      %p133 = por %p131, %p132
      %s134 = ssub.s32 %s28, %s35
      %p135 = scmp.eq.s32.totalorder %s134, 0
      %s137 = sadd.s32 %s136, 1
      %s138 = scalar_select %p135, %s136, %s137
      %p141 = pneg %p135
      %p142 = scmp.eq.s32.totalorder %s20, 3
      %p143 = por %p141, %p142
      %p144 = scmp.ne.s32.totalorder %s136, %s139
      %p145 = scmp.eq.s32.totalorder %s20, 0
      %p146 = por %p144, %p145
      %p147 = scmp.ne.s32.totalorder %s136, %s139
      %p148 = scmp.eq.s32.totalorder %s25, 3
      %p149 = por %p147, %p148
      %p150 = scmp.ne.s32.totalorder %s139, %s140
      %p151 = scmp.eq.s32.totalorder %s25, 0
      %p152 = por %p150, %p151
      %p153 = scmp.ne.s32.totalorder %s139, %s140
      %p154 = scmp.eq.s32.totalorder %s26, 3
      %p155 = por %p153, %p154
      %p157 = scmp.ne.s32.totalorder %s140, %s156
      %p158 = scmp.eq.s32.totalorder %s26, 0
      %p159 = por %p157, %p158
      %s160 = ssub.s32 %s28, %s35
      %p161 = scmp.eq.s32.totalorder %s160, 0
      %s163 = sadd.s32 %s162, 1
      %s164 = scalar_select %p161, %s162, %s163
      %p167 = pneg %p161
      %p168 = scmp.eq.s32.totalorder %s20, 3
      %p169 = por %p167, %p168
      %p170 = scmp.ne.s32.totalorder %s162, %s165
      %p171 = scmp.eq.s32.totalorder %s20, 0
      %p172 = por %p170, %p171
      %p173 = scmp.ne.s32.totalorder %s162, %s165
      %p174 = scmp.eq.s32.totalorder %s25, 3
      %p175 = por %p173, %p174
      %p176 = scmp.ne.s32.totalorder %s165, %s166
      %p177 = scmp.eq.s32.totalorder %s25, 0
      %p178 = por %p176, %p177
      %p179 = scmp.ne.s32.totalorder %s165, %s166
      %p180 = scmp.eq.s32.totalorder %s26, 3
      %p181 = por %p179, %p180
      %p183 = scmp.ne.s32.totalorder %s166, %s182
      %p184 = scmp.eq.s32.totalorder %s26, 0
      %p185 = por %p183, %p184
      %s186 = ssub.s32 %s28, %s35
      %p187 = scmp.eq.s32.totalorder %s186, 0
      %s189 = sadd.s32 %s188, 1
      %s190 = scalar_select %p187, %s188, %s189
      %p193 = pneg %p187
      %p194 = scmp.eq.s32.totalorder %s20, 3
      %p195 = por %p193, %p194
      %p196 = scmp.ne.s32.totalorder %s188, %s191
      %p197 = scmp.eq.s32.totalorder %s20, 0
      %p198 = por %p196, %p197
      %p199 = scmp.ne.s32.totalorder %s188, %s191
      %p200 = scmp.eq.s32.totalorder %s25, 3
      %p201 = por %p199, %p200
      %p202 = scmp.ne.s32.totalorder %s191, %s192
      %p203 = scmp.eq.s32.totalorder %s25, 0
      %p204 = por %p202, %p203
      %p205 = scmp.ne.s32.totalorder %s191, %s192
      %p206 = scmp.eq.s32.totalorder %s26, 3
      %p207 = por %p205, %p206
      %p209 = scmp.ne.s32.totalorder %s192, %s208
      %p210 = scmp.eq.s32.totalorder %s26, 0
      %p211 = por %p209, %p210
      %s212 = ssub.s32 %s28, %s35
      %p213 = scmp.eq.s32.totalorder %s212, 0
      %s215 = sadd.s32 %s214, 1
      %s216 = scalar_select %p213, %s214, %s215
      %p219 = pneg %p213
      %p220 = scmp.eq.s32.totalorder %s20, 3
      %p221 = por %p219, %p220
      %p222 = scmp.ne.s32.totalorder %s214, %s217
      %p223 = scmp.eq.s32.totalorder %s20, 0
      %p224 = por %p222, %p223
      %p225 = scmp.ne.s32.totalorder %s214, %s217
      %p226 = scmp.eq.s32.totalorder %s25, 3
      %p227 = por %p225, %p226
      %p228 = scmp.ne.s32.totalorder %s217, %s218
      %p229 = scmp.eq.s32.totalorder %s25, 0
      %p230 = por %p228, %p229
      %p231 = scmp.ne.s32.totalorder %s217, %s218
      %p232 = scmp.eq.s32.totalorder %s26, 3
      %p233 = por %p231, %p232
      %p235 = scmp.ne.s32.totalorder %s218, %s234
      %p236 = scmp.eq.s32.totalorder %s26, 0
      %p237 = por %p235, %p236
      %s239 = sadd.s32 %s238, 1
      %p242 = scmp.eq.s32.totalorder %s20, 3
      %p243 = scmp.ne.s32.totalorder %s238, %s240
      %p244 = scmp.eq.s32.totalorder %s20, 0
      %p245 = por %p243, %p244
      %p246 = scmp.ne.s32.totalorder %s238, %s240
      %p247 = scmp.eq.s32.totalorder %s25, 3
      %p248 = por %p246, %p247
      %p249 = scmp.ne.s32.totalorder %s240, %s241
      %p250 = scmp.eq.s32.totalorder %s25, 0
      %p251 = por %p249, %p250
      %p252 = scmp.ne.s32.totalorder %s240, %s241
      %p253 = scmp.eq.s32.totalorder %s26, 3
      %p254 = por %p252, %p253
      %p256 = scmp.ne.s32.totalorder %s241, %s255
      %p257 = scmp.eq.s32.totalorder %s26, 0
      %p258 = por %p256, %p257
      %s260 = sadd.s32 %s259, 1
      %p263 = scmp.eq.s32.totalorder %s20, 3
      %p264 = scmp.ne.s32.totalorder %s259, %s261
      %p265 = scmp.eq.s32.totalorder %s20, 0
      %p266 = por %p264, %p265
      %p267 = scmp.ne.s32.totalorder %s259, %s261
      %p268 = scmp.eq.s32.totalorder %s25, 3
      %p269 = por %p267, %p268
      %p270 = scmp.ne.s32.totalorder %s261, %s262
      %p271 = scmp.eq.s32.totalorder %s25, 0
      %p272 = por %p270, %p271
      %p273 = scmp.ne.s32.totalorder %s261, %s262
      %p274 = scmp.eq.s32.totalorder %s26, 3
      %p275 = por %p273, %p274
      %p277 = scmp.ne.s32.totalorder %s262, %s276
      %p278 = scmp.eq.s32.totalorder %s26, 0
      %p279 = por %p277, %p278
      %s281 = sadd.s32 %s280, 1
      %p284 = scmp.eq.s32.totalorder %s20, 3
      %p285 = scmp.ne.s32.totalorder %s280, %s282
      %p286 = scmp.eq.s32.totalorder %s20, 0
      %p287 = por %p285, %p286
      %p288 = scmp.ne.s32.totalorder %s280, %s282
      %p289 = scmp.eq.s32.totalorder %s25, 3
      %p290 = por %p288, %p289
      %p291 = scmp.ne.s32.totalorder %s282, %s283
      %p292 = scmp.eq.s32.totalorder %s25, 0
      %p293 = por %p291, %p292
      %p294 = scmp.ne.s32.totalorder %s282, %s283
      %p295 = scmp.eq.s32.totalorder %s26, 3
      %p296 = por %p294, %p295
      %p298 = scmp.ne.s32.totalorder %s283, %s297
      %p299 = scmp.eq.s32.totalorder %s26, 0
      %p300 = por %p298, %p299
      %s301 = ssub.s32 %s27, %s39
      %p302 = scmp.eq.s32.totalorder %s301, 0
      %s304 = sadd.s32 %s303, 1
      %s305 = scalar_select %p302, %s303, %s304
      %p308 = pneg %p302
      %p309 = scmp.eq.s32.totalorder %s20, 3
      %p310 = por %p308, %p309
      %p311 = scmp.ne.s32.totalorder %s303, %s306
      %p312 = scmp.eq.s32.totalorder %s20, 0
      %p313 = por %p311, %p312
      %p314 = scmp.ne.s32.totalorder %s303, %s306
      %p315 = scmp.eq.s32.totalorder %s25, 3
      %p316 = por %p314, %p315
      %p317 = scmp.ne.s32.totalorder %s306, %s307
      %p318 = scmp.eq.s32.totalorder %s25, 0
      %p319 = por %p317, %p318
      %p320 = scmp.ne.s32.totalorder %s306, %s307
      %p321 = scmp.eq.s32.totalorder %s26, 3
      %p322 = por %p320, %p321
      %p324 = scmp.ne.s32.totalorder %s307, %s323
      %p325 = scmp.eq.s32.totalorder %s26, 0
      %p326 = por %p324, %p325
      %p327 = scmp.le.s32.totalorder 1, %s20
      %p328 = scmp.lt.s32.totalorder %s20, 5
      %p329 = pnand %p327, %p328
      %p330 = pneg %p329
      // Predicated region
      $region9: #{vit_forward.1} parent=5 // pred_check
        _
      $region10: #{vit_forward.1} parent=5 // pred_check_branch
        %332 = sbr.rel (%p329) target = $region12
      $region11: #{vit_forward.1} parent=5 // pred_region
        %s333 = ssub.s32 %s20, 1
        // Predicated region
        $region13: #{vit_forward.1} parent=11 // pred_check
          %p334 = pneg %p79
        $region14: #{vit_forward.1} parent=11 // pred_check_branch
          %336 = sbr.rel (%p334) target = $region16
        $region15: #{vit_forward.1} parent=11 // pred_region
          _
        $region16: #{vit_forward.1} parent=11 // pred_fallthru
          _
        // Predicated region
        $region17: #{vit_forward.1} parent=11 // pred_check
          %p337 = pneg %p100
        $region18: #{vit_forward.1} parent=11 // pred_check_branch
          %339 = sbr.rel (%p337) target = $region20
        $region19: #{vit_forward.1} parent=11 // pred_region
          _
        $region20: #{vit_forward.1} parent=11 // pred_fallthru
          _
        // Predicated region
        $region21: #{vit_forward.1} parent=11 // pred_check
          %p340 = pneg %p251
        $region22: #{vit_forward.1} parent=11 // pred_check_branch
          %342 = sbr.rel (%p340) target = $region24
        $region23: #{vit_forward.1} parent=11 // pred_region
          _
        $region24: #{vit_forward.1} parent=11 // pred_fallthru
          _
        // Predicated region
        $region25: #{vit_forward.1} parent=11 // pred_check
          %p343 = pneg %p272
        $region26: #{vit_forward.1} parent=11 // pred_check_branch
          %345 = sbr.rel (%p343) target = $region28
        $region27: #{vit_forward.1} parent=11 // pred_region
          _
        $region28: #{vit_forward.1} parent=11 // pred_fallthru
          _
        // Predicated region
        $region29: #{vit_forward.1} parent=11 // pred_check
          %p346 = pneg %p293
        $region30: #{vit_forward.1} parent=11 // pred_check_branch
          %348 = sbr.rel (%p346) target = $region32
        $region31: #{vit_forward.1} parent=11 // pred_region
          _
        $region32: #{vit_forward.1} parent=11 // pred_fallthru
          _
      $region12: #{vit_forward.1} parent=5 // pred_fallthru
        _
      %p349 = scmp.lt.s32.totalorder %s20, 4
      // Predicated region
      $region33: #{vit_forward.1} parent=5 // pred_check
        %p350 = pneg %p349
      $region34: #{vit_forward.1} parent=5 // pred_check_branch
        %352 = sbr.rel (%p350) target = $region36
      $region35: #{vit_forward.1} parent=5 // pred_region
        // Predicated region
        $region37: #{vit_forward.1} parent=35 // pred_check
          %p353 = pneg %p52
        $region38: #{vit_forward.1} parent=35 // pred_check_branch
          %355 = sbr.rel (%p353) target = $region40
        $region39: #{vit_forward.1} parent=35 // pred_region
          %s356 = smul.u32 2, %s27
          %p357 = scmp.lt.s32.totalorder %s356, 3
          %s358 = scalar_select %p357, %s356, 3
          %s359 = smul.addr %s358, 32
          %s360 = smul.addr %s359, 4
          %s361 = scalar_lea.vmem %s0, %s360
          %s362 = smul.u32 2, %s27
        $region40: #{vit_forward.1} parent=35 // pred_fallthru
          _
        // Predicated region
        $region41: #{vit_forward.1} parent=35 // pred_check
          %p363 = pneg %p120
        $region42: #{vit_forward.1} parent=35 // pred_check_branch
          %365 = sbr.rel (%p363) target = $region44
        $region43: #{vit_forward.1} parent=35 // pred_region
          %p366 = scmp.lt.s32.totalorder %s28, 1
          %s367 = scalar_select %p366, %s28, 1
          %s368 = smul.addr %s367, 48
          %s369 = smul.addr %s368, 4
          %s370 = scalar_lea.vmem %s3, %s369
        $region44: #{vit_forward.1} parent=35 // pred_fallthru
          _
        // Predicated region
        $region45: #{vit_forward.1} parent=35 // pred_check
          %p371 = pneg %p146
        $region46: #{vit_forward.1} parent=35 // pred_check_branch
          %373 = sbr.rel (%p371) target = $region48
        $region47: #{vit_forward.1} parent=35 // pred_region
          %p374 = scmp.lt.s32.totalorder %s28, 1
          %s375 = scalar_select %p374, %s28, 1
          %s376 = smul.addr %s375, 16
          %s377 = smul.addr %s376, 4
          %s378 = scalar_lea.vmem %s4, %s377
        $region48: #{vit_forward.1} parent=35 // pred_fallthru
          _
        // Predicated region
        $region49: #{vit_forward.1} parent=35 // pred_check
          %p379 = pneg %p172
        $region50: #{vit_forward.1} parent=35 // pred_check_branch
          %381 = sbr.rel (%p379) target = $region52
        $region51: #{vit_forward.1} parent=35 // pred_region
          %p382 = scmp.lt.s32.totalorder %s28, 1
          %s383 = scalar_select %p382, %s28, 1
          %s384 = smul.addr %s383, 16
          %s385 = smul.addr %s384, 4
          %s386 = scalar_lea.vmem %s5, %s385
        $region52: #{vit_forward.1} parent=35 // pred_fallthru
          _
        // Predicated region
        $region53: #{vit_forward.1} parent=35 // pred_check
          %p387 = pneg %p198
        $region54: #{vit_forward.1} parent=35 // pred_check_branch
          %389 = sbr.rel (%p387) target = $region56
        $region55: #{vit_forward.1} parent=35 // pred_region
          %p390 = scmp.lt.s32.totalorder %s28, 1
          %s391 = scalar_select %p390, %s28, 1
          %s392 = smul.addr %s391, 16
          %s393 = smul.addr %s392, 4
          %s394 = scalar_lea.vmem %s6, %s393
        $region56: #{vit_forward.1} parent=35 // pred_fallthru
          _
        // Predicated region
        $region57: #{vit_forward.1} parent=35 // pred_check
          %p395 = pneg %p224
        $region58: #{vit_forward.1} parent=35 // pred_check_branch
          %397 = sbr.rel (%p395) target = $region60
        $region59: #{vit_forward.1} parent=35 // pred_region
          %p398 = scmp.lt.s32.totalorder %s28, 1
          %s399 = scalar_select %p398, %s28, 1
          %s400 = smul.addr %s399, 3
          %s401 = smul.addr %s400, 8
          %s402 = scalar_lea.vmem %s7, %s401
        $region60: #{vit_forward.1} parent=35 // pred_fallthru
          _
      $region36: #{vit_forward.1} parent=5 // pred_fallthru
        _
      %p403 = scmp.le.s32.totalorder 1, %s20
      %p404 = scmp.lt.s32.totalorder %s20, 5
      %p405 = pnand %p403, %p404
      %p406 = pneg %p405
      // Predicated region
      $region61: #{vit_forward.1} parent=5 // pred_check
        _
      $region62: #{vit_forward.1} parent=5 // pred_check_branch
        %408 = sbr.rel (%p405) target = $region64
      $region63: #{vit_forward.1} parent=5 // pred_region
        %s409 = ssub.s32 %s20, 1
        %s410 = smul.u32 2, %s29
        %p411 = scmp.lt.s32.totalorder %s410, 3
        %s412 = scalar_select %p411, %s410, 3
        %s413 = smul.addr %s412, 32
        %s414 = smul.addr %s413, 4
        %s415 = scalar_lea.vmem %s0, %s414
        %p416 = pneg %p58
        %p417 = pneg %p55
        %p418 = pneg %p79
        %p419 = pneg %p76
        %p420 = pneg %p100
        %p421 = pneg %p97
        %p422 = scmp.lt.s32.totalorder %s30, 1
        %s423 = scalar_select %p422, %s30, 1
        %s424 = smul.addr %s423, 48
        %s425 = smul.addr %s424, 4
        %s426 = scalar_lea.vmem %s3, %s425
        %p427 = pneg %p126
        %p428 = pneg %p123
        %p429 = scmp.lt.s32.totalorder %s30, 1
        %s430 = scalar_select %p429, %s30, 1
        %s431 = smul.addr %s430, 16
        %s432 = smul.addr %s431, 4
        %s433 = scalar_lea.vmem %s4, %s432
        %p434 = pneg %p152
        %p435 = pneg %p149
        %p436 = scmp.lt.s32.totalorder %s30, 1
        %s437 = scalar_select %p436, %s30, 1
        %s438 = smul.addr %s437, 16
        %s439 = smul.addr %s438, 4
        %s440 = scalar_lea.vmem %s5, %s439
        %p441 = pneg %p178
        %p442 = pneg %p175
        %p443 = scmp.lt.s32.totalorder %s30, 1
        %s444 = scalar_select %p443, %s30, 1
        %s445 = smul.addr %s444, 16
        %s446 = smul.addr %s445, 4
        %s447 = scalar_lea.vmem %s6, %s446
        %p448 = pneg %p204
        %p449 = pneg %p201
        %p450 = scmp.lt.s32.totalorder %s30, 1
        %s451 = scalar_select %p450, %s30, 1
        %s452 = smul.addr %s451, 3
        %s453 = smul.addr %s452, 8
        %s454 = scalar_lea.vmem %s7, %s453
        %p455 = pneg %p230
        %p456 = pneg %p227
        %p457 = pneg %p251
        %p458 = pneg %p248
        %p459 = pneg %p272
        %p460 = pneg %p269
        %p461 = pneg %p293
        %p462 = pneg %p290
        %p463 = pneg %p319
        %p464 = pneg %p316
        %s465 = sand.u32 %s306, 1
        %s466 = scalar_lea.sflag [#allocation4], %s465
        %s467 = sand.u32 %s306, 1
        %s468 = smul.addr %s467, 2
        %s469 = scalar_lea.vmem [#allocation3], %s468
        %s470 = smul.u32 2, %s29
        %p471 = scmp.lt.s32.totalorder %s470, 3
        %s472 = scalar_select %p471, %s470, 3
        %s473 = smul.addr %s472, 32
        %s474 = smul.addr %s473, 4
        %s475 = scalar_lea.vmem %s0, %s474
        %s476 = smul.u32 2, %s29
        %p477 = scmp.lt.s32.totalorder %s30, 1
        %s478 = scalar_select %p477, %s30, 1
        %s479 = smul.addr %s478, 48
        %s480 = smul.addr %s479, 4
        %s481 = scalar_lea.vmem %s3, %s480
        %p482 = scmp.lt.s32.totalorder %s30, 1
        %s483 = scalar_select %p482, %s30, 1
        %s484 = smul.addr %s483, 16
        %s485 = smul.addr %s484, 4
        %s486 = scalar_lea.vmem %s4, %s485
        %p487 = scmp.lt.s32.totalorder %s30, 1
        %s488 = scalar_select %p487, %s30, 1
        %s489 = smul.addr %s488, 16
        %s490 = smul.addr %s489, 4
        %s491 = scalar_lea.vmem %s5, %s490
        %p492 = scmp.lt.s32.totalorder %s30, 1
        %s493 = scalar_select %p492, %s30, 1
        %s494 = smul.addr %s493, 16
        %s495 = smul.addr %s494, 4
        %s496 = scalar_lea.vmem %s6, %s495
        %p497 = scmp.lt.s32.totalorder %s30, 1
        %s498 = scalar_select %p497, %s30, 1
        %s499 = smul.addr %s498, 3
        %s500 = smul.addr %s499, 8
        %s501 = scalar_lea.vmem %s7, %s500
        %p503 = scmp.eq.s32.totalorder %s30, 0
        // Predicated region
        $region65: #{vit_forward.1} parent=63 // pred_check
          %p504 = pneg %p503
        $region66: #{vit_forward.1} parent=63 // pred_check_branch
          %506 = sbr.rel (%p504) target = $region68
        $region67: #{vit_forward.1} parent=63 // pred_region
          %v507 = vld [vmem:[%s475] sm:$0xff]
          %v508 = vld [vmem:[%s475 + $0x8] sm:$0xff]
          %v509 = vld [vmem:[%s475 + $0x10] sm:$0xff]
          %v510 = vld [vmem:[%s475 + $0x18] sm:$0xff]
          %v511 = vld [vmem:[%s475 + $0x20] sm:$0xff]
          %v512 = vld [vmem:[%s475 + $0x28] sm:$0xff]
          %v513 = vld [vmem:[%s475 + $0x30] sm:$0xff]
          %v514 = vld [vmem:[%s475 + $0x38] sm:$0xff]
          %v515 = vld [vmem:[%s475 + $0x40] sm:$0xff]
          %v516 = vld [vmem:[%s475 + $0x48] sm:$0xff]
          %v517 = vld [vmem:[%s475 + $0x50] sm:$0xff]
          %v518 = vld [vmem:[%s475 + $0x58] sm:$0xff]
          %v519 = vld [vmem:[%s475 + $0x60] sm:$0xff]
          %v520 = vld [vmem:[%s475 + $0x68] sm:$0xff]
          %v521 = vld [vmem:[%s475 + $0x70] sm:$0xff]
          %v522 = vld [vmem:[%s475 + $0x78] sm:$0xff]
          %v523 = vld [vmem:[%s475 + $0x80] sm:$0xff]
          %v524 = vld [vmem:[%s475 + $0x88] sm:$0xff]
          %v525 = vld [vmem:[%s475 + $0x90] sm:$0xff]
          %v526 = vld [vmem:[%s475 + $0x98] sm:$0xff]
          %v527 = vld [vmem:[%s475 + $0xa0] sm:$0xff]
          %v528 = vld [vmem:[%s475 + $0xa8] sm:$0xff]
          %v529 = vld [vmem:[%s475 + $0xb0] sm:$0xff]
          %v530 = vld [vmem:[%s475 + $0xb8] sm:$0xff]
          %v531 = vld [vmem:[%s475 + $0xc0] sm:$0xff]
          %v532 = vld [vmem:[%s475 + $0xc8] sm:$0xff]
          %v533 = vld [vmem:[%s475 + $0xd0] sm:$0xff]
          %v534 = vld [vmem:[%s475 + $0xd8] sm:$0xff]
          %v535 = vld [vmem:[%s475 + $0xe0] sm:$0xff]
          %v536 = vld [vmem:[%s475 + $0xe8] sm:$0xff]
          %v537 = vld [vmem:[%s475 + $0xf0] sm:$0xff]
          %v538 = vld [vmem:[%s475 + $0xf8] sm:$0xff]
          %v539 = vld [vmem:[%s1] sm:$0xf]
          %v540 = vld [vmem:[%s1 + $0x4] sm:$0xf]
          %v541 = vld [vmem:[%s1 + $0x8] sm:$0xf]
          %v542 = vld [vmem:[%s1 + $0xc] sm:$0xf]
          %v543 = vld [vmem:[%s1 + $0x10] sm:$0xf]
          %v544 = vld [vmem:[%s1 + $0x14] sm:$0xf]
          %v545 = vld [vmem:[%s1 + $0x18] sm:$0xf]
          %v546 = vld [vmem:[%s1 + $0x1c] sm:$0xf]
          %v547 = vld [vmem:[%s1 + $0x20] sm:$0xf]
          %v548 = vld [vmem:[%s1 + $0x24] sm:$0xf]
          %v549 = vld [vmem:[%s1 + $0x28] sm:$0xf]
          %v550 = vld [vmem:[%s1 + $0x2c] sm:$0xf]
          %v551 = vld [vmem:[%s1 + $0x30] sm:$0xf]
          %v552 = vld [vmem:[%s1 + $0x34] sm:$0xf]
          %v553 = vld [vmem:[%s1 + $0x38] sm:$0xf]
          %v554 = vld [vmem:[%s1 + $0x3c] sm:$0xf]
          %v555 = vld [vmem:[%s1 + $0x40] sm:$0xf]
          %v556 = vld [vmem:[%s1 + $0x44] sm:$0xf]
          %v557 = vld [vmem:[%s1 + $0x48] sm:$0xf]
          %v558 = vld [vmem:[%s1 + $0x4c] sm:$0xf]
          %v559 = vld [vmem:[%s1 + $0x50] sm:$0xf]
          %v560 = vld [vmem:[%s1 + $0x54] sm:$0xf]
          %v561 = vld [vmem:[%s1 + $0x58] sm:$0xf]
          %v562 = vld [vmem:[%s1 + $0x5c] sm:$0xf]
          %v563 = vld [vmem:[%s1 + $0x60] sm:$0xf]
          %v564 = vld [vmem:[%s1 + $0x64] sm:$0xf]
          %v565 = vld [vmem:[%s1 + $0x68] sm:$0xf]
          %v566 = vld [vmem:[%s1 + $0x6c] sm:$0xf]
          %v567 = vld [vmem:[%s1 + $0x70] sm:$0xf]
          %v568 = vld [vmem:[%s1 + $0x74] sm:$0xf]
          %v569 = vld [vmem:[%s1 + $0x78] sm:$0xf]
          %v570 = vld [vmem:[%s1 + $0x7c] sm:$0xf]
          %v603 = vunpack.c.l.b16 %v507
          %v604 = vunpack.c.h.b16 %v507
          %v605 = vunpack.c.l.b16 %v508
          %v606 = vunpack.c.h.b16 %v508
          %v607 = vunpack.c.l.b16 %v509
          %v608 = vunpack.c.h.b16 %v509
          %v609 = vunpack.c.l.b16 %v510
          %v610 = vunpack.c.h.b16 %v510
          %v611 = vunpack.c.l.b16 %v511
          %v612 = vunpack.c.h.b16 %v511
          %v613 = vunpack.c.l.b16 %v512
          %v614 = vunpack.c.h.b16 %v512
          %v615 = vunpack.c.l.b16 %v513
          %v616 = vunpack.c.h.b16 %v513
          %v617 = vunpack.c.l.b16 %v514
          %v618 = vunpack.c.h.b16 %v514
          %v619 = vunpack.c.l.b16 %v515
          %v620 = vunpack.c.h.b16 %v515
          %v621 = vunpack.c.l.b16 %v516
          %v622 = vunpack.c.h.b16 %v516
          %v623 = vunpack.c.l.b16 %v517
          %v624 = vunpack.c.h.b16 %v517
          %v625 = vunpack.c.l.b16 %v518
          %v626 = vunpack.c.h.b16 %v518
          %v627 = vunpack.c.l.b16 %v519
          %v628 = vunpack.c.h.b16 %v519
          %v629 = vunpack.c.l.b16 %v520
          %v630 = vunpack.c.h.b16 %v520
          %v631 = vunpack.c.l.b16 %v521
          %v632 = vunpack.c.h.b16 %v521
          %v633 = vunpack.c.l.b16 %v522
          %v634 = vunpack.c.h.b16 %v522
          %v635 = vunpack.c.l.b16 %v523
          %v636 = vunpack.c.h.b16 %v523
          %v637 = vunpack.c.l.b16 %v524
          %v638 = vunpack.c.h.b16 %v524
          %v639 = vunpack.c.l.b16 %v525
          %v640 = vunpack.c.h.b16 %v525
          %v641 = vunpack.c.l.b16 %v526
          %v642 = vunpack.c.h.b16 %v526
          %v643 = vunpack.c.l.b16 %v527
          %v644 = vunpack.c.h.b16 %v527
          %v645 = vunpack.c.l.b16 %v528
          %v646 = vunpack.c.h.b16 %v528
          %v647 = vunpack.c.l.b16 %v529
          %v648 = vunpack.c.h.b16 %v529
          %v649 = vunpack.c.l.b16 %v530
          %v650 = vunpack.c.h.b16 %v530
          %v651 = vunpack.c.l.b16 %v531
          %v652 = vunpack.c.h.b16 %v531
          %v653 = vunpack.c.l.b16 %v532
          %v654 = vunpack.c.h.b16 %v532
          %v655 = vunpack.c.l.b16 %v533
          %v656 = vunpack.c.h.b16 %v533
          %v657 = vunpack.c.l.b16 %v534
          %v658 = vunpack.c.h.b16 %v534
          %v659 = vunpack.c.l.b16 %v535
          %v660 = vunpack.c.h.b16 %v535
          %v661 = vunpack.c.l.b16 %v536
          %v662 = vunpack.c.h.b16 %v536
          %v663 = vunpack.c.l.b16 %v537
          %v664 = vunpack.c.h.b16 %v537
          %v665 = vunpack.c.l.b16 %v538
          %v666 = vunpack.c.h.b16 %v538
          %v667 = vpack.c.b16 %v605, %v603
          %v668 = vpack.c.b16 %v606, %v604
          %v669 = vpack.c.b16 %v609, %v607
          %v670 = vpack.c.b16 %v610, %v608
          %v671 = vpack.c.b16 %v613, %v611
          %v672 = vpack.c.b16 %v614, %v612
          %v673 = vpack.c.b16 %v617, %v615
          %v674 = vpack.c.b16 %v618, %v616
          %v675 = vpack.c.b16 %v621, %v619
          %v676 = vpack.c.b16 %v622, %v620
          %v677 = vpack.c.b16 %v625, %v623
          %v678 = vpack.c.b16 %v626, %v624
          %v679 = vpack.c.b16 %v629, %v627
          %v680 = vpack.c.b16 %v630, %v628
          %v681 = vpack.c.b16 %v633, %v631
          %v682 = vpack.c.b16 %v634, %v632
          %v683 = vpack.c.b16 %v637, %v635
          %v684 = vpack.c.b16 %v638, %v636
          %v685 = vpack.c.b16 %v641, %v639
          %v686 = vpack.c.b16 %v642, %v640
          %v687 = vpack.c.b16 %v645, %v643
          %v688 = vpack.c.b16 %v646, %v644
          %v689 = vpack.c.b16 %v649, %v647
          %v690 = vpack.c.b16 %v650, %v648
          %v691 = vpack.c.b16 %v653, %v651
          %v692 = vpack.c.b16 %v654, %v652
          %v693 = vpack.c.b16 %v657, %v655
          %v694 = vpack.c.b16 %v658, %v656
          %v695 = vpack.c.b16 %v661, %v659
          %v696 = vpack.c.b16 %v662, %v660
          %v697 = vpack.c.b16 %v665, %v663
          %v698 = vpack.c.b16 %v666, %v664
          %v763 = vunpack.c.l.b16 %v539
          %v764 = vunpack.c.l.b16 %v540
          %v765 = vunpack.c.l.b16 %v541
          %v766 = vunpack.c.l.b16 %v542
          %v767 = vunpack.c.l.b16 %v543
          %v768 = vunpack.c.l.b16 %v544
          %v769 = vunpack.c.l.b16 %v545
          %v770 = vunpack.c.l.b16 %v546
          %v771 = vunpack.c.l.b16 %v547
          %v772 = vunpack.c.l.b16 %v548
          %v773 = vunpack.c.l.b16 %v549
          %v774 = vunpack.c.l.b16 %v550
          %v775 = vunpack.c.l.b16 %v551
          %v776 = vunpack.c.l.b16 %v552
          %v777 = vunpack.c.l.b16 %v553
          %v778 = vunpack.c.l.b16 %v554
          %v779 = vunpack.c.l.b16 %v555
          %v780 = vunpack.c.l.b16 %v556
          %v781 = vunpack.c.l.b16 %v557
          %v782 = vunpack.c.l.b16 %v558
          %v783 = vunpack.c.l.b16 %v559
          %v784 = vunpack.c.l.b16 %v560
          %v785 = vunpack.c.l.b16 %v561
          %v786 = vunpack.c.l.b16 %v562
          %v787 = vunpack.c.l.b16 %v563
          %v788 = vunpack.c.l.b16 %v564
          %v789 = vunpack.c.l.b16 %v565
          %v790 = vunpack.c.l.b16 %v566
          %v791 = vunpack.c.l.b16 %v567
          %v792 = vunpack.c.l.b16 %v568
          %v793 = vunpack.c.l.b16 %v569
          %v794 = vunpack.c.l.b16 %v570
          %v795 = vpack.c.b16 %v764, %v763
          %v796 = vpack.c.b16 %v766, %v765
          %v797 = vpack.c.b16 %v768, %v767
          %v798 = vpack.c.b16 %v770, %v769
          %v799 = vpack.c.b16 %v772, %v771
          %v800 = vpack.c.b16 %v774, %v773
          %v801 = vpack.c.b16 %v776, %v775
          %v802 = vpack.c.b16 %v778, %v777
          %v803 = vpack.c.b16 %v780, %v779
          %v804 = vpack.c.b16 %v782, %v781
          %v805 = vpack.c.b16 %v784, %v783
          %v806 = vpack.c.b16 %v786, %v785
          %v807 = vpack.c.b16 %v788, %v787
          %v808 = vpack.c.b16 %v790, %v789
          %v809 = vpack.c.b16 %v792, %v791
          %v810 = vpack.c.b16 %v794, %v793
          %827 = vmatprep.subr.bf16.mxu0 0
          %828 = vmatpush1.bf16.msra.mxu0 %v795
          %829 = vmatprep.subr.bf16.mxu0 0
          %830 = vmatpush1.bf16.msra.mxu0 %v796
          %831 = vmatprep.subr.bf16.mxu0 0
          %832 = vmatpush1.bf16.msra.mxu0 %v797
          %833 = vmatprep.subr.bf16.mxu0 0
          %834 = vmatpush1.bf16.msra.mxu0 %v798
          %835 = vmatprep.subr.bf16.mxu0 0
          %836 = vmatpush1.bf16.msra.mxu0 %v799
          %837 = vmatprep.subr.bf16.mxu0 0
          %838 = vmatpush1.bf16.msra.mxu0 %v800
          %839 = vmatprep.subr.bf16.mxu0 0
          %840 = vmatpush1.bf16.msra.mxu0 %v801
          %841 = vmatprep.subr.bf16.mxu0 0
          %842 = vmatpush1.bf16.msra.mxu0 %v802
          %843 = vmatprep.subr.bf16.mxu0 0
          %844 = vmatpush1.bf16.msra.mxu0 %v803
          %845 = vmatprep.subr.bf16.mxu0 0
          %846 = vmatpush1.bf16.msra.mxu0 %v804
          %847 = vmatprep.subr.bf16.mxu0 0
          %848 = vmatpush1.bf16.msra.mxu0 %v805
          %849 = vmatprep.subr.bf16.mxu0 0
          %850 = vmatpush1.bf16.msra.mxu0 %v806
          %851 = vmatprep.subr.bf16.mxu0 0
          %852 = vmatpush1.bf16.msra.mxu0 %v807
          %853 = vmatprep.subr.bf16.mxu0 0
          %854 = vmatpush1.bf16.msra.mxu0 %v808
          %855 = vmatprep.subr.bf16.mxu0 0
          %856 = vmatpush1.bf16.msra.mxu0 %v809
          %857 = vmatprep.subr.bf16.mxu0 0
          %858 = vmatpush1.bf16.msra.mxu0 %v810
          %859 = vmatprep.mubr.bf16.mxu0 %v668
          %860 = vmatmul.mubr.bf16.gmra.mrb[0].mxu0 %v667
          %v861 = vpop.f32.mrb[0].mxu0
          %v862 = vadd.f32 0.0, %v861
          %v863 = vpop.f32.mrb[0].mxu0
          %v864 = vpop.f32.mrb[0].mxu0
          %v865 = vadd.f32 0.0, %v864
          %v866 = vpop.f32.mrb[0].mxu0
          %867 = vmatprep.mubr.bf16.mxu0 %v670
          %868 = vmatmul.mubr.bf16.gmra.mrb[0].mxu0 %v669
          %v869 = vpop.f32.mrb[0].mxu0
          %v870 = vadd.f32 0.0, %v869
          %v871 = vpop.f32.mrb[0].mxu0
          %v872 = vpop.f32.mrb[0].mxu0
          %v873 = vadd.f32 0.0, %v872
          %v874 = vpop.f32.mrb[0].mxu0
          %875 = vmatprep.mubr.bf16.mxu0 %v672
          %876 = vmatmul.mubr.bf16.gmra.mrb[0].mxu0 %v671
          %v877 = vpop.f32.mrb[0].mxu0
          %v878 = vadd.f32 0.0, %v877
          %v879 = vpop.f32.mrb[0].mxu0
          %v880 = vpop.f32.mrb[0].mxu0
          %v881 = vadd.f32 0.0, %v880
          %v882 = vpop.f32.mrb[0].mxu0
          %883 = vmatprep.mubr.bf16.mxu0 %v674
          %884 = vmatmul.mubr.bf16.gmra.mrb[0].mxu0 %v673
          %v885 = vpop.f32.mrb[0].mxu0
          %v886 = vadd.f32 0.0, %v885
          %v887 = vpop.f32.mrb[0].mxu0
          %v888 = vpop.f32.mrb[0].mxu0
          %v889 = vadd.f32 0.0, %v888
          %v890 = vpop.f32.mrb[0].mxu0
          %891 = vmatprep.mubr.bf16.mxu0 %v676
          %892 = vmatmul.mubr.bf16.gmra.mrb[0].mxu0 %v675
          %v893 = vpop.f32.mrb[0].mxu0
          %v894 = vadd.f32 0.0, %v893
          %v895 = vpop.f32.mrb[0].mxu0
          %v896 = vpop.f32.mrb[0].mxu0
          %v897 = vadd.f32 0.0, %v896
          %v898 = vpop.f32.mrb[0].mxu0
          %899 = vmatprep.mubr.bf16.mxu0 %v678
          %900 = vmatmul.mubr.bf16.gmra.mrb[0].mxu0 %v677
          %v901 = vpop.f32.mrb[0].mxu0
          %v902 = vadd.f32 0.0, %v901
          %v903 = vpop.f32.mrb[0].mxu0
          %v904 = vpop.f32.mrb[0].mxu0
          %v905 = vadd.f32 0.0, %v904
          %v906 = vpop.f32.mrb[0].mxu0
          %907 = vmatprep.mubr.bf16.mxu0 %v680
          %908 = vmatmul.mubr.bf16.gmra.mrb[0].mxu0 %v679
          %v909 = vpop.f32.mrb[0].mxu0
          %v910 = vadd.f32 0.0, %v909
          %v911 = vpop.f32.mrb[0].mxu0
          %v912 = vpop.f32.mrb[0].mxu0
          %v913 = vadd.f32 0.0, %v912
          %v914 = vpop.f32.mrb[0].mxu0
          %915 = vmatprep.mubr.bf16.mxu0 %v682
          %916 = vmatmul.mubr.bf16.gmra.mrb[0].mxu0 %v681
          %v917 = vpop.f32.mrb[0].mxu0
          %v918 = vadd.f32 0.0, %v917
          %v919 = vpop.f32.mrb[0].mxu0
          %v920 = vpop.f32.mrb[0].mxu0
          %v921 = vadd.f32 0.0, %v920
          %v922 = vpop.f32.mrb[0].mxu0
          %923 = vmatprep.mubr.bf16.mxu0 %v684
          %924 = vmatmul.mubr.bf16.gmra.mrb[0].mxu0 %v683
          %v925 = vpop.f32.mrb[0].mxu0
          %v926 = vadd.f32 0.0, %v925
          %v927 = vpop.f32.mrb[0].mxu0
          %v928 = vpop.f32.mrb[0].mxu0
          %v929 = vadd.f32 0.0, %v928
          %v930 = vpop.f32.mrb[0].mxu0
          %931 = vmatprep.mubr.bf16.mxu0 %v686
          %932 = vmatmul.mubr.bf16.gmra.mrb[0].mxu0 %v685
          %v933 = vpop.f32.mrb[0].mxu0
          %v934 = vadd.f32 0.0, %v933
          %v935 = vpop.f32.mrb[0].mxu0
          %v936 = vpop.f32.mrb[0].mxu0
          %v937 = vadd.f32 0.0, %v936
          %v938 = vpop.f32.mrb[0].mxu0
          %939 = vmatprep.mubr.bf16.mxu0 %v688
          %940 = vmatmul.mubr.bf16.gmra.mrb[0].mxu0 %v687
          %v941 = vpop.f32.mrb[0].mxu0
          %v942 = vadd.f32 0.0, %v941
          %v943 = vpop.f32.mrb[0].mxu0
          %v944 = vpop.f32.mrb[0].mxu0
          %v945 = vadd.f32 0.0, %v944
          %v946 = vpop.f32.mrb[0].mxu0
          %947 = vmatprep.mubr.bf16.mxu0 %v690
          %948 = vmatmul.mubr.bf16.gmra.mrb[0].mxu0 %v689
          %v949 = vpop.f32.mrb[0].mxu0
          %v950 = vadd.f32 0.0, %v949
          %v951 = vpop.f32.mrb[0].mxu0
          %v952 = vpop.f32.mrb[0].mxu0
          %v953 = vadd.f32 0.0, %v952
          %v954 = vpop.f32.mrb[0].mxu0
          %955 = vmatprep.mubr.bf16.mxu0 %v692
          %956 = vmatmul.mubr.bf16.gmra.mrb[0].mxu0 %v691
          %v957 = vpop.f32.mrb[0].mxu0
          %v958 = vadd.f32 0.0, %v957
          %v959 = vpop.f32.mrb[0].mxu0
          %v960 = vpop.f32.mrb[0].mxu0
          %v961 = vadd.f32 0.0, %v960
          %v962 = vpop.f32.mrb[0].mxu0
          %963 = vmatprep.mubr.bf16.mxu0 %v694
          %964 = vmatmul.mubr.bf16.gmra.mrb[0].mxu0 %v693
          %v965 = vpop.f32.mrb[0].mxu0
          %v966 = vadd.f32 0.0, %v965
          %v967 = vpop.f32.mrb[0].mxu0
          %v968 = vpop.f32.mrb[0].mxu0
          %v969 = vadd.f32 0.0, %v968
          %v970 = vpop.f32.mrb[0].mxu0
          %971 = vmatprep.mubr.bf16.mxu0 %v696
          %972 = vmatmul.mubr.bf16.gmra.mrb[0].mxu0 %v695
          %v973 = vpop.f32.mrb[0].mxu0
          %v974 = vadd.f32 0.0, %v973
          %v975 = vpop.f32.mrb[0].mxu0
          %v976 = vpop.f32.mrb[0].mxu0
          %v977 = vadd.f32 0.0, %v976
          %v978 = vpop.f32.mrb[0].mxu0
          %979 = vmatprep.mubr.bf16.mxu0 %v698
          %980 = vmatmul.mubr.bf16.gmra.mrb[0].mxu0 %v697
          %v981 = vpop.f32.mrb[0].mxu0
          %v982 = vadd.f32 0.0, %v981
          %v983 = vpop.f32.mrb[0].mxu0
          %v984 = vpop.f32.mrb[0].mxu0
          %v985 = vadd.f32 0.0, %v984
          %v986 = vpop.f32.mrb[0].mxu0
          %987 = vdwg.mxu0
          %v988 = vld [vmem:[%s2] sm:$0xff]
          %v989 = vld [vmem:[%s2 + $0x8] sm:$0xff]
          %v990 = vld [vmem:[%s2 + $0x10] sm:$0xff]
          %v991 = vld [vmem:[%s2 + $0x18] sm:$0xff]
          %v992 = vld [vmem:[%s2 + $0x20] sm:$0xff]
          %v993 = vld [vmem:[%s2 + $0x28] sm:$0xff]
          %v994 = vld [vmem:[%s2 + $0x30] sm:$0xff]
          %v995 = vld [vmem:[%s2 + $0x38] sm:$0xff]
          %v996 = vld [vmem:[%s2 + $0x40] sm:$0xff]
          %v997 = vld [vmem:[%s2 + $0x48] sm:$0xff]
          %v998 = vld [vmem:[%s2 + $0x50] sm:$0xff]
          %v999 = vld [vmem:[%s2 + $0x58] sm:$0xff]
          %v1000 = vld [vmem:[%s2 + $0x60] sm:$0xff]
          %v1001 = vld [vmem:[%s2 + $0x68] sm:$0xff]
          %v1002 = vld [vmem:[%s2 + $0x70] sm:$0xff]
          %v1003 = vld [vmem:[%s2 + $0x78] sm:$0xff]
          %v1004 = vadd.f32 %v862, %v988
          %v1005 = vadd.f32 %v865, %v989
          %v1006 = vadd.f32 %v870, %v990
          %v1007 = vadd.f32 %v873, %v991
          %v1008 = vadd.f32 %v878, %v992
          %v1009 = vadd.f32 %v881, %v993
          %v1010 = vadd.f32 %v886, %v994
          %v1011 = vadd.f32 %v889, %v995
          %v1012 = vadd.f32 %v894, %v996
          %v1013 = vadd.f32 %v897, %v997
          %v1014 = vadd.f32 %v902, %v998
          %v1015 = vadd.f32 %v905, %v999
          %v1016 = vadd.f32 %v910, %v1000
          %v1017 = vadd.f32 %v913, %v1001
          %v1018 = vadd.f32 %v918, %v1002
          %v1019 = vadd.f32 %v921, %v1003
          %v1020 = vadd.f32 %v926, %v988
          %v1021 = vadd.f32 %v929, %v989
          %v1022 = vadd.f32 %v934, %v990
          %v1023 = vadd.f32 %v937, %v991
          %v1024 = vadd.f32 %v942, %v992
          %v1025 = vadd.f32 %v945, %v993
          %v1026 = vadd.f32 %v950, %v994
          %v1027 = vadd.f32 %v953, %v995
          %v1028 = vadd.f32 %v958, %v996
          %v1029 = vadd.f32 %v961, %v997
          %v1030 = vadd.f32 %v966, %v998
          %v1031 = vadd.f32 %v969, %v999
          %v1032 = vadd.f32 %v974, %v1000
          %v1033 = vadd.f32 %v977, %v1001
          %v1034 = vadd.f32 %v982, %v1002
          %v1035 = vadd.f32 %v985, %v1003
          %1036 = vst [vmem:[#allocation2] sm:$0xff] %v1004
          %1037 = vst [vmem:[#allocation2 + $0x8] sm:$0xff] %v1005
          %1038 = vst [vmem:[#allocation2 + $0x10] sm:$0xff] %v1006
          %1039 = vst [vmem:[#allocation2 + $0x18] sm:$0xff] %v1007
          %1040 = vst [vmem:[#allocation2 + $0x20] sm:$0xff] %v1008
          %1041 = vst [vmem:[#allocation2 + $0x28] sm:$0xff] %v1009
          %1042 = vst [vmem:[#allocation2 + $0x30] sm:$0xff] %v1010
          %1043 = vst [vmem:[#allocation2 + $0x38] sm:$0xff] %v1011
          %1044 = vst [vmem:[#allocation2 + $0x40] sm:$0xff] %v1012
          %1045 = vst [vmem:[#allocation2 + $0x48] sm:$0xff] %v1013
          %1046 = vst [vmem:[#allocation2 + $0x50] sm:$0xff] %v1014
          %1047 = vst [vmem:[#allocation2 + $0x58] sm:$0xff] %v1015
          %1048 = vst [vmem:[#allocation2 + $0x60] sm:$0xff] %v1016
          %1049 = vst [vmem:[#allocation2 + $0x68] sm:$0xff] %v1017
          %1050 = vst [vmem:[#allocation2 + $0x70] sm:$0xff] %v1018
          %1051 = vst [vmem:[#allocation2 + $0x78] sm:$0xff] %v1019
          %1052 = vst [vmem:[#allocation2 + $0x80] sm:$0xff] %v1020
          %1053 = vst [vmem:[#allocation2 + $0x88] sm:$0xff] %v1021
          %1054 = vst [vmem:[#allocation2 + $0x90] sm:$0xff] %v1022
          %1055 = vst [vmem:[#allocation2 + $0x98] sm:$0xff] %v1023
          %1056 = vst [vmem:[#allocation2 + $0xa0] sm:$0xff] %v1024
          %1057 = vst [vmem:[#allocation2 + $0xa8] sm:$0xff] %v1025
          %1058 = vst [vmem:[#allocation2 + $0xb0] sm:$0xff] %v1026
          %1059 = vst [vmem:[#allocation2 + $0xb8] sm:$0xff] %v1027
          %1060 = vst [vmem:[#allocation2 + $0xc0] sm:$0xff] %v1028
          %1061 = vst [vmem:[#allocation2 + $0xc8] sm:$0xff] %v1029
          %1062 = vst [vmem:[#allocation2 + $0xd0] sm:$0xff] %v1030
          %1063 = vst [vmem:[#allocation2 + $0xd8] sm:$0xff] %v1031
          %1064 = vst [vmem:[#allocation2 + $0xe0] sm:$0xff] %v1032
          %1065 = vst [vmem:[#allocation2 + $0xe8] sm:$0xff] %v1033
          %1066 = vst [vmem:[#allocation2 + $0xf0] sm:$0xff] %v1034
          %1067 = vst [vmem:[#allocation2 + $0xf8] sm:$0xff] %v1035
        $region68: #{vit_forward.1} parent=63 // pred_fallthru
          _
        %v1068 = vld [vmem:[#allocation2] sm:$0xff]
        %v1069 = vld [vmem:[#allocation2 + $0x8] sm:$0xff]
        %v1070 = vld [vmem:[#allocation2 + $0x10] sm:$0xff]
        %v1071 = vld [vmem:[#allocation2 + $0x18] sm:$0xff]
        %v1072 = vld [vmem:[#allocation2 + $0x20] sm:$0xff]
        %v1073 = vld [vmem:[#allocation2 + $0x28] sm:$0xff]
        %v1074 = vld [vmem:[#allocation2 + $0x30] sm:$0xff]
        %v1075 = vld [vmem:[#allocation2 + $0x38] sm:$0xff]
        %v1076 = vld [vmem:[#allocation2 + $0x40] sm:$0xff]
        %v1077 = vld [vmem:[#allocation2 + $0x48] sm:$0xff]
        %v1078 = vld [vmem:[#allocation2 + $0x50] sm:$0xff]
        %v1079 = vld [vmem:[#allocation2 + $0x58] sm:$0xff]
        %v1080 = vld [vmem:[#allocation2 + $0x60] sm:$0xff]
        %v1081 = vld [vmem:[#allocation2 + $0x68] sm:$0xff]
        %v1082 = vld [vmem:[#allocation2 + $0x70] sm:$0xff]
        %v1083 = vld [vmem:[#allocation2 + $0x78] sm:$0xff]
        %v1084 = vld [vmem:[#allocation2 + $0x80] sm:$0xff]
        %v1085 = vld [vmem:[#allocation2 + $0x88] sm:$0xff]
        %v1086 = vld [vmem:[#allocation2 + $0x90] sm:$0xff]
        %v1087 = vld [vmem:[#allocation2 + $0x98] sm:$0xff]
        %v1088 = vld [vmem:[#allocation2 + $0xa0] sm:$0xff]
        %v1089 = vld [vmem:[#allocation2 + $0xa8] sm:$0xff]
        %v1090 = vld [vmem:[#allocation2 + $0xb0] sm:$0xff]
        %v1091 = vld [vmem:[#allocation2 + $0xb8] sm:$0xff]
        %v1092 = vld [vmem:[#allocation2 + $0xc0] sm:$0xff]
        %v1093 = vld [vmem:[#allocation2 + $0xc8] sm:$0xff]
        %v1094 = vld [vmem:[#allocation2 + $0xd0] sm:$0xff]
        %v1095 = vld [vmem:[#allocation2 + $0xd8] sm:$0xff]
        %v1096 = vld [vmem:[#allocation2 + $0xe0] sm:$0xff]
        %v1097 = vld [vmem:[#allocation2 + $0xe8] sm:$0xff]
        %v1098 = vld [vmem:[#allocation2 + $0xf0] sm:$0xff]
        %v1099 = vld [vmem:[#allocation2 + $0xf8] sm:$0xff]
        %v1100 = vld [vmem:[%s501] sm:$0xff]
        %v1101 = vld [vmem:[%s501 + $0x8] sm:$0xff]
        %v1102 = vld [vmem:[%s501 + $0x10] sm:$0xff]
        %1103 = vadd.xlane.f32.xlu0 %v1068
        %v1104 = vpop.xlane.xlu0 %1103
        %1105 = vadd.xlane.f32.xlu0 %v1069
        %v1106 = vpop.xlane.xlu0 %1105
        %1107 = vadd.xlane.f32.xlu0 %v1070
        %v1108 = vpop.xlane.xlu0 %1107
        %1109 = vadd.xlane.f32.xlu0 %v1071
        %v1110 = vpop.xlane.xlu0 %1109
        %1111 = vadd.xlane.f32.xlu0 %v1072
        %v1112 = vpop.xlane.xlu0 %1111
        %1113 = vadd.xlane.f32.xlu0 %v1073
        %v1114 = vpop.xlane.xlu0 %1113
        %1115 = vadd.xlane.f32.xlu0 %v1074
        %v1116 = vpop.xlane.xlu0 %1115
        %1117 = vadd.xlane.f32.xlu0 %v1075
        %v1118 = vpop.xlane.xlu0 %1117
        %1119 = vadd.xlane.f32.xlu0 %v1076
        %v1120 = vpop.xlane.xlu0 %1119
        %1121 = vadd.xlane.f32.xlu0 %v1077
        %v1122 = vpop.xlane.xlu0 %1121
        %1123 = vadd.xlane.f32.xlu0 %v1078
        %v1124 = vpop.xlane.xlu0 %1123
        %1125 = vadd.xlane.f32.xlu0 %v1079
        %v1126 = vpop.xlane.xlu0 %1125
        %1127 = vadd.xlane.f32.xlu0 %v1080
        %v1128 = vpop.xlane.xlu0 %1127
        %1129 = vadd.xlane.f32.xlu0 %v1081
        %v1130 = vpop.xlane.xlu0 %1129
        %1131 = vadd.xlane.f32.xlu0 %v1082
        %v1132 = vpop.xlane.xlu0 %1131
        %1133 = vadd.xlane.f32.xlu0 %v1083
        %v1134 = vpop.xlane.xlu0 %1133
        %1135 = vadd.xlane.f32.xlu0 %v1084
        %v1136 = vpop.xlane.xlu0 %1135
        %1137 = vadd.xlane.f32.xlu0 %v1085
        %v1138 = vpop.xlane.xlu0 %1137
        %1139 = vadd.xlane.f32.xlu0 %v1086
        %v1140 = vpop.xlane.xlu0 %1139
        %1141 = vadd.xlane.f32.xlu0 %v1087
        %v1142 = vpop.xlane.xlu0 %1141
        %1143 = vadd.xlane.f32.xlu0 %v1088
        %v1144 = vpop.xlane.xlu0 %1143
        %1145 = vadd.xlane.f32.xlu0 %v1089
        %v1146 = vpop.xlane.xlu0 %1145
        %1147 = vadd.xlane.f32.xlu0 %v1090
        %v1148 = vpop.xlane.xlu0 %1147
        %1149 = vadd.xlane.f32.xlu0 %v1091
        %v1150 = vpop.xlane.xlu0 %1149
        %1151 = vadd.xlane.f32.xlu0 %v1092
        %v1152 = vpop.xlane.xlu0 %1151
        %1153 = vadd.xlane.f32.xlu0 %v1093
        %v1154 = vpop.xlane.xlu0 %1153
        %1155 = vadd.xlane.f32.xlu0 %v1094
        %v1156 = vpop.xlane.xlu0 %1155
        %1157 = vadd.xlane.f32.xlu0 %v1095
        %v1158 = vpop.xlane.xlu0 %1157
        %1159 = vadd.xlane.f32.xlu0 %v1096
        %v1160 = vpop.xlane.xlu0 %1159
        %1161 = vadd.xlane.f32.xlu0 %v1097
        %v1162 = vpop.xlane.xlu0 %1161
        %1163 = vadd.xlane.f32.xlu0 %v1098
        %v1164 = vpop.xlane.xlu0 %1163
        %1165 = vadd.xlane.f32.xlu0 %v1099
        %v1166 = vpop.xlane.xlu0 %1165
        %v1167 = vmul.f32 %v1104, 0.03125
        %v1168 = vmul.f32 %v1106, 0.03125
        %v1169 = vmul.f32 %v1108, 0.03125
        %v1170 = vmul.f32 %v1110, 0.03125
        %v1171 = vmul.f32 %v1112, 0.03125
        %v1172 = vmul.f32 %v1114, 0.03125
        %v1173 = vmul.f32 %v1116, 0.03125
        %v1174 = vmul.f32 %v1118, 0.03125
        %v1175 = vmul.f32 %v1120, 0.03125
        %v1176 = vmul.f32 %v1122, 0.03125
        %v1177 = vmul.f32 %v1124, 0.03125
        %v1178 = vmul.f32 %v1126, 0.03125
        %v1179 = vmul.f32 %v1128, 0.03125
        %v1180 = vmul.f32 %v1130, 0.03125
        %v1181 = vmul.f32 %v1132, 0.03125
        %v1182 = vmul.f32 %v1134, 0.03125
        %v1183 = vmul.f32 %v1136, 0.03125
        %v1184 = vmul.f32 %v1138, 0.03125
        %v1185 = vmul.f32 %v1140, 0.03125
        %v1186 = vmul.f32 %v1142, 0.03125
        %v1187 = vmul.f32 %v1144, 0.03125
        %v1188 = vmul.f32 %v1146, 0.03125
        %v1189 = vmul.f32 %v1148, 0.03125
        %v1190 = vmul.f32 %v1150, 0.03125
        %v1191 = vmul.f32 %v1152, 0.03125
        %v1192 = vmul.f32 %v1154, 0.03125
        %v1193 = vmul.f32 %v1156, 0.03125
        %v1194 = vmul.f32 %v1158, 0.03125
        %v1195 = vmul.f32 %v1160, 0.03125
        %v1196 = vmul.f32 %v1162, 0.03125
        %v1197 = vmul.f32 %v1164, 0.03125
        %v1198 = vmul.f32 %v1166, 0.03125
        %v1199 = vmul.f32 %v1068, %v1068
        %v1200 = vmul.f32 %v1069, %v1069
        %v1201 = vmul.f32 %v1070, %v1070
        %v1202 = vmul.f32 %v1071, %v1071
        %v1203 = vmul.f32 %v1072, %v1072
        %v1204 = vmul.f32 %v1073, %v1073
        %v1205 = vmul.f32 %v1074, %v1074
        %v1206 = vmul.f32 %v1075, %v1075
        %v1207 = vmul.f32 %v1076, %v1076
        %v1208 = vmul.f32 %v1077, %v1077
        %v1209 = vmul.f32 %v1078, %v1078
        %v1210 = vmul.f32 %v1079, %v1079
        %v1211 = vmul.f32 %v1080, %v1080
        %v1212 = vmul.f32 %v1081, %v1081
        %v1213 = vmul.f32 %v1082, %v1082
        %v1214 = vmul.f32 %v1083, %v1083
        %v1215 = vmul.f32 %v1084, %v1084
        %v1216 = vmul.f32 %v1085, %v1085
        %v1217 = vmul.f32 %v1086, %v1086
        %v1218 = vmul.f32 %v1087, %v1087
        %v1219 = vmul.f32 %v1088, %v1088
        %v1220 = vmul.f32 %v1089, %v1089
        %v1221 = vmul.f32 %v1090, %v1090
        %v1222 = vmul.f32 %v1091, %v1091
        %v1223 = vmul.f32 %v1092, %v1092
        %v1224 = vmul.f32 %v1093, %v1093
        %v1225 = vmul.f32 %v1094, %v1094
        %v1226 = vmul.f32 %v1095, %v1095
        %v1227 = vmul.f32 %v1096, %v1096
        %v1228 = vmul.f32 %v1097, %v1097
        %v1229 = vmul.f32 %v1098, %v1098
        %v1230 = vmul.f32 %v1099, %v1099
        %1231 = vadd.xlane.f32.xlu0 %v1199
        %v1232 = vpop.xlane.xlu0 %1231
        %1233 = vadd.xlane.f32.xlu0 %v1200
        %v1234 = vpop.xlane.xlu0 %1233
        %1235 = vadd.xlane.f32.xlu0 %v1201
        %v1236 = vpop.xlane.xlu0 %1235
        %1237 = vadd.xlane.f32.xlu0 %v1202
        %v1238 = vpop.xlane.xlu0 %1237
        %1239 = vadd.xlane.f32.xlu0 %v1203
        %v1240 = vpop.xlane.xlu0 %1239
        %1241 = vadd.xlane.f32.xlu0 %v1204
        %v1242 = vpop.xlane.xlu0 %1241
        %1243 = vadd.xlane.f32.xlu0 %v1205
        %v1244 = vpop.xlane.xlu0 %1243
        %1245 = vadd.xlane.f32.xlu0 %v1206
        %v1246 = vpop.xlane.xlu0 %1245
        %1247 = vadd.xlane.f32.xlu0 %v1207
        %v1248 = vpop.xlane.xlu0 %1247
        %1249 = vadd.xlane.f32.xlu0 %v1208
        %v1250 = vpop.xlane.xlu0 %1249
        %1251 = vadd.xlane.f32.xlu0 %v1209
        %v1252 = vpop.xlane.xlu0 %1251
        %1253 = vadd.xlane.f32.xlu0 %v1210
        %v1254 = vpop.xlane.xlu0 %1253
        %1255 = vadd.xlane.f32.xlu0 %v1211
        %v1256 = vpop.xlane.xlu0 %1255
        %1257 = vadd.xlane.f32.xlu0 %v1212
        %v1258 = vpop.xlane.xlu0 %1257
        %1259 = vadd.xlane.f32.xlu0 %v1213
        %v1260 = vpop.xlane.xlu0 %1259
        %1261 = vadd.xlane.f32.xlu0 %v1214
        %v1262 = vpop.xlane.xlu0 %1261
        %1263 = vadd.xlane.f32.xlu0 %v1215
        %v1264 = vpop.xlane.xlu0 %1263
        %1265 = vadd.xlane.f32.xlu0 %v1216
        %v1266 = vpop.xlane.xlu0 %1265
        %1267 = vadd.xlane.f32.xlu0 %v1217
        %v1268 = vpop.xlane.xlu0 %1267
        %1269 = vadd.xlane.f32.xlu0 %v1218
        %v1270 = vpop.xlane.xlu0 %1269
        %1271 = vadd.xlane.f32.xlu0 %v1219
        %v1272 = vpop.xlane.xlu0 %1271
        %1273 = vadd.xlane.f32.xlu0 %v1220
        %v1274 = vpop.xlane.xlu0 %1273
        %1275 = vadd.xlane.f32.xlu0 %v1221
        %v1276 = vpop.xlane.xlu0 %1275
        %1277 = vadd.xlane.f32.xlu0 %v1222
        %v1278 = vpop.xlane.xlu0 %1277
        %1279 = vadd.xlane.f32.xlu0 %v1223
        %v1280 = vpop.xlane.xlu0 %1279
        %1281 = vadd.xlane.f32.xlu0 %v1224
        %v1282 = vpop.xlane.xlu0 %1281
        %1283 = vadd.xlane.f32.xlu0 %v1225
        %v1284 = vpop.xlane.xlu0 %1283
        %1285 = vadd.xlane.f32.xlu0 %v1226
        %v1286 = vpop.xlane.xlu0 %1285
        %1287 = vadd.xlane.f32.xlu0 %v1227
        %v1288 = vpop.xlane.xlu0 %1287
        %1289 = vadd.xlane.f32.xlu0 %v1228
        %v1290 = vpop.xlane.xlu0 %1289
        %1291 = vadd.xlane.f32.xlu0 %v1229
        %v1292 = vpop.xlane.xlu0 %1291
        %1293 = vadd.xlane.f32.xlu0 %v1230
        %v1294 = vpop.xlane.xlu0 %1293
        %v1295 = vmul.f32 %v1232, 0.03125
        %v1296 = vmul.f32 %v1234, 0.03125
        %v1297 = vmul.f32 %v1236, 0.03125
        %v1298 = vmul.f32 %v1238, 0.03125
        %v1299 = vmul.f32 %v1240, 0.03125
        %v1300 = vmul.f32 %v1242, 0.03125
        %v1301 = vmul.f32 %v1244, 0.03125
        %v1302 = vmul.f32 %v1246, 0.03125
        %v1303 = vmul.f32 %v1248, 0.03125
        %v1304 = vmul.f32 %v1250, 0.03125
        %v1305 = vmul.f32 %v1252, 0.03125
        %v1306 = vmul.f32 %v1254, 0.03125
        %v1307 = vmul.f32 %v1256, 0.03125
        %v1308 = vmul.f32 %v1258, 0.03125
        %v1309 = vmul.f32 %v1260, 0.03125
        %v1310 = vmul.f32 %v1262, 0.03125
        %v1311 = vmul.f32 %v1264, 0.03125
        %v1312 = vmul.f32 %v1266, 0.03125
        %v1313 = vmul.f32 %v1268, 0.03125
        %v1314 = vmul.f32 %v1270, 0.03125
        %v1315 = vmul.f32 %v1272, 0.03125
        %v1316 = vmul.f32 %v1274, 0.03125
        %v1317 = vmul.f32 %v1276, 0.03125
        %v1318 = vmul.f32 %v1278, 0.03125
        %v1319 = vmul.f32 %v1280, 0.03125
        %v1320 = vmul.f32 %v1282, 0.03125
        %v1321 = vmul.f32 %v1284, 0.03125
        %v1322 = vmul.f32 %v1286, 0.03125
        %v1323 = vmul.f32 %v1288, 0.03125
        %v1324 = vmul.f32 %v1290, 0.03125
        %v1325 = vmul.f32 %v1292, 0.03125
        %v1326 = vmul.f32 %v1294, 0.03125
        %v1327 = vmul.f32 %v1167, %v1167
        %v1328 = vmul.f32 %v1168, %v1168
        %v1329 = vmul.f32 %v1169, %v1169
        %v1330 = vmul.f32 %v1170, %v1170
        %v1331 = vmul.f32 %v1171, %v1171
        %v1332 = vmul.f32 %v1172, %v1172
        %v1333 = vmul.f32 %v1173, %v1173
        %v1334 = vmul.f32 %v1174, %v1174
        %v1335 = vmul.f32 %v1175, %v1175
        %v1336 = vmul.f32 %v1176, %v1176
        %v1337 = vmul.f32 %v1177, %v1177
        %v1338 = vmul.f32 %v1178, %v1178
        %v1339 = vmul.f32 %v1179, %v1179
        %v1340 = vmul.f32 %v1180, %v1180
        %v1341 = vmul.f32 %v1181, %v1181
        %v1342 = vmul.f32 %v1182, %v1182
        %v1343 = vmul.f32 %v1183, %v1183
        %v1344 = vmul.f32 %v1184, %v1184
        %v1345 = vmul.f32 %v1185, %v1185
        %v1346 = vmul.f32 %v1186, %v1186
        %v1347 = vmul.f32 %v1187, %v1187
        %v1348 = vmul.f32 %v1188, %v1188
        %v1349 = vmul.f32 %v1189, %v1189
        %v1350 = vmul.f32 %v1190, %v1190
        %v1351 = vmul.f32 %v1191, %v1191
        %v1352 = vmul.f32 %v1192, %v1192
        %v1353 = vmul.f32 %v1193, %v1193
        %v1354 = vmul.f32 %v1194, %v1194
        %v1355 = vmul.f32 %v1195, %v1195
        %v1356 = vmul.f32 %v1196, %v1196
        %v1357 = vmul.f32 %v1197, %v1197
        %v1358 = vmul.f32 %v1198, %v1198
        %v1359 = vsub.f32 %v1295, %v1327
        %v1360 = vsub.f32 %v1296, %v1328
        %v1361 = vsub.f32 %v1297, %v1329
        %v1362 = vsub.f32 %v1298, %v1330
        %v1363 = vsub.f32 %v1299, %v1331
        %v1364 = vsub.f32 %v1300, %v1332
        %v1365 = vsub.f32 %v1301, %v1333
        %v1366 = vsub.f32 %v1302, %v1334
        %v1367 = vsub.f32 %v1303, %v1335
        %v1368 = vsub.f32 %v1304, %v1336
        %v1369 = vsub.f32 %v1305, %v1337
        %v1370 = vsub.f32 %v1306, %v1338
        %v1371 = vsub.f32 %v1307, %v1339
        %v1372 = vsub.f32 %v1308, %v1340
        %v1373 = vsub.f32 %v1309, %v1341
        %v1374 = vsub.f32 %v1310, %v1342
        %v1375 = vsub.f32 %v1311, %v1343
        %v1376 = vsub.f32 %v1312, %v1344
        %v1377 = vsub.f32 %v1313, %v1345
        %v1378 = vsub.f32 %v1314, %v1346
        %v1379 = vsub.f32 %v1315, %v1347
        %v1380 = vsub.f32 %v1316, %v1348
        %v1381 = vsub.f32 %v1317, %v1349
        %v1382 = vsub.f32 %v1318, %v1350
        %v1383 = vsub.f32 %v1319, %v1351
        %v1384 = vsub.f32 %v1320, %v1352
        %v1385 = vsub.f32 %v1321, %v1353
        %v1386 = vsub.f32 %v1322, %v1354
        %v1387 = vsub.f32 %v1323, %v1355
        %v1388 = vsub.f32 %v1324, %v1356
        %v1389 = vsub.f32 %v1325, %v1357
        %v1390 = vsub.f32 %v1326, %v1358
        %v1391 = vmax.f32 %v1359, 0.0
        %v1392 = vmax.f32 %v1360, 0.0
        %v1393 = vmax.f32 %v1361, 0.0
        %v1394 = vmax.f32 %v1362, 0.0
        %v1395 = vmax.f32 %v1363, 0.0
        %v1396 = vmax.f32 %v1364, 0.0
        %v1397 = vmax.f32 %v1365, 0.0
        %v1398 = vmax.f32 %v1366, 0.0
        %v1399 = vmax.f32 %v1367, 0.0
        %v1400 = vmax.f32 %v1368, 0.0
        %v1401 = vmax.f32 %v1369, 0.0
        %v1402 = vmax.f32 %v1370, 0.0
        %v1403 = vmax.f32 %v1371, 0.0
        %v1404 = vmax.f32 %v1372, 0.0
        %v1405 = vmax.f32 %v1373, 0.0
        %v1406 = vmax.f32 %v1374, 0.0
        %v1407 = vmax.f32 %v1375, 0.0
        %v1408 = vmax.f32 %v1376, 0.0
        %v1409 = vmax.f32 %v1377, 0.0
        %v1410 = vmax.f32 %v1378, 0.0
        %v1411 = vmax.f32 %v1379, 0.0
        %v1412 = vmax.f32 %v1380, 0.0
        %v1413 = vmax.f32 %v1381, 0.0
        %v1414 = vmax.f32 %v1382, 0.0
        %v1415 = vmax.f32 %v1383, 0.0
        %v1416 = vmax.f32 %v1384, 0.0
        %v1417 = vmax.f32 %v1385, 0.0
        %v1418 = vmax.f32 %v1386, 0.0
        %v1419 = vmax.f32 %v1387, 0.0
        %v1420 = vmax.f32 %v1388, 0.0
        %v1421 = vmax.f32 %v1389, 0.0
        %v1422 = vmax.f32 %v1390, 0.0
        %v1423 = vsub.f32 %v1068, %v1167
        %v1424 = vsub.f32 %v1069, %v1168
        %v1425 = vsub.f32 %v1070, %v1169
        %v1426 = vsub.f32 %v1071, %v1170
        %v1427 = vsub.f32 %v1072, %v1171
        %v1428 = vsub.f32 %v1073, %v1172
        %v1429 = vsub.f32 %v1074, %v1173
        %v1430 = vsub.f32 %v1075, %v1174
        %v1431 = vsub.f32 %v1076, %v1175
        %v1432 = vsub.f32 %v1077, %v1176
        %v1433 = vsub.f32 %v1078, %v1177
        %v1434 = vsub.f32 %v1079, %v1178
        %v1435 = vsub.f32 %v1080, %v1179
        %v1436 = vsub.f32 %v1081, %v1180
        %v1437 = vsub.f32 %v1082, %v1181
        %v1438 = vsub.f32 %v1083, %v1182
        %v1439 = vsub.f32 %v1084, %v1183
        %v1440 = vsub.f32 %v1085, %v1184
        %v1441 = vsub.f32 %v1086, %v1185
        %v1442 = vsub.f32 %v1087, %v1186
        %v1443 = vsub.f32 %v1088, %v1187
        %v1444 = vsub.f32 %v1089, %v1188
        %v1445 = vsub.f32 %v1090, %v1189
        %v1446 = vsub.f32 %v1091, %v1190
        %v1447 = vsub.f32 %v1092, %v1191
        %v1448 = vsub.f32 %v1093, %v1192
        %v1449 = vsub.f32 %v1094, %v1193
        %v1450 = vsub.f32 %v1095, %v1194
        %v1451 = vsub.f32 %v1096, %v1195
        %v1452 = vsub.f32 %v1097, %v1196
        %v1453 = vsub.f32 %v1098, %v1197
        %v1454 = vsub.f32 %v1099, %v1198
        %v1455 = vadd.f32 %v1391, 1e-05
        %v1456 = vadd.f32 %v1392, 1e-05
        %v1457 = vadd.f32 %v1393, 1e-05
        %v1458 = vadd.f32 %v1394, 1e-05
        %v1459 = vadd.f32 %v1395, 1e-05
        %v1460 = vadd.f32 %v1396, 1e-05
        %v1461 = vadd.f32 %v1397, 1e-05
        %v1462 = vadd.f32 %v1398, 1e-05
        %v1463 = vadd.f32 %v1399, 1e-05
        %v1464 = vadd.f32 %v1400, 1e-05
        %v1465 = vadd.f32 %v1401, 1e-05
        %v1466 = vadd.f32 %v1402, 1e-05
        %v1467 = vadd.f32 %v1403, 1e-05
        %v1468 = vadd.f32 %v1404, 1e-05
        %v1469 = vadd.f32 %v1405, 1e-05
        %v1470 = vadd.f32 %v1406, 1e-05
        %v1471 = vadd.f32 %v1407, 1e-05
        %v1472 = vadd.f32 %v1408, 1e-05
        %v1473 = vadd.f32 %v1409, 1e-05
        %v1474 = vadd.f32 %v1410, 1e-05
        %v1475 = vadd.f32 %v1411, 1e-05
        %v1476 = vadd.f32 %v1412, 1e-05
        %v1477 = vadd.f32 %v1413, 1e-05
        %v1478 = vadd.f32 %v1414, 1e-05
        %v1479 = vadd.f32 %v1415, 1e-05
        %v1480 = vadd.f32 %v1416, 1e-05
        %v1481 = vadd.f32 %v1417, 1e-05
        %v1482 = vadd.f32 %v1418, 1e-05
        %v1483 = vadd.f32 %v1419, 1e-05
        %v1484 = vadd.f32 %v1420, 1e-05
        %v1485 = vadd.f32 %v1421, 1e-05
        %v1486 = vadd.f32 %v1422, 1e-05
        %v1487 = vrsqrt.pop %v1455
        %v1488 = vrsqrt.pop %v1456
        %v1489 = vrsqrt.pop %v1457
        %v1490 = vrsqrt.pop %v1458
        %v1491 = vrsqrt.pop %v1459
        %v1492 = vrsqrt.pop %v1460
        %v1493 = vrsqrt.pop %v1461
        %v1494 = vrsqrt.pop %v1462
        %v1495 = vrsqrt.pop %v1463
        %v1496 = vrsqrt.pop %v1464
        %v1497 = vrsqrt.pop %v1465
        %v1498 = vrsqrt.pop %v1466
        %v1499 = vrsqrt.pop %v1467
        %v1500 = vrsqrt.pop %v1468
        %v1501 = vrsqrt.pop %v1469
        %v1502 = vrsqrt.pop %v1470
        %v1503 = vrsqrt.pop %v1471
        %v1504 = vrsqrt.pop %v1472
        %v1505 = vrsqrt.pop %v1473
        %v1506 = vrsqrt.pop %v1474
        %v1507 = vrsqrt.pop %v1475
        %v1508 = vrsqrt.pop %v1476
        %v1509 = vrsqrt.pop %v1477
        %v1510 = vrsqrt.pop %v1478
        %v1511 = vrsqrt.pop %v1479
        %v1512 = vrsqrt.pop %v1480
        %v1513 = vrsqrt.pop %v1481
        %v1514 = vrsqrt.pop %v1482
        %v1515 = vrsqrt.pop %v1483
        %v1516 = vrsqrt.pop %v1484
        %v1517 = vrsqrt.pop %v1485
        %v1518 = vrsqrt.pop %v1486
        %v1519 = vmul.f32 %v1423, %v1487
        %v1520 = vmul.f32 %v1424, %v1488
        %v1521 = vmul.f32 %v1425, %v1489
        %v1522 = vmul.f32 %v1426, %v1490
        %v1523 = vmul.f32 %v1427, %v1491
        %v1524 = vmul.f32 %v1428, %v1492
        %v1525 = vmul.f32 %v1429, %v1493
        %v1526 = vmul.f32 %v1430, %v1494
        %v1527 = vmul.f32 %v1431, %v1495
        %v1528 = vmul.f32 %v1432, %v1496
        %v1529 = vmul.f32 %v1433, %v1497
        %v1530 = vmul.f32 %v1434, %v1498
        %v1531 = vmul.f32 %v1435, %v1499
        %v1532 = vmul.f32 %v1436, %v1500
        %v1533 = vmul.f32 %v1437, %v1501
        %v1534 = vmul.f32 %v1438, %v1502
        %v1535 = vmul.f32 %v1439, %v1503
        %v1536 = vmul.f32 %v1440, %v1504
        %v1537 = vmul.f32 %v1441, %v1505
        %v1538 = vmul.f32 %v1442, %v1506
        %v1539 = vmul.f32 %v1443, %v1507
        %v1540 = vmul.f32 %v1444, %v1508
        %v1541 = vmul.f32 %v1445, %v1509
        %v1542 = vmul.f32 %v1446, %v1510
        %v1543 = vmul.f32 %v1447, %v1511
        %v1544 = vmul.f32 %v1448, %v1512
        %v1545 = vmul.f32 %v1449, %v1513
        %v1546 = vmul.f32 %v1450, %v1514
        %v1547 = vmul.f32 %v1451, %v1515
        %v1548 = vmul.f32 %v1452, %v1516
        %v1549 = vmul.f32 %v1453, %v1517
        %v1550 = vmul.f32 %v1454, %v1518
        %v1551 = vlaneseq
        %v1552 = vshrl.u32 %v1551, 7
        %v1553 = vsub.s32 0, %v1552
        %v1554 = vrot.slane %v1100, %v1553
        %v1555 = vmul.f32 %v1519, %v1554
        %v1556 = vmul.f32 %v1520, %v1554
        %v1557 = vmul.f32 %v1521, %v1554
        %v1558 = vmul.f32 %v1522, %v1554
        %v1559 = vmul.f32 %v1523, %v1554
        %v1560 = vmul.f32 %v1524, %v1554
        %v1561 = vmul.f32 %v1525, %v1554
        %v1562 = vmul.f32 %v1526, %v1554
        %v1563 = vmul.f32 %v1527, %v1554
        %v1564 = vmul.f32 %v1528, %v1554
        %v1565 = vmul.f32 %v1529, %v1554
        %v1566 = vmul.f32 %v1530, %v1554
        %v1567 = vmul.f32 %v1531, %v1554
        %v1568 = vmul.f32 %v1532, %v1554
        %v1569 = vmul.f32 %v1533, %v1554
        %v1570 = vmul.f32 %v1534, %v1554
        %v1571 = vmul.f32 %v1535, %v1554
        %v1572 = vmul.f32 %v1536, %v1554
        %v1573 = vmul.f32 %v1537, %v1554
        %v1574 = vmul.f32 %v1538, %v1554
        %v1575 = vmul.f32 %v1539, %v1554
        %v1576 = vmul.f32 %v1540, %v1554
        %v1577 = vmul.f32 %v1541, %v1554
        %v1578 = vmul.f32 %v1542, %v1554
        %v1579 = vmul.f32 %v1543, %v1554
        %v1580 = vmul.f32 %v1544, %v1554
        %v1581 = vmul.f32 %v1545, %v1554
        %v1582 = vmul.f32 %v1546, %v1554
        %v1583 = vmul.f32 %v1547, %v1554
        %v1584 = vmul.f32 %v1548, %v1554
        %v1585 = vmul.f32 %v1549, %v1554
        %v1586 = vmul.f32 %v1550, %v1554
        %v1587 = vlaneseq
        %v1588 = vshrl.u32 %v1587, 7
        %v1589 = vsub.s32 1, %v1588
        %v1590 = vrot.slane %v1100, %v1589
        %v1591 = vadd.f32 %v1555, %v1590
        %v1592 = vadd.f32 %v1556, %v1590
        %v1593 = vadd.f32 %v1557, %v1590
        %v1594 = vadd.f32 %v1558, %v1590
        %v1595 = vadd.f32 %v1559, %v1590
        %v1596 = vadd.f32 %v1560, %v1590
        %v1597 = vadd.f32 %v1561, %v1590
        %v1598 = vadd.f32 %v1562, %v1590
        %v1599 = vadd.f32 %v1563, %v1590
        %v1600 = vadd.f32 %v1564, %v1590
        %v1601 = vadd.f32 %v1565, %v1590
        %v1602 = vadd.f32 %v1566, %v1590
        %v1603 = vadd.f32 %v1567, %v1590
        %v1604 = vadd.f32 %v1568, %v1590
        %v1605 = vadd.f32 %v1569, %v1590
        %v1606 = vadd.f32 %v1570, %v1590
        %v1607 = vadd.f32 %v1571, %v1590
        %v1608 = vadd.f32 %v1572, %v1590
        %v1609 = vadd.f32 %v1573, %v1590
        %v1610 = vadd.f32 %v1574, %v1590
        %v1611 = vadd.f32 %v1575, %v1590
        %v1612 = vadd.f32 %v1576, %v1590
        %v1613 = vadd.f32 %v1577, %v1590
        %v1614 = vadd.f32 %v1578, %v1590
        %v1615 = vadd.f32 %v1579, %v1590
        %v1616 = vadd.f32 %v1580, %v1590
        %v1617 = vadd.f32 %v1581, %v1590
        %v1618 = vadd.f32 %v1582, %v1590
        %v1619 = vadd.f32 %v1583, %v1590
        %v1620 = vadd.f32 %v1584, %v1590
        %v1621 = vadd.f32 %v1585, %v1590
        %v1622 = vadd.f32 %v1586, %v1590
        %v1623 = vpack.c.bf16 %v1592, %v1591
        %v1624 = vpack.c.bf16 %v1594, %v1593
        %v1625 = vpack.c.bf16 %v1596, %v1595
        %v1626 = vpack.c.bf16 %v1598, %v1597
        %v1627 = vpack.c.bf16 %v1600, %v1599
        %v1628 = vpack.c.bf16 %v1602, %v1601
        %v1629 = vpack.c.bf16 %v1604, %v1603
        %v1630 = vpack.c.bf16 %v1606, %v1605
        %v1631 = vpack.c.bf16 %v1608, %v1607
        %v1632 = vpack.c.bf16 %v1610, %v1609
        %v1633 = vpack.c.bf16 %v1612, %v1611
        %v1634 = vpack.c.bf16 %v1614, %v1613
        %v1635 = vpack.c.bf16 %v1616, %v1615
        %v1636 = vpack.c.bf16 %v1618, %v1617
        %v1637 = vpack.c.bf16 %v1620, %v1619
        %v1638 = vpack.c.bf16 %v1622, %v1621
        %v1639 = vld [vmem:[%s481] sm:$0xff]
        %v1640 = vld [vmem:[%s481 + $0x8] sm:$0xf]
        %v1641 = vld [vmem:[%s481 + $0xc] sm:$0xff]
        %v1642 = vld [vmem:[%s481 + $0x14] sm:$0xf]
        %v1643 = vld [vmem:[%s481 + $0x18] sm:$0xff]
        %v1644 = vld [vmem:[%s481 + $0x20] sm:$0xf]
        %v1645 = vld [vmem:[%s481 + $0x24] sm:$0xff]
        %v1646 = vld [vmem:[%s481 + $0x2c] sm:$0xf]
        %v1647 = vld [vmem:[%s481 + $0x30] sm:$0xff]
        %v1648 = vld [vmem:[%s481 + $0x38] sm:$0xf]
        %v1649 = vld [vmem:[%s481 + $0x3c] sm:$0xff]
        %v1650 = vld [vmem:[%s481 + $0x44] sm:$0xf]
        %v1651 = vld [vmem:[%s481 + $0x48] sm:$0xff]
        %v1652 = vld [vmem:[%s481 + $0x50] sm:$0xf]
        %v1653 = vld [vmem:[%s481 + $0x54] sm:$0xff]
        %v1654 = vld [vmem:[%s481 + $0x5c] sm:$0xf]
        %v1655 = vld [vmem:[%s481 + $0x60] sm:$0xff]
        %v1656 = vld [vmem:[%s481 + $0x68] sm:$0xf]
        %v1657 = vld [vmem:[%s481 + $0x6c] sm:$0xff]
        %v1658 = vld [vmem:[%s481 + $0x74] sm:$0xf]
        %v1659 = vld [vmem:[%s481 + $0x78] sm:$0xff]
        %v1660 = vld [vmem:[%s481 + $0x80] sm:$0xf]
        %v1661 = vld [vmem:[%s481 + $0x84] sm:$0xff]
        %v1662 = vld [vmem:[%s481 + $0x8c] sm:$0xf]
        %v1663 = vld [vmem:[%s481 + $0x90] sm:$0xff]
        %v1664 = vld [vmem:[%s481 + $0x98] sm:$0xf]
        %v1665 = vld [vmem:[%s481 + $0x9c] sm:$0xff]
        %v1666 = vld [vmem:[%s481 + $0xa4] sm:$0xf]
        %v1667 = vld [vmem:[%s481 + $0xa8] sm:$0xff]
        %v1668 = vld [vmem:[%s481 + $0xb0] sm:$0xf]
        %v1669 = vld [vmem:[%s481 + $0xb4] sm:$0xff]
        %v1670 = vld [vmem:[%s481 + $0xbc] sm:$0xf]
        %v1671 = vlaneseq
        %v1672 = vshrl.u32 %v1671, 7
        %v1673 = vsub.s32 6, %v1672
        %v1674 = vrot.slane %v1100, %v1673
        %v1675 = vlaneseq
        %v1676 = vshrl.u32 %v1675, 7
        %v1677 = vsub.s32 6, %v1676
        %v1678 = vrot.slane %v1101, %v1677
        %v1679 = vlaneseq
        %v1680 = vshrl.u32 %v1679, 7
        %v1681 = vsub.s32 6, %v1680
        %v1682 = vrot.slane %v1102, %v1681
        %v1715 = vunpack.c.l.b16 %v1639
        %v1716 = vunpack.c.h.b16 %v1639
        %v1717 = vunpack.c.l.b16 %v1640
        %v1718 = vunpack.c.l.b16 %v1641
        %v1719 = vunpack.c.h.b16 %v1641
        %v1720 = vunpack.c.l.b16 %v1642
        %v1721 = vunpack.c.l.b16 %v1643
        %v1722 = vunpack.c.h.b16 %v1643
        %v1723 = vunpack.c.l.b16 %v1644
        %v1724 = vunpack.c.l.b16 %v1645
        %v1725 = vunpack.c.h.b16 %v1645
        %v1726 = vunpack.c.l.b16 %v1646
        %v1727 = vunpack.c.l.b16 %v1647
        %v1728 = vunpack.c.h.b16 %v1647
        %v1729 = vunpack.c.l.b16 %v1648
        %v1730 = vunpack.c.l.b16 %v1649
        %v1731 = vunpack.c.h.b16 %v1649
        %v1732 = vunpack.c.l.b16 %v1650
        %v1733 = vunpack.c.l.b16 %v1651
        %v1734 = vunpack.c.h.b16 %v1651
        %v1735 = vunpack.c.l.b16 %v1652
        %v1736 = vunpack.c.l.b16 %v1653
        %v1737 = vunpack.c.h.b16 %v1653
        %v1738 = vunpack.c.l.b16 %v1654
        %v1739 = vunpack.c.l.b16 %v1655
        %v1740 = vunpack.c.h.b16 %v1655
        %v1741 = vunpack.c.l.b16 %v1656
        %v1742 = vunpack.c.l.b16 %v1657
        %v1743 = vunpack.c.h.b16 %v1657
        %v1744 = vunpack.c.l.b16 %v1658
        %v1745 = vunpack.c.l.b16 %v1659
        %v1746 = vunpack.c.h.b16 %v1659
        %v1747 = vunpack.c.l.b16 %v1660
        %v1748 = vunpack.c.l.b16 %v1661
        %v1749 = vunpack.c.h.b16 %v1661
        %v1750 = vunpack.c.l.b16 %v1662
        %v1751 = vunpack.c.l.b16 %v1663
        %v1752 = vunpack.c.h.b16 %v1663
        %v1753 = vunpack.c.l.b16 %v1664
        %v1754 = vunpack.c.l.b16 %v1665
        %v1755 = vunpack.c.h.b16 %v1665
        %v1756 = vunpack.c.l.b16 %v1666
        %v1757 = vunpack.c.l.b16 %v1667
        %v1758 = vunpack.c.h.b16 %v1667
        %v1759 = vunpack.c.l.b16 %v1668
        %v1760 = vunpack.c.l.b16 %v1669
        %v1761 = vunpack.c.h.b16 %v1669
        %v1762 = vunpack.c.l.b16 %v1670
        %v1763 = vpack.c.b16 %v1718, %v1715
        %v1764 = vpack.c.b16 %v1719, %v1716
        %v1765 = vpack.c.b16 %v1720, %v1717
        %v1766 = vpack.c.b16 %v1724, %v1721
        %v1767 = vpack.c.b16 %v1725, %v1722
        %v1768 = vpack.c.b16 %v1726, %v1723
        %v1769 = vpack.c.b16 %v1730, %v1727
        %v1770 = vpack.c.b16 %v1731, %v1728
        %v1771 = vpack.c.b16 %v1732, %v1729
        %v1772 = vpack.c.b16 %v1736, %v1733
        %v1773 = vpack.c.b16 %v1737, %v1734
        %v1774 = vpack.c.b16 %v1738, %v1735
        %v1775 = vpack.c.b16 %v1742, %v1739
        %v1776 = vpack.c.b16 %v1743, %v1740
        %v1777 = vpack.c.b16 %v1744, %v1741
        %v1778 = vpack.c.b16 %v1748, %v1745
        %v1779 = vpack.c.b16 %v1749, %v1746
        %v1780 = vpack.c.b16 %v1750, %v1747
        %v1781 = vpack.c.b16 %v1754, %v1751
        %v1782 = vpack.c.b16 %v1755, %v1752
        %v1783 = vpack.c.b16 %v1756, %v1753
        %v1784 = vpack.c.b16 %v1760, %v1757
        %v1785 = vpack.c.b16 %v1761, %v1758
        %v1786 = vpack.c.b16 %v1762, %v1759
        %1811 = vmatprep.subr.bf16.mxu0 %v1764
        %1812 = vmatpush1.bf16.msra.mxu0 %v1763
        %1813 = vmatprep.subr.bf16.mxu0 %v1767
        %1814 = vmatpush1.bf16.msra.mxu0 %v1766
        %1815 = vmatprep.subr.bf16.mxu0 %v1770
        %1816 = vmatpush1.bf16.msra.mxu0 %v1769
        %1817 = vmatprep.subr.bf16.mxu0 %v1773
        %1818 = vmatpush1.bf16.msra.mxu0 %v1772
        %1819 = vmatprep.subr.bf16.mxu0 %v1776
        %1820 = vmatpush1.bf16.msra.mxu0 %v1775
        %1821 = vmatprep.subr.bf16.mxu0 %v1779
        %1822 = vmatpush1.bf16.msra.mxu0 %v1778
        %1823 = vmatprep.subr.bf16.mxu0 %v1782
        %1824 = vmatpush1.bf16.msra.mxu0 %v1781
        %1825 = vmatprep.subr.bf16.mxu0 %v1785
        %1826 = vmatpush1.bf16.msra.mxu0 %v1784
        %1827 = vmatprep.subr.bf16.mxu0 0
        %1828 = vmatpush1.bf16.msra.mxu0 0
        %1829 = vmatprep.subr.bf16.mxu0 0
        %1830 = vmatpush1.bf16.msra.mxu0 0
        %1831 = vmatprep.subr.bf16.mxu0 0
        %1832 = vmatpush1.bf16.msra.mxu0 0
        %1833 = vmatprep.subr.bf16.mxu0 0
        %1834 = vmatpush1.bf16.msra.mxu0 0
        %1835 = vmatprep.subr.bf16.mxu0 0
        %1836 = vmatpush1.bf16.msra.mxu0 0
        %1837 = vmatprep.subr.bf16.mxu0 0
        %1838 = vmatpush1.bf16.msra.mxu0 0
        %1839 = vmatprep.subr.bf16.mxu0 0
        %1840 = vmatpush1.bf16.msra.mxu0 0
        %1841 = vmatprep.subr.bf16.mxu0 0
        %1842 = vmatpush1.bf16.msra.mxu0 0
        %1843 = vmatprep.mubr.bf16.mxu0 0
        %1844 = vmatmul.mubr.bf16.gmra.mrb[0].mxu0 %v1623
        %v1845 = vpop.f32.mrb[0].mxu0
        %v1846 = vadd.f32 %v1674, %v1845
        %v1847 = vpop.f32.mrb[0].mxu0
        %v1848 = vadd.f32 %v1678, %v1847
        %v1849 = vpop.f32.mrb[0].mxu0
        %v1850 = vadd.f32 %v1674, %v1849
        %v1851 = vpop.f32.mrb[0].mxu0
        %v1852 = vadd.f32 %v1678, %v1851
        %1853 = vmatprep.mubr.bf16.mxu0 0
        %1854 = vmatmul.mubr.bf16.gmra.mrb[0].mxu0 %v1624
        %v1855 = vpop.f32.mrb[0].mxu0
        %v1856 = vadd.f32 %v1674, %v1855
        %v1857 = vpop.f32.mrb[0].mxu0
        %v1858 = vadd.f32 %v1678, %v1857
        %v1859 = vpop.f32.mrb[0].mxu0
        %v1860 = vadd.f32 %v1674, %v1859
        %v1861 = vpop.f32.mrb[0].mxu0
        %v1862 = vadd.f32 %v1678, %v1861
        %1863 = vmatprep.mubr.bf16.mxu0 0
        %1864 = vmatmul.mubr.bf16.gmra.mrb[0].mxu0 %v1625
        %v1865 = vpop.f32.mrb[0].mxu0
        %v1866 = vadd.f32 %v1674, %v1865
        %v1867 = vpop.f32.mrb[0].mxu0
        %v1868 = vadd.f32 %v1678, %v1867
        %v1869 = vpop.f32.mrb[0].mxu0
        %v1870 = vadd.f32 %v1674, %v1869
        %v1871 = vpop.f32.mrb[0].mxu0
        %v1872 = vadd.f32 %v1678, %v1871
        %1873 = vmatprep.mubr.bf16.mxu0 0
        %1874 = vmatmul.mubr.bf16.gmra.mrb[0].mxu0 %v1626
        %v1875 = vpop.f32.mrb[0].mxu0
        %v1876 = vadd.f32 %v1674, %v1875
        %v1877 = vpop.f32.mrb[0].mxu0
        %v1878 = vadd.f32 %v1678, %v1877
        %v1879 = vpop.f32.mrb[0].mxu0
        %v1880 = vadd.f32 %v1674, %v1879
        %v1881 = vpop.f32.mrb[0].mxu0
        %v1882 = vadd.f32 %v1678, %v1881
        %1883 = vmatprep.mubr.bf16.mxu0 0
        %1884 = vmatmul.mubr.bf16.gmra.mrb[0].mxu0 %v1627
        %v1885 = vpop.f32.mrb[0].mxu0
        %v1886 = vadd.f32 %v1674, %v1885
        %v1887 = vpop.f32.mrb[0].mxu0
        %v1888 = vadd.f32 %v1678, %v1887
        %v1889 = vpop.f32.mrb[0].mxu0
        %v1890 = vadd.f32 %v1674, %v1889
        %v1891 = vpop.f32.mrb[0].mxu0
        %v1892 = vadd.f32 %v1678, %v1891
        %1893 = vmatprep.mubr.bf16.mxu0 0
        %1894 = vmatmul.mubr.bf16.gmra.mrb[0].mxu0 %v1628
        %v1895 = vpop.f32.mrb[0].mxu0
        %v1896 = vadd.f32 %v1674, %v1895
        %v1897 = vpop.f32.mrb[0].mxu0
        %v1898 = vadd.f32 %v1678, %v1897
        %v1899 = vpop.f32.mrb[0].mxu0
        %v1900 = vadd.f32 %v1674, %v1899
        %v1901 = vpop.f32.mrb[0].mxu0
        %v1902 = vadd.f32 %v1678, %v1901
        %1903 = vmatprep.mubr.bf16.mxu0 0
        %1904 = vmatmul.mubr.bf16.gmra.mrb[0].mxu0 %v1629
        %v1905 = vpop.f32.mrb[0].mxu0
        %v1906 = vadd.f32 %v1674, %v1905
        %v1907 = vpop.f32.mrb[0].mxu0
        %v1908 = vadd.f32 %v1678, %v1907
        %v1909 = vpop.f32.mrb[0].mxu0
        %v1910 = vadd.f32 %v1674, %v1909
        %v1911 = vpop.f32.mrb[0].mxu0
        %v1912 = vadd.f32 %v1678, %v1911
        %1913 = vmatprep.mubr.bf16.mxu0 0
        %1914 = vmatmul.mubr.bf16.gmra.mrb[0].mxu0 %v1630
        %v1915 = vpop.f32.mrb[0].mxu0
        %v1916 = vadd.f32 %v1674, %v1915
        %v1917 = vpop.f32.mrb[0].mxu0
        %v1918 = vadd.f32 %v1678, %v1917
        %v1919 = vpop.f32.mrb[0].mxu0
        %v1920 = vadd.f32 %v1674, %v1919
        %v1921 = vpop.f32.mrb[0].mxu0
        %v1922 = vadd.f32 %v1678, %v1921
        %1923 = vmatprep.mubr.bf16.mxu0 0
        %1924 = vmatmul.mubr.bf16.gmra.mrb[0].mxu0 %v1631
        %v1925 = vpop.f32.mrb[0].mxu0
        %v1926 = vadd.f32 %v1674, %v1925
        %v1927 = vpop.f32.mrb[0].mxu0
        %v1928 = vadd.f32 %v1678, %v1927
        %v1929 = vpop.f32.mrb[0].mxu0
        %v1930 = vadd.f32 %v1674, %v1929
        %v1931 = vpop.f32.mrb[0].mxu0
        %v1932 = vadd.f32 %v1678, %v1931
        %1933 = vmatprep.mubr.bf16.mxu0 0
        %1934 = vmatmul.mubr.bf16.gmra.mrb[0].mxu0 %v1632
        %v1935 = vpop.f32.mrb[0].mxu0
        %v1936 = vadd.f32 %v1674, %v1935
        %v1937 = vpop.f32.mrb[0].mxu0
        %v1938 = vadd.f32 %v1678, %v1937
        %v1939 = vpop.f32.mrb[0].mxu0
        %v1940 = vadd.f32 %v1674, %v1939
        %v1941 = vpop.f32.mrb[0].mxu0
        %v1942 = vadd.f32 %v1678, %v1941
        %1943 = vmatprep.mubr.bf16.mxu0 0
        %1944 = vmatmul.mubr.bf16.gmra.mrb[0].mxu0 %v1633
        %v1945 = vpop.f32.mrb[0].mxu0
        %v1946 = vadd.f32 %v1674, %v1945
        %v1947 = vpop.f32.mrb[0].mxu0
        %v1948 = vadd.f32 %v1678, %v1947
        %v1949 = vpop.f32.mrb[0].mxu0
        %v1950 = vadd.f32 %v1674, %v1949
        %v1951 = vpop.f32.mrb[0].mxu0
        %v1952 = vadd.f32 %v1678, %v1951
        %1953 = vmatprep.mubr.bf16.mxu0 0
        %1954 = vmatmul.mubr.bf16.gmra.mrb[0].mxu0 %v1634
        %v1955 = vpop.f32.mrb[0].mxu0
        %v1956 = vadd.f32 %v1674, %v1955
        %v1957 = vpop.f32.mrb[0].mxu0
        %v1958 = vadd.f32 %v1678, %v1957
        %v1959 = vpop.f32.mrb[0].mxu0
        %v1960 = vadd.f32 %v1674, %v1959
        %v1961 = vpop.f32.mrb[0].mxu0
        %v1962 = vadd.f32 %v1678, %v1961
        %1963 = vmatprep.mubr.bf16.mxu0 0
        %1964 = vmatmul.mubr.bf16.gmra.mrb[0].mxu0 %v1635
        %v1965 = vpop.f32.mrb[0].mxu0
        %v1966 = vadd.f32 %v1674, %v1965
        %v1967 = vpop.f32.mrb[0].mxu0
        %v1968 = vadd.f32 %v1678, %v1967
        %v1969 = vpop.f32.mrb[0].mxu0
        %v1970 = vadd.f32 %v1674, %v1969
        %v1971 = vpop.f32.mrb[0].mxu0
        %v1972 = vadd.f32 %v1678, %v1971
        %1973 = vmatprep.mubr.bf16.mxu0 0
        %1974 = vmatmul.mubr.bf16.gmra.mrb[0].mxu0 %v1636
        %v1975 = vpop.f32.mrb[0].mxu0
        %v1976 = vadd.f32 %v1674, %v1975
        %v1977 = vpop.f32.mrb[0].mxu0
        %v1978 = vadd.f32 %v1678, %v1977
        %v1979 = vpop.f32.mrb[0].mxu0
        %v1980 = vadd.f32 %v1674, %v1979
        %v1981 = vpop.f32.mrb[0].mxu0
        %v1982 = vadd.f32 %v1678, %v1981
        %1983 = vmatprep.mubr.bf16.mxu0 0
        %1984 = vmatmul.mubr.bf16.gmra.mrb[0].mxu0 %v1637
        %v1985 = vpop.f32.mrb[0].mxu0
        %v1986 = vadd.f32 %v1674, %v1985
        %v1987 = vpop.f32.mrb[0].mxu0
        %v1988 = vadd.f32 %v1678, %v1987
        %v1989 = vpop.f32.mrb[0].mxu0
        %v1990 = vadd.f32 %v1674, %v1989
        %v1991 = vpop.f32.mrb[0].mxu0
        %v1992 = vadd.f32 %v1678, %v1991
        %1993 = vmatprep.mubr.bf16.mxu0 0
        %1994 = vmatmul.mubr.bf16.gmra.mrb[0].mxu0 %v1638
        %v1995 = vpop.f32.mrb[0].mxu0
        %v1996 = vadd.f32 %v1674, %v1995
        %v1997 = vpop.f32.mrb[0].mxu0
        %v1998 = vadd.f32 %v1678, %v1997
        %v1999 = vpop.f32.mrb[0].mxu0
        %v2000 = vadd.f32 %v1674, %v1999
        %v2001 = vpop.f32.mrb[0].mxu0
        %v2002 = vadd.f32 %v1678, %v2001
        %2003 = vdwg.mxu0
        %2004 = vmatprep.subr.bf16.mxu0 0
        %2005 = vmatpush1.bf16.msra.mxu0 %v1765
        %2006 = vmatprep.subr.bf16.mxu0 0
        %2007 = vmatpush1.bf16.msra.mxu0 %v1768
        %2008 = vmatprep.subr.bf16.mxu0 0
        %2009 = vmatpush1.bf16.msra.mxu0 %v1771
        %2010 = vmatprep.subr.bf16.mxu0 0
        %2011 = vmatpush1.bf16.msra.mxu0 %v1774
        %2012 = vmatprep.subr.bf16.mxu0 0
        %2013 = vmatpush1.bf16.msra.mxu0 %v1777
        %2014 = vmatprep.subr.bf16.mxu0 0
        %2015 = vmatpush1.bf16.msra.mxu0 %v1780
        %2016 = vmatprep.subr.bf16.mxu0 0
        %2017 = vmatpush1.bf16.msra.mxu0 %v1783
        %2018 = vmatprep.subr.bf16.mxu0 0
        %2019 = vmatpush1.bf16.msra.mxu0 %v1786
        %2020 = vmatprep.subr.bf16.mxu0 0
        %2021 = vmatpush1.bf16.msra.mxu0 0
        %2022 = vmatprep.subr.bf16.mxu0 0
        %2023 = vmatpush1.bf16.msra.mxu0 0
        %2024 = vmatprep.subr.bf16.mxu0 0
        %2025 = vmatpush1.bf16.msra.mxu0 0
        %2026 = vmatprep.subr.bf16.mxu0 0
        %2027 = vmatpush1.bf16.msra.mxu0 0
        %2028 = vmatprep.subr.bf16.mxu0 0
        %2029 = vmatpush1.bf16.msra.mxu0 0
        %2030 = vmatprep.subr.bf16.mxu0 0
        %2031 = vmatpush1.bf16.msra.mxu0 0
        %2032 = vmatprep.subr.bf16.mxu0 0
        %2033 = vmatpush1.bf16.msra.mxu0 0
        %2034 = vmatprep.subr.bf16.mxu0 0
        %2035 = vmatpush1.bf16.msra.mxu0 0
        %2036 = vmatprep.mubr.bf16.mxu0 0
        %2037 = vmatmul.mubr.bf16.gmra.mrb[0].mxu0 %v1623
        %v2038 = vpop.f32.mrb[0].mxu0
        %v2039 = vadd.f32 %v1682, %v2038
        %v2040 = vpop.f32.mrb[0].mxu0
        %v2041 = vpop.f32.mrb[0].mxu0
        %v2042 = vadd.f32 %v1682, %v2041
        %v2043 = vpop.f32.mrb[0].mxu0
        %2044 = vmatprep.mubr.bf16.mxu0 0
        %2045 = vmatmul.mubr.bf16.gmra.mrb[0].mxu0 %v1624
        %v2046 = vpop.f32.mrb[0].mxu0
        %v2047 = vadd.f32 %v1682, %v2046
        %v2048 = vpop.f32.mrb[0].mxu0
        %v2049 = vpop.f32.mrb[0].mxu0
        %v2050 = vadd.f32 %v1682, %v2049
        %v2051 = vpop.f32.mrb[0].mxu0
        %2052 = vmatprep.mubr.bf16.mxu0 0
        %2053 = vmatmul.mubr.bf16.gmra.mrb[0].mxu0 %v1625
        %v2054 = vpop.f32.mrb[0].mxu0
        %v2055 = vadd.f32 %v1682, %v2054
        %v2056 = vpop.f32.mrb[0].mxu0
        %v2057 = vpop.f32.mrb[0].mxu0
        %v2058 = vadd.f32 %v1682, %v2057
        %v2059 = vpop.f32.mrb[0].mxu0
        %2060 = vmatprep.mubr.bf16.mxu0 0
        %2061 = vmatmul.mubr.bf16.gmra.mrb[0].mxu0 %v1626
        %v2062 = vpop.f32.mrb[0].mxu0
        %v2063 = vadd.f32 %v1682, %v2062
        %v2064 = vpop.f32.mrb[0].mxu0
        %v2065 = vpop.f32.mrb[0].mxu0
        %v2066 = vadd.f32 %v1682, %v2065
        %v2067 = vpop.f32.mrb[0].mxu0
        %2068 = vmatprep.mubr.bf16.mxu0 0
        %2069 = vmatmul.mubr.bf16.gmra.mrb[0].mxu0 %v1627
        %v2070 = vpop.f32.mrb[0].mxu0
        %v2071 = vadd.f32 %v1682, %v2070
        %v2072 = vpop.f32.mrb[0].mxu0
        %v2073 = vpop.f32.mrb[0].mxu0
        %v2074 = vadd.f32 %v1682, %v2073
        %v2075 = vpop.f32.mrb[0].mxu0
        %2076 = vmatprep.mubr.bf16.mxu0 0
        %2077 = vmatmul.mubr.bf16.gmra.mrb[0].mxu0 %v1628
        %v2078 = vpop.f32.mrb[0].mxu0
        %v2079 = vadd.f32 %v1682, %v2078
        %v2080 = vpop.f32.mrb[0].mxu0
        %v2081 = vpop.f32.mrb[0].mxu0
        %v2082 = vadd.f32 %v1682, %v2081
        %v2083 = vpop.f32.mrb[0].mxu0
        %2084 = vmatprep.mubr.bf16.mxu0 0
        %2085 = vmatmul.mubr.bf16.gmra.mrb[0].mxu0 %v1629
        %v2086 = vpop.f32.mrb[0].mxu0
        %v2087 = vadd.f32 %v1682, %v2086
        %v2088 = vpop.f32.mrb[0].mxu0
        %v2089 = vpop.f32.mrb[0].mxu0
        %v2090 = vadd.f32 %v1682, %v2089
        %v2091 = vpop.f32.mrb[0].mxu0
        %2092 = vmatprep.mubr.bf16.mxu0 0
        %2093 = vmatmul.mubr.bf16.gmra.mrb[0].mxu0 %v1630
        %v2094 = vpop.f32.mrb[0].mxu0
        %v2095 = vadd.f32 %v1682, %v2094
        %v2096 = vpop.f32.mrb[0].mxu0
        %v2097 = vpop.f32.mrb[0].mxu0
        %v2098 = vadd.f32 %v1682, %v2097
        %v2099 = vpop.f32.mrb[0].mxu0
        %2100 = vmatprep.mubr.bf16.mxu0 0
        %2101 = vmatmul.mubr.bf16.gmra.mrb[0].mxu0 %v1631
        %v2102 = vpop.f32.mrb[0].mxu0
        %v2103 = vadd.f32 %v1682, %v2102
        %v2104 = vpop.f32.mrb[0].mxu0
        %v2105 = vpop.f32.mrb[0].mxu0
        %v2106 = vadd.f32 %v1682, %v2105
        %v2107 = vpop.f32.mrb[0].mxu0
        %2108 = vmatprep.mubr.bf16.mxu0 0
        %2109 = vmatmul.mubr.bf16.gmra.mrb[0].mxu0 %v1632
        %v2110 = vpop.f32.mrb[0].mxu0
        %v2111 = vadd.f32 %v1682, %v2110
        %v2112 = vpop.f32.mrb[0].mxu0
        %v2113 = vpop.f32.mrb[0].mxu0
        %v2114 = vadd.f32 %v1682, %v2113
        %v2115 = vpop.f32.mrb[0].mxu0
        %2116 = vmatprep.mubr.bf16.mxu0 0
        %2117 = vmatmul.mubr.bf16.gmra.mrb[0].mxu0 %v1633
        %v2118 = vpop.f32.mrb[0].mxu0
        %v2119 = vadd.f32 %v1682, %v2118
        %v2120 = vpop.f32.mrb[0].mxu0
        %v2121 = vpop.f32.mrb[0].mxu0
        %v2122 = vadd.f32 %v1682, %v2121
        %v2123 = vpop.f32.mrb[0].mxu0
        %2124 = vmatprep.mubr.bf16.mxu0 0
        %2125 = vmatmul.mubr.bf16.gmra.mrb[0].mxu0 %v1634
        %v2126 = vpop.f32.mrb[0].mxu0
        %v2127 = vadd.f32 %v1682, %v2126
        %v2128 = vpop.f32.mrb[0].mxu0
        %v2129 = vpop.f32.mrb[0].mxu0
        %v2130 = vadd.f32 %v1682, %v2129
        %v2131 = vpop.f32.mrb[0].mxu0
        %2132 = vmatprep.mubr.bf16.mxu0 0
        %2133 = vmatmul.mubr.bf16.gmra.mrb[0].mxu0 %v1635
        %v2134 = vpop.f32.mrb[0].mxu0
        %v2135 = vadd.f32 %v1682, %v2134
        %v2136 = vpop.f32.mrb[0].mxu0
        %v2137 = vpop.f32.mrb[0].mxu0
        %v2138 = vadd.f32 %v1682, %v2137
        %v2139 = vpop.f32.mrb[0].mxu0
        %2140 = vmatprep.mubr.bf16.mxu0 0
        %2141 = vmatmul.mubr.bf16.gmra.mrb[0].mxu0 %v1636
        %v2142 = vpop.f32.mrb[0].mxu0
        %v2143 = vadd.f32 %v1682, %v2142
        %v2144 = vpop.f32.mrb[0].mxu0
        %v2145 = vpop.f32.mrb[0].mxu0
        %v2146 = vadd.f32 %v1682, %v2145
        %v2147 = vpop.f32.mrb[0].mxu0
        %2148 = vmatprep.mubr.bf16.mxu0 0
        %2149 = vmatmul.mubr.bf16.gmra.mrb[0].mxu0 %v1637
        %v2150 = vpop.f32.mrb[0].mxu0
        %v2151 = vadd.f32 %v1682, %v2150
        %v2152 = vpop.f32.mrb[0].mxu0
        %v2153 = vpop.f32.mrb[0].mxu0
        %v2154 = vadd.f32 %v1682, %v2153
        %v2155 = vpop.f32.mrb[0].mxu0
        %2156 = vmatprep.mubr.bf16.mxu0 0
        %2157 = vmatmul.mubr.bf16.gmra.mrb[0].mxu0 %v1638
        %v2158 = vpop.f32.mrb[0].mxu0
        %v2159 = vadd.f32 %v1682, %v2158
        %v2160 = vpop.f32.mrb[0].mxu0
        %v2161 = vpop.f32.mrb[0].mxu0
        %v2162 = vadd.f32 %v1682, %v2161
        %v2163 = vpop.f32.mrb[0].mxu0
        %2164 = vdwg.mxu0
        %v2165 = vlaneseq
        %v2166 = vand.u32 %v2165, 127
        %vm2167 = vcmp.lt.s32.totalorder %v2166, 5
        %v2168 = vpack.c.bf16 %v1850, %v1846
        %v2169 = vpack.c.bf16 %v1860, %v1856
        %v2170 = vpack.c.bf16 %v1870, %v1866
        %v2171 = vpack.c.bf16 %v1880, %v1876
        %v2172 = vpack.c.bf16 %v1890, %v1886
        %v2173 = vpack.c.bf16 %v1900, %v1896
        %v2174 = vpack.c.bf16 %v1910, %v1906
        %v2175 = vpack.c.bf16 %v1920, %v1916
        %v2176 = vpack.c.bf16 %v1930, %v1926
        %v2177 = vpack.c.bf16 %v1940, %v1936
        %v2178 = vpack.c.bf16 %v1950, %v1946
        %v2179 = vpack.c.bf16 %v1960, %v1956
        %v2180 = vpack.c.bf16 %v1970, %v1966
        %v2181 = vpack.c.bf16 %v1980, %v1976
        %v2182 = vpack.c.bf16 %v1990, %v1986
        %v2183 = vpack.c.bf16 %v2000, %v1996
        %v2184 = vpack.c.bf16 %v1852, %v1848
        %v2185 = vpack.c.bf16 %v1862, %v1858
        %v2186 = vpack.c.bf16 %v1872, %v1868
        %v2187 = vpack.c.bf16 %v1882, %v1878
        %v2188 = vpack.c.bf16 %v1892, %v1888
        %v2189 = vpack.c.bf16 %v1902, %v1898
        %v2190 = vpack.c.bf16 %v1912, %v1908
        %v2191 = vpack.c.bf16 %v1922, %v1918
        %v2192 = vpack.c.bf16 %v1932, %v1928
        %v2193 = vpack.c.bf16 %v1942, %v1938
        %v2194 = vpack.c.bf16 %v1952, %v1948
        %v2195 = vpack.c.bf16 %v1962, %v1958
        %v2196 = vpack.c.bf16 %v1972, %v1968
        %v2197 = vpack.c.bf16 %v1982, %v1978
        %v2198 = vpack.c.bf16 %v1992, %v1988
        %v2199 = vpack.c.bf16 %v2002, %v1998
        %v2200 = vpack.c.bf16 %v2042, %v2039
        %v2201 = vpack.c.bf16 %v2050, %v2047
        %v2202 = vpack.c.bf16 %v2058, %v2055
        %v2203 = vpack.c.bf16 %v2066, %v2063
        %v2204 = vpack.c.bf16 %v2074, %v2071
        %v2205 = vpack.c.bf16 %v2082, %v2079
        %v2206 = vpack.c.bf16 %v2090, %v2087
        %v2207 = vpack.c.bf16 %v2098, %v2095
        %v2208 = vpack.c.bf16 %v2106, %v2103
        %v2209 = vpack.c.bf16 %v2114, %v2111
        %v2210 = vpack.c.bf16 %v2122, %v2119
        %v2211 = vpack.c.bf16 %v2130, %v2127
        %v2212 = vpack.c.bf16 %v2138, %v2135
        %v2213 = vpack.c.bf16 %v2146, %v2143
        %v2214 = vpack.c.bf16 %v2154, %v2151
        %v2215 = vpack.c.bf16 %v2162, %v2159
        %vm2216 = vcmask 261120
        %v2218 = vsel %vm2216, %v2168, 0
        %v2221 = vsel %vm2216, %v2169, 0
        %v2224 = vsel %vm2216, %v2170, 0
        %v2227 = vsel %vm2216, %v2171, 0
        %v2230 = vsel %vm2216, %v2172, 0
        %v2233 = vsel %vm2216, %v2173, 0
        %v2236 = vsel %vm2216, %v2174, 0
        %v2239 = vsel %vm2216, %v2175, 0
        %v2242 = vsel %vm2216, %v2184, 0
        %v2245 = vsel %vm2216, %v2185, 0
        %v2248 = vsel %vm2216, %v2186, 0
        %v2251 = vsel %vm2216, %v2187, 0
        %v2254 = vsel %vm2216, %v2188, 0
        %v2257 = vsel %vm2216, %v2189, 0
        %v2260 = vsel %vm2216, %v2190, 0
        %v2263 = vsel %vm2216, %v2191, 0
        %2265 = vmatprep.subr.bf16.mxu0 0
        %2266 = vmatpush1.bf16.xpose.msra.mxu0 %v2242
        %2267 = vmatprep.subr.bf16.mxu0 0
        %2268 = vmatpush1.bf16.xpose.msra.mxu0 %v2245
        %2269 = vmatprep.subr.bf16.mxu0 0
        %2270 = vmatpush1.bf16.xpose.msra.mxu0 %v2248
        %2271 = vmatprep.subr.bf16.mxu0 0
        %2272 = vmatpush1.bf16.xpose.msra.mxu0 %v2251
        %2273 = vmatprep.subr.bf16.mxu0 0
        %2274 = vmatpush1.bf16.xpose.msra.mxu0 %v2254
        %2275 = vmatprep.subr.bf16.mxu0 0
        %2276 = vmatpush1.bf16.xpose.msra.mxu0 %v2257
        %2277 = vmatprep.subr.bf16.mxu0 0
        %2278 = vmatpush1.bf16.xpose.msra.mxu0 %v2260
        %2279 = vmatprep.subr.bf16.mxu0 0
        %2280 = vmatpush1.bf16.xpose.msra.mxu0 %v2263
        %2281 = vmatprep.subr.bf16.mxu0 0
        %2282 = vmatpush1.bf16.xpose.msra.mxu0 0
        %2283 = vmatprep.subr.bf16.mxu0 0
        %2284 = vmatpush1.bf16.xpose.msra.mxu0 0
        %2285 = vmatprep.subr.bf16.mxu0 0
        %2286 = vmatpush1.bf16.xpose.msra.mxu0 0
        %2287 = vmatprep.subr.bf16.mxu0 0
        %2288 = vmatpush1.bf16.xpose.msra.mxu0 0
        %2289 = vmatprep.subr.bf16.mxu0 0
        %2290 = vmatpush1.bf16.xpose.msra.mxu0 0
        %2291 = vmatprep.subr.bf16.mxu0 0
        %2292 = vmatpush1.bf16.xpose.msra.mxu0 0
        %2293 = vmatprep.subr.bf16.mxu0 0
        %2294 = vmatpush1.bf16.xpose.msra.mxu0 0
        %2295 = vmatprep.subr.bf16.mxu0 0
        %2296 = vmatpush1.bf16.xpose.msra.mxu0 0
        %2297 = vmatprep.mubr.bf16.mxu0 0
        %2298 = vmatmul.mubr.bf16.gmra.mrb[0].mxu0 %v2218
        %v2299 = vpop.f32.mrb[0].mxu0
        %v2300 = vadd.f32 0.0, %v2299
        %v2301 = vpop.f32.mrb[0].mxu0
        %v2302 = vpop.f32.mrb[0].mxu0
        %v2303 = vadd.f32 0.0, %v2302
        %v2304 = vpop.f32.mrb[0].mxu0
        %2305 = vmatprep.mubr.bf16.mxu0 0
        %2306 = vmatmul.mubr.bf16.gmra.mrb[0].mxu0 %v2221
        %v2307 = vpop.f32.mrb[0].mxu0
        %v2308 = vadd.f32 0.0, %v2307
        %v2309 = vpop.f32.mrb[0].mxu0
        %v2310 = vpop.f32.mrb[0].mxu0
        %v2311 = vadd.f32 0.0, %v2310
        %v2312 = vpop.f32.mrb[0].mxu0
        %2313 = vmatprep.mubr.bf16.mxu0 0
        %2314 = vmatmul.mubr.bf16.gmra.mrb[0].mxu0 %v2224
        %v2315 = vpop.f32.mrb[0].mxu0
        %v2316 = vadd.f32 0.0, %v2315
        %v2317 = vpop.f32.mrb[0].mxu0
        %v2318 = vpop.f32.mrb[0].mxu0
        %v2319 = vadd.f32 0.0, %v2318
        %v2320 = vpop.f32.mrb[0].mxu0
        %2321 = vmatprep.mubr.bf16.mxu0 0
        %2322 = vmatmul.mubr.bf16.gmra.mrb[0].mxu0 %v2227
        %v2323 = vpop.f32.mrb[0].mxu0
        %v2324 = vadd.f32 0.0, %v2323
        %v2325 = vpop.f32.mrb[0].mxu0
        %v2326 = vpop.f32.mrb[0].mxu0
        %v2327 = vadd.f32 0.0, %v2326
        %v2328 = vpop.f32.mrb[0].mxu0
        %2329 = vmatprep.mubr.bf16.mxu0 0
        %2330 = vmatmul.mubr.bf16.gmra.mrb[0].mxu0 %v2230
        %v2331 = vpop.f32.mrb[0].mxu0
        %v2332 = vadd.f32 0.0, %v2331
        %v2333 = vpop.f32.mrb[0].mxu0
        %v2334 = vpop.f32.mrb[0].mxu0
        %v2335 = vadd.f32 0.0, %v2334
        %v2336 = vpop.f32.mrb[0].mxu0
        %2337 = vmatprep.mubr.bf16.mxu0 0
        %2338 = vmatmul.mubr.bf16.gmra.mrb[0].mxu0 %v2233
        %v2339 = vpop.f32.mrb[0].mxu0
        %v2340 = vadd.f32 0.0, %v2339
        %v2341 = vpop.f32.mrb[0].mxu0
        %v2342 = vpop.f32.mrb[0].mxu0
        %v2343 = vadd.f32 0.0, %v2342
        %v2344 = vpop.f32.mrb[0].mxu0
        %2345 = vmatprep.mubr.bf16.mxu0 0
        %2346 = vmatmul.mubr.bf16.gmra.mrb[0].mxu0 %v2236
        %v2347 = vpop.f32.mrb[0].mxu0
        %v2348 = vadd.f32 0.0, %v2347
        %v2349 = vpop.f32.mrb[0].mxu0
        %v2350 = vpop.f32.mrb[0].mxu0
        %v2351 = vadd.f32 0.0, %v2350
        %v2352 = vpop.f32.mrb[0].mxu0
        %2353 = vmatprep.mubr.bf16.mxu0 0
        %2354 = vmatmul.mubr.bf16.gmra.mrb[0].mxu0 %v2239
        %v2355 = vpop.f32.mrb[0].mxu0
        %v2356 = vadd.f32 0.0, %v2355
        %v2357 = vpop.f32.mrb[0].mxu0
        %v2358 = vpop.f32.mrb[0].mxu0
        %v2359 = vadd.f32 0.0, %v2358
        %v2360 = vpop.f32.mrb[0].mxu0
        %2361 = vdwg.mxu0
        %v2363 = vsel %vm2216, %v2176, 0
        %v2366 = vsel %vm2216, %v2177, 0
        %v2369 = vsel %vm2216, %v2178, 0
        %v2372 = vsel %vm2216, %v2179, 0
        %v2375 = vsel %vm2216, %v2180, 0
        %v2378 = vsel %vm2216, %v2181, 0
        %v2381 = vsel %vm2216, %v2182, 0
        %v2384 = vsel %vm2216, %v2183, 0
        %v2387 = vsel %vm2216, %v2192, 0
        %v2390 = vsel %vm2216, %v2193, 0
        %v2393 = vsel %vm2216, %v2194, 0
        %v2396 = vsel %vm2216, %v2195, 0
        %v2399 = vsel %vm2216, %v2196, 0
        %v2402 = vsel %vm2216, %v2197, 0
        %v2405 = vsel %vm2216, %v2198, 0
        %v2408 = vsel %vm2216, %v2199, 0
        %2410 = vmatprep.subr.bf16.mxu0 0
        %2411 = vmatpush1.bf16.xpose.msra.mxu0 %v2387
        %2412 = vmatprep.subr.bf16.mxu0 0
        %2413 = vmatpush1.bf16.xpose.msra.mxu0 %v2390
        %2414 = vmatprep.subr.bf16.mxu0 0
        %2415 = vmatpush1.bf16.xpose.msra.mxu0 %v2393
        %2416 = vmatprep.subr.bf16.mxu0 0
        %2417 = vmatpush1.bf16.xpose.msra.mxu0 %v2396
        %2418 = vmatprep.subr.bf16.mxu0 0
        %2419 = vmatpush1.bf16.xpose.msra.mxu0 %v2399
        %2420 = vmatprep.subr.bf16.mxu0 0
        %2421 = vmatpush1.bf16.xpose.msra.mxu0 %v2402
        %2422 = vmatprep.subr.bf16.mxu0 0
        %2423 = vmatpush1.bf16.xpose.msra.mxu0 %v2405
        %2424 = vmatprep.subr.bf16.mxu0 0
        %2425 = vmatpush1.bf16.xpose.msra.mxu0 %v2408
        %2426 = vmatprep.subr.bf16.mxu0 0
        %2427 = vmatpush1.bf16.xpose.msra.mxu0 0
        %2428 = vmatprep.subr.bf16.mxu0 0
        %2429 = vmatpush1.bf16.xpose.msra.mxu0 0
        %2430 = vmatprep.subr.bf16.mxu0 0
        %2431 = vmatpush1.bf16.xpose.msra.mxu0 0
        %2432 = vmatprep.subr.bf16.mxu0 0
        %2433 = vmatpush1.bf16.xpose.msra.mxu0 0
        %2434 = vmatprep.subr.bf16.mxu0 0
        %2435 = vmatpush1.bf16.xpose.msra.mxu0 0
        %2436 = vmatprep.subr.bf16.mxu0 0
        %2437 = vmatpush1.bf16.xpose.msra.mxu0 0
        %2438 = vmatprep.subr.bf16.mxu0 0
        %2439 = vmatpush1.bf16.xpose.msra.mxu0 0
        %2440 = vmatprep.subr.bf16.mxu0 0
        %2441 = vmatpush1.bf16.xpose.msra.mxu0 0
        %2442 = vmatprep.mubr.bf16.mxu0 0
        %2443 = vmatmul.mubr.bf16.gmra.mrb[0].mxu0 %v2363
        %v2444 = vpop.f32.mrb[0].mxu0
        %v2445 = vadd.f32 0.0, %v2444
        %v2446 = vpop.f32.mrb[0].mxu0
        %v2447 = vpop.f32.mrb[0].mxu0
        %v2448 = vadd.f32 0.0, %v2447
        %v2449 = vpop.f32.mrb[0].mxu0
        %2450 = vmatprep.mubr.bf16.mxu0 0
        %2451 = vmatmul.mubr.bf16.gmra.mrb[0].mxu0 %v2366
        %v2452 = vpop.f32.mrb[0].mxu0
        %v2453 = vadd.f32 0.0, %v2452
        %v2454 = vpop.f32.mrb[0].mxu0
        %v2455 = vpop.f32.mrb[0].mxu0
        %v2456 = vadd.f32 0.0, %v2455
        %v2457 = vpop.f32.mrb[0].mxu0
        %2458 = vmatprep.mubr.bf16.mxu0 0
        %2459 = vmatmul.mubr.bf16.gmra.mrb[0].mxu0 %v2369
        %v2460 = vpop.f32.mrb[0].mxu0
        %v2461 = vadd.f32 0.0, %v2460
        %v2462 = vpop.f32.mrb[0].mxu0
        %v2463 = vpop.f32.mrb[0].mxu0
        %v2464 = vadd.f32 0.0, %v2463
        %v2465 = vpop.f32.mrb[0].mxu0
        %2466 = vmatprep.mubr.bf16.mxu0 0
        %2467 = vmatmul.mubr.bf16.gmra.mrb[0].mxu0 %v2372
        %v2468 = vpop.f32.mrb[0].mxu0
        %v2469 = vadd.f32 0.0, %v2468
        %v2470 = vpop.f32.mrb[0].mxu0
        %v2471 = vpop.f32.mrb[0].mxu0
        %v2472 = vadd.f32 0.0, %v2471
        %v2473 = vpop.f32.mrb[0].mxu0
        %2474 = vmatprep.mubr.bf16.mxu0 0
        %2475 = vmatmul.mubr.bf16.gmra.mrb[0].mxu0 %v2375
        %v2476 = vpop.f32.mrb[0].mxu0
        %v2477 = vadd.f32 0.0, %v2476
        %v2478 = vpop.f32.mrb[0].mxu0
        %v2479 = vpop.f32.mrb[0].mxu0
        %v2480 = vadd.f32 0.0, %v2479
        %v2481 = vpop.f32.mrb[0].mxu0
        %2482 = vmatprep.mubr.bf16.mxu0 0
        %2483 = vmatmul.mubr.bf16.gmra.mrb[0].mxu0 %v2378
        %v2484 = vpop.f32.mrb[0].mxu0
        %v2485 = vadd.f32 0.0, %v2484
        %v2486 = vpop.f32.mrb[0].mxu0
        %v2487 = vpop.f32.mrb[0].mxu0
        %v2488 = vadd.f32 0.0, %v2487
        %v2489 = vpop.f32.mrb[0].mxu0
        %2490 = vmatprep.mubr.bf16.mxu0 0
        %2491 = vmatmul.mubr.bf16.gmra.mrb[0].mxu0 %v2381
        %v2492 = vpop.f32.mrb[0].mxu0
        %v2493 = vadd.f32 0.0, %v2492
        %v2494 = vpop.f32.mrb[0].mxu0
        %v2495 = vpop.f32.mrb[0].mxu0
        %v2496 = vadd.f32 0.0, %v2495
        %v2497 = vpop.f32.mrb[0].mxu0
        %2498 = vmatprep.mubr.bf16.mxu0 0
        %2499 = vmatmul.mubr.bf16.gmra.mrb[0].mxu0 %v2384
        %v2500 = vpop.f32.mrb[0].mxu0
        %v2501 = vadd.f32 0.0, %v2500
        %v2502 = vpop.f32.mrb[0].mxu0
        %v2503 = vpop.f32.mrb[0].mxu0
        %v2504 = vadd.f32 0.0, %v2503
        %v2505 = vpop.f32.mrb[0].mxu0
        %2506 = vdwg.mxu0
        %v2507 = vmul.f32 %v2300, 0.35355338
        %v2508 = vmul.f32 %v2303, 0.35355338
        %v2509 = vmul.f32 %v2308, 0.35355338
        %v2510 = vmul.f32 %v2311, 0.35355338
        %v2511 = vmul.f32 %v2316, 0.35355338
        %v2512 = vmul.f32 %v2319, 0.35355338
        %v2513 = vmul.f32 %v2324, 0.35355338
        %v2514 = vmul.f32 %v2327, 0.35355338
        %v2515 = vmul.f32 %v2332, 0.35355338
        %v2516 = vmul.f32 %v2335, 0.35355338
        %v2517 = vmul.f32 %v2340, 0.35355338
        %v2518 = vmul.f32 %v2343, 0.35355338
        %v2519 = vmul.f32 %v2348, 0.35355338
        %v2520 = vmul.f32 %v2351, 0.35355338
        %v2521 = vmul.f32 %v2356, 0.35355338
        %v2522 = vmul.f32 %v2359, 0.35355338
        %v2523 = vmul.f32 %v2445, 0.35355338
        %v2524 = vmul.f32 %v2448, 0.35355338
        %v2525 = vmul.f32 %v2453, 0.35355338
        %v2526 = vmul.f32 %v2456, 0.35355338
        %v2527 = vmul.f32 %v2461, 0.35355338
        %v2528 = vmul.f32 %v2464, 0.35355338
        %v2529 = vmul.f32 %v2469, 0.35355338
        %v2530 = vmul.f32 %v2472, 0.35355338
        %v2531 = vmul.f32 %v2477, 0.35355338
        %v2532 = vmul.f32 %v2480, 0.35355338
        %v2533 = vmul.f32 %v2485, 0.35355338
        %v2534 = vmul.f32 %v2488, 0.35355338
        %v2535 = vmul.f32 %v2493, 0.35355338
        %v2536 = vmul.f32 %v2496, 0.35355338
        %v2537 = vmul.f32 %v2501, 0.35355338
        %v2538 = vmul.f32 %v2504, 0.35355338
        %v2539 = vsel %vm2167, 1, 0
        %vm2540 = vcmp.eq.s32.totalorder %v2539, 1
        %v2541 = vsel %vm2540, %v2507, -1e+30
        %v2542 = vsel %vm2540, %v2508, -1e+30
        %v2543 = vsel %vm2540, %v2509, -1e+30
        %v2544 = vsel %vm2540, %v2510, -1e+30
        %v2545 = vsel %vm2540, %v2511, -1e+30
        %v2546 = vsel %vm2540, %v2512, -1e+30
        %v2547 = vsel %vm2540, %v2513, -1e+30
        %v2548 = vsel %vm2540, %v2514, -1e+30
        %v2549 = vsel %vm2540, %v2515, -1e+30
        %v2550 = vsel %vm2540, %v2516, -1e+30
        %v2551 = vsel %vm2540, %v2517, -1e+30
        %v2552 = vsel %vm2540, %v2518, -1e+30
        %v2553 = vsel %vm2540, %v2519, -1e+30
        %v2554 = vsel %vm2540, %v2520, -1e+30
        %v2555 = vsel %vm2540, %v2521, -1e+30
        %v2556 = vsel %vm2540, %v2522, -1e+30
        %v2557 = vsel %vm2540, %v2523, -1e+30
        %v2558 = vsel %vm2540, %v2524, -1e+30
        %v2559 = vsel %vm2540, %v2525, -1e+30
        %v2560 = vsel %vm2540, %v2526, -1e+30
        %v2561 = vsel %vm2540, %v2527, -1e+30
        %v2562 = vsel %vm2540, %v2528, -1e+30
        %v2563 = vsel %vm2540, %v2529, -1e+30
        %v2564 = vsel %vm2540, %v2530, -1e+30
        %v2565 = vsel %vm2540, %v2531, -1e+30
        %v2566 = vsel %vm2540, %v2532, -1e+30
        %v2567 = vsel %vm2540, %v2533, -1e+30
        %v2568 = vsel %vm2540, %v2534, -1e+30
        %v2569 = vsel %vm2540, %v2535, -1e+30
        %v2570 = vsel %vm2540, %v2536, -1e+30
        %v2571 = vsel %vm2540, %v2537, -1e+30
        %v2572 = vsel %vm2540, %v2538, -1e+30
        %2573 = vmax.xlane.f32.xlu0 %v2541
        %v2574 = vpop.xlane.xlu0 %2573
        %2575 = vmax.xlane.f32.xlu0 %v2542
        %v2576 = vpop.xlane.xlu0 %2575
        %2577 = vmax.xlane.f32.xlu0 %v2543
        %v2578 = vpop.xlane.xlu0 %2577
        %2579 = vmax.xlane.f32.xlu0 %v2544
        %v2580 = vpop.xlane.xlu0 %2579
        %2581 = vmax.xlane.f32.xlu0 %v2545
        %v2582 = vpop.xlane.xlu0 %2581
        %2583 = vmax.xlane.f32.xlu0 %v2546
        %v2584 = vpop.xlane.xlu0 %2583
        %2585 = vmax.xlane.f32.xlu0 %v2547
        %v2586 = vpop.xlane.xlu0 %2585
        %2587 = vmax.xlane.f32.xlu0 %v2548
        %v2588 = vpop.xlane.xlu0 %2587
        %2589 = vmax.xlane.f32.xlu0 %v2549
        %v2590 = vpop.xlane.xlu0 %2589
        %2591 = vmax.xlane.f32.xlu0 %v2550
        %v2592 = vpop.xlane.xlu0 %2591
        %2593 = vmax.xlane.f32.xlu0 %v2551
        %v2594 = vpop.xlane.xlu0 %2593
        %2595 = vmax.xlane.f32.xlu0 %v2552
        %v2596 = vpop.xlane.xlu0 %2595
        %2597 = vmax.xlane.f32.xlu0 %v2553
        %v2598 = vpop.xlane.xlu0 %2597
        %2599 = vmax.xlane.f32.xlu0 %v2554
        %v2600 = vpop.xlane.xlu0 %2599
        %2601 = vmax.xlane.f32.xlu0 %v2555
        %v2602 = vpop.xlane.xlu0 %2601
        %2603 = vmax.xlane.f32.xlu0 %v2556
        %v2604 = vpop.xlane.xlu0 %2603
        %2605 = vmax.xlane.f32.xlu0 %v2557
        %v2606 = vpop.xlane.xlu0 %2605
        %2607 = vmax.xlane.f32.xlu0 %v2558
        %v2608 = vpop.xlane.xlu0 %2607
        %2609 = vmax.xlane.f32.xlu0 %v2559
        %v2610 = vpop.xlane.xlu0 %2609
        %2611 = vmax.xlane.f32.xlu0 %v2560
        %v2612 = vpop.xlane.xlu0 %2611
        %2613 = vmax.xlane.f32.xlu0 %v2561
        %v2614 = vpop.xlane.xlu0 %2613
        %2615 = vmax.xlane.f32.xlu0 %v2562
        %v2616 = vpop.xlane.xlu0 %2615
        %2617 = vmax.xlane.f32.xlu0 %v2563
        %v2618 = vpop.xlane.xlu0 %2617
        %2619 = vmax.xlane.f32.xlu0 %v2564
        %v2620 = vpop.xlane.xlu0 %2619
        %2621 = vmax.xlane.f32.xlu0 %v2565
        %v2622 = vpop.xlane.xlu0 %2621
        %2623 = vmax.xlane.f32.xlu0 %v2566
        %v2624 = vpop.xlane.xlu0 %2623
        %2625 = vmax.xlane.f32.xlu0 %v2567
        %v2626 = vpop.xlane.xlu0 %2625
        %2627 = vmax.xlane.f32.xlu0 %v2568
        %v2628 = vpop.xlane.xlu0 %2627
        %2629 = vmax.xlane.f32.xlu0 %v2569
        %v2630 = vpop.xlane.xlu0 %2629
        %2631 = vmax.xlane.f32.xlu0 %v2570
        %v2632 = vpop.xlane.xlu0 %2631
        %2633 = vmax.xlane.f32.xlu0 %v2571
        %v2634 = vpop.xlane.xlu0 %2633
        %2635 = vmax.xlane.f32.xlu0 %v2572
        %v2636 = vpop.xlane.xlu0 %2635
        %v2637 = vsub.f32 %v2541, %v2574
        %v2638 = vsub.f32 %v2542, %v2576
        %v2639 = vsub.f32 %v2543, %v2578
        %v2640 = vsub.f32 %v2544, %v2580
        %v2641 = vsub.f32 %v2545, %v2582
        %v2642 = vsub.f32 %v2546, %v2584
        %v2643 = vsub.f32 %v2547, %v2586
        %v2644 = vsub.f32 %v2548, %v2588
        %v2645 = vsub.f32 %v2549, %v2590
        %v2646 = vsub.f32 %v2550, %v2592
        %v2647 = vsub.f32 %v2551, %v2594
        %v2648 = vsub.f32 %v2552, %v2596
        %v2649 = vsub.f32 %v2553, %v2598
        %v2650 = vsub.f32 %v2554, %v2600
        %v2651 = vsub.f32 %v2555, %v2602
        %v2652 = vsub.f32 %v2556, %v2604
        %v2653 = vsub.f32 %v2557, %v2606
        %v2654 = vsub.f32 %v2558, %v2608
        %v2655 = vsub.f32 %v2559, %v2610
        %v2656 = vsub.f32 %v2560, %v2612
        %v2657 = vsub.f32 %v2561, %v2614
        %v2658 = vsub.f32 %v2562, %v2616
        %v2659 = vsub.f32 %v2563, %v2618
        %v2660 = vsub.f32 %v2564, %v2620
        %v2661 = vsub.f32 %v2565, %v2622
        %v2662 = vsub.f32 %v2566, %v2624
        %v2663 = vsub.f32 %v2567, %v2626
        %v2664 = vsub.f32 %v2568, %v2628
        %v2665 = vsub.f32 %v2569, %v2630
        %v2666 = vsub.f32 %v2570, %v2632
        %v2667 = vsub.f32 %v2571, %v2634
        %v2668 = vsub.f32 %v2572, %v2636
        %v2669 = vmul.f32 %v2637, 1.442695
        %v2670 = vpow.pop %v2669
        %v2671 = vmul.f32 %v2638, 1.442695
        %v2672 = vpow.pop %v2671
        %v2673 = vmul.f32 %v2639, 1.442695
        %v2674 = vpow.pop %v2673
        %v2675 = vmul.f32 %v2640, 1.442695
        %v2676 = vpow.pop %v2675
        %v2677 = vmul.f32 %v2641, 1.442695
        %v2678 = vpow.pop %v2677
        %v2679 = vmul.f32 %v2642, 1.442695
        %v2680 = vpow.pop %v2679
        %v2681 = vmul.f32 %v2643, 1.442695
        %v2682 = vpow.pop %v2681
        %v2683 = vmul.f32 %v2644, 1.442695
        %v2684 = vpow.pop %v2683
        %v2685 = vmul.f32 %v2645, 1.442695
        %v2686 = vpow.pop %v2685
        %v2687 = vmul.f32 %v2646, 1.442695
        %v2688 = vpow.pop %v2687
        %v2689 = vmul.f32 %v2647, 1.442695
        %v2690 = vpow.pop %v2689
        %v2691 = vmul.f32 %v2648, 1.442695
        %v2692 = vpow.pop %v2691
        %v2693 = vmul.f32 %v2649, 1.442695
        %v2694 = vpow.pop %v2693
        %v2695 = vmul.f32 %v2650, 1.442695
        %v2696 = vpow.pop %v2695
        %v2697 = vmul.f32 %v2651, 1.442695
        %v2698 = vpow.pop %v2697
        %v2699 = vmul.f32 %v2652, 1.442695
        %v2700 = vpow.pop %v2699
        %v2701 = vmul.f32 %v2653, 1.442695
        %v2702 = vpow.pop %v2701
        %v2703 = vmul.f32 %v2654, 1.442695
        %v2704 = vpow.pop %v2703
        %v2705 = vmul.f32 %v2655, 1.442695
        %v2706 = vpow.pop %v2705
        %v2707 = vmul.f32 %v2656, 1.442695
        %v2708 = vpow.pop %v2707
        %v2709 = vmul.f32 %v2657, 1.442695
        %v2710 = vpow.pop %v2709
        %v2711 = vmul.f32 %v2658, 1.442695
        %v2712 = vpow.pop %v2711
        %v2713 = vmul.f32 %v2659, 1.442695
        %v2714 = vpow.pop %v2713
        %v2715 = vmul.f32 %v2660, 1.442695
        %v2716 = vpow.pop %v2715
        %v2717 = vmul.f32 %v2661, 1.442695
        %v2718 = vpow.pop %v2717
        %v2719 = vmul.f32 %v2662, 1.442695
        %v2720 = vpow.pop %v2719
        %v2721 = vmul.f32 %v2663, 1.442695
        %v2722 = vpow.pop %v2721
        %v2723 = vmul.f32 %v2664, 1.442695
        %v2724 = vpow.pop %v2723
        %v2725 = vmul.f32 %v2665, 1.442695
        %v2726 = vpow.pop %v2725
        %v2727 = vmul.f32 %v2666, 1.442695
        %v2728 = vpow.pop %v2727
        %v2729 = vmul.f32 %v2667, 1.442695
        %v2730 = vpow.pop %v2729
        %v2731 = vmul.f32 %v2668, 1.442695
        %v2732 = vpow.pop %v2731
        %2733 = vadd.xlane.f32.xlu0 %v2670
        %v2734 = vpop.xlane.xlu0 %2733
        %2735 = vadd.xlane.f32.xlu0 %v2672
        %v2736 = vpop.xlane.xlu0 %2735
        %2737 = vadd.xlane.f32.xlu0 %v2674
        %v2738 = vpop.xlane.xlu0 %2737
        %2739 = vadd.xlane.f32.xlu0 %v2676
        %v2740 = vpop.xlane.xlu0 %2739
        %2741 = vadd.xlane.f32.xlu0 %v2678
        %v2742 = vpop.xlane.xlu0 %2741
        %2743 = vadd.xlane.f32.xlu0 %v2680
        %v2744 = vpop.xlane.xlu0 %2743
        %2745 = vadd.xlane.f32.xlu0 %v2682
        %v2746 = vpop.xlane.xlu0 %2745
        %2747 = vadd.xlane.f32.xlu0 %v2684
        %v2748 = vpop.xlane.xlu0 %2747
        %2749 = vadd.xlane.f32.xlu0 %v2686
        %v2750 = vpop.xlane.xlu0 %2749
        %2751 = vadd.xlane.f32.xlu0 %v2688
        %v2752 = vpop.xlane.xlu0 %2751
        %2753 = vadd.xlane.f32.xlu0 %v2690
        %v2754 = vpop.xlane.xlu0 %2753
        %2755 = vadd.xlane.f32.xlu0 %v2692
        %v2756 = vpop.xlane.xlu0 %2755
        %2757 = vadd.xlane.f32.xlu0 %v2694
        %v2758 = vpop.xlane.xlu0 %2757
        %2759 = vadd.xlane.f32.xlu0 %v2696
        %v2760 = vpop.xlane.xlu0 %2759
        %2761 = vadd.xlane.f32.xlu0 %v2698
        %v2762 = vpop.xlane.xlu0 %2761
        %2763 = vadd.xlane.f32.xlu0 %v2700
        %v2764 = vpop.xlane.xlu0 %2763
        %2765 = vadd.xlane.f32.xlu0 %v2702
        %v2766 = vpop.xlane.xlu0 %2765
        %2767 = vadd.xlane.f32.xlu0 %v2704
        %v2768 = vpop.xlane.xlu0 %2767
        %2769 = vadd.xlane.f32.xlu0 %v2706
        %v2770 = vpop.xlane.xlu0 %2769
        %2771 = vadd.xlane.f32.xlu0 %v2708
        %v2772 = vpop.xlane.xlu0 %2771
        %2773 = vadd.xlane.f32.xlu0 %v2710
        %v2774 = vpop.xlane.xlu0 %2773
        %2775 = vadd.xlane.f32.xlu0 %v2712
        %v2776 = vpop.xlane.xlu0 %2775
        %2777 = vadd.xlane.f32.xlu0 %v2714
        %v2778 = vpop.xlane.xlu0 %2777
        %2779 = vadd.xlane.f32.xlu0 %v2716
        %v2780 = vpop.xlane.xlu0 %2779
        %2781 = vadd.xlane.f32.xlu0 %v2718
        %v2782 = vpop.xlane.xlu0 %2781
        %2783 = vadd.xlane.f32.xlu0 %v2720
        %v2784 = vpop.xlane.xlu0 %2783
        %2785 = vadd.xlane.f32.xlu0 %v2722
        %v2786 = vpop.xlane.xlu0 %2785
        %2787 = vadd.xlane.f32.xlu0 %v2724
        %v2788 = vpop.xlane.xlu0 %2787
        %2789 = vadd.xlane.f32.xlu0 %v2726
        %v2790 = vpop.xlane.xlu0 %2789
        %2791 = vadd.xlane.f32.xlu0 %v2728
        %v2792 = vpop.xlane.xlu0 %2791
        %2793 = vadd.xlane.f32.xlu0 %v2730
        %v2794 = vpop.xlane.xlu0 %2793
        %2795 = vadd.xlane.f32.xlu0 %v2732
        %v2796 = vpop.xlane.xlu0 %2795
        %v2797 = vrcp.pop %v2734
        %v2798 = vrcp.pop %v2736
        %v2799 = vrcp.pop %v2738
        %v2800 = vrcp.pop %v2740
        %v2801 = vrcp.pop %v2742
        %v2802 = vrcp.pop %v2744
        %v2803 = vrcp.pop %v2746
        %v2804 = vrcp.pop %v2748
        %v2805 = vrcp.pop %v2750
        %v2806 = vrcp.pop %v2752
        %v2807 = vrcp.pop %v2754
        %v2808 = vrcp.pop %v2756
        %v2809 = vrcp.pop %v2758
        %v2810 = vrcp.pop %v2760
        %v2811 = vrcp.pop %v2762
        %v2812 = vrcp.pop %v2764
        %v2813 = vrcp.pop %v2766
        %v2814 = vrcp.pop %v2768
        %v2815 = vrcp.pop %v2770
        %v2816 = vrcp.pop %v2772
        %v2817 = vrcp.pop %v2774
        %v2818 = vrcp.pop %v2776
        %v2819 = vrcp.pop %v2778
        %v2820 = vrcp.pop %v2780
        %v2821 = vrcp.pop %v2782
        %v2822 = vrcp.pop %v2784
        %v2823 = vrcp.pop %v2786
        %v2824 = vrcp.pop %v2788
        %v2825 = vrcp.pop %v2790
        %v2826 = vrcp.pop %v2792
        %v2827 = vrcp.pop %v2794
        %v2828 = vrcp.pop %v2796
        %v2829 = vmul.f32 %v2670, %v2797
        %v2830 = vmul.f32 %v2672, %v2798
        %v2831 = vmul.f32 %v2674, %v2799
        %v2832 = vmul.f32 %v2676, %v2800
        %v2833 = vmul.f32 %v2678, %v2801
        %v2834 = vmul.f32 %v2680, %v2802
        %v2835 = vmul.f32 %v2682, %v2803
        %v2836 = vmul.f32 %v2684, %v2804
        %v2837 = vmul.f32 %v2686, %v2805
        %v2838 = vmul.f32 %v2688, %v2806
        %v2839 = vmul.f32 %v2690, %v2807
        %v2840 = vmul.f32 %v2692, %v2808
        %v2841 = vmul.f32 %v2694, %v2809
        %v2842 = vmul.f32 %v2696, %v2810
        %v2843 = vmul.f32 %v2698, %v2811
        %v2844 = vmul.f32 %v2700, %v2812
        %v2845 = vmul.f32 %v2702, %v2813
        %v2846 = vmul.f32 %v2704, %v2814
        %v2847 = vmul.f32 %v2706, %v2815
        %v2848 = vmul.f32 %v2708, %v2816
        %v2849 = vmul.f32 %v2710, %v2817
        %v2850 = vmul.f32 %v2712, %v2818
        %v2851 = vmul.f32 %v2714, %v2819
        %v2852 = vmul.f32 %v2716, %v2820
        %v2853 = vmul.f32 %v2718, %v2821
        %v2854 = vmul.f32 %v2720, %v2822
        %v2855 = vmul.f32 %v2722, %v2823
        %v2856 = vmul.f32 %v2724, %v2824
        %v2857 = vmul.f32 %v2726, %v2825
        %v2858 = vmul.f32 %v2728, %v2826
        %v2859 = vmul.f32 %v2730, %v2827
        %v2860 = vmul.f32 %v2732, %v2828
        %v2861 = vpack.c.bf16 %v2830, %v2829
        %v2862 = vpack.c.bf16 %v2832, %v2831
        %v2863 = vpack.c.bf16 %v2834, %v2833
        %v2864 = vpack.c.bf16 %v2836, %v2835
        %v2865 = vpack.c.bf16 %v2838, %v2837
        %v2866 = vpack.c.bf16 %v2840, %v2839
        %v2867 = vpack.c.bf16 %v2842, %v2841
        %v2868 = vpack.c.bf16 %v2844, %v2843
        %v2869 = vpack.c.bf16 %v2846, %v2845
        %v2870 = vpack.c.bf16 %v2848, %v2847
        %v2871 = vpack.c.bf16 %v2850, %v2849
        %v2872 = vpack.c.bf16 %v2852, %v2851
        %v2873 = vpack.c.bf16 %v2854, %v2853
        %v2874 = vpack.c.bf16 %v2856, %v2855
        %v2875 = vpack.c.bf16 %v2858, %v2857
        %v2876 = vpack.c.bf16 %v2860, %v2859
        %2877 = vmatprep.subr.bf16.mxu0 0
        %2878 = vmatpush1.bf16.msra.mxu0 %v2200
        %2879 = vmatprep.subr.bf16.mxu0 0
        %2880 = vmatpush1.bf16.msra.mxu0 %v2201
        %2881 = vmatprep.subr.bf16.mxu0 0
        %2882 = vmatpush1.bf16.msra.mxu0 %v2202
        %2883 = vmatprep.subr.bf16.mxu0 0
        %2884 = vmatpush1.bf16.msra.mxu0 %v2203
        %2885 = vmatprep.subr.bf16.mxu0 0
        %2886 = vmatpush1.bf16.msra.mxu0 %v2204
        %2887 = vmatprep.subr.bf16.mxu0 0
        %2888 = vmatpush1.bf16.msra.mxu0 %v2205
        %2889 = vmatprep.subr.bf16.mxu0 0
        %2890 = vmatpush1.bf16.msra.mxu0 %v2206
        %2891 = vmatprep.subr.bf16.mxu0 0
        %2892 = vmatpush1.bf16.msra.mxu0 %v2207
        %2893 = vmatprep.subr.bf16.mxu0 0
        %2894 = vmatpush1.bf16.msra.mxu0 0
        %2895 = vmatprep.subr.bf16.mxu0 0
        %2896 = vmatpush1.bf16.msra.mxu0 0
        %2897 = vmatprep.subr.bf16.mxu0 0
        %2898 = vmatpush1.bf16.msra.mxu0 0
        %2899 = vmatprep.subr.bf16.mxu0 0
        %2900 = vmatpush1.bf16.msra.mxu0 0
        %2901 = vmatprep.subr.bf16.mxu0 0
        %2902 = vmatpush1.bf16.msra.mxu0 0
        %2903 = vmatprep.subr.bf16.mxu0 0
        %2904 = vmatpush1.bf16.msra.mxu0 0
        %2905 = vmatprep.subr.bf16.mxu0 0
        %2906 = vmatpush1.bf16.msra.mxu0 0
        %2907 = vmatprep.subr.bf16.mxu0 0
        %2908 = vmatpush1.bf16.msra.mxu0 0
        %2909 = vmatprep.mubr.bf16.mxu0 0
        %2910 = vmatmul.mubr.bf16.gmra.mrb[0].mxu0 %v2861
        %v2911 = vpop.f32.mrb[0].mxu0
        %v2912 = vadd.f32 0.0, %v2911
        %v2913 = vpop.f32.mrb[0].mxu0
        %v2914 = vpop.f32.mrb[0].mxu0
        %v2915 = vadd.f32 0.0, %v2914
        %v2916 = vpop.f32.mrb[0].mxu0
        %2917 = vmatprep.mubr.bf16.mxu0 0
        %2918 = vmatmul.mubr.bf16.gmra.mrb[0].mxu0 %v2862
        %v2919 = vpop.f32.mrb[0].mxu0
        %v2920 = vadd.f32 0.0, %v2919
        %v2921 = vpop.f32.mrb[0].mxu0
        %v2922 = vpop.f32.mrb[0].mxu0
        %v2923 = vadd.f32 0.0, %v2922
        %v2924 = vpop.f32.mrb[0].mxu0
        %2925 = vmatprep.mubr.bf16.mxu0 0
        %2926 = vmatmul.mubr.bf16.gmra.mrb[0].mxu0 %v2863
        %v2927 = vpop.f32.mrb[0].mxu0
        %v2928 = vadd.f32 0.0, %v2927
        %v2929 = vpop.f32.mrb[0].mxu0
        %v2930 = vpop.f32.mrb[0].mxu0
        %v2931 = vadd.f32 0.0, %v2930
        %v2932 = vpop.f32.mrb[0].mxu0
        %2933 = vmatprep.mubr.bf16.mxu0 0
        %2934 = vmatmul.mubr.bf16.gmra.mrb[0].mxu0 %v2864
        %v2935 = vpop.f32.mrb[0].mxu0
        %v2936 = vadd.f32 0.0, %v2935
        %v2937 = vpop.f32.mrb[0].mxu0
        %v2938 = vpop.f32.mrb[0].mxu0
        %v2939 = vadd.f32 0.0, %v2938
        %v2940 = vpop.f32.mrb[0].mxu0
        %2941 = vmatprep.mubr.bf16.mxu0 0
        %2942 = vmatmul.mubr.bf16.gmra.mrb[0].mxu0 %v2865
        %v2943 = vpop.f32.mrb[0].mxu0
        %v2944 = vadd.f32 0.0, %v2943
        %v2945 = vpop.f32.mrb[0].mxu0
        %v2946 = vpop.f32.mrb[0].mxu0
        %v2947 = vadd.f32 0.0, %v2946
        %v2948 = vpop.f32.mrb[0].mxu0
        %2949 = vmatprep.mubr.bf16.mxu0 0
        %2950 = vmatmul.mubr.bf16.gmra.mrb[0].mxu0 %v2866
        %v2951 = vpop.f32.mrb[0].mxu0
        %v2952 = vadd.f32 0.0, %v2951
        %v2953 = vpop.f32.mrb[0].mxu0
        %v2954 = vpop.f32.mrb[0].mxu0
        %v2955 = vadd.f32 0.0, %v2954
        %v2956 = vpop.f32.mrb[0].mxu0
        %2957 = vmatprep.mubr.bf16.mxu0 0
        %2958 = vmatmul.mubr.bf16.gmra.mrb[0].mxu0 %v2867
        %v2959 = vpop.f32.mrb[0].mxu0
        %v2960 = vadd.f32 0.0, %v2959
        %v2961 = vpop.f32.mrb[0].mxu0
        %v2962 = vpop.f32.mrb[0].mxu0
        %v2963 = vadd.f32 0.0, %v2962
        %v2964 = vpop.f32.mrb[0].mxu0
        %2965 = vmatprep.mubr.bf16.mxu0 0
        %2966 = vmatmul.mubr.bf16.gmra.mrb[0].mxu0 %v2868
        %v2967 = vpop.f32.mrb[0].mxu0
        %v2968 = vadd.f32 0.0, %v2967
        %v2969 = vpop.f32.mrb[0].mxu0
        %v2970 = vpop.f32.mrb[0].mxu0
        %v2971 = vadd.f32 0.0, %v2970
        %v2972 = vpop.f32.mrb[0].mxu0
        %2973 = vdwg.mxu0
        %2974 = vmatprep.subr.bf16.mxu0 0
        %2975 = vmatpush1.bf16.msra.mxu0 %v2208
        %2976 = vmatprep.subr.bf16.mxu0 0
        %2977 = vmatpush1.bf16.msra.mxu0 %v2209
        %2978 = vmatprep.subr.bf16.mxu0 0
        %2979 = vmatpush1.bf16.msra.mxu0 %v2210
        %2980 = vmatprep.subr.bf16.mxu0 0
        %2981 = vmatpush1.bf16.msra.mxu0 %v2211
        %2982 = vmatprep.subr.bf16.mxu0 0
        %2983 = vmatpush1.bf16.msra.mxu0 %v2212
        %2984 = vmatprep.subr.bf16.mxu0 0
        %2985 = vmatpush1.bf16.msra.mxu0 %v2213
        %2986 = vmatprep.subr.bf16.mxu0 0
        %2987 = vmatpush1.bf16.msra.mxu0 %v2214
        %2988 = vmatprep.subr.bf16.mxu0 0
        %2989 = vmatpush1.bf16.msra.mxu0 %v2215
        %2990 = vmatprep.subr.bf16.mxu0 0
        %2991 = vmatpush1.bf16.msra.mxu0 0
        %2992 = vmatprep.subr.bf16.mxu0 0
        %2993 = vmatpush1.bf16.msra.mxu0 0
        %2994 = vmatprep.subr.bf16.mxu0 0
        %2995 = vmatpush1.bf16.msra.mxu0 0
        %2996 = vmatprep.subr.bf16.mxu0 0
        %2997 = vmatpush1.bf16.msra.mxu0 0
        %2998 = vmatprep.subr.bf16.mxu0 0
        %2999 = vmatpush1.bf16.msra.mxu0 0
        %3000 = vmatprep.subr.bf16.mxu0 0
        %3001 = vmatpush1.bf16.msra.mxu0 0
        %3002 = vmatprep.subr.bf16.mxu0 0
        %3003 = vmatpush1.bf16.msra.mxu0 0
        %3004 = vmatprep.subr.bf16.mxu0 0
        %3005 = vmatpush1.bf16.msra.mxu0 0
        %3006 = vmatprep.mubr.bf16.mxu0 0
        %3007 = vmatmul.mubr.bf16.gmra.mrb[0].mxu0 %v2869
        %v3008 = vpop.f32.mrb[0].mxu0
        %v3009 = vadd.f32 0.0, %v3008
        %v3010 = vpop.f32.mrb[0].mxu0
        %v3011 = vpop.f32.mrb[0].mxu0
        %v3012 = vadd.f32 0.0, %v3011
        %v3013 = vpop.f32.mrb[0].mxu0
        %3014 = vmatprep.mubr.bf16.mxu0 0
        %3015 = vmatmul.mubr.bf16.gmra.mrb[0].mxu0 %v2870
        %v3016 = vpop.f32.mrb[0].mxu0
        %v3017 = vadd.f32 0.0, %v3016
        %v3018 = vpop.f32.mrb[0].mxu0
        %v3019 = vpop.f32.mrb[0].mxu0
        %v3020 = vadd.f32 0.0, %v3019
        %v3021 = vpop.f32.mrb[0].mxu0
        %3022 = vmatprep.mubr.bf16.mxu0 0
        %3023 = vmatmul.mubr.bf16.gmra.mrb[0].mxu0 %v2871
        %v3024 = vpop.f32.mrb[0].mxu0
        %v3025 = vadd.f32 0.0, %v3024
        %v3026 = vpop.f32.mrb[0].mxu0
        %v3027 = vpop.f32.mrb[0].mxu0
        %v3028 = vadd.f32 0.0, %v3027
        %v3029 = vpop.f32.mrb[0].mxu0
        %3030 = vmatprep.mubr.bf16.mxu0 0
        %3031 = vmatmul.mubr.bf16.gmra.mrb[0].mxu0 %v2872
        %v3032 = vpop.f32.mrb[0].mxu0
        %v3033 = vadd.f32 0.0, %v3032
        %v3034 = vpop.f32.mrb[0].mxu0
        %v3035 = vpop.f32.mrb[0].mxu0
        %v3036 = vadd.f32 0.0, %v3035
        %v3037 = vpop.f32.mrb[0].mxu0
        %3038 = vmatprep.mubr.bf16.mxu0 0
        %3039 = vmatmul.mubr.bf16.gmra.mrb[0].mxu0 %v2873
        %v3040 = vpop.f32.mrb[0].mxu0
        %v3041 = vadd.f32 0.0, %v3040
        %v3042 = vpop.f32.mrb[0].mxu0
        %v3043 = vpop.f32.mrb[0].mxu0
        %v3044 = vadd.f32 0.0, %v3043
        %v3045 = vpop.f32.mrb[0].mxu0
        %3046 = vmatprep.mubr.bf16.mxu0 0
        %3047 = vmatmul.mubr.bf16.gmra.mrb[0].mxu0 %v2874
        %v3048 = vpop.f32.mrb[0].mxu0
        %v3049 = vadd.f32 0.0, %v3048
        %v3050 = vpop.f32.mrb[0].mxu0
        %v3051 = vpop.f32.mrb[0].mxu0
        %v3052 = vadd.f32 0.0, %v3051
        %v3053 = vpop.f32.mrb[0].mxu0
        %3054 = vmatprep.mubr.bf16.mxu0 0
        %3055 = vmatmul.mubr.bf16.gmra.mrb[0].mxu0 %v2875
        %v3056 = vpop.f32.mrb[0].mxu0
        %v3057 = vadd.f32 0.0, %v3056
        %v3058 = vpop.f32.mrb[0].mxu0
        %v3059 = vpop.f32.mrb[0].mxu0
        %v3060 = vadd.f32 0.0, %v3059
        %v3061 = vpop.f32.mrb[0].mxu0
        %3062 = vmatprep.mubr.bf16.mxu0 0
        %3063 = vmatmul.mubr.bf16.gmra.mrb[0].mxu0 %v2876
        %v3064 = vpop.f32.mrb[0].mxu0
        %v3065 = vadd.f32 0.0, %v3064
        %v3066 = vpop.f32.mrb[0].mxu0
        %v3067 = vpop.f32.mrb[0].mxu0
        %v3068 = vadd.f32 0.0, %v3067
        %v3069 = vpop.f32.mrb[0].mxu0
        %3070 = vdwg.mxu0
        %v3071 = vpack.c.bf16 %v2915, %v2912
        %v3072 = vpack.c.bf16 %v2923, %v2920
        %v3073 = vpack.c.bf16 %v2931, %v2928
        %v3074 = vpack.c.bf16 %v2939, %v2936
        %v3075 = vpack.c.bf16 %v2947, %v2944
        %v3076 = vpack.c.bf16 %v2955, %v2952
        %v3077 = vpack.c.bf16 %v2963, %v2960
        %v3078 = vpack.c.bf16 %v2971, %v2968
        %v3079 = vpack.c.bf16 %v3012, %v3009
        %v3080 = vpack.c.bf16 %v3020, %v3017
        %v3081 = vpack.c.bf16 %v3028, %v3025
        %v3082 = vpack.c.bf16 %v3036, %v3033
        %v3083 = vpack.c.bf16 %v3044, %v3041
        %v3084 = vpack.c.bf16 %v3052, %v3049
        %v3085 = vpack.c.bf16 %v3060, %v3057
        %v3086 = vpack.c.bf16 %v3068, %v3065
        %v3087 = vld [vmem:[%s486] sm:$0xf]
        %v3088 = vld [vmem:[%s486 + $0x4] sm:$0xf]
        %v3089 = vld [vmem:[%s486 + $0x8] sm:$0xf]
        %v3090 = vld [vmem:[%s486 + $0xc] sm:$0xf]
        %3099 = vrot.lane.b32.xlu0 %v2168, 96
        %v3100 = vpop.permute.xlu0 %3099
        %3101 = vrot.lane.b32.xlu0 %v2169, 96
        %v3102 = vpop.permute.xlu0 %3101
        %3103 = vrot.lane.b32.xlu0 %v2170, 96
        %v3104 = vpop.permute.xlu0 %3103
        %3105 = vrot.lane.b32.xlu0 %v2171, 96
        %v3106 = vpop.permute.xlu0 %3105
        %3107 = vrot.lane.b32.xlu0 %v2172, 96
        %v3108 = vpop.permute.xlu0 %3107
        %3109 = vrot.lane.b32.xlu0 %v2173, 96
        %v3110 = vpop.permute.xlu0 %3109
        %3111 = vrot.lane.b32.xlu0 %v2174, 96
        %v3112 = vpop.permute.xlu0 %3111
        %3113 = vrot.lane.b32.xlu0 %v2175, 96
        %v3114 = vpop.permute.xlu0 %3113
        %3123 = vrot.lane.b32.xlu0 %v2184, 96
        %v3124 = vpop.permute.xlu0 %3123
        %3125 = vrot.lane.b32.xlu0 %v2185, 96
        %v3126 = vpop.permute.xlu0 %3125
        %3127 = vrot.lane.b32.xlu0 %v2186, 96
        %v3128 = vpop.permute.xlu0 %3127
        %3129 = vrot.lane.b32.xlu0 %v2187, 96
        %v3130 = vpop.permute.xlu0 %3129
        %3131 = vrot.lane.b32.xlu0 %v2188, 96
        %v3132 = vpop.permute.xlu0 %3131
        %3133 = vrot.lane.b32.xlu0 %v2189, 96
        %v3134 = vpop.permute.xlu0 %3133
        %3135 = vrot.lane.b32.xlu0 %v2190, 96
        %v3136 = vpop.permute.xlu0 %3135
        %3137 = vrot.lane.b32.xlu0 %v2191, 96
        %v3138 = vpop.permute.xlu0 %3137
        %v3140 = vsel %vm2216, %v3100, 0
        %v3143 = vsel %vm2216, %v3102, 0
        %v3146 = vsel %vm2216, %v3104, 0
        %v3149 = vsel %vm2216, %v3106, 0
        %v3152 = vsel %vm2216, %v3108, 0
        %v3155 = vsel %vm2216, %v3110, 0
        %v3158 = vsel %vm2216, %v3112, 0
        %v3161 = vsel %vm2216, %v3114, 0
        %v3164 = vsel %vm2216, %v3124, 0
        %v3167 = vsel %vm2216, %v3126, 0
        %v3170 = vsel %vm2216, %v3128, 0
        %v3173 = vsel %vm2216, %v3130, 0
        %v3176 = vsel %vm2216, %v3132, 0
        %v3179 = vsel %vm2216, %v3134, 0
        %v3182 = vsel %vm2216, %v3136, 0
        %v3185 = vsel %vm2216, %v3138, 0
        %3187 = vmatprep.subr.bf16.mxu0 0
        %3188 = vmatpush1.bf16.xpose.msra.mxu0 %v3164
        %3189 = vmatprep.subr.bf16.mxu0 0
        %3190 = vmatpush1.bf16.xpose.msra.mxu0 %v3167
        %3191 = vmatprep.subr.bf16.mxu0 0
        %3192 = vmatpush1.bf16.xpose.msra.mxu0 %v3170
        %3193 = vmatprep.subr.bf16.mxu0 0
        %3194 = vmatpush1.bf16.xpose.msra.mxu0 %v3173
        %3195 = vmatprep.subr.bf16.mxu0 0
        %3196 = vmatpush1.bf16.xpose.msra.mxu0 %v3176
        %3197 = vmatprep.subr.bf16.mxu0 0
        %3198 = vmatpush1.bf16.xpose.msra.mxu0 %v3179
        %3199 = vmatprep.subr.bf16.mxu0 0
        %3200 = vmatpush1.bf16.xpose.msra.mxu0 %v3182
        %3201 = vmatprep.subr.bf16.mxu0 0
        %3202 = vmatpush1.bf16.xpose.msra.mxu0 %v3185
        %3203 = vmatprep.subr.bf16.mxu0 0
        %3204 = vmatpush1.bf16.xpose.msra.mxu0 0
        %3205 = vmatprep.subr.bf16.mxu0 0
        %3206 = vmatpush1.bf16.xpose.msra.mxu0 0
        %3207 = vmatprep.subr.bf16.mxu0 0
        %3208 = vmatpush1.bf16.xpose.msra.mxu0 0
        %3209 = vmatprep.subr.bf16.mxu0 0
        %3210 = vmatpush1.bf16.xpose.msra.mxu0 0
        %3211 = vmatprep.subr.bf16.mxu0 0
        %3212 = vmatpush1.bf16.xpose.msra.mxu0 0
        %3213 = vmatprep.subr.bf16.mxu0 0
        %3214 = vmatpush1.bf16.xpose.msra.mxu0 0
        %3215 = vmatprep.subr.bf16.mxu0 0
        %3216 = vmatpush1.bf16.xpose.msra.mxu0 0
        %3217 = vmatprep.subr.bf16.mxu0 0
        %3218 = vmatpush1.bf16.xpose.msra.mxu0 0
        %3219 = vmatprep.mubr.bf16.mxu0 0
        %3220 = vmatmul.mubr.bf16.gmra.mrb[0].mxu0 %v3140
        %v3221 = vpop.f32.mrb[0].mxu0
        %v3222 = vadd.f32 0.0, %v3221
        %v3223 = vpop.f32.mrb[0].mxu0
        %v3224 = vpop.f32.mrb[0].mxu0
        %v3225 = vadd.f32 0.0, %v3224
        %v3226 = vpop.f32.mrb[0].mxu0
        %3227 = vmatprep.mubr.bf16.mxu0 0
        %3228 = vmatmul.mubr.bf16.gmra.mrb[0].mxu0 %v3143
        %v3229 = vpop.f32.mrb[0].mxu0
        %v3230 = vadd.f32 0.0, %v3229
        %v3231 = vpop.f32.mrb[0].mxu0
        %v3232 = vpop.f32.mrb[0].mxu0
        %v3233 = vadd.f32 0.0, %v3232
        %v3234 = vpop.f32.mrb[0].mxu0
        %3235 = vmatprep.mubr.bf16.mxu0 0
        %3236 = vmatmul.mubr.bf16.gmra.mrb[0].mxu0 %v3146
        %v3237 = vpop.f32.mrb[0].mxu0
        %v3238 = vadd.f32 0.0, %v3237
        %v3239 = vpop.f32.mrb[0].mxu0
        %v3240 = vpop.f32.mrb[0].mxu0
        %v3241 = vadd.f32 0.0, %v3240
        %v3242 = vpop.f32.mrb[0].mxu0
        %3243 = vmatprep.mubr.bf16.mxu0 0
        %3244 = vmatmul.mubr.bf16.gmra.mrb[0].mxu0 %v3149
        %v3245 = vpop.f32.mrb[0].mxu0
        %v3246 = vadd.f32 0.0, %v3245
        %v3247 = vpop.f32.mrb[0].mxu0
        %v3248 = vpop.f32.mrb[0].mxu0
        %v3249 = vadd.f32 0.0, %v3248
        %v3250 = vpop.f32.mrb[0].mxu0
        %3251 = vmatprep.mubr.bf16.mxu0 0
        %3252 = vmatmul.mubr.bf16.gmra.mrb[0].mxu0 %v3152
        %v3253 = vpop.f32.mrb[0].mxu0
        %v3254 = vadd.f32 0.0, %v3253
        %v3255 = vpop.f32.mrb[0].mxu0
        %v3256 = vpop.f32.mrb[0].mxu0
        %v3257 = vadd.f32 0.0, %v3256
        %v3258 = vpop.f32.mrb[0].mxu0
        %3259 = vmatprep.mubr.bf16.mxu0 0
        %3260 = vmatmul.mubr.bf16.gmra.mrb[0].mxu0 %v3155
        %v3261 = vpop.f32.mrb[0].mxu0
        %v3262 = vadd.f32 0.0, %v3261
        %v3263 = vpop.f32.mrb[0].mxu0
        %v3264 = vpop.f32.mrb[0].mxu0
        %v3265 = vadd.f32 0.0, %v3264
        %v3266 = vpop.f32.mrb[0].mxu0
        %3267 = vmatprep.mubr.bf16.mxu0 0
        %3268 = vmatmul.mubr.bf16.gmra.mrb[0].mxu0 %v3158
        %v3269 = vpop.f32.mrb[0].mxu0
        %v3270 = vadd.f32 0.0, %v3269
        %v3271 = vpop.f32.mrb[0].mxu0
        %v3272 = vpop.f32.mrb[0].mxu0
        %v3273 = vadd.f32 0.0, %v3272
        %v3274 = vpop.f32.mrb[0].mxu0
        %3275 = vmatprep.mubr.bf16.mxu0 0
        %3276 = vmatmul.mubr.bf16.gmra.mrb[0].mxu0 %v3161
        %v3277 = vpop.f32.mrb[0].mxu0
        %v3278 = vadd.f32 0.0, %v3277
        %v3279 = vpop.f32.mrb[0].mxu0
        %v3280 = vpop.f32.mrb[0].mxu0
        %v3281 = vadd.f32 0.0, %v3280
        %v3282 = vpop.f32.mrb[0].mxu0
        %3283 = vdwg.mxu0
        %3292 = vrot.lane.b32.xlu0 %v2176, 96
        %v3293 = vpop.permute.xlu0 %3292
        %3294 = vrot.lane.b32.xlu0 %v2177, 96
        %v3295 = vpop.permute.xlu0 %3294
        %3296 = vrot.lane.b32.xlu0 %v2178, 96
        %v3297 = vpop.permute.xlu0 %3296
        %3298 = vrot.lane.b32.xlu0 %v2179, 96
        %v3299 = vpop.permute.xlu0 %3298
        %3300 = vrot.lane.b32.xlu0 %v2180, 96
        %v3301 = vpop.permute.xlu0 %3300
        %3302 = vrot.lane.b32.xlu0 %v2181, 96
        %v3303 = vpop.permute.xlu0 %3302
        %3304 = vrot.lane.b32.xlu0 %v2182, 96
        %v3305 = vpop.permute.xlu0 %3304
        %3306 = vrot.lane.b32.xlu0 %v2183, 96
        %v3307 = vpop.permute.xlu0 %3306
        %3316 = vrot.lane.b32.xlu0 %v2192, 96
        %v3317 = vpop.permute.xlu0 %3316
        %3318 = vrot.lane.b32.xlu0 %v2193, 96
        %v3319 = vpop.permute.xlu0 %3318
        %3320 = vrot.lane.b32.xlu0 %v2194, 96
        %v3321 = vpop.permute.xlu0 %3320
        %3322 = vrot.lane.b32.xlu0 %v2195, 96
        %v3323 = vpop.permute.xlu0 %3322
        %3324 = vrot.lane.b32.xlu0 %v2196, 96
        %v3325 = vpop.permute.xlu0 %3324
        %3326 = vrot.lane.b32.xlu0 %v2197, 96
        %v3327 = vpop.permute.xlu0 %3326
        %3328 = vrot.lane.b32.xlu0 %v2198, 96
        %v3329 = vpop.permute.xlu0 %3328
        %3330 = vrot.lane.b32.xlu0 %v2199, 96
        %v3331 = vpop.permute.xlu0 %3330
        %v3333 = vsel %vm2216, %v3293, 0
        %v3336 = vsel %vm2216, %v3295, 0
        %v3339 = vsel %vm2216, %v3297, 0
        %v3342 = vsel %vm2216, %v3299, 0
        %v3345 = vsel %vm2216, %v3301, 0
        %v3348 = vsel %vm2216, %v3303, 0
        %v3351 = vsel %vm2216, %v3305, 0
        %v3354 = vsel %vm2216, %v3307, 0
        %v3357 = vsel %vm2216, %v3317, 0
        %v3360 = vsel %vm2216, %v3319, 0
        %v3363 = vsel %vm2216, %v3321, 0
        %v3366 = vsel %vm2216, %v3323, 0
        %v3369 = vsel %vm2216, %v3325, 0
        %v3372 = vsel %vm2216, %v3327, 0
        %v3375 = vsel %vm2216, %v3329, 0
        %v3378 = vsel %vm2216, %v3331, 0
        %3380 = vmatprep.subr.bf16.mxu0 0
        %3381 = vmatpush1.bf16.xpose.msra.mxu0 %v3357
        %3382 = vmatprep.subr.bf16.mxu0 0
        %3383 = vmatpush1.bf16.xpose.msra.mxu0 %v3360
        %3384 = vmatprep.subr.bf16.mxu0 0
        %3385 = vmatpush1.bf16.xpose.msra.mxu0 %v3363
        %3386 = vmatprep.subr.bf16.mxu0 0
        %3387 = vmatpush1.bf16.xpose.msra.mxu0 %v3366
        %3388 = vmatprep.subr.bf16.mxu0 0
        %3389 = vmatpush1.bf16.xpose.msra.mxu0 %v3369
        %3390 = vmatprep.subr.bf16.mxu0 0
        %3391 = vmatpush1.bf16.xpose.msra.mxu0 %v3372
        %3392 = vmatprep.subr.bf16.mxu0 0
        %3393 = vmatpush1.bf16.xpose.msra.mxu0 %v3375
        %3394 = vmatprep.subr.bf16.mxu0 0
        %3395 = vmatpush1.bf16.xpose.msra.mxu0 %v3378
        %3396 = vmatprep.subr.bf16.mxu0 0
        %3397 = vmatpush1.bf16.xpose.msra.mxu0 0
        %3398 = vmatprep.subr.bf16.mxu0 0
        %3399 = vmatpush1.bf16.xpose.msra.mxu0 0
        %3400 = vmatprep.subr.bf16.mxu0 0
        %3401 = vmatpush1.bf16.xpose.msra.mxu0 0
        %3402 = vmatprep.subr.bf16.mxu0 0
        %3403 = vmatpush1.bf16.xpose.msra.mxu0 0
        %3404 = vmatprep.subr.bf16.mxu0 0
        %3405 = vmatpush1.bf16.xpose.msra.mxu0 0
        %3406 = vmatprep.subr.bf16.mxu0 0
        %3407 = vmatpush1.bf16.xpose.msra.mxu0 0
        %3408 = vmatprep.subr.bf16.mxu0 0
        %3409 = vmatpush1.bf16.xpose.msra.mxu0 0
        %3410 = vmatprep.subr.bf16.mxu0 0
        %3411 = vmatpush1.bf16.xpose.msra.mxu0 0
        %3412 = vmatprep.mubr.bf16.mxu0 0
        %3413 = vmatmul.mubr.bf16.gmra.mrb[0].mxu0 %v3333
        %v3414 = vpop.f32.mrb[0].mxu0
        %v3415 = vadd.f32 0.0, %v3414
        %v3416 = vpop.f32.mrb[0].mxu0
        %v3417 = vpop.f32.mrb[0].mxu0
        %v3418 = vadd.f32 0.0, %v3417
        %v3419 = vpop.f32.mrb[0].mxu0
        %3420 = vmatprep.mubr.bf16.mxu0 0
        %3421 = vmatmul.mubr.bf16.gmra.mrb[0].mxu0 %v3336
        %v3422 = vpop.f32.mrb[0].mxu0
        %v3423 = vadd.f32 0.0, %v3422
        %v3424 = vpop.f32.mrb[0].mxu0
        %v3425 = vpop.f32.mrb[0].mxu0
        %v3426 = vadd.f32 0.0, %v3425
        %v3427 = vpop.f32.mrb[0].mxu0
        %3428 = vmatprep.mubr.bf16.mxu0 0
        %3429 = vmatmul.mubr.bf16.gmra.mrb[0].mxu0 %v3339
        %v3430 = vpop.f32.mrb[0].mxu0
        %v3431 = vadd.f32 0.0, %v3430
        %v3432 = vpop.f32.mrb[0].mxu0
        %v3433 = vpop.f32.mrb[0].mxu0
        %v3434 = vadd.f32 0.0, %v3433
        %v3435 = vpop.f32.mrb[0].mxu0
        %3436 = vmatprep.mubr.bf16.mxu0 0
        %3437 = vmatmul.mubr.bf16.gmra.mrb[0].mxu0 %v3342
        %v3438 = vpop.f32.mrb[0].mxu0
        %v3439 = vadd.f32 0.0, %v3438
        %v3440 = vpop.f32.mrb[0].mxu0
        %v3441 = vpop.f32.mrb[0].mxu0
        %v3442 = vadd.f32 0.0, %v3441
        %v3443 = vpop.f32.mrb[0].mxu0
        %3444 = vmatprep.mubr.bf16.mxu0 0
        %3445 = vmatmul.mubr.bf16.gmra.mrb[0].mxu0 %v3345
        %v3446 = vpop.f32.mrb[0].mxu0
        %v3447 = vadd.f32 0.0, %v3446
        %v3448 = vpop.f32.mrb[0].mxu0
        %v3449 = vpop.f32.mrb[0].mxu0
        %v3450 = vadd.f32 0.0, %v3449
        %v3451 = vpop.f32.mrb[0].mxu0
        %3452 = vmatprep.mubr.bf16.mxu0 0
        %3453 = vmatmul.mubr.bf16.gmra.mrb[0].mxu0 %v3348
        %v3454 = vpop.f32.mrb[0].mxu0
        %v3455 = vadd.f32 0.0, %v3454
        %v3456 = vpop.f32.mrb[0].mxu0
        %v3457 = vpop.f32.mrb[0].mxu0
        %v3458 = vadd.f32 0.0, %v3457
        %v3459 = vpop.f32.mrb[0].mxu0
        %3460 = vmatprep.mubr.bf16.mxu0 0
        %3461 = vmatmul.mubr.bf16.gmra.mrb[0].mxu0 %v3351
        %v3462 = vpop.f32.mrb[0].mxu0
        %v3463 = vadd.f32 0.0, %v3462
        %v3464 = vpop.f32.mrb[0].mxu0
        %v3465 = vpop.f32.mrb[0].mxu0
        %v3466 = vadd.f32 0.0, %v3465
        %v3467 = vpop.f32.mrb[0].mxu0
        %3468 = vmatprep.mubr.bf16.mxu0 0
        %3469 = vmatmul.mubr.bf16.gmra.mrb[0].mxu0 %v3354
        %v3470 = vpop.f32.mrb[0].mxu0
        %v3471 = vadd.f32 0.0, %v3470
        %v3472 = vpop.f32.mrb[0].mxu0
        %v3473 = vpop.f32.mrb[0].mxu0
        %v3474 = vadd.f32 0.0, %v3473
        %v3475 = vpop.f32.mrb[0].mxu0
        %3476 = vdwg.mxu0
        %v3477 = vmul.f32 %v3222, 0.35355338
        %v3478 = vmul.f32 %v3225, 0.35355338
        %v3479 = vmul.f32 %v3230, 0.35355338
        %v3480 = vmul.f32 %v3233, 0.35355338
        %v3481 = vmul.f32 %v3238, 0.35355338
        %v3482 = vmul.f32 %v3241, 0.35355338
        %v3483 = vmul.f32 %v3246, 0.35355338
        %v3484 = vmul.f32 %v3249, 0.35355338
        %v3485 = vmul.f32 %v3254, 0.35355338
        %v3486 = vmul.f32 %v3257, 0.35355338
        %v3487 = vmul.f32 %v3262, 0.35355338
        %v3488 = vmul.f32 %v3265, 0.35355338
        %v3489 = vmul.f32 %v3270, 0.35355338
        %v3490 = vmul.f32 %v3273, 0.35355338
        %v3491 = vmul.f32 %v3278, 0.35355338
        %v3492 = vmul.f32 %v3281, 0.35355338
        %v3493 = vmul.f32 %v3415, 0.35355338
        %v3494 = vmul.f32 %v3418, 0.35355338
        %v3495 = vmul.f32 %v3423, 0.35355338
        %v3496 = vmul.f32 %v3426, 0.35355338
        %v3497 = vmul.f32 %v3431, 0.35355338
        %v3498 = vmul.f32 %v3434, 0.35355338
        %v3499 = vmul.f32 %v3439, 0.35355338
        %v3500 = vmul.f32 %v3442, 0.35355338
        %v3501 = vmul.f32 %v3447, 0.35355338
        %v3502 = vmul.f32 %v3450, 0.35355338
        %v3503 = vmul.f32 %v3455, 0.35355338
        %v3504 = vmul.f32 %v3458, 0.35355338
        %v3505 = vmul.f32 %v3463, 0.35355338
        %v3506 = vmul.f32 %v3466, 0.35355338
        %v3507 = vmul.f32 %v3471, 0.35355338
        %v3508 = vmul.f32 %v3474, 0.35355338
        %v3509 = vsel %vm2540, %v3477, -1e+30
        %v3510 = vsel %vm2540, %v3478, -1e+30
        %v3511 = vsel %vm2540, %v3479, -1e+30
        %v3512 = vsel %vm2540, %v3480, -1e+30
        %v3513 = vsel %vm2540, %v3481, -1e+30
        %v3514 = vsel %vm2540, %v3482, -1e+30
        %v3515 = vsel %vm2540, %v3483, -1e+30
        %v3516 = vsel %vm2540, %v3484, -1e+30
        %v3517 = vsel %vm2540, %v3485, -1e+30
        %v3518 = vsel %vm2540, %v3486, -1e+30
        %v3519 = vsel %vm2540, %v3487, -1e+30
        %v3520 = vsel %vm2540, %v3488, -1e+30
        %v3521 = vsel %vm2540, %v3489, -1e+30
        %v3522 = vsel %vm2540, %v3490, -1e+30
        %v3523 = vsel %vm2540, %v3491, -1e+30
        %v3524 = vsel %vm2540, %v3492, -1e+30
        %v3525 = vsel %vm2540, %v3493, -1e+30
        %v3526 = vsel %vm2540, %v3494, -1e+30
        %v3527 = vsel %vm2540, %v3495, -1e+30
        %v3528 = vsel %vm2540, %v3496, -1e+30
        %v3529 = vsel %vm2540, %v3497, -1e+30
        %v3530 = vsel %vm2540, %v3498, -1e+30
        %v3531 = vsel %vm2540, %v3499, -1e+30
        %v3532 = vsel %vm2540, %v3500, -1e+30
        %v3533 = vsel %vm2540, %v3501, -1e+30
        %v3534 = vsel %vm2540, %v3502, -1e+30
        %v3535 = vsel %vm2540, %v3503, -1e+30
        %v3536 = vsel %vm2540, %v3504, -1e+30
        %v3537 = vsel %vm2540, %v3505, -1e+30
        %v3538 = vsel %vm2540, %v3506, -1e+30
        %v3539 = vsel %vm2540, %v3507, -1e+30
        %v3540 = vsel %vm2540, %v3508, -1e+30
        %3541 = vmax.xlane.f32.xlu0 %v3509
        %v3542 = vpop.xlane.xlu0 %3541
        %3543 = vmax.xlane.f32.xlu0 %v3510
        %v3544 = vpop.xlane.xlu0 %3543
        %3545 = vmax.xlane.f32.xlu0 %v3511
        %v3546 = vpop.xlane.xlu0 %3545
        %3547 = vmax.xlane.f32.xlu0 %v3512
        %v3548 = vpop.xlane.xlu0 %3547
        %3549 = vmax.xlane.f32.xlu0 %v3513
        %v3550 = vpop.xlane.xlu0 %3549
        %3551 = vmax.xlane.f32.xlu0 %v3514
        %v3552 = vpop.xlane.xlu0 %3551
        %3553 = vmax.xlane.f32.xlu0 %v3515
        %v3554 = vpop.xlane.xlu0 %3553
        %3555 = vmax.xlane.f32.xlu0 %v3516
        %v3556 = vpop.xlane.xlu0 %3555
        %3557 = vmax.xlane.f32.xlu0 %v3517
        %v3558 = vpop.xlane.xlu0 %3557
        %3559 = vmax.xlane.f32.xlu0 %v3518
        %v3560 = vpop.xlane.xlu0 %3559
        %3561 = vmax.xlane.f32.xlu0 %v3519
        %v3562 = vpop.xlane.xlu0 %3561
        %3563 = vmax.xlane.f32.xlu0 %v3520
        %v3564 = vpop.xlane.xlu0 %3563
        %3565 = vmax.xlane.f32.xlu0 %v3521
        %v3566 = vpop.xlane.xlu0 %3565
        %3567 = vmax.xlane.f32.xlu0 %v3522
        %v3568 = vpop.xlane.xlu0 %3567
        %3569 = vmax.xlane.f32.xlu0 %v3523
        %v3570 = vpop.xlane.xlu0 %3569
        %3571 = vmax.xlane.f32.xlu0 %v3524
        %v3572 = vpop.xlane.xlu0 %3571
        %3573 = vmax.xlane.f32.xlu0 %v3525
        %v3574 = vpop.xlane.xlu0 %3573
        %3575 = vmax.xlane.f32.xlu0 %v3526
        %v3576 = vpop.xlane.xlu0 %3575
        %3577 = vmax.xlane.f32.xlu0 %v3527
        %v3578 = vpop.xlane.xlu0 %3577
        %3579 = vmax.xlane.f32.xlu0 %v3528
        %v3580 = vpop.xlane.xlu0 %3579
        %3581 = vmax.xlane.f32.xlu0 %v3529
        %v3582 = vpop.xlane.xlu0 %3581
        %3583 = vmax.xlane.f32.xlu0 %v3530
        %v3584 = vpop.xlane.xlu0 %3583
        %3585 = vmax.xlane.f32.xlu0 %v3531
        %v3586 = vpop.xlane.xlu0 %3585
        %3587 = vmax.xlane.f32.xlu0 %v3532
        %v3588 = vpop.xlane.xlu0 %3587
        %3589 = vmax.xlane.f32.xlu0 %v3533
        %v3590 = vpop.xlane.xlu0 %3589
        %3591 = vmax.xlane.f32.xlu0 %v3534
        %v3592 = vpop.xlane.xlu0 %3591
        %3593 = vmax.xlane.f32.xlu0 %v3535
        %v3594 = vpop.xlane.xlu0 %3593
        %3595 = vmax.xlane.f32.xlu0 %v3536
        %v3596 = vpop.xlane.xlu0 %3595
        %3597 = vmax.xlane.f32.xlu0 %v3537
        %v3598 = vpop.xlane.xlu0 %3597
        %3599 = vmax.xlane.f32.xlu0 %v3538
        %v3600 = vpop.xlane.xlu0 %3599
        %3601 = vmax.xlane.f32.xlu0 %v3539
        %v3602 = vpop.xlane.xlu0 %3601
        %3603 = vmax.xlane.f32.xlu0 %v3540
        %v3604 = vpop.xlane.xlu0 %3603
        %v3605 = vsub.f32 %v3509, %v3542
        %v3606 = vsub.f32 %v3510, %v3544
        %v3607 = vsub.f32 %v3511, %v3546
        %v3608 = vsub.f32 %v3512, %v3548
        %v3609 = vsub.f32 %v3513, %v3550
        %v3610 = vsub.f32 %v3514, %v3552
        %v3611 = vsub.f32 %v3515, %v3554
        %v3612 = vsub.f32 %v3516, %v3556
        %v3613 = vsub.f32 %v3517, %v3558
        %v3614 = vsub.f32 %v3518, %v3560
        %v3615 = vsub.f32 %v3519, %v3562
        %v3616 = vsub.f32 %v3520, %v3564
        %v3617 = vsub.f32 %v3521, %v3566
        %v3618 = vsub.f32 %v3522, %v3568
        %v3619 = vsub.f32 %v3523, %v3570
        %v3620 = vsub.f32 %v3524, %v3572
        %v3621 = vsub.f32 %v3525, %v3574
        %v3622 = vsub.f32 %v3526, %v3576
        %v3623 = vsub.f32 %v3527, %v3578
        %v3624 = vsub.f32 %v3528, %v3580
        %v3625 = vsub.f32 %v3529, %v3582
        %v3626 = vsub.f32 %v3530, %v3584
        %v3627 = vsub.f32 %v3531, %v3586
        %v3628 = vsub.f32 %v3532, %v3588
        %v3629 = vsub.f32 %v3533, %v3590
        %v3630 = vsub.f32 %v3534, %v3592
        %v3631 = vsub.f32 %v3535, %v3594
        %v3632 = vsub.f32 %v3536, %v3596
        %v3633 = vsub.f32 %v3537, %v3598
        %v3634 = vsub.f32 %v3538, %v3600
        %v3635 = vsub.f32 %v3539, %v3602
        %v3636 = vsub.f32 %v3540, %v3604
        %v3637 = vmul.f32 %v3605, 1.442695
        %v3638 = vpow.pop %v3637
        %v3639 = vmul.f32 %v3606, 1.442695
        %v3640 = vpow.pop %v3639
        %v3641 = vmul.f32 %v3607, 1.442695
        %v3642 = vpow.pop %v3641
        %v3643 = vmul.f32 %v3608, 1.442695
        %v3644 = vpow.pop %v3643
        %v3645 = vmul.f32 %v3609, 1.442695
        %v3646 = vpow.pop %v3645
        %v3647 = vmul.f32 %v3610, 1.442695
        %v3648 = vpow.pop %v3647
        %v3649 = vmul.f32 %v3611, 1.442695
        %v3650 = vpow.pop %v3649
        %v3651 = vmul.f32 %v3612, 1.442695
        %v3652 = vpow.pop %v3651
        %v3653 = vmul.f32 %v3613, 1.442695
        %v3654 = vpow.pop %v3653
        %v3655 = vmul.f32 %v3614, 1.442695
        %v3656 = vpow.pop %v3655
        %v3657 = vmul.f32 %v3615, 1.442695
        %v3658 = vpow.pop %v3657
        %v3659 = vmul.f32 %v3616, 1.442695
        %v3660 = vpow.pop %v3659
        %v3661 = vmul.f32 %v3617, 1.442695
        %v3662 = vpow.pop %v3661
        %v3663 = vmul.f32 %v3618, 1.442695
        %v3664 = vpow.pop %v3663
        %v3665 = vmul.f32 %v3619, 1.442695
        %v3666 = vpow.pop %v3665
        %v3667 = vmul.f32 %v3620, 1.442695
        %v3668 = vpow.pop %v3667
        %v3669 = vmul.f32 %v3621, 1.442695
        %v3670 = vpow.pop %v3669
        %v3671 = vmul.f32 %v3622, 1.442695
        %v3672 = vpow.pop %v3671
        %v3673 = vmul.f32 %v3623, 1.442695
        %v3674 = vpow.pop %v3673
        %v3675 = vmul.f32 %v3624, 1.442695
        %v3676 = vpow.pop %v3675
        %v3677 = vmul.f32 %v3625, 1.442695
        %v3678 = vpow.pop %v3677
        %v3679 = vmul.f32 %v3626, 1.442695
        %v3680 = vpow.pop %v3679
        %v3681 = vmul.f32 %v3627, 1.442695
        %v3682 = vpow.pop %v3681
        %v3683 = vmul.f32 %v3628, 1.442695
        %v3684 = vpow.pop %v3683
        %v3685 = vmul.f32 %v3629, 1.442695
        %v3686 = vpow.pop %v3685
        %v3687 = vmul.f32 %v3630, 1.442695
        %v3688 = vpow.pop %v3687
        %v3689 = vmul.f32 %v3631, 1.442695
        %v3690 = vpow.pop %v3689
        %v3691 = vmul.f32 %v3632, 1.442695
        %v3692 = vpow.pop %v3691
        %v3693 = vmul.f32 %v3633, 1.442695
        %v3694 = vpow.pop %v3693
        %v3695 = vmul.f32 %v3634, 1.442695
        %v3696 = vpow.pop %v3695
        %v3697 = vmul.f32 %v3635, 1.442695
        %v3698 = vpow.pop %v3697
        %v3699 = vmul.f32 %v3636, 1.442695
        %v3700 = vpow.pop %v3699
        %3701 = vadd.xlane.f32.xlu0 %v3638
        %v3702 = vpop.xlane.xlu0 %3701
        %3703 = vadd.xlane.f32.xlu0 %v3640
        %v3704 = vpop.xlane.xlu0 %3703
        %3705 = vadd.xlane.f32.xlu0 %v3642
        %v3706 = vpop.xlane.xlu0 %3705
        %3707 = vadd.xlane.f32.xlu0 %v3644
        %v3708 = vpop.xlane.xlu0 %3707
        %3709 = vadd.xlane.f32.xlu0 %v3646
        %v3710 = vpop.xlane.xlu0 %3709
        %3711 = vadd.xlane.f32.xlu0 %v3648
        %v3712 = vpop.xlane.xlu0 %3711
        %3713 = vadd.xlane.f32.xlu0 %v3650
        %v3714 = vpop.xlane.xlu0 %3713
        %3715 = vadd.xlane.f32.xlu0 %v3652
        %v3716 = vpop.xlane.xlu0 %3715
        %3717 = vadd.xlane.f32.xlu0 %v3654
        %v3718 = vpop.xlane.xlu0 %3717
        %3719 = vadd.xlane.f32.xlu0 %v3656
        %v3720 = vpop.xlane.xlu0 %3719
        %3721 = vadd.xlane.f32.xlu0 %v3658
        %v3722 = vpop.xlane.xlu0 %3721
        %3723 = vadd.xlane.f32.xlu0 %v3660
        %v3724 = vpop.xlane.xlu0 %3723
        %3725 = vadd.xlane.f32.xlu0 %v3662
        %v3726 = vpop.xlane.xlu0 %3725
        %3727 = vadd.xlane.f32.xlu0 %v3664
        %v3728 = vpop.xlane.xlu0 %3727
        %3729 = vadd.xlane.f32.xlu0 %v3666
        %v3730 = vpop.xlane.xlu0 %3729
        %3731 = vadd.xlane.f32.xlu0 %v3668
        %v3732 = vpop.xlane.xlu0 %3731
        %3733 = vadd.xlane.f32.xlu0 %v3670
        %v3734 = vpop.xlane.xlu0 %3733
        %3735 = vadd.xlane.f32.xlu0 %v3672
        %v3736 = vpop.xlane.xlu0 %3735
        %3737 = vadd.xlane.f32.xlu0 %v3674
        %v3738 = vpop.xlane.xlu0 %3737
        %3739 = vadd.xlane.f32.xlu0 %v3676
        %v3740 = vpop.xlane.xlu0 %3739
        %3741 = vadd.xlane.f32.xlu0 %v3678
        %v3742 = vpop.xlane.xlu0 %3741
        %3743 = vadd.xlane.f32.xlu0 %v3680
        %v3744 = vpop.xlane.xlu0 %3743
        %3745 = vadd.xlane.f32.xlu0 %v3682
        %v3746 = vpop.xlane.xlu0 %3745
        %3747 = vadd.xlane.f32.xlu0 %v3684
        %v3748 = vpop.xlane.xlu0 %3747
        %3749 = vadd.xlane.f32.xlu0 %v3686
        %v3750 = vpop.xlane.xlu0 %3749
        %3751 = vadd.xlane.f32.xlu0 %v3688
        %v3752 = vpop.xlane.xlu0 %3751
        %3753 = vadd.xlane.f32.xlu0 %v3690
        %v3754 = vpop.xlane.xlu0 %3753
        %3755 = vadd.xlane.f32.xlu0 %v3692
        %v3756 = vpop.xlane.xlu0 %3755
        %3757 = vadd.xlane.f32.xlu0 %v3694
        %v3758 = vpop.xlane.xlu0 %3757
        %3759 = vadd.xlane.f32.xlu0 %v3696
        %v3760 = vpop.xlane.xlu0 %3759
        %3761 = vadd.xlane.f32.xlu0 %v3698
        %v3762 = vpop.xlane.xlu0 %3761
        %3763 = vadd.xlane.f32.xlu0 %v3700
        %v3764 = vpop.xlane.xlu0 %3763
        %v3765 = vrcp.pop %v3702
        %v3766 = vrcp.pop %v3704
        %v3767 = vrcp.pop %v3706
        %v3768 = vrcp.pop %v3708
        %v3769 = vrcp.pop %v3710
        %v3770 = vrcp.pop %v3712
        %v3771 = vrcp.pop %v3714
        %v3772 = vrcp.pop %v3716
        %v3773 = vrcp.pop %v3718
        %v3774 = vrcp.pop %v3720
        %v3775 = vrcp.pop %v3722
        %v3776 = vrcp.pop %v3724
        %v3777 = vrcp.pop %v3726
        %v3778 = vrcp.pop %v3728
        %v3779 = vrcp.pop %v3730
        %v3780 = vrcp.pop %v3732
        %v3781 = vrcp.pop %v3734
        %v3782 = vrcp.pop %v3736
        %v3783 = vrcp.pop %v3738
        %v3784 = vrcp.pop %v3740
        %v3785 = vrcp.pop %v3742
        %v3786 = vrcp.pop %v3744
        %v3787 = vrcp.pop %v3746
        %v3788 = vrcp.pop %v3748
        %v3789 = vrcp.pop %v3750
        %v3790 = vrcp.pop %v3752
        %v3791 = vrcp.pop %v3754
        %v3792 = vrcp.pop %v3756
        %v3793 = vrcp.pop %v3758
        %v3794 = vrcp.pop %v3760
        %v3795 = vrcp.pop %v3762
        %v3796 = vrcp.pop %v3764
        %v3797 = vmul.f32 %v3638, %v3765
        %v3798 = vmul.f32 %v3640, %v3766
        %v3799 = vmul.f32 %v3642, %v3767
        %v3800 = vmul.f32 %v3644, %v3768
        %v3801 = vmul.f32 %v3646, %v3769
        %v3802 = vmul.f32 %v3648, %v3770
        %v3803 = vmul.f32 %v3650, %v3771
        %v3804 = vmul.f32 %v3652, %v3772
        %v3805 = vmul.f32 %v3654, %v3773
        %v3806 = vmul.f32 %v3656, %v3774
        %v3807 = vmul.f32 %v3658, %v3775
        %v3808 = vmul.f32 %v3660, %v3776
        %v3809 = vmul.f32 %v3662, %v3777
        %v3810 = vmul.f32 %v3664, %v3778
        %v3811 = vmul.f32 %v3666, %v3779
        %v3812 = vmul.f32 %v3668, %v3780
        %v3813 = vmul.f32 %v3670, %v3781
        %v3814 = vmul.f32 %v3672, %v3782
        %v3815 = vmul.f32 %v3674, %v3783
        %v3816 = vmul.f32 %v3676, %v3784
        %v3817 = vmul.f32 %v3678, %v3785
        %v3818 = vmul.f32 %v3680, %v3786
        %v3819 = vmul.f32 %v3682, %v3787
        %v3820 = vmul.f32 %v3684, %v3788
        %v3821 = vmul.f32 %v3686, %v3789
        %v3822 = vmul.f32 %v3688, %v3790
        %v3823 = vmul.f32 %v3690, %v3791
        %v3824 = vmul.f32 %v3692, %v3792
        %v3825 = vmul.f32 %v3694, %v3793
        %v3826 = vmul.f32 %v3696, %v3794
        %v3827 = vmul.f32 %v3698, %v3795
        %v3828 = vmul.f32 %v3700, %v3796
        %v3829 = vpack.c.bf16 %v3798, %v3797
        %v3830 = vpack.c.bf16 %v3800, %v3799
        %v3831 = vpack.c.bf16 %v3802, %v3801
        %v3832 = vpack.c.bf16 %v3804, %v3803
        %v3833 = vpack.c.bf16 %v3806, %v3805
        %v3834 = vpack.c.bf16 %v3808, %v3807
        %v3835 = vpack.c.bf16 %v3810, %v3809
        %v3836 = vpack.c.bf16 %v3812, %v3811
        %v3837 = vpack.c.bf16 %v3814, %v3813
        %v3838 = vpack.c.bf16 %v3816, %v3815
        %v3839 = vpack.c.bf16 %v3818, %v3817
        %v3840 = vpack.c.bf16 %v3820, %v3819
        %v3841 = vpack.c.bf16 %v3822, %v3821
        %v3842 = vpack.c.bf16 %v3824, %v3823
        %v3843 = vpack.c.bf16 %v3826, %v3825
        %v3844 = vpack.c.bf16 %v3828, %v3827
        %3853 = vrot.lane.b32.xlu0 %v2200, 96
        %v3854 = vpop.permute.xlu0 %3853
        %3855 = vrot.lane.b32.xlu0 %v2201, 96
        %v3856 = vpop.permute.xlu0 %3855
        %3857 = vrot.lane.b32.xlu0 %v2202, 96
        %v3858 = vpop.permute.xlu0 %3857
        %3859 = vrot.lane.b32.xlu0 %v2203, 96
        %v3860 = vpop.permute.xlu0 %3859
        %3861 = vrot.lane.b32.xlu0 %v2204, 96
        %v3862 = vpop.permute.xlu0 %3861
        %3863 = vrot.lane.b32.xlu0 %v2205, 96
        %v3864 = vpop.permute.xlu0 %3863
        %3865 = vrot.lane.b32.xlu0 %v2206, 96
        %v3866 = vpop.permute.xlu0 %3865
        %3867 = vrot.lane.b32.xlu0 %v2207, 96
        %v3868 = vpop.permute.xlu0 %3867
        %3877 = vmatprep.subr.bf16.mxu0 0
        %3878 = vmatpush1.bf16.msra.mxu0 %v3854
        %3879 = vmatprep.subr.bf16.mxu0 0
        %3880 = vmatpush1.bf16.msra.mxu0 %v3856
        %3881 = vmatprep.subr.bf16.mxu0 0
        %3882 = vmatpush1.bf16.msra.mxu0 %v3858
        %3883 = vmatprep.subr.bf16.mxu0 0
        %3884 = vmatpush1.bf16.msra.mxu0 %v3860
        %3885 = vmatprep.subr.bf16.mxu0 0
        %3886 = vmatpush1.bf16.msra.mxu0 %v3862
        %3887 = vmatprep.subr.bf16.mxu0 0
        %3888 = vmatpush1.bf16.msra.mxu0 %v3864
        %3889 = vmatprep.subr.bf16.mxu0 0
        %3890 = vmatpush1.bf16.msra.mxu0 %v3866
        %3891 = vmatprep.subr.bf16.mxu0 0
        %3892 = vmatpush1.bf16.msra.mxu0 %v3868
        %3893 = vmatprep.subr.bf16.mxu0 0
        %3894 = vmatpush1.bf16.msra.mxu0 0
        %3895 = vmatprep.subr.bf16.mxu0 0
        %3896 = vmatpush1.bf16.msra.mxu0 0
        %3897 = vmatprep.subr.bf16.mxu0 0
        %3898 = vmatpush1.bf16.msra.mxu0 0
        %3899 = vmatprep.subr.bf16.mxu0 0
        %3900 = vmatpush1.bf16.msra.mxu0 0
        %3901 = vmatprep.subr.bf16.mxu0 0
        %3902 = vmatpush1.bf16.msra.mxu0 0
        %3903 = vmatprep.subr.bf16.mxu0 0
        %3904 = vmatpush1.bf16.msra.mxu0 0
        %3905 = vmatprep.subr.bf16.mxu0 0
        %3906 = vmatpush1.bf16.msra.mxu0 0
        %3907 = vmatprep.subr.bf16.mxu0 0
        %3908 = vmatpush1.bf16.msra.mxu0 0
        %3909 = vmatprep.mubr.bf16.mxu0 0
        %3910 = vmatmul.mubr.bf16.gmra.mrb[0].mxu0 %v3829
        %v3911 = vpop.f32.mrb[0].mxu0
        %v3912 = vadd.f32 0.0, %v3911
        %v3913 = vpop.f32.mrb[0].mxu0
        %v3914 = vpop.f32.mrb[0].mxu0
        %v3915 = vadd.f32 0.0, %v3914
        %v3916 = vpop.f32.mrb[0].mxu0
        %3917 = vmatprep.mubr.bf16.mxu0 0
        %3918 = vmatmul.mubr.bf16.gmra.mrb[0].mxu0 %v3830
        %v3919 = vpop.f32.mrb[0].mxu0
        %v3920 = vadd.f32 0.0, %v3919
        %v3921 = vpop.f32.mrb[0].mxu0
        %v3922 = vpop.f32.mrb[0].mxu0
        %v3923 = vadd.f32 0.0, %v3922
        %v3924 = vpop.f32.mrb[0].mxu0
        %3925 = vmatprep.mubr.bf16.mxu0 0
        %3926 = vmatmul.mubr.bf16.gmra.mrb[0].mxu0 %v3831
        %v3927 = vpop.f32.mrb[0].mxu0
        %v3928 = vadd.f32 0.0, %v3927
        %v3929 = vpop.f32.mrb[0].mxu0
        %v3930 = vpop.f32.mrb[0].mxu0
        %v3931 = vadd.f32 0.0, %v3930
        %v3932 = vpop.f32.mrb[0].mxu0
        %3933 = vmatprep.mubr.bf16.mxu0 0
        %3934 = vmatmul.mubr.bf16.gmra.mrb[0].mxu0 %v3832
        %v3935 = vpop.f32.mrb[0].mxu0
        %v3936 = vadd.f32 0.0, %v3935
        %v3937 = vpop.f32.mrb[0].mxu0
        %v3938 = vpop.f32.mrb[0].mxu0
        %v3939 = vadd.f32 0.0, %v3938
        %v3940 = vpop.f32.mrb[0].mxu0
        %3941 = vmatprep.mubr.bf16.mxu0 0
        %3942 = vmatmul.mubr.bf16.gmra.mrb[0].mxu0 %v3833
        %v3943 = vpop.f32.mrb[0].mxu0
        %v3944 = vadd.f32 0.0, %v3943
        %v3945 = vpop.f32.mrb[0].mxu0
        %v3946 = vpop.f32.mrb[0].mxu0
        %v3947 = vadd.f32 0.0, %v3946
        %v3948 = vpop.f32.mrb[0].mxu0
        %3949 = vmatprep.mubr.bf16.mxu0 0
        %3950 = vmatmul.mubr.bf16.gmra.mrb[0].mxu0 %v3834
        %v3951 = vpop.f32.mrb[0].mxu0
        %v3952 = vadd.f32 0.0, %v3951
        %v3953 = vpop.f32.mrb[0].mxu0
        %v3954 = vpop.f32.mrb[0].mxu0
        %v3955 = vadd.f32 0.0, %v3954
        %v3956 = vpop.f32.mrb[0].mxu0
        %3957 = vmatprep.mubr.bf16.mxu0 0
        %3958 = vmatmul.mubr.bf16.gmra.mrb[0].mxu0 %v3835
        %v3959 = vpop.f32.mrb[0].mxu0
        %v3960 = vadd.f32 0.0, %v3959
        %v3961 = vpop.f32.mrb[0].mxu0
        %v3962 = vpop.f32.mrb[0].mxu0
        %v3963 = vadd.f32 0.0, %v3962
        %v3964 = vpop.f32.mrb[0].mxu0
        %3965 = vmatprep.mubr.bf16.mxu0 0
        %3966 = vmatmul.mubr.bf16.gmra.mrb[0].mxu0 %v3836
        %v3967 = vpop.f32.mrb[0].mxu0
        %v3968 = vadd.f32 0.0, %v3967
        %v3969 = vpop.f32.mrb[0].mxu0
        %v3970 = vpop.f32.mrb[0].mxu0
        %v3971 = vadd.f32 0.0, %v3970
        %v3972 = vpop.f32.mrb[0].mxu0
        %3973 = vdwg.mxu0
        %3982 = vrot.lane.b32.xlu0 %v2208, 96
        %v3983 = vpop.permute.xlu0 %3982
        %3984 = vrot.lane.b32.xlu0 %v2209, 96
        %v3985 = vpop.permute.xlu0 %3984
        %3986 = vrot.lane.b32.xlu0 %v2210, 96
        %v3987 = vpop.permute.xlu0 %3986
        %3988 = vrot.lane.b32.xlu0 %v2211, 96
        %v3989 = vpop.permute.xlu0 %3988
        %3990 = vrot.lane.b32.xlu0 %v2212, 96
        %v3991 = vpop.permute.xlu0 %3990
        %3992 = vrot.lane.b32.xlu0 %v2213, 96
        %v3993 = vpop.permute.xlu0 %3992
        %3994 = vrot.lane.b32.xlu0 %v2214, 96
        %v3995 = vpop.permute.xlu0 %3994
        %3996 = vrot.lane.b32.xlu0 %v2215, 96
        %v3997 = vpop.permute.xlu0 %3996
        %4006 = vmatprep.subr.bf16.mxu0 0
        %4007 = vmatpush1.bf16.msra.mxu0 %v3983
        %4008 = vmatprep.subr.bf16.mxu0 0
        %4009 = vmatpush1.bf16.msra.mxu0 %v3985
        %4010 = vmatprep.subr.bf16.mxu0 0
        %4011 = vmatpush1.bf16.msra.mxu0 %v3987
        %4012 = vmatprep.subr.bf16.mxu0 0
        %4013 = vmatpush1.bf16.msra.mxu0 %v3989
        %4014 = vmatprep.subr.bf16.mxu0 0
        %4015 = vmatpush1.bf16.msra.mxu0 %v3991
        %4016 = vmatprep.subr.bf16.mxu0 0
        %4017 = vmatpush1.bf16.msra.mxu0 %v3993
        %4018 = vmatprep.subr.bf16.mxu0 0
        %4019 = vmatpush1.bf16.msra.mxu0 %v3995
        %4020 = vmatprep.subr.bf16.mxu0 0
        %4021 = vmatpush1.bf16.msra.mxu0 %v3997
        %4022 = vmatprep.subr.bf16.mxu0 0
        %4023 = vmatpush1.bf16.msra.mxu0 0
        %4024 = vmatprep.subr.bf16.mxu0 0
        %4025 = vmatpush1.bf16.msra.mxu0 0
        %4026 = vmatprep.subr.bf16.mxu0 0
        %4027 = vmatpush1.bf16.msra.mxu0 0
        %4028 = vmatprep.subr.bf16.mxu0 0
        %4029 = vmatpush1.bf16.msra.mxu0 0
        %4030 = vmatprep.subr.bf16.mxu0 0
        %4031 = vmatpush1.bf16.msra.mxu0 0
        %4032 = vmatprep.subr.bf16.mxu0 0
        %4033 = vmatpush1.bf16.msra.mxu0 0
        %4034 = vmatprep.subr.bf16.mxu0 0
        %4035 = vmatpush1.bf16.msra.mxu0 0
        %4036 = vmatprep.subr.bf16.mxu0 0
        %4037 = vmatpush1.bf16.msra.mxu0 0
        %4038 = vmatprep.mubr.bf16.mxu0 0
        %4039 = vmatmul.mubr.bf16.gmra.mrb[0].mxu0 %v3837
        %v4040 = vpop.f32.mrb[0].mxu0
        %v4041 = vadd.f32 0.0, %v4040
        %v4042 = vpop.f32.mrb[0].mxu0
        %v4043 = vpop.f32.mrb[0].mxu0
        %v4044 = vadd.f32 0.0, %v4043
        %v4045 = vpop.f32.mrb[0].mxu0
        %4046 = vmatprep.mubr.bf16.mxu0 0
        %4047 = vmatmul.mubr.bf16.gmra.mrb[0].mxu0 %v3838
        %v4048 = vpop.f32.mrb[0].mxu0
        %v4049 = vadd.f32 0.0, %v4048
        %v4050 = vpop.f32.mrb[0].mxu0
        %v4051 = vpop.f32.mrb[0].mxu0
        %v4052 = vadd.f32 0.0, %v4051
        %v4053 = vpop.f32.mrb[0].mxu0
        %4054 = vmatprep.mubr.bf16.mxu0 0
        %4055 = vmatmul.mubr.bf16.gmra.mrb[0].mxu0 %v3839
        %v4056 = vpop.f32.mrb[0].mxu0
        %v4057 = vadd.f32 0.0, %v4056
        %v4058 = vpop.f32.mrb[0].mxu0
        %v4059 = vpop.f32.mrb[0].mxu0
        %v4060 = vadd.f32 0.0, %v4059
        %v4061 = vpop.f32.mrb[0].mxu0
        %4062 = vmatprep.mubr.bf16.mxu0 0
        %4063 = vmatmul.mubr.bf16.gmra.mrb[0].mxu0 %v3840
        %v4064 = vpop.f32.mrb[0].mxu0
        %v4065 = vadd.f32 0.0, %v4064
        %v4066 = vpop.f32.mrb[0].mxu0
        %v4067 = vpop.f32.mrb[0].mxu0
        %v4068 = vadd.f32 0.0, %v4067
        %v4069 = vpop.f32.mrb[0].mxu0
        %4070 = vmatprep.mubr.bf16.mxu0 0
        %4071 = vmatmul.mubr.bf16.gmra.mrb[0].mxu0 %v3841
        %v4072 = vpop.f32.mrb[0].mxu0
        %v4073 = vadd.f32 0.0, %v4072
        %v4074 = vpop.f32.mrb[0].mxu0
        %v4075 = vpop.f32.mrb[0].mxu0
        %v4076 = vadd.f32 0.0, %v4075
        %v4077 = vpop.f32.mrb[0].mxu0
        %4078 = vmatprep.mubr.bf16.mxu0 0
        %4079 = vmatmul.mubr.bf16.gmra.mrb[0].mxu0 %v3842
        %v4080 = vpop.f32.mrb[0].mxu0
        %v4081 = vadd.f32 0.0, %v4080
        %v4082 = vpop.f32.mrb[0].mxu0
        %v4083 = vpop.f32.mrb[0].mxu0
        %v4084 = vadd.f32 0.0, %v4083
        %v4085 = vpop.f32.mrb[0].mxu0
        %4086 = vmatprep.mubr.bf16.mxu0 0
        %4087 = vmatmul.mubr.bf16.gmra.mrb[0].mxu0 %v3843
        %v4088 = vpop.f32.mrb[0].mxu0
        %v4089 = vadd.f32 0.0, %v4088
        %v4090 = vpop.f32.mrb[0].mxu0
        %v4091 = vpop.f32.mrb[0].mxu0
        %v4092 = vadd.f32 0.0, %v4091
        %v4093 = vpop.f32.mrb[0].mxu0
        %4094 = vmatprep.mubr.bf16.mxu0 0
        %4095 = vmatmul.mubr.bf16.gmra.mrb[0].mxu0 %v3844
        %v4096 = vpop.f32.mrb[0].mxu0
        %v4097 = vadd.f32 0.0, %v4096
        %v4098 = vpop.f32.mrb[0].mxu0
        %v4099 = vpop.f32.mrb[0].mxu0
        %v4100 = vadd.f32 0.0, %v4099
        %v4101 = vpop.f32.mrb[0].mxu0
        %4102 = vdwg.mxu0
        %v4103 = vpack.c.bf16 %v3915, %v3912
        %v4104 = vpack.c.bf16 %v3923, %v3920
        %v4105 = vpack.c.bf16 %v3931, %v3928
        %v4106 = vpack.c.bf16 %v3939, %v3936
        %v4107 = vpack.c.bf16 %v3947, %v3944
        %v4108 = vpack.c.bf16 %v3955, %v3952
        %v4109 = vpack.c.bf16 %v3963, %v3960
        %v4110 = vpack.c.bf16 %v3971, %v3968
        %v4111 = vpack.c.bf16 %v4044, %v4041
        %v4112 = vpack.c.bf16 %v4052, %v4049
        %v4113 = vpack.c.bf16 %v4060, %v4057
        %v4114 = vpack.c.bf16 %v4068, %v4065
        %v4115 = vpack.c.bf16 %v4076, %v4073
        %v4116 = vpack.c.bf16 %v4084, %v4081
        %v4117 = vpack.c.bf16 %v4092, %v4089
        %v4118 = vpack.c.bf16 %v4100, %v4097
        %s4119 = scalar_lea.vmem %s486, 16
        %v4120 = vld [vmem:[%s4119] sm:$0xf]
        %v4121 = vld [vmem:[%s4119 + $0x4] sm:$0xf]
        %v4122 = vld [vmem:[%s4119 + $0x8] sm:$0xf]
        %v4123 = vld [vmem:[%s4119 + $0xc] sm:$0xf]
        %v4128 = vunpack.c.l.b16 %v4120
        %v4129 = vunpack.c.l.b16 %v4121
        %v4130 = vunpack.c.l.b16 %v4122
        %v4131 = vunpack.c.l.b16 %v4123
        %v4132 = vpack.c.b16 %v4129, %v4128
        %v4133 = vpack.c.b16 %v4131, %v4130
        %v4137 = vsel %vm2216, %v4103, 0
        %v4140 = vsel %vm2216, %v4104, 0
        %v4143 = vsel %vm2216, %v4105, 0
        %v4146 = vsel %vm2216, %v4106, 0
        %v4149 = vsel %vm2216, %v4107, 0
        %v4152 = vsel %vm2216, %v4108, 0
        %v4155 = vsel %vm2216, %v4109, 0
        %v4158 = vsel %vm2216, %v4110, 0
        %v4161 = vsel %vm2216, %v4111, 0
        %v4164 = vsel %vm2216, %v4112, 0
        %v4167 = vsel %vm2216, %v4113, 0
        %v4170 = vsel %vm2216, %v4114, 0
        %v4173 = vsel %vm2216, %v4115, 0
        %v4176 = vsel %vm2216, %v4116, 0
        %v4179 = vsel %vm2216, %v4117, 0
        %v4182 = vsel %vm2216, %v4118, 0
        %4184 = vmatprep.subr.bf16.mxu0 0
        %4185 = vmatpush1.bf16.msra.mxu0 %v4132
        %4186 = vmatprep.subr.bf16.mxu0 0
        %4187 = vmatpush1.bf16.msra.mxu0 %v4133
        %4188 = vmatprep.subr.bf16.mxu0 0
        %4189 = vmatpush1.bf16.msra.mxu0 0
        %4190 = vmatprep.subr.bf16.mxu0 0
        %4191 = vmatpush1.bf16.msra.mxu0 0
        %4192 = vmatprep.subr.bf16.mxu0 0
        %4193 = vmatpush1.bf16.msra.mxu0 0
        %4194 = vmatprep.subr.bf16.mxu0 0
        %4195 = vmatpush1.bf16.msra.mxu0 0
        %4196 = vmatprep.subr.bf16.mxu0 0
        %4197 = vmatpush1.bf16.msra.mxu0 0
        %4198 = vmatprep.subr.bf16.mxu0 0
        %4199 = vmatpush1.bf16.msra.mxu0 0
        %4200 = vmatprep.subr.bf16.mxu0 0
        %4201 = vmatpush1.bf16.msra.mxu0 0
        %4202 = vmatprep.subr.bf16.mxu0 0
        %4203 = vmatpush1.bf16.msra.mxu0 0
        %4204 = vmatprep.subr.bf16.mxu0 0
        %4205 = vmatpush1.bf16.msra.mxu0 0
        %4206 = vmatprep.subr.bf16.mxu0 0
        %4207 = vmatpush1.bf16.msra.mxu0 0
        %4208 = vmatprep.subr.bf16.mxu0 0
        %4209 = vmatpush1.bf16.msra.mxu0 0
        %4210 = vmatprep.subr.bf16.mxu0 0
        %4211 = vmatpush1.bf16.msra.mxu0 0
        %4212 = vmatprep.subr.bf16.mxu0 0
        %4213 = vmatpush1.bf16.msra.mxu0 0
        %4214 = vmatprep.subr.bf16.mxu0 0
        %4215 = vmatpush1.bf16.msra.mxu0 0
        %4216 = vmatprep.mubr.bf16.mxu0 0
        %4217 = vmatmul.mubr.bf16.gmra.mrb[0].mxu0 %v4137
        %v4218 = vpop.f32.mrb[0].mxu0
        %v4219 = vadd.f32 0.0, %v4218
        %v4220 = vpop.f32.mrb[0].mxu0
        %v4221 = vpop.f32.mrb[0].mxu0
        %v4222 = vadd.f32 0.0, %v4221
        %v4223 = vpop.f32.mrb[0].mxu0
        %4224 = vmatprep.mubr.bf16.mxu0 0
        %4225 = vmatmul.mubr.bf16.gmra.mrb[0].mxu0 %v4140
        %v4226 = vpop.f32.mrb[0].mxu0
        %v4227 = vadd.f32 0.0, %v4226
        %v4228 = vpop.f32.mrb[0].mxu0
        %v4229 = vpop.f32.mrb[0].mxu0
        %v4230 = vadd.f32 0.0, %v4229
        %v4231 = vpop.f32.mrb[0].mxu0
        %4232 = vmatprep.mubr.bf16.mxu0 0
        %4233 = vmatmul.mubr.bf16.gmra.mrb[0].mxu0 %v4143
        %v4234 = vpop.f32.mrb[0].mxu0
        %v4235 = vadd.f32 0.0, %v4234
        %v4236 = vpop.f32.mrb[0].mxu0
        %v4237 = vpop.f32.mrb[0].mxu0
        %v4238 = vadd.f32 0.0, %v4237
        %v4239 = vpop.f32.mrb[0].mxu0
        %4240 = vmatprep.mubr.bf16.mxu0 0
        %4241 = vmatmul.mubr.bf16.gmra.mrb[0].mxu0 %v4146
        %v4242 = vpop.f32.mrb[0].mxu0
        %v4243 = vadd.f32 0.0, %v4242
        %v4244 = vpop.f32.mrb[0].mxu0
        %v4245 = vpop.f32.mrb[0].mxu0
        %v4246 = vadd.f32 0.0, %v4245
        %v4247 = vpop.f32.mrb[0].mxu0
        %4248 = vmatprep.mubr.bf16.mxu0 0
        %4249 = vmatmul.mubr.bf16.gmra.mrb[0].mxu0 %v4149
        %v4250 = vpop.f32.mrb[0].mxu0
        %v4251 = vadd.f32 0.0, %v4250
        %v4252 = vpop.f32.mrb[0].mxu0
        %v4253 = vpop.f32.mrb[0].mxu0
        %v4254 = vadd.f32 0.0, %v4253
        %v4255 = vpop.f32.mrb[0].mxu0
        %4256 = vmatprep.mubr.bf16.mxu0 0
        %4257 = vmatmul.mubr.bf16.gmra.mrb[0].mxu0 %v4152
        %v4258 = vpop.f32.mrb[0].mxu0
        %v4259 = vadd.f32 0.0, %v4258
        %v4260 = vpop.f32.mrb[0].mxu0
        %v4261 = vpop.f32.mrb[0].mxu0
        %v4262 = vadd.f32 0.0, %v4261
        %v4263 = vpop.f32.mrb[0].mxu0
        %4264 = vmatprep.mubr.bf16.mxu0 0
        %4265 = vmatmul.mubr.bf16.gmra.mrb[0].mxu0 %v4155
        %v4266 = vpop.f32.mrb[0].mxu0
        %v4267 = vadd.f32 0.0, %v4266
        %v4268 = vpop.f32.mrb[0].mxu0
        %v4269 = vpop.f32.mrb[0].mxu0
        %v4270 = vadd.f32 0.0, %v4269
        %v4271 = vpop.f32.mrb[0].mxu0
        %4272 = vmatprep.mubr.bf16.mxu0 0
        %4273 = vmatmul.mubr.bf16.gmra.mrb[0].mxu0 %v4158
        %v4274 = vpop.f32.mrb[0].mxu0
        %v4275 = vadd.f32 0.0, %v4274
        %v4276 = vpop.f32.mrb[0].mxu0
        %v4277 = vpop.f32.mrb[0].mxu0
        %v4278 = vadd.f32 0.0, %v4277
        %v4279 = vpop.f32.mrb[0].mxu0
        %4280 = vmatprep.mubr.bf16.mxu0 0
        %4281 = vmatmul.mubr.bf16.gmra.mrb[0].mxu0 %v4161
        %v4282 = vpop.f32.mrb[0].mxu0
        %v4283 = vadd.f32 0.0, %v4282
        %v4284 = vpop.f32.mrb[0].mxu0
        %v4285 = vpop.f32.mrb[0].mxu0
        %v4286 = vadd.f32 0.0, %v4285
        %v4287 = vpop.f32.mrb[0].mxu0
        %4288 = vmatprep.mubr.bf16.mxu0 0
        %4289 = vmatmul.mubr.bf16.gmra.mrb[0].mxu0 %v4164
        %v4290 = vpop.f32.mrb[0].mxu0
        %v4291 = vadd.f32 0.0, %v4290
        %v4292 = vpop.f32.mrb[0].mxu0
        %v4293 = vpop.f32.mrb[0].mxu0
        %v4294 = vadd.f32 0.0, %v4293
        %v4295 = vpop.f32.mrb[0].mxu0
        %4296 = vmatprep.mubr.bf16.mxu0 0
        %4297 = vmatmul.mubr.bf16.gmra.mrb[0].mxu0 %v4167
        %v4298 = vpop.f32.mrb[0].mxu0
        %v4299 = vadd.f32 0.0, %v4298
        %v4300 = vpop.f32.mrb[0].mxu0
        %v4301 = vpop.f32.mrb[0].mxu0
        %v4302 = vadd.f32 0.0, %v4301
        %v4303 = vpop.f32.mrb[0].mxu0
        %4304 = vmatprep.mubr.bf16.mxu0 0
        %4305 = vmatmul.mubr.bf16.gmra.mrb[0].mxu0 %v4170
        %v4306 = vpop.f32.mrb[0].mxu0
        %v4307 = vadd.f32 0.0, %v4306
        %v4308 = vpop.f32.mrb[0].mxu0
        %v4309 = vpop.f32.mrb[0].mxu0
        %v4310 = vadd.f32 0.0, %v4309
        %v4311 = vpop.f32.mrb[0].mxu0
        %4312 = vmatprep.mubr.bf16.mxu0 0
        %4313 = vmatmul.mubr.bf16.gmra.mrb[0].mxu0 %v4173
        %v4314 = vpop.f32.mrb[0].mxu0
        %v4315 = vadd.f32 0.0, %v4314
        %v4316 = vpop.f32.mrb[0].mxu0
        %v4317 = vpop.f32.mrb[0].mxu0
        %v4318 = vadd.f32 0.0, %v4317
        %v4319 = vpop.f32.mrb[0].mxu0
        %4320 = vmatprep.mubr.bf16.mxu0 0
        %4321 = vmatmul.mubr.bf16.gmra.mrb[0].mxu0 %v4176
        %v4322 = vpop.f32.mrb[0].mxu0
        %v4323 = vadd.f32 0.0, %v4322
        %v4324 = vpop.f32.mrb[0].mxu0
        %v4325 = vpop.f32.mrb[0].mxu0
        %v4326 = vadd.f32 0.0, %v4325
        %v4327 = vpop.f32.mrb[0].mxu0
        %4328 = vmatprep.mubr.bf16.mxu0 0
        %4329 = vmatmul.mubr.bf16.gmra.mrb[0].mxu0 %v4179
        %v4330 = vpop.f32.mrb[0].mxu0
        %v4331 = vadd.f32 0.0, %v4330
        %v4332 = vpop.f32.mrb[0].mxu0
        %v4333 = vpop.f32.mrb[0].mxu0
        %v4334 = vadd.f32 0.0, %v4333
        %v4335 = vpop.f32.mrb[0].mxu0
        %4336 = vmatprep.mubr.bf16.mxu0 0
        %4337 = vmatmul.mubr.bf16.gmra.mrb[0].mxu0 %v4182
        %v4338 = vpop.f32.mrb[0].mxu0
        %v4339 = vadd.f32 0.0, %v4338
        %v4340 = vpop.f32.mrb[0].mxu0
        %v4341 = vpop.f32.mrb[0].mxu0
        %v4342 = vadd.f32 0.0, %v4341
        %v4343 = vpop.f32.mrb[0].mxu0
        %4344 = vdwg.mxu0
        %v4349 = vunpack.c.l.b16 %v3087
        %v4350 = vunpack.c.l.b16 %v3088
        %v4351 = vunpack.c.l.b16 %v3089
        %v4352 = vunpack.c.l.b16 %v3090
        %v4353 = vpack.c.b16 %v4350, %v4349
        %v4354 = vpack.c.b16 %v4352, %v4351
        %v4358 = vsel %vm2216, %v3071, 0
        %v4361 = vsel %vm2216, %v3072, 0
        %v4364 = vsel %vm2216, %v3073, 0
        %v4367 = vsel %vm2216, %v3074, 0
        %v4370 = vsel %vm2216, %v3075, 0
        %v4373 = vsel %vm2216, %v3076, 0
        %v4376 = vsel %vm2216, %v3077, 0
        %v4379 = vsel %vm2216, %v3078, 0
        %v4382 = vsel %vm2216, %v3079, 0
        %v4385 = vsel %vm2216, %v3080, 0
        %v4388 = vsel %vm2216, %v3081, 0
        %v4391 = vsel %vm2216, %v3082, 0
        %v4394 = vsel %vm2216, %v3083, 0
        %v4397 = vsel %vm2216, %v3084, 0
        %v4400 = vsel %vm2216, %v3085, 0
        %v4403 = vsel %vm2216, %v3086, 0
        %4405 = vmatprep.subr.bf16.mxu0 0
        %4406 = vmatpush1.bf16.msra.mxu0 %v4353
        %4407 = vmatprep.subr.bf16.mxu0 0
        %4408 = vmatpush1.bf16.msra.mxu0 %v4354
        %4409 = vmatprep.subr.bf16.mxu0 0
        %4410 = vmatpush1.bf16.msra.mxu0 0
        %4411 = vmatprep.subr.bf16.mxu0 0
        %4412 = vmatpush1.bf16.msra.mxu0 0
        %4413 = vmatprep.subr.bf16.mxu0 0
        %4414 = vmatpush1.bf16.msra.mxu0 0
        %4415 = vmatprep.subr.bf16.mxu0 0
        %4416 = vmatpush1.bf16.msra.mxu0 0
        %4417 = vmatprep.subr.bf16.mxu0 0
        %4418 = vmatpush1.bf16.msra.mxu0 0
        %4419 = vmatprep.subr.bf16.mxu0 0
        %4420 = vmatpush1.bf16.msra.mxu0 0
        %4421 = vmatprep.subr.bf16.mxu0 0
        %4422 = vmatpush1.bf16.msra.mxu0 0
        %4423 = vmatprep.subr.bf16.mxu0 0
        %4424 = vmatpush1.bf16.msra.mxu0 0
        %4425 = vmatprep.subr.bf16.mxu0 0
        %4426 = vmatpush1.bf16.msra.mxu0 0
        %4427 = vmatprep.subr.bf16.mxu0 0
        %4428 = vmatpush1.bf16.msra.mxu0 0
        %4429 = vmatprep.subr.bf16.mxu0 0
        %4430 = vmatpush1.bf16.msra.mxu0 0
        %4431 = vmatprep.subr.bf16.mxu0 0
        %4432 = vmatpush1.bf16.msra.mxu0 0
        %4433 = vmatprep.subr.bf16.mxu0 0
        %4434 = vmatpush1.bf16.msra.mxu0 0
        %4435 = vmatprep.subr.bf16.mxu0 0
        %4436 = vmatpush1.bf16.msra.mxu0 0
        %4437 = vmatprep.mubr.bf16.mxu0 0
        %4438 = vmatmul.mubr.bf16.gmra.mrb[0].mxu0 %v4358
        %v4439 = vpop.f32.mrb[0].mxu0
        %v4440 = vadd.f32 %v4219, %v4439
        %v4441 = vpop.f32.mrb[0].mxu0
        %v4442 = vpop.f32.mrb[0].mxu0
        %v4443 = vadd.f32 %v4222, %v4442
        %v4444 = vpop.f32.mrb[0].mxu0
        %4445 = vmatprep.mubr.bf16.mxu0 0
        %4446 = vmatmul.mubr.bf16.gmra.mrb[0].mxu0 %v4361
        %v4447 = vpop.f32.mrb[0].mxu0
        %v4448 = vadd.f32 %v4227, %v4447
        %v4449 = vpop.f32.mrb[0].mxu0
        %v4450 = vpop.f32.mrb[0].mxu0
        %v4451 = vadd.f32 %v4230, %v4450
        %v4452 = vpop.f32.mrb[0].mxu0
        %4453 = vmatprep.mubr.bf16.mxu0 0
        %4454 = vmatmul.mubr.bf16.gmra.mrb[0].mxu0 %v4364
        %v4455 = vpop.f32.mrb[0].mxu0
        %v4456 = vadd.f32 %v4235, %v4455
        %v4457 = vpop.f32.mrb[0].mxu0
        %v4458 = vpop.f32.mrb[0].mxu0
        %v4459 = vadd.f32 %v4238, %v4458
        %v4460 = vpop.f32.mrb[0].mxu0
        %4461 = vmatprep.mubr.bf16.mxu0 0
        %4462 = vmatmul.mubr.bf16.gmra.mrb[0].mxu0 %v4367
        %v4463 = vpop.f32.mrb[0].mxu0
        %v4464 = vadd.f32 %v4243, %v4463
        %v4465 = vpop.f32.mrb[0].mxu0
        %v4466 = vpop.f32.mrb[0].mxu0
        %v4467 = vadd.f32 %v4246, %v4466
        %v4468 = vpop.f32.mrb[0].mxu0
        %4469 = vmatprep.mubr.bf16.mxu0 0
        %4470 = vmatmul.mubr.bf16.gmra.mrb[0].mxu0 %v4370
        %v4471 = vpop.f32.mrb[0].mxu0
        %v4472 = vadd.f32 %v4251, %v4471
        %v4473 = vpop.f32.mrb[0].mxu0
        %v4474 = vpop.f32.mrb[0].mxu0
        %v4475 = vadd.f32 %v4254, %v4474
        %v4476 = vpop.f32.mrb[0].mxu0
        %4477 = vmatprep.mubr.bf16.mxu0 0
        %4478 = vmatmul.mubr.bf16.gmra.mrb[0].mxu0 %v4373
        %v4479 = vpop.f32.mrb[0].mxu0
        %v4480 = vadd.f32 %v4259, %v4479
        %v4481 = vpop.f32.mrb[0].mxu0
        %v4482 = vpop.f32.mrb[0].mxu0
        %v4483 = vadd.f32 %v4262, %v4482
        %v4484 = vpop.f32.mrb[0].mxu0
        %4485 = vmatprep.mubr.bf16.mxu0 0
        %4486 = vmatmul.mubr.bf16.gmra.mrb[0].mxu0 %v4376
        %v4487 = vpop.f32.mrb[0].mxu0
        %v4488 = vadd.f32 %v4267, %v4487
        %v4489 = vpop.f32.mrb[0].mxu0
        %v4490 = vpop.f32.mrb[0].mxu0
        %v4491 = vadd.f32 %v4270, %v4490
        %v4492 = vpop.f32.mrb[0].mxu0
        %4493 = vmatprep.mubr.bf16.mxu0 0
        %4494 = vmatmul.mubr.bf16.gmra.mrb[0].mxu0 %v4379
        %v4495 = vpop.f32.mrb[0].mxu0
        %v4496 = vadd.f32 %v4275, %v4495
        %v4497 = vpop.f32.mrb[0].mxu0
        %v4498 = vpop.f32.mrb[0].mxu0
        %v4499 = vadd.f32 %v4278, %v4498
        %v4500 = vpop.f32.mrb[0].mxu0
        %4501 = vmatprep.mubr.bf16.mxu0 0
        %4502 = vmatmul.mubr.bf16.gmra.mrb[0].mxu0 %v4382
        %v4503 = vpop.f32.mrb[0].mxu0
        %v4504 = vadd.f32 %v4283, %v4503
        %v4505 = vpop.f32.mrb[0].mxu0
        %v4506 = vpop.f32.mrb[0].mxu0
        %v4507 = vadd.f32 %v4286, %v4506
        %v4508 = vpop.f32.mrb[0].mxu0
        %4509 = vmatprep.mubr.bf16.mxu0 0
        %4510 = vmatmul.mubr.bf16.gmra.mrb[0].mxu0 %v4385
        %v4511 = vpop.f32.mrb[0].mxu0
        %v4512 = vadd.f32 %v4291, %v4511
        %v4513 = vpop.f32.mrb[0].mxu0
        %v4514 = vpop.f32.mrb[0].mxu0
        %v4515 = vadd.f32 %v4294, %v4514
        %v4516 = vpop.f32.mrb[0].mxu0
        %4517 = vmatprep.mubr.bf16.mxu0 0
        %4518 = vmatmul.mubr.bf16.gmra.mrb[0].mxu0 %v4388
        %v4519 = vpop.f32.mrb[0].mxu0
        %v4520 = vadd.f32 %v4299, %v4519
        %v4521 = vpop.f32.mrb[0].mxu0
        %v4522 = vpop.f32.mrb[0].mxu0
        %v4523 = vadd.f32 %v4302, %v4522
        %v4524 = vpop.f32.mrb[0].mxu0
        %4525 = vmatprep.mubr.bf16.mxu0 0
        %4526 = vmatmul.mubr.bf16.gmra.mrb[0].mxu0 %v4391
        %v4527 = vpop.f32.mrb[0].mxu0
        %v4528 = vadd.f32 %v4307, %v4527
        %v4529 = vpop.f32.mrb[0].mxu0
        %v4530 = vpop.f32.mrb[0].mxu0
        %v4531 = vadd.f32 %v4310, %v4530
        %v4532 = vpop.f32.mrb[0].mxu0
        %4533 = vmatprep.mubr.bf16.mxu0 0
        %4534 = vmatmul.mubr.bf16.gmra.mrb[0].mxu0 %v4394
        %v4535 = vpop.f32.mrb[0].mxu0
        %v4536 = vadd.f32 %v4315, %v4535
        %v4537 = vpop.f32.mrb[0].mxu0
        %v4538 = vpop.f32.mrb[0].mxu0
        %v4539 = vadd.f32 %v4318, %v4538
        %v4540 = vpop.f32.mrb[0].mxu0
        %4541 = vmatprep.mubr.bf16.mxu0 0
        %4542 = vmatmul.mubr.bf16.gmra.mrb[0].mxu0 %v4397
        %v4543 = vpop.f32.mrb[0].mxu0
        %v4544 = vadd.f32 %v4323, %v4543
        %v4545 = vpop.f32.mrb[0].mxu0
        %v4546 = vpop.f32.mrb[0].mxu0
        %v4547 = vadd.f32 %v4326, %v4546
        %v4548 = vpop.f32.mrb[0].mxu0
        %4549 = vmatprep.mubr.bf16.mxu0 0
        %4550 = vmatmul.mubr.bf16.gmra.mrb[0].mxu0 %v4400
        %v4551 = vpop.f32.mrb[0].mxu0
        %v4552 = vadd.f32 %v4331, %v4551
        %v4553 = vpop.f32.mrb[0].mxu0
        %v4554 = vpop.f32.mrb[0].mxu0
        %v4555 = vadd.f32 %v4334, %v4554
        %v4556 = vpop.f32.mrb[0].mxu0
        %4557 = vmatprep.mubr.bf16.mxu0 0
        %4558 = vmatmul.mubr.bf16.gmra.mrb[0].mxu0 %v4403
        %v4559 = vpop.f32.mrb[0].mxu0
        %v4560 = vadd.f32 %v4339, %v4559
        %v4561 = vpop.f32.mrb[0].mxu0
        %v4562 = vpop.f32.mrb[0].mxu0
        %v4563 = vadd.f32 %v4342, %v4562
        %v4564 = vpop.f32.mrb[0].mxu0
        %4565 = vdwg.mxu0
        %4566 = vrot.lane.b32.xlu0 %v2168, 64
        %v4567 = vpop.permute.xlu0 %4566
        %4568 = vrot.lane.b32.xlu0 %v2169, 64
        %v4569 = vpop.permute.xlu0 %4568
        %4570 = vrot.lane.b32.xlu0 %v2170, 64
        %v4571 = vpop.permute.xlu0 %4570
        %4572 = vrot.lane.b32.xlu0 %v2171, 64
        %v4573 = vpop.permute.xlu0 %4572
        %4574 = vrot.lane.b32.xlu0 %v2172, 64
        %v4575 = vpop.permute.xlu0 %4574
        %4576 = vrot.lane.b32.xlu0 %v2173, 64
        %v4577 = vpop.permute.xlu0 %4576
        %4578 = vrot.lane.b32.xlu0 %v2174, 64
        %v4579 = vpop.permute.xlu0 %4578
        %4580 = vrot.lane.b32.xlu0 %v2175, 64
        %v4581 = vpop.permute.xlu0 %4580
        %4582 = vrot.lane.b32.xlu0 %v2184, 64
        %v4583 = vpop.permute.xlu0 %4582
        %4584 = vrot.lane.b32.xlu0 %v2185, 64
        %v4585 = vpop.permute.xlu0 %4584
        %4586 = vrot.lane.b32.xlu0 %v2186, 64
        %v4587 = vpop.permute.xlu0 %4586
        %4588 = vrot.lane.b32.xlu0 %v2187, 64
        %v4589 = vpop.permute.xlu0 %4588
        %4590 = vrot.lane.b32.xlu0 %v2188, 64
        %v4591 = vpop.permute.xlu0 %4590
        %4592 = vrot.lane.b32.xlu0 %v2189, 64
        %v4593 = vpop.permute.xlu0 %4592
        %4594 = vrot.lane.b32.xlu0 %v2190, 64
        %v4595 = vpop.permute.xlu0 %4594
        %4596 = vrot.lane.b32.xlu0 %v2191, 64
        %v4597 = vpop.permute.xlu0 %4596
        %v4599 = vsel %vm2216, %v4567, 0
        %v4602 = vsel %vm2216, %v4569, 0
        %v4605 = vsel %vm2216, %v4571, 0
        %v4608 = vsel %vm2216, %v4573, 0
        %v4611 = vsel %vm2216, %v4575, 0
        %v4614 = vsel %vm2216, %v4577, 0
        %v4617 = vsel %vm2216, %v4579, 0
        %v4620 = vsel %vm2216, %v4581, 0
        %v4623 = vsel %vm2216, %v4583, 0
        %v4626 = vsel %vm2216, %v4585, 0
        %v4629 = vsel %vm2216, %v4587, 0
        %v4632 = vsel %vm2216, %v4589, 0
        %v4635 = vsel %vm2216, %v4591, 0
        %v4638 = vsel %vm2216, %v4593, 0
        %v4641 = vsel %vm2216, %v4595, 0
        %v4644 = vsel %vm2216, %v4597, 0
        %4646 = vmatprep.subr.bf16.mxu0 0
        %4647 = vmatpush1.bf16.xpose.msra.mxu0 %v4623
        %4648 = vmatprep.subr.bf16.mxu0 0
        %4649 = vmatpush1.bf16.xpose.msra.mxu0 %v4626
        %4650 = vmatprep.subr.bf16.mxu0 0
        %4651 = vmatpush1.bf16.xpose.msra.mxu0 %v4629
        %4652 = vmatprep.subr.bf16.mxu0 0
        %4653 = vmatpush1.bf16.xpose.msra.mxu0 %v4632
        %4654 = vmatprep.subr.bf16.mxu0 0
        %4655 = vmatpush1.bf16.xpose.msra.mxu0 %v4635
        %4656 = vmatprep.subr.bf16.mxu0 0
        %4657 = vmatpush1.bf16.xpose.msra.mxu0 %v4638
        %4658 = vmatprep.subr.bf16.mxu0 0
        %4659 = vmatpush1.bf16.xpose.msra.mxu0 %v4641
        %4660 = vmatprep.subr.bf16.mxu0 0
        %4661 = vmatpush1.bf16.xpose.msra.mxu0 %v4644
        %4662 = vmatprep.subr.bf16.mxu0 0
        %4663 = vmatpush1.bf16.xpose.msra.mxu0 0
        %4664 = vmatprep.subr.bf16.mxu0 0
        %4665 = vmatpush1.bf16.xpose.msra.mxu0 0
        %4666 = vmatprep.subr.bf16.mxu0 0
        %4667 = vmatpush1.bf16.xpose.msra.mxu0 0
        %4668 = vmatprep.subr.bf16.mxu0 0
        %4669 = vmatpush1.bf16.xpose.msra.mxu0 0
        %4670 = vmatprep.subr.bf16.mxu0 0
        %4671 = vmatpush1.bf16.xpose.msra.mxu0 0
        %4672 = vmatprep.subr.bf16.mxu0 0
        %4673 = vmatpush1.bf16.xpose.msra.mxu0 0
        %4674 = vmatprep.subr.bf16.mxu0 0
        %4675 = vmatpush1.bf16.xpose.msra.mxu0 0
        %4676 = vmatprep.subr.bf16.mxu0 0
        %4677 = vmatpush1.bf16.xpose.msra.mxu0 0
        %4678 = vmatprep.mubr.bf16.mxu0 0
        %4679 = vmatmul.mubr.bf16.gmra.mrb[0].mxu0 %v4599
        %v4680 = vpop.f32.mrb[0].mxu0
        %v4681 = vadd.f32 0.0, %v4680
        %v4682 = vpop.f32.mrb[0].mxu0
        %v4683 = vpop.f32.mrb[0].mxu0
        %v4684 = vadd.f32 0.0, %v4683
        %v4685 = vpop.f32.mrb[0].mxu0
        %4686 = vmatprep.mubr.bf16.mxu0 0
        %4687 = vmatmul.mubr.bf16.gmra.mrb[0].mxu0 %v4602
        %v4688 = vpop.f32.mrb[0].mxu0
        %v4689 = vadd.f32 0.0, %v4688
        %v4690 = vpop.f32.mrb[0].mxu0
        %v4691 = vpop.f32.mrb[0].mxu0
        %v4692 = vadd.f32 0.0, %v4691
        %v4693 = vpop.f32.mrb[0].mxu0
        %4694 = vmatprep.mubr.bf16.mxu0 0
        %4695 = vmatmul.mubr.bf16.gmra.mrb[0].mxu0 %v4605
        %v4696 = vpop.f32.mrb[0].mxu0
        %v4697 = vadd.f32 0.0, %v4696
        %v4698 = vpop.f32.mrb[0].mxu0
        %v4699 = vpop.f32.mrb[0].mxu0
        %v4700 = vadd.f32 0.0, %v4699
        %v4701 = vpop.f32.mrb[0].mxu0
        %4702 = vmatprep.mubr.bf16.mxu0 0
        %4703 = vmatmul.mubr.bf16.gmra.mrb[0].mxu0 %v4608
        %v4704 = vpop.f32.mrb[0].mxu0
        %v4705 = vadd.f32 0.0, %v4704
        %v4706 = vpop.f32.mrb[0].mxu0
        %v4707 = vpop.f32.mrb[0].mxu0
        %v4708 = vadd.f32 0.0, %v4707
        %v4709 = vpop.f32.mrb[0].mxu0
        %4710 = vmatprep.mubr.bf16.mxu0 0
        %4711 = vmatmul.mubr.bf16.gmra.mrb[0].mxu0 %v4611
        %v4712 = vpop.f32.mrb[0].mxu0
        %v4713 = vadd.f32 0.0, %v4712
        %v4714 = vpop.f32.mrb[0].mxu0
        %v4715 = vpop.f32.mrb[0].mxu0
        %v4716 = vadd.f32 0.0, %v4715
        %v4717 = vpop.f32.mrb[0].mxu0
        %4718 = vmatprep.mubr.bf16.mxu0 0
        %4719 = vmatmul.mubr.bf16.gmra.mrb[0].mxu0 %v4614
        %v4720 = vpop.f32.mrb[0].mxu0
        %v4721 = vadd.f32 0.0, %v4720
        %v4722 = vpop.f32.mrb[0].mxu0
        %v4723 = vpop.f32.mrb[0].mxu0
        %v4724 = vadd.f32 0.0, %v4723
        %v4725 = vpop.f32.mrb[0].mxu0
        %4726 = vmatprep.mubr.bf16.mxu0 0
        %4727 = vmatmul.mubr.bf16.gmra.mrb[0].mxu0 %v4617
        %v4728 = vpop.f32.mrb[0].mxu0
        %v4729 = vadd.f32 0.0, %v4728
        %v4730 = vpop.f32.mrb[0].mxu0
        %v4731 = vpop.f32.mrb[0].mxu0
        %v4732 = vadd.f32 0.0, %v4731
        %v4733 = vpop.f32.mrb[0].mxu0
        %4734 = vmatprep.mubr.bf16.mxu0 0
        %4735 = vmatmul.mubr.bf16.gmra.mrb[0].mxu0 %v4620
        %v4736 = vpop.f32.mrb[0].mxu0
        %v4737 = vadd.f32 0.0, %v4736
        %v4738 = vpop.f32.mrb[0].mxu0
        %v4739 = vpop.f32.mrb[0].mxu0
        %v4740 = vadd.f32 0.0, %v4739
        %v4741 = vpop.f32.mrb[0].mxu0
        %4742 = vdwg.mxu0
        %4743 = vrot.lane.b32.xlu0 %v2176, 64
        %v4744 = vpop.permute.xlu0 %4743
        %4745 = vrot.lane.b32.xlu0 %v2177, 64
        %v4746 = vpop.permute.xlu0 %4745
        %4747 = vrot.lane.b32.xlu0 %v2178, 64
        %v4748 = vpop.permute.xlu0 %4747
        %4749 = vrot.lane.b32.xlu0 %v2179, 64
        %v4750 = vpop.permute.xlu0 %4749
        %4751 = vrot.lane.b32.xlu0 %v2180, 64
        %v4752 = vpop.permute.xlu0 %4751
        %4753 = vrot.lane.b32.xlu0 %v2181, 64
        %v4754 = vpop.permute.xlu0 %4753
        %4755 = vrot.lane.b32.xlu0 %v2182, 64
        %v4756 = vpop.permute.xlu0 %4755
        %4757 = vrot.lane.b32.xlu0 %v2183, 64
        %v4758 = vpop.permute.xlu0 %4757
        %4759 = vrot.lane.b32.xlu0 %v2192, 64
        %v4760 = vpop.permute.xlu0 %4759
        %4761 = vrot.lane.b32.xlu0 %v2193, 64
        %v4762 = vpop.permute.xlu0 %4761
        %4763 = vrot.lane.b32.xlu0 %v2194, 64
        %v4764 = vpop.permute.xlu0 %4763
        %4765 = vrot.lane.b32.xlu0 %v2195, 64
        %v4766 = vpop.permute.xlu0 %4765
        %4767 = vrot.lane.b32.xlu0 %v2196, 64
        %v4768 = vpop.permute.xlu0 %4767
        %4769 = vrot.lane.b32.xlu0 %v2197, 64
        %v4770 = vpop.permute.xlu0 %4769
        %4771 = vrot.lane.b32.xlu0 %v2198, 64
        %v4772 = vpop.permute.xlu0 %4771
        %4773 = vrot.lane.b32.xlu0 %v2199, 64
        %v4774 = vpop.permute.xlu0 %4773
        %v4776 = vsel %vm2216, %v4744, 0
        %v4779 = vsel %vm2216, %v4746, 0
        %v4782 = vsel %vm2216, %v4748, 0
        %v4785 = vsel %vm2216, %v4750, 0
        %v4788 = vsel %vm2216, %v4752, 0
        %v4791 = vsel %vm2216, %v4754, 0
        %v4794 = vsel %vm2216, %v4756, 0
        %v4797 = vsel %vm2216, %v4758, 0
        %v4800 = vsel %vm2216, %v4760, 0
        %v4803 = vsel %vm2216, %v4762, 0
        %v4806 = vsel %vm2216, %v4764, 0
        %v4809 = vsel %vm2216, %v4766, 0
        %v4812 = vsel %vm2216, %v4768, 0
        %v4815 = vsel %vm2216, %v4770, 0
        %v4818 = vsel %vm2216, %v4772, 0
        %v4821 = vsel %vm2216, %v4774, 0
        %4823 = vmatprep.subr.bf16.mxu0 0
        %4824 = vmatpush1.bf16.xpose.msra.mxu0 %v4800
        %4825 = vmatprep.subr.bf16.mxu0 0
        %4826 = vmatpush1.bf16.xpose.msra.mxu0 %v4803
        %4827 = vmatprep.subr.bf16.mxu0 0
        %4828 = vmatpush1.bf16.xpose.msra.mxu0 %v4806
        %4829 = vmatprep.subr.bf16.mxu0 0
        %4830 = vmatpush1.bf16.xpose.msra.mxu0 %v4809
        %4831 = vmatprep.subr.bf16.mxu0 0
        %4832 = vmatpush1.bf16.xpose.msra.mxu0 %v4812
        %4833 = vmatprep.subr.bf16.mxu0 0
        %4834 = vmatpush1.bf16.xpose.msra.mxu0 %v4815
        %4835 = vmatprep.subr.bf16.mxu0 0
        %4836 = vmatpush1.bf16.xpose.msra.mxu0 %v4818
        %4837 = vmatprep.subr.bf16.mxu0 0
        %4838 = vmatpush1.bf16.xpose.msra.mxu0 %v4821
        %4839 = vmatprep.subr.bf16.mxu0 0
        %4840 = vmatpush1.bf16.xpose.msra.mxu0 0
        %4841 = vmatprep.subr.bf16.mxu0 0
        %4842 = vmatpush1.bf16.xpose.msra.mxu0 0
        %4843 = vmatprep.subr.bf16.mxu0 0
        %4844 = vmatpush1.bf16.xpose.msra.mxu0 0
        %4845 = vmatprep.subr.bf16.mxu0 0
        %4846 = vmatpush1.bf16.xpose.msra.mxu0 0
        %4847 = vmatprep.subr.bf16.mxu0 0
        %4848 = vmatpush1.bf16.xpose.msra.mxu0 0
        %4849 = vmatprep.subr.bf16.mxu0 0
        %4850 = vmatpush1.bf16.xpose.msra.mxu0 0
        %4851 = vmatprep.subr.bf16.mxu0 0
        %4852 = vmatpush1.bf16.xpose.msra.mxu0 0
        %4853 = vmatprep.subr.bf16.mxu0 0
        %4854 = vmatpush1.bf16.xpose.msra.mxu0 0
        %4855 = vmatprep.mubr.bf16.mxu0 0
        %4856 = vmatmul.mubr.bf16.gmra.mrb[0].mxu0 %v4776
        %v4857 = vpop.f32.mrb[0].mxu0
        %v4858 = vadd.f32 0.0, %v4857
        %v4859 = vpop.f32.mrb[0].mxu0
        %v4860 = vpop.f32.mrb[0].mxu0
        %v4861 = vadd.f32 0.0, %v4860
        %v4862 = vpop.f32.mrb[0].mxu0
        %4863 = vmatprep.mubr.bf16.mxu0 0
        %4864 = vmatmul.mubr.bf16.gmra.mrb[0].mxu0 %v4779
        %v4865 = vpop.f32.mrb[0].mxu0
        %v4866 = vadd.f32 0.0, %v4865
        %v4867 = vpop.f32.mrb[0].mxu0
        %v4868 = vpop.f32.mrb[0].mxu0
        %v4869 = vadd.f32 0.0, %v4868
        %v4870 = vpop.f32.mrb[0].mxu0
        %4871 = vmatprep.mubr.bf16.mxu0 0
        %4872 = vmatmul.mubr.bf16.gmra.mrb[0].mxu0 %v4782
        %v4873 = vpop.f32.mrb[0].mxu0
        %v4874 = vadd.f32 0.0, %v4873
        %v4875 = vpop.f32.mrb[0].mxu0
        %v4876 = vpop.f32.mrb[0].mxu0
        %v4877 = vadd.f32 0.0, %v4876
        %v4878 = vpop.f32.mrb[0].mxu0
        %4879 = vmatprep.mubr.bf16.mxu0 0
        %4880 = vmatmul.mubr.bf16.gmra.mrb[0].mxu0 %v4785
        %v4881 = vpop.f32.mrb[0].mxu0
        %v4882 = vadd.f32 0.0, %v4881
        %v4883 = vpop.f32.mrb[0].mxu0
        %v4884 = vpop.f32.mrb[0].mxu0
        %v4885 = vadd.f32 0.0, %v4884
        %v4886 = vpop.f32.mrb[0].mxu0
        %4887 = vmatprep.mubr.bf16.mxu0 0
        %4888 = vmatmul.mubr.bf16.gmra.mrb[0].mxu0 %v4788
        %v4889 = vpop.f32.mrb[0].mxu0
        %v4890 = vadd.f32 0.0, %v4889
        %v4891 = vpop.f32.mrb[0].mxu0
        %v4892 = vpop.f32.mrb[0].mxu0
        %v4893 = vadd.f32 0.0, %v4892
        %v4894 = vpop.f32.mrb[0].mxu0
        %4895 = vmatprep.mubr.bf16.mxu0 0
        %4896 = vmatmul.mubr.bf16.gmra.mrb[0].mxu0 %v4791
        %v4897 = vpop.f32.mrb[0].mxu0
        %v4898 = vadd.f32 0.0, %v4897
        %v4899 = vpop.f32.mrb[0].mxu0
        %v4900 = vpop.f32.mrb[0].mxu0
        %v4901 = vadd.f32 0.0, %v4900
        %v4902 = vpop.f32.mrb[0].mxu0
        %4903 = vmatprep.mubr.bf16.mxu0 0
        %4904 = vmatmul.mubr.bf16.gmra.mrb[0].mxu0 %v4794
        %v4905 = vpop.f32.mrb[0].mxu0
        %v4906 = vadd.f32 0.0, %v4905
        %v4907 = vpop.f32.mrb[0].mxu0
        %v4908 = vpop.f32.mrb[0].mxu0
        %v4909 = vadd.f32 0.0, %v4908
        %v4910 = vpop.f32.mrb[0].mxu0
        %4911 = vmatprep.mubr.bf16.mxu0 0
        %4912 = vmatmul.mubr.bf16.gmra.mrb[0].mxu0 %v4797
        %v4913 = vpop.f32.mrb[0].mxu0
        %v4914 = vadd.f32 0.0, %v4913
        %v4915 = vpop.f32.mrb[0].mxu0
        %v4916 = vpop.f32.mrb[0].mxu0
        %v4917 = vadd.f32 0.0, %v4916
        %v4918 = vpop.f32.mrb[0].mxu0
        %4919 = vdwg.mxu0
        %v4920 = vmul.f32 %v4681, 0.35355338
        %v4921 = vmul.f32 %v4684, 0.35355338
        %v4922 = vmul.f32 %v4689, 0.35355338
        %v4923 = vmul.f32 %v4692, 0.35355338
        %v4924 = vmul.f32 %v4697, 0.35355338
        %v4925 = vmul.f32 %v4700, 0.35355338
        %v4926 = vmul.f32 %v4705, 0.35355338
        %v4927 = vmul.f32 %v4708, 0.35355338
        %v4928 = vmul.f32 %v4713, 0.35355338
        %v4929 = vmul.f32 %v4716, 0.35355338
        %v4930 = vmul.f32 %v4721, 0.35355338
        %v4931 = vmul.f32 %v4724, 0.35355338
        %v4932 = vmul.f32 %v4729, 0.35355338
        %v4933 = vmul.f32 %v4732, 0.35355338
        %v4934 = vmul.f32 %v4737, 0.35355338
        %v4935 = vmul.f32 %v4740, 0.35355338
        %v4936 = vmul.f32 %v4858, 0.35355338
        %v4937 = vmul.f32 %v4861, 0.35355338
        %v4938 = vmul.f32 %v4866, 0.35355338
        %v4939 = vmul.f32 %v4869, 0.35355338
        %v4940 = vmul.f32 %v4874, 0.35355338
        %v4941 = vmul.f32 %v4877, 0.35355338
        %v4942 = vmul.f32 %v4882, 0.35355338
        %v4943 = vmul.f32 %v4885, 0.35355338
        %v4944 = vmul.f32 %v4890, 0.35355338
        %v4945 = vmul.f32 %v4893, 0.35355338
        %v4946 = vmul.f32 %v4898, 0.35355338
        %v4947 = vmul.f32 %v4901, 0.35355338
        %v4948 = vmul.f32 %v4906, 0.35355338
        %v4949 = vmul.f32 %v4909, 0.35355338
        %v4950 = vmul.f32 %v4914, 0.35355338
        %v4951 = vmul.f32 %v4917, 0.35355338
        %v4952 = vsel %vm2540, %v4920, -1e+30
        %v4953 = vsel %vm2540, %v4921, -1e+30
        %v4954 = vsel %vm2540, %v4922, -1e+30
        %v4955 = vsel %vm2540, %v4923, -1e+30
        %v4956 = vsel %vm2540, %v4924, -1e+30
        %v4957 = vsel %vm2540, %v4925, -1e+30
        %v4958 = vsel %vm2540, %v4926, -1e+30
        %v4959 = vsel %vm2540, %v4927, -1e+30
        %v4960 = vsel %vm2540, %v4928, -1e+30
        %v4961 = vsel %vm2540, %v4929, -1e+30
        %v4962 = vsel %vm2540, %v4930, -1e+30
        %v4963 = vsel %vm2540, %v4931, -1e+30
        %v4964 = vsel %vm2540, %v4932, -1e+30
        %v4965 = vsel %vm2540, %v4933, -1e+30
        %v4966 = vsel %vm2540, %v4934, -1e+30
        %v4967 = vsel %vm2540, %v4935, -1e+30
        %v4968 = vsel %vm2540, %v4936, -1e+30
        %v4969 = vsel %vm2540, %v4937, -1e+30
        %v4970 = vsel %vm2540, %v4938, -1e+30
        %v4971 = vsel %vm2540, %v4939, -1e+30
        %v4972 = vsel %vm2540, %v4940, -1e+30
        %v4973 = vsel %vm2540, %v4941, -1e+30
        %v4974 = vsel %vm2540, %v4942, -1e+30
        %v4975 = vsel %vm2540, %v4943, -1e+30
        %v4976 = vsel %vm2540, %v4944, -1e+30
        %v4977 = vsel %vm2540, %v4945, -1e+30
        %v4978 = vsel %vm2540, %v4946, -1e+30
        %v4979 = vsel %vm2540, %v4947, -1e+30
        %v4980 = vsel %vm2540, %v4948, -1e+30
        %v4981 = vsel %vm2540, %v4949, -1e+30
        %v4982 = vsel %vm2540, %v4950, -1e+30
        %v4983 = vsel %vm2540, %v4951, -1e+30
        %4984 = vmax.xlane.f32.xlu0 %v4952
        %v4985 = vpop.xlane.xlu0 %4984
        %4986 = vmax.xlane.f32.xlu0 %v4953
        %v4987 = vpop.xlane.xlu0 %4986
        %4988 = vmax.xlane.f32.xlu0 %v4954
        %v4989 = vpop.xlane.xlu0 %4988
        %4990 = vmax.xlane.f32.xlu0 %v4955
        %v4991 = vpop.xlane.xlu0 %4990
        %4992 = vmax.xlane.f32.xlu0 %v4956
        %v4993 = vpop.xlane.xlu0 %4992
        %4994 = vmax.xlane.f32.xlu0 %v4957
        %v4995 = vpop.xlane.xlu0 %4994
        %4996 = vmax.xlane.f32.xlu0 %v4958
        %v4997 = vpop.xlane.xlu0 %4996
        %4998 = vmax.xlane.f32.xlu0 %v4959
        %v4999 = vpop.xlane.xlu0 %4998
        %5000 = vmax.xlane.f32.xlu0 %v4960
        %v5001 = vpop.xlane.xlu0 %5000
        %5002 = vmax.xlane.f32.xlu0 %v4961
        %v5003 = vpop.xlane.xlu0 %5002
        %5004 = vmax.xlane.f32.xlu0 %v4962
        %v5005 = vpop.xlane.xlu0 %5004
        %5006 = vmax.xlane.f32.xlu0 %v4963
        %v5007 = vpop.xlane.xlu0 %5006
        %5008 = vmax.xlane.f32.xlu0 %v4964
        %v5009 = vpop.xlane.xlu0 %5008
        %5010 = vmax.xlane.f32.xlu0 %v4965
        %v5011 = vpop.xlane.xlu0 %5010
        %5012 = vmax.xlane.f32.xlu0 %v4966
        %v5013 = vpop.xlane.xlu0 %5012
        %5014 = vmax.xlane.f32.xlu0 %v4967
        %v5015 = vpop.xlane.xlu0 %5014
        %5016 = vmax.xlane.f32.xlu0 %v4968
        %v5017 = vpop.xlane.xlu0 %5016
        %5018 = vmax.xlane.f32.xlu0 %v4969
        %v5019 = vpop.xlane.xlu0 %5018
        %5020 = vmax.xlane.f32.xlu0 %v4970
        %v5021 = vpop.xlane.xlu0 %5020
        %5022 = vmax.xlane.f32.xlu0 %v4971
        %v5023 = vpop.xlane.xlu0 %5022
        %5024 = vmax.xlane.f32.xlu0 %v4972
        %v5025 = vpop.xlane.xlu0 %5024
        %5026 = vmax.xlane.f32.xlu0 %v4973
        %v5027 = vpop.xlane.xlu0 %5026
        %5028 = vmax.xlane.f32.xlu0 %v4974
        %v5029 = vpop.xlane.xlu0 %5028
        %5030 = vmax.xlane.f32.xlu0 %v4975
        %v5031 = vpop.xlane.xlu0 %5030
        %5032 = vmax.xlane.f32.xlu0 %v4976
        %v5033 = vpop.xlane.xlu0 %5032
        %5034 = vmax.xlane.f32.xlu0 %v4977
        %v5035 = vpop.xlane.xlu0 %5034
        %5036 = vmax.xlane.f32.xlu0 %v4978
        %v5037 = vpop.xlane.xlu0 %5036
        %5038 = vmax.xlane.f32.xlu0 %v4979
        %v5039 = vpop.xlane.xlu0 %5038
        %5040 = vmax.xlane.f32.xlu0 %v4980
        %v5041 = vpop.xlane.xlu0 %5040
        %5042 = vmax.xlane.f32.xlu0 %v4981
        %v5043 = vpop.xlane.xlu0 %5042
        %5044 = vmax.xlane.f32.xlu0 %v4982
        %v5045 = vpop.xlane.xlu0 %5044
        %5046 = vmax.xlane.f32.xlu0 %v4983
        %v5047 = vpop.xlane.xlu0 %5046
        %v5048 = vsub.f32 %v4952, %v4985
        %v5049 = vsub.f32 %v4953, %v4987
        %v5050 = vsub.f32 %v4954, %v4989
        %v5051 = vsub.f32 %v4955, %v4991
        %v5052 = vsub.f32 %v4956, %v4993
        %v5053 = vsub.f32 %v4957, %v4995
        %v5054 = vsub.f32 %v4958, %v4997
        %v5055 = vsub.f32 %v4959, %v4999
        %v5056 = vsub.f32 %v4960, %v5001
        %v5057 = vsub.f32 %v4961, %v5003
        %v5058 = vsub.f32 %v4962, %v5005
        %v5059 = vsub.f32 %v4963, %v5007
        %v5060 = vsub.f32 %v4964, %v5009
        %v5061 = vsub.f32 %v4965, %v5011
        %v5062 = vsub.f32 %v4966, %v5013
        %v5063 = vsub.f32 %v4967, %v5015
        %v5064 = vsub.f32 %v4968, %v5017
        %v5065 = vsub.f32 %v4969, %v5019
        %v5066 = vsub.f32 %v4970, %v5021
        %v5067 = vsub.f32 %v4971, %v5023
        %v5068 = vsub.f32 %v4972, %v5025
        %v5069 = vsub.f32 %v4973, %v5027
        %v5070 = vsub.f32 %v4974, %v5029
        %v5071 = vsub.f32 %v4975, %v5031
        %v5072 = vsub.f32 %v4976, %v5033
        %v5073 = vsub.f32 %v4977, %v5035
        %v5074 = vsub.f32 %v4978, %v5037
        %v5075 = vsub.f32 %v4979, %v5039
        %v5076 = vsub.f32 %v4980, %v5041
        %v5077 = vsub.f32 %v4981, %v5043
        %v5078 = vsub.f32 %v4982, %v5045
        %v5079 = vsub.f32 %v4983, %v5047
        %v5080 = vmul.f32 %v5048, 1.442695
        %v5081 = vpow.pop %v5080
        %v5082 = vmul.f32 %v5049, 1.442695
        %v5083 = vpow.pop %v5082
        %v5084 = vmul.f32 %v5050, 1.442695
        %v5085 = vpow.pop %v5084
        %v5086 = vmul.f32 %v5051, 1.442695
        %v5087 = vpow.pop %v5086
        %v5088 = vmul.f32 %v5052, 1.442695
        %v5089 = vpow.pop %v5088
        %v5090 = vmul.f32 %v5053, 1.442695
        %v5091 = vpow.pop %v5090
        %v5092 = vmul.f32 %v5054, 1.442695
        %v5093 = vpow.pop %v5092
        %v5094 = vmul.f32 %v5055, 1.442695
        %v5095 = vpow.pop %v5094
        %v5096 = vmul.f32 %v5056, 1.442695
        %v5097 = vpow.pop %v5096
        %v5098 = vmul.f32 %v5057, 1.442695
        %v5099 = vpow.pop %v5098
        %v5100 = vmul.f32 %v5058, 1.442695
        %v5101 = vpow.pop %v5100
        %v5102 = vmul.f32 %v5059, 1.442695
        %v5103 = vpow.pop %v5102
        %v5104 = vmul.f32 %v5060, 1.442695
        %v5105 = vpow.pop %v5104
        %v5106 = vmul.f32 %v5061, 1.442695
        %v5107 = vpow.pop %v5106
        %v5108 = vmul.f32 %v5062, 1.442695
        %v5109 = vpow.pop %v5108
        %v5110 = vmul.f32 %v5063, 1.442695
        %v5111 = vpow.pop %v5110
        %v5112 = vmul.f32 %v5064, 1.442695
        %v5113 = vpow.pop %v5112
        %v5114 = vmul.f32 %v5065, 1.442695
        %v5115 = vpow.pop %v5114
        %v5116 = vmul.f32 %v5066, 1.442695
        %v5117 = vpow.pop %v5116
        %v5118 = vmul.f32 %v5067, 1.442695
        %v5119 = vpow.pop %v5118
        %v5120 = vmul.f32 %v5068, 1.442695
        %v5121 = vpow.pop %v5120
        %v5122 = vmul.f32 %v5069, 1.442695
        %v5123 = vpow.pop %v5122
        %v5124 = vmul.f32 %v5070, 1.442695
        %v5125 = vpow.pop %v5124
        %v5126 = vmul.f32 %v5071, 1.442695
        %v5127 = vpow.pop %v5126
        %v5128 = vmul.f32 %v5072, 1.442695
        %v5129 = vpow.pop %v5128
        %v5130 = vmul.f32 %v5073, 1.442695
        %v5131 = vpow.pop %v5130
        %v5132 = vmul.f32 %v5074, 1.442695
        %v5133 = vpow.pop %v5132
        %v5134 = vmul.f32 %v5075, 1.442695
        %v5135 = vpow.pop %v5134
        %v5136 = vmul.f32 %v5076, 1.442695
        %v5137 = vpow.pop %v5136
        %v5138 = vmul.f32 %v5077, 1.442695
        %v5139 = vpow.pop %v5138
        %v5140 = vmul.f32 %v5078, 1.442695
        %v5141 = vpow.pop %v5140
        %v5142 = vmul.f32 %v5079, 1.442695
        %v5143 = vpow.pop %v5142
        %5144 = vadd.xlane.f32.xlu0 %v5081
        %v5145 = vpop.xlane.xlu0 %5144
        %5146 = vadd.xlane.f32.xlu0 %v5083
        %v5147 = vpop.xlane.xlu0 %5146
        %5148 = vadd.xlane.f32.xlu0 %v5085
        %v5149 = vpop.xlane.xlu0 %5148
        %5150 = vadd.xlane.f32.xlu0 %v5087
        %v5151 = vpop.xlane.xlu0 %5150
        %5152 = vadd.xlane.f32.xlu0 %v5089
        %v5153 = vpop.xlane.xlu0 %5152
        %5154 = vadd.xlane.f32.xlu0 %v5091
        %v5155 = vpop.xlane.xlu0 %5154
        %5156 = vadd.xlane.f32.xlu0 %v5093
        %v5157 = vpop.xlane.xlu0 %5156
        %5158 = vadd.xlane.f32.xlu0 %v5095
        %v5159 = vpop.xlane.xlu0 %5158
        %5160 = vadd.xlane.f32.xlu0 %v5097
        %v5161 = vpop.xlane.xlu0 %5160
        %5162 = vadd.xlane.f32.xlu0 %v5099
        %v5163 = vpop.xlane.xlu0 %5162
        %5164 = vadd.xlane.f32.xlu0 %v5101
        %v5165 = vpop.xlane.xlu0 %5164
        %5166 = vadd.xlane.f32.xlu0 %v5103
        %v5167 = vpop.xlane.xlu0 %5166
        %5168 = vadd.xlane.f32.xlu0 %v5105
        %v5169 = vpop.xlane.xlu0 %5168
        %5170 = vadd.xlane.f32.xlu0 %v5107
        %v5171 = vpop.xlane.xlu0 %5170
        %5172 = vadd.xlane.f32.xlu0 %v5109
        %v5173 = vpop.xlane.xlu0 %5172
        %5174 = vadd.xlane.f32.xlu0 %v5111
        %v5175 = vpop.xlane.xlu0 %5174
        %5176 = vadd.xlane.f32.xlu0 %v5113
        %v5177 = vpop.xlane.xlu0 %5176
        %5178 = vadd.xlane.f32.xlu0 %v5115
        %v5179 = vpop.xlane.xlu0 %5178
        %5180 = vadd.xlane.f32.xlu0 %v5117
        %v5181 = vpop.xlane.xlu0 %5180
        %5182 = vadd.xlane.f32.xlu0 %v5119
        %v5183 = vpop.xlane.xlu0 %5182
        %5184 = vadd.xlane.f32.xlu0 %v5121
        %v5185 = vpop.xlane.xlu0 %5184
        %5186 = vadd.xlane.f32.xlu0 %v5123
        %v5187 = vpop.xlane.xlu0 %5186
        %5188 = vadd.xlane.f32.xlu0 %v5125
        %v5189 = vpop.xlane.xlu0 %5188
        %5190 = vadd.xlane.f32.xlu0 %v5127
        %v5191 = vpop.xlane.xlu0 %5190
        %5192 = vadd.xlane.f32.xlu0 %v5129
        %v5193 = vpop.xlane.xlu0 %5192
        %5194 = vadd.xlane.f32.xlu0 %v5131
        %v5195 = vpop.xlane.xlu0 %5194
        %5196 = vadd.xlane.f32.xlu0 %v5133
        %v5197 = vpop.xlane.xlu0 %5196
        %5198 = vadd.xlane.f32.xlu0 %v5135
        %v5199 = vpop.xlane.xlu0 %5198
        %5200 = vadd.xlane.f32.xlu0 %v5137
        %v5201 = vpop.xlane.xlu0 %5200
        %5202 = vadd.xlane.f32.xlu0 %v5139
        %v5203 = vpop.xlane.xlu0 %5202
        %5204 = vadd.xlane.f32.xlu0 %v5141
        %v5205 = vpop.xlane.xlu0 %5204
        %5206 = vadd.xlane.f32.xlu0 %v5143
        %v5207 = vpop.xlane.xlu0 %5206
        %v5208 = vrcp.pop %v5145
        %v5209 = vrcp.pop %v5147
        %v5210 = vrcp.pop %v5149
        %v5211 = vrcp.pop %v5151
        %v5212 = vrcp.pop %v5153
        %v5213 = vrcp.pop %v5155
        %v5214 = vrcp.pop %v5157
        %v5215 = vrcp.pop %v5159
        %v5216 = vrcp.pop %v5161
        %v5217 = vrcp.pop %v5163
        %v5218 = vrcp.pop %v5165
        %v5219 = vrcp.pop %v5167
        %v5220 = vrcp.pop %v5169
        %v5221 = vrcp.pop %v5171
        %v5222 = vrcp.pop %v5173
        %v5223 = vrcp.pop %v5175
        %v5224 = vrcp.pop %v5177
        %v5225 = vrcp.pop %v5179
        %v5226 = vrcp.pop %v5181
        %v5227 = vrcp.pop %v5183
        %v5228 = vrcp.pop %v5185
        %v5229 = vrcp.pop %v5187
        %v5230 = vrcp.pop %v5189
        %v5231 = vrcp.pop %v5191
        %v5232 = vrcp.pop %v5193
        %v5233 = vrcp.pop %v5195
        %v5234 = vrcp.pop %v5197
        %v5235 = vrcp.pop %v5199
        %v5236 = vrcp.pop %v5201
        %v5237 = vrcp.pop %v5203
        %v5238 = vrcp.pop %v5205
        %v5239 = vrcp.pop %v5207
        %v5240 = vmul.f32 %v5081, %v5208
        %v5241 = vmul.f32 %v5083, %v5209
        %v5242 = vmul.f32 %v5085, %v5210
        %v5243 = vmul.f32 %v5087, %v5211
        %v5244 = vmul.f32 %v5089, %v5212
        %v5245 = vmul.f32 %v5091, %v5213
        %v5246 = vmul.f32 %v5093, %v5214
        %v5247 = vmul.f32 %v5095, %v5215
        %v5248 = vmul.f32 %v5097, %v5216
        %v5249 = vmul.f32 %v5099, %v5217
        %v5250 = vmul.f32 %v5101, %v5218
        %v5251 = vmul.f32 %v5103, %v5219
        %v5252 = vmul.f32 %v5105, %v5220
        %v5253 = vmul.f32 %v5107, %v5221
        %v5254 = vmul.f32 %v5109, %v5222
        %v5255 = vmul.f32 %v5111, %v5223
        %v5256 = vmul.f32 %v5113, %v5224
        %v5257 = vmul.f32 %v5115, %v5225
        %v5258 = vmul.f32 %v5117, %v5226
        %v5259 = vmul.f32 %v5119, %v5227
        %v5260 = vmul.f32 %v5121, %v5228
        %v5261 = vmul.f32 %v5123, %v5229
        %v5262 = vmul.f32 %v5125, %v5230
        %v5263 = vmul.f32 %v5127, %v5231
        %v5264 = vmul.f32 %v5129, %v5232
        %v5265 = vmul.f32 %v5131, %v5233
        %v5266 = vmul.f32 %v5133, %v5234
        %v5267 = vmul.f32 %v5135, %v5235
        %v5268 = vmul.f32 %v5137, %v5236
        %v5269 = vmul.f32 %v5139, %v5237
        %v5270 = vmul.f32 %v5141, %v5238
        %v5271 = vmul.f32 %v5143, %v5239
        %v5272 = vpack.c.bf16 %v5241, %v5240
        %v5273 = vpack.c.bf16 %v5243, %v5242
        %v5274 = vpack.c.bf16 %v5245, %v5244
        %v5275 = vpack.c.bf16 %v5247, %v5246
        %v5276 = vpack.c.bf16 %v5249, %v5248
        %v5277 = vpack.c.bf16 %v5251, %v5250
        %v5278 = vpack.c.bf16 %v5253, %v5252
        %v5279 = vpack.c.bf16 %v5255, %v5254
        %v5280 = vpack.c.bf16 %v5257, %v5256
        %v5281 = vpack.c.bf16 %v5259, %v5258
        %v5282 = vpack.c.bf16 %v5261, %v5260
        %v5283 = vpack.c.bf16 %v5263, %v5262
        %v5284 = vpack.c.bf16 %v5265, %v5264
        %v5285 = vpack.c.bf16 %v5267, %v5266
        %v5286 = vpack.c.bf16 %v5269, %v5268
        %v5287 = vpack.c.bf16 %v5271, %v5270
        %5288 = vrot.lane.b32.xlu0 %v2200, 64
        %v5289 = vpop.permute.xlu0 %5288
        %5290 = vrot.lane.b32.xlu0 %v2201, 64
        %v5291 = vpop.permute.xlu0 %5290
        %5292 = vrot.lane.b32.xlu0 %v2202, 64
        %v5293 = vpop.permute.xlu0 %5292
        %5294 = vrot.lane.b32.xlu0 %v2203, 64
        %v5295 = vpop.permute.xlu0 %5294
        %5296 = vrot.lane.b32.xlu0 %v2204, 64
        %v5297 = vpop.permute.xlu0 %5296
        %5298 = vrot.lane.b32.xlu0 %v2205, 64
        %v5299 = vpop.permute.xlu0 %5298
        %5300 = vrot.lane.b32.xlu0 %v2206, 64
        %v5301 = vpop.permute.xlu0 %5300
        %5302 = vrot.lane.b32.xlu0 %v2207, 64
        %v5303 = vpop.permute.xlu0 %5302
        %5312 = vmatprep.subr.bf16.mxu0 0
        %5313 = vmatpush1.bf16.msra.mxu0 %v5289
        %5314 = vmatprep.subr.bf16.mxu0 0
        %5315 = vmatpush1.bf16.msra.mxu0 %v5291
        %5316 = vmatprep.subr.bf16.mxu0 0
        %5317 = vmatpush1.bf16.msra.mxu0 %v5293
        %5318 = vmatprep.subr.bf16.mxu0 0
        %5319 = vmatpush1.bf16.msra.mxu0 %v5295
        %5320 = vmatprep.subr.bf16.mxu0 0
        %5321 = vmatpush1.bf16.msra.mxu0 %v5297
        %5322 = vmatprep.subr.bf16.mxu0 0
        %5323 = vmatpush1.bf16.msra.mxu0 %v5299
        %5324 = vmatprep.subr.bf16.mxu0 0
        %5325 = vmatpush1.bf16.msra.mxu0 %v5301
        %5326 = vmatprep.subr.bf16.mxu0 0
        %5327 = vmatpush1.bf16.msra.mxu0 %v5303
        %5328 = vmatprep.subr.bf16.mxu0 0
        %5329 = vmatpush1.bf16.msra.mxu0 0
        %5330 = vmatprep.subr.bf16.mxu0 0
        %5331 = vmatpush1.bf16.msra.mxu0 0
        %5332 = vmatprep.subr.bf16.mxu0 0
        %5333 = vmatpush1.bf16.msra.mxu0 0
        %5334 = vmatprep.subr.bf16.mxu0 0
        %5335 = vmatpush1.bf16.msra.mxu0 0
        %5336 = vmatprep.subr.bf16.mxu0 0
        %5337 = vmatpush1.bf16.msra.mxu0 0
        %5338 = vmatprep.subr.bf16.mxu0 0
        %5339 = vmatpush1.bf16.msra.mxu0 0
        %5340 = vmatprep.subr.bf16.mxu0 0
        %5341 = vmatpush1.bf16.msra.mxu0 0
        %5342 = vmatprep.subr.bf16.mxu0 0
        %5343 = vmatpush1.bf16.msra.mxu0 0
        %5344 = vmatprep.mubr.bf16.mxu0 0
        %5345 = vmatmul.mubr.bf16.gmra.mrb[0].mxu0 %v5272
        %v5346 = vpop.f32.mrb[0].mxu0
        %v5347 = vadd.f32 0.0, %v5346
        %v5348 = vpop.f32.mrb[0].mxu0
        %v5349 = vpop.f32.mrb[0].mxu0
        %v5350 = vadd.f32 0.0, %v5349
        %v5351 = vpop.f32.mrb[0].mxu0
        %5352 = vmatprep.mubr.bf16.mxu0 0
        %5353 = vmatmul.mubr.bf16.gmra.mrb[0].mxu0 %v5273
        %v5354 = vpop.f32.mrb[0].mxu0
        %v5355 = vadd.f32 0.0, %v5354
        %v5356 = vpop.f32.mrb[0].mxu0
        %v5357 = vpop.f32.mrb[0].mxu0
        %v5358 = vadd.f32 0.0, %v5357
        %v5359 = vpop.f32.mrb[0].mxu0
        %5360 = vmatprep.mubr.bf16.mxu0 0
        %5361 = vmatmul.mubr.bf16.gmra.mrb[0].mxu0 %v5274
        %v5362 = vpop.f32.mrb[0].mxu0
        %v5363 = vadd.f32 0.0, %v5362
        %v5364 = vpop.f32.mrb[0].mxu0
        %v5365 = vpop.f32.mrb[0].mxu0
        %v5366 = vadd.f32 0.0, %v5365
        %v5367 = vpop.f32.mrb[0].mxu0
        %5368 = vmatprep.mubr.bf16.mxu0 0
        %5369 = vmatmul.mubr.bf16.gmra.mrb[0].mxu0 %v5275
        %v5370 = vpop.f32.mrb[0].mxu0
        %v5371 = vadd.f32 0.0, %v5370
        %v5372 = vpop.f32.mrb[0].mxu0
        %v5373 = vpop.f32.mrb[0].mxu0
        %v5374 = vadd.f32 0.0, %v5373
        %v5375 = vpop.f32.mrb[0].mxu0
        %5376 = vmatprep.mubr.bf16.mxu0 0
        %5377 = vmatmul.mubr.bf16.gmra.mrb[0].mxu0 %v5276
        %v5378 = vpop.f32.mrb[0].mxu0
        %v5379 = vadd.f32 0.0, %v5378
        %v5380 = vpop.f32.mrb[0].mxu0
        %v5381 = vpop.f32.mrb[0].mxu0
        %v5382 = vadd.f32 0.0, %v5381
        %v5383 = vpop.f32.mrb[0].mxu0
        %5384 = vmatprep.mubr.bf16.mxu0 0
        %5385 = vmatmul.mubr.bf16.gmra.mrb[0].mxu0 %v5277
        %v5386 = vpop.f32.mrb[0].mxu0
        %v5387 = vadd.f32 0.0, %v5386
        %v5388 = vpop.f32.mrb[0].mxu0
        %v5389 = vpop.f32.mrb[0].mxu0
        %v5390 = vadd.f32 0.0, %v5389
        %v5391 = vpop.f32.mrb[0].mxu0
        %5392 = vmatprep.mubr.bf16.mxu0 0
        %5393 = vmatmul.mubr.bf16.gmra.mrb[0].mxu0 %v5278
        %v5394 = vpop.f32.mrb[0].mxu0
        %v5395 = vadd.f32 0.0, %v5394
        %v5396 = vpop.f32.mrb[0].mxu0
        %v5397 = vpop.f32.mrb[0].mxu0
        %v5398 = vadd.f32 0.0, %v5397
        %v5399 = vpop.f32.mrb[0].mxu0
        %5400 = vmatprep.mubr.bf16.mxu0 0
        %5401 = vmatmul.mubr.bf16.gmra.mrb[0].mxu0 %v5279
        %v5402 = vpop.f32.mrb[0].mxu0
        %v5403 = vadd.f32 0.0, %v5402
        %v5404 = vpop.f32.mrb[0].mxu0
        %v5405 = vpop.f32.mrb[0].mxu0
        %v5406 = vadd.f32 0.0, %v5405
        %v5407 = vpop.f32.mrb[0].mxu0
        %5408 = vdwg.mxu0
        %5409 = vrot.lane.b32.xlu0 %v2208, 64
        %v5410 = vpop.permute.xlu0 %5409
        %5411 = vrot.lane.b32.xlu0 %v2209, 64
        %v5412 = vpop.permute.xlu0 %5411
        %5413 = vrot.lane.b32.xlu0 %v2210, 64
        %v5414 = vpop.permute.xlu0 %5413
        %5415 = vrot.lane.b32.xlu0 %v2211, 64
        %v5416 = vpop.permute.xlu0 %5415
        %5417 = vrot.lane.b32.xlu0 %v2212, 64
        %v5418 = vpop.permute.xlu0 %5417
        %5419 = vrot.lane.b32.xlu0 %v2213, 64
        %v5420 = vpop.permute.xlu0 %5419
        %5421 = vrot.lane.b32.xlu0 %v2214, 64
        %v5422 = vpop.permute.xlu0 %5421
        %5423 = vrot.lane.b32.xlu0 %v2215, 64
        %v5424 = vpop.permute.xlu0 %5423
        %5433 = vmatprep.subr.bf16.mxu0 0
        %5434 = vmatpush1.bf16.msra.mxu0 %v5410
        %5435 = vmatprep.subr.bf16.mxu0 0
        %5436 = vmatpush1.bf16.msra.mxu0 %v5412
        %5437 = vmatprep.subr.bf16.mxu0 0
        %5438 = vmatpush1.bf16.msra.mxu0 %v5414
        %5439 = vmatprep.subr.bf16.mxu0 0
        %5440 = vmatpush1.bf16.msra.mxu0 %v5416
        %5441 = vmatprep.subr.bf16.mxu0 0
        %5442 = vmatpush1.bf16.msra.mxu0 %v5418
        %5443 = vmatprep.subr.bf16.mxu0 0
        %5444 = vmatpush1.bf16.msra.mxu0 %v5420
        %5445 = vmatprep.subr.bf16.mxu0 0
        %5446 = vmatpush1.bf16.msra.mxu0 %v5422
        %5447 = vmatprep.subr.bf16.mxu0 0
        %5448 = vmatpush1.bf16.msra.mxu0 %v5424
        %5449 = vmatprep.subr.bf16.mxu0 0
        %5450 = vmatpush1.bf16.msra.mxu0 0
        %5451 = vmatprep.subr.bf16.mxu0 0
        %5452 = vmatpush1.bf16.msra.mxu0 0
        %5453 = vmatprep.subr.bf16.mxu0 0
        %5454 = vmatpush1.bf16.msra.mxu0 0
        %5455 = vmatprep.subr.bf16.mxu0 0
        %5456 = vmatpush1.bf16.msra.mxu0 0
        %5457 = vmatprep.subr.bf16.mxu0 0
        %5458 = vmatpush1.bf16.msra.mxu0 0
        %5459 = vmatprep.subr.bf16.mxu0 0
        %5460 = vmatpush1.bf16.msra.mxu0 0
        %5461 = vmatprep.subr.bf16.mxu0 0
        %5462 = vmatpush1.bf16.msra.mxu0 0
        %5463 = vmatprep.subr.bf16.mxu0 0
        %5464 = vmatpush1.bf16.msra.mxu0 0
        %5465 = vmatprep.mubr.bf16.mxu0 0
        %5466 = vmatmul.mubr.bf16.gmra.mrb[0].mxu0 %v5280
        %v5467 = vpop.f32.mrb[0].mxu0
        %v5468 = vadd.f32 0.0, %v5467
        %v5469 = vpop.f32.mrb[0].mxu0
        %v5470 = vpop.f32.mrb[0].mxu0
        %v5471 = vadd.f32 0.0, %v5470
        %v5472 = vpop.f32.mrb[0].mxu0
        %5473 = vmatprep.mubr.bf16.mxu0 0
        %5474 = vmatmul.mubr.bf16.gmra.mrb[0].mxu0 %v5281
        %v5475 = vpop.f32.mrb[0].mxu0
        %v5476 = vadd.f32 0.0, %v5475
        %v5477 = vpop.f32.mrb[0].mxu0
        %v5478 = vpop.f32.mrb[0].mxu0
        %v5479 = vadd.f32 0.0, %v5478
        %v5480 = vpop.f32.mrb[0].mxu0
        %5481 = vmatprep.mubr.bf16.mxu0 0
        %5482 = vmatmul.mubr.bf16.gmra.mrb[0].mxu0 %v5282
        %v5483 = vpop.f32.mrb[0].mxu0
        %v5484 = vadd.f32 0.0, %v5483
        %v5485 = vpop.f32.mrb[0].mxu0
        %v5486 = vpop.f32.mrb[0].mxu0
        %v5487 = vadd.f32 0.0, %v5486
        %v5488 = vpop.f32.mrb[0].mxu0
        %5489 = vmatprep.mubr.bf16.mxu0 0
        %5490 = vmatmul.mubr.bf16.gmra.mrb[0].mxu0 %v5283
        %v5491 = vpop.f32.mrb[0].mxu0
        %v5492 = vadd.f32 0.0, %v5491
        %v5493 = vpop.f32.mrb[0].mxu0
        %v5494 = vpop.f32.mrb[0].mxu0
        %v5495 = vadd.f32 0.0, %v5494
        %v5496 = vpop.f32.mrb[0].mxu0
        %5497 = vmatprep.mubr.bf16.mxu0 0
        %5498 = vmatmul.mubr.bf16.gmra.mrb[0].mxu0 %v5284
        %v5499 = vpop.f32.mrb[0].mxu0
        %v5500 = vadd.f32 0.0, %v5499
        %v5501 = vpop.f32.mrb[0].mxu0
        %v5502 = vpop.f32.mrb[0].mxu0
        %v5503 = vadd.f32 0.0, %v5502
        %v5504 = vpop.f32.mrb[0].mxu0
        %5505 = vmatprep.mubr.bf16.mxu0 0
        %5506 = vmatmul.mubr.bf16.gmra.mrb[0].mxu0 %v5285
        %v5507 = vpop.f32.mrb[0].mxu0
        %v5508 = vadd.f32 0.0, %v5507
        %v5509 = vpop.f32.mrb[0].mxu0
        %v5510 = vpop.f32.mrb[0].mxu0
        %v5511 = vadd.f32 0.0, %v5510
        %v5512 = vpop.f32.mrb[0].mxu0
        %5513 = vmatprep.mubr.bf16.mxu0 0
        %5514 = vmatmul.mubr.bf16.gmra.mrb[0].mxu0 %v5286
        %v5515 = vpop.f32.mrb[0].mxu0
        %v5516 = vadd.f32 0.0, %v5515
        %v5517 = vpop.f32.mrb[0].mxu0
        %v5518 = vpop.f32.mrb[0].mxu0
        %v5519 = vadd.f32 0.0, %v5518
        %v5520 = vpop.f32.mrb[0].mxu0
        %5521 = vmatprep.mubr.bf16.mxu0 0
        %5522 = vmatmul.mubr.bf16.gmra.mrb[0].mxu0 %v5287
        %v5523 = vpop.f32.mrb[0].mxu0
        %v5524 = vadd.f32 0.0, %v5523
        %v5525 = vpop.f32.mrb[0].mxu0
        %v5526 = vpop.f32.mrb[0].mxu0
        %v5527 = vadd.f32 0.0, %v5526
        %v5528 = vpop.f32.mrb[0].mxu0
        %5529 = vdwg.mxu0
        %v5530 = vpack.c.bf16 %v5350, %v5347
        %v5531 = vpack.c.bf16 %v5358, %v5355
        %v5532 = vpack.c.bf16 %v5366, %v5363
        %v5533 = vpack.c.bf16 %v5374, %v5371
        %v5534 = vpack.c.bf16 %v5382, %v5379
        %v5535 = vpack.c.bf16 %v5390, %v5387
        %v5536 = vpack.c.bf16 %v5398, %v5395
        %v5537 = vpack.c.bf16 %v5406, %v5403
        %v5538 = vpack.c.bf16 %v5471, %v5468
        %v5539 = vpack.c.bf16 %v5479, %v5476
        %v5540 = vpack.c.bf16 %v5487, %v5484
        %v5541 = vpack.c.bf16 %v5495, %v5492
        %v5542 = vpack.c.bf16 %v5503, %v5500
        %v5543 = vpack.c.bf16 %v5511, %v5508
        %v5544 = vpack.c.bf16 %v5519, %v5516
        %v5545 = vpack.c.bf16 %v5527, %v5524
        %s5546 = scalar_lea.vmem %s486, 32
        %v5547 = vld [vmem:[%s5546] sm:$0xf]
        %v5548 = vld [vmem:[%s5546 + $0x4] sm:$0xf]
        %v5549 = vld [vmem:[%s5546 + $0x8] sm:$0xf]
        %v5550 = vld [vmem:[%s5546 + $0xc] sm:$0xf]
        %v5555 = vunpack.c.l.b16 %v5547
        %v5556 = vunpack.c.l.b16 %v5548
        %v5557 = vunpack.c.l.b16 %v5549
        %v5558 = vunpack.c.l.b16 %v5550
        %v5559 = vpack.c.b16 %v5556, %v5555
        %v5560 = vpack.c.b16 %v5558, %v5557
        %v5564 = vsel %vm2216, %v5530, 0
        %v5567 = vsel %vm2216, %v5531, 0
        %v5570 = vsel %vm2216, %v5532, 0
        %v5573 = vsel %vm2216, %v5533, 0
        %v5576 = vsel %vm2216, %v5534, 0
        %v5579 = vsel %vm2216, %v5535, 0
        %v5582 = vsel %vm2216, %v5536, 0
        %v5585 = vsel %vm2216, %v5537, 0
        %v5588 = vsel %vm2216, %v5538, 0
        %v5591 = vsel %vm2216, %v5539, 0
        %v5594 = vsel %vm2216, %v5540, 0
        %v5597 = vsel %vm2216, %v5541, 0
        %v5600 = vsel %vm2216, %v5542, 0
        %v5603 = vsel %vm2216, %v5543, 0
        %v5606 = vsel %vm2216, %v5544, 0
        %v5609 = vsel %vm2216, %v5545, 0
        %5611 = vmatprep.subr.bf16.mxu0 0
        %5612 = vmatpush1.bf16.msra.mxu0 %v5559
        %5613 = vmatprep.subr.bf16.mxu0 0
        %5614 = vmatpush1.bf16.msra.mxu0 %v5560
        %5615 = vmatprep.subr.bf16.mxu0 0
        %5616 = vmatpush1.bf16.msra.mxu0 0
        %5617 = vmatprep.subr.bf16.mxu0 0
        %5618 = vmatpush1.bf16.msra.mxu0 0
        %5619 = vmatprep.subr.bf16.mxu0 0
        %5620 = vmatpush1.bf16.msra.mxu0 0
        %5621 = vmatprep.subr.bf16.mxu0 0
        %5622 = vmatpush1.bf16.msra.mxu0 0
        %5623 = vmatprep.subr.bf16.mxu0 0
        %5624 = vmatpush1.bf16.msra.mxu0 0
        %5625 = vmatprep.subr.bf16.mxu0 0
        %5626 = vmatpush1.bf16.msra.mxu0 0
        %5627 = vmatprep.subr.bf16.mxu0 0
        %5628 = vmatpush1.bf16.msra.mxu0 0
        %5629 = vmatprep.subr.bf16.mxu0 0
        %5630 = vmatpush1.bf16.msra.mxu0 0
        %5631 = vmatprep.subr.bf16.mxu0 0
        %5632 = vmatpush1.bf16.msra.mxu0 0
        %5633 = vmatprep.subr.bf16.mxu0 0
        %5634 = vmatpush1.bf16.msra.mxu0 0
        %5635 = vmatprep.subr.bf16.mxu0 0
        %5636 = vmatpush1.bf16.msra.mxu0 0
        %5637 = vmatprep.subr.bf16.mxu0 0
        %5638 = vmatpush1.bf16.msra.mxu0 0
        %5639 = vmatprep.subr.bf16.mxu0 0
        %5640 = vmatpush1.bf16.msra.mxu0 0
        %5641 = vmatprep.subr.bf16.mxu0 0
        %5642 = vmatpush1.bf16.msra.mxu0 0
        %5643 = vmatprep.mubr.bf16.mxu0 0
        %5644 = vmatmul.mubr.bf16.gmra.mrb[0].mxu0 %v5564
        %v5645 = vpop.f32.mrb[0].mxu0
        %v5646 = vadd.f32 0.0, %v5645
        %v5647 = vpop.f32.mrb[0].mxu0
        %v5648 = vpop.f32.mrb[0].mxu0
        %v5649 = vadd.f32 0.0, %v5648
        %v5650 = vpop.f32.mrb[0].mxu0
        %5651 = vmatprep.mubr.bf16.mxu0 0
        %5652 = vmatmul.mubr.bf16.gmra.mrb[0].mxu0 %v5567
        %v5653 = vpop.f32.mrb[0].mxu0
        %v5654 = vadd.f32 0.0, %v5653
        %v5655 = vpop.f32.mrb[0].mxu0
        %v5656 = vpop.f32.mrb[0].mxu0
        %v5657 = vadd.f32 0.0, %v5656
        %v5658 = vpop.f32.mrb[0].mxu0
        %5659 = vmatprep.mubr.bf16.mxu0 0
        %5660 = vmatmul.mubr.bf16.gmra.mrb[0].mxu0 %v5570
        %v5661 = vpop.f32.mrb[0].mxu0
        %v5662 = vadd.f32 0.0, %v5661
        %v5663 = vpop.f32.mrb[0].mxu0
        %v5664 = vpop.f32.mrb[0].mxu0
        %v5665 = vadd.f32 0.0, %v5664
        %v5666 = vpop.f32.mrb[0].mxu0
        %5667 = vmatprep.mubr.bf16.mxu0 0
        %5668 = vmatmul.mubr.bf16.gmra.mrb[0].mxu0 %v5573
        %v5669 = vpop.f32.mrb[0].mxu0
        %v5670 = vadd.f32 0.0, %v5669
        %v5671 = vpop.f32.mrb[0].mxu0
        %v5672 = vpop.f32.mrb[0].mxu0
        %v5673 = vadd.f32 0.0, %v5672
        %v5674 = vpop.f32.mrb[0].mxu0
        %5675 = vmatprep.mubr.bf16.mxu0 0
        %5676 = vmatmul.mubr.bf16.gmra.mrb[0].mxu0 %v5576
        %v5677 = vpop.f32.mrb[0].mxu0
        %v5678 = vadd.f32 0.0, %v5677
        %v5679 = vpop.f32.mrb[0].mxu0
        %v5680 = vpop.f32.mrb[0].mxu0
        %v5681 = vadd.f32 0.0, %v5680
        %v5682 = vpop.f32.mrb[0].mxu0
        %5683 = vmatprep.mubr.bf16.mxu0 0
        %5684 = vmatmul.mubr.bf16.gmra.mrb[0].mxu0 %v5579
        %v5685 = vpop.f32.mrb[0].mxu0
        %v5686 = vadd.f32 0.0, %v5685
        %v5687 = vpop.f32.mrb[0].mxu0
        %v5688 = vpop.f32.mrb[0].mxu0
        %v5689 = vadd.f32 0.0, %v5688
        %v5690 = vpop.f32.mrb[0].mxu0
        %5691 = vmatprep.mubr.bf16.mxu0 0
        %5692 = vmatmul.mubr.bf16.gmra.mrb[0].mxu0 %v5582
        %v5693 = vpop.f32.mrb[0].mxu0
        %v5694 = vadd.f32 0.0, %v5693
        %v5695 = vpop.f32.mrb[0].mxu0
        %v5696 = vpop.f32.mrb[0].mxu0
        %v5697 = vadd.f32 0.0, %v5696
        %v5698 = vpop.f32.mrb[0].mxu0
        %5699 = vmatprep.mubr.bf16.mxu0 0
        %5700 = vmatmul.mubr.bf16.gmra.mrb[0].mxu0 %v5585
        %v5701 = vpop.f32.mrb[0].mxu0
        %v5702 = vadd.f32 0.0, %v5701
        %v5703 = vpop.f32.mrb[0].mxu0
        %v5704 = vpop.f32.mrb[0].mxu0
        %v5705 = vadd.f32 0.0, %v5704
        %v5706 = vpop.f32.mrb[0].mxu0
        %5707 = vmatprep.mubr.bf16.mxu0 0
        %5708 = vmatmul.mubr.bf16.gmra.mrb[0].mxu0 %v5588
        %v5709 = vpop.f32.mrb[0].mxu0
        %v5710 = vadd.f32 0.0, %v5709
        %v5711 = vpop.f32.mrb[0].mxu0
        %v5712 = vpop.f32.mrb[0].mxu0
        %v5713 = vadd.f32 0.0, %v5712
        %v5714 = vpop.f32.mrb[0].mxu0
        %5715 = vmatprep.mubr.bf16.mxu0 0
        %5716 = vmatmul.mubr.bf16.gmra.mrb[0].mxu0 %v5591
        %v5717 = vpop.f32.mrb[0].mxu0
        %v5718 = vadd.f32 0.0, %v5717
        %v5719 = vpop.f32.mrb[0].mxu0
        %v5720 = vpop.f32.mrb[0].mxu0
        %v5721 = vadd.f32 0.0, %v5720
        %v5722 = vpop.f32.mrb[0].mxu0
        %5723 = vmatprep.mubr.bf16.mxu0 0
        %5724 = vmatmul.mubr.bf16.gmra.mrb[0].mxu0 %v5594
        %v5725 = vpop.f32.mrb[0].mxu0
        %v5726 = vadd.f32 0.0, %v5725
        %v5727 = vpop.f32.mrb[0].mxu0
        %v5728 = vpop.f32.mrb[0].mxu0
        %v5729 = vadd.f32 0.0, %v5728
        %v5730 = vpop.f32.mrb[0].mxu0
        %5731 = vmatprep.mubr.bf16.mxu0 0
        %5732 = vmatmul.mubr.bf16.gmra.mrb[0].mxu0 %v5597
        %v5733 = vpop.f32.mrb[0].mxu0
        %v5734 = vadd.f32 0.0, %v5733
        %v5735 = vpop.f32.mrb[0].mxu0
        %v5736 = vpop.f32.mrb[0].mxu0
        %v5737 = vadd.f32 0.0, %v5736
        %v5738 = vpop.f32.mrb[0].mxu0
        %5739 = vmatprep.mubr.bf16.mxu0 0
        %5740 = vmatmul.mubr.bf16.gmra.mrb[0].mxu0 %v5600
        %v5741 = vpop.f32.mrb[0].mxu0
        %v5742 = vadd.f32 0.0, %v5741
        %v5743 = vpop.f32.mrb[0].mxu0
        %v5744 = vpop.f32.mrb[0].mxu0
        %v5745 = vadd.f32 0.0, %v5744
        %v5746 = vpop.f32.mrb[0].mxu0
        %5747 = vmatprep.mubr.bf16.mxu0 0
        %5748 = vmatmul.mubr.bf16.gmra.mrb[0].mxu0 %v5603
        %v5749 = vpop.f32.mrb[0].mxu0
        %v5750 = vadd.f32 0.0, %v5749
        %v5751 = vpop.f32.mrb[0].mxu0
        %v5752 = vpop.f32.mrb[0].mxu0
        %v5753 = vadd.f32 0.0, %v5752
        %v5754 = vpop.f32.mrb[0].mxu0
        %5755 = vmatprep.mubr.bf16.mxu0 0
        %5756 = vmatmul.mubr.bf16.gmra.mrb[0].mxu0 %v5606
        %v5757 = vpop.f32.mrb[0].mxu0
        %v5758 = vadd.f32 0.0, %v5757
        %v5759 = vpop.f32.mrb[0].mxu0
        %v5760 = vpop.f32.mrb[0].mxu0
        %v5761 = vadd.f32 0.0, %v5760
        %v5762 = vpop.f32.mrb[0].mxu0
        %5763 = vmatprep.mubr.bf16.mxu0 0
        %5764 = vmatmul.mubr.bf16.gmra.mrb[0].mxu0 %v5609
        %v5765 = vpop.f32.mrb[0].mxu0
        %v5766 = vadd.f32 0.0, %v5765
        %v5767 = vpop.f32.mrb[0].mxu0
        %v5768 = vpop.f32.mrb[0].mxu0
        %v5769 = vadd.f32 0.0, %v5768
        %v5770 = vpop.f32.mrb[0].mxu0
        %5771 = vdwg.mxu0
        %v5772 = vadd.f32 %v4440, %v5646
        %v5773 = vadd.f32 %v4443, %v5649
        %v5774 = vadd.f32 %v4448, %v5654
        %v5775 = vadd.f32 %v4451, %v5657
        %v5776 = vadd.f32 %v4456, %v5662
        %v5777 = vadd.f32 %v4459, %v5665
        %v5778 = vadd.f32 %v4464, %v5670
        %v5779 = vadd.f32 %v4467, %v5673
        %v5780 = vadd.f32 %v4472, %v5678
        %v5781 = vadd.f32 %v4475, %v5681
        %v5782 = vadd.f32 %v4480, %v5686
        %v5783 = vadd.f32 %v4483, %v5689
        %v5784 = vadd.f32 %v4488, %v5694
        %v5785 = vadd.f32 %v4491, %v5697
        %v5786 = vadd.f32 %v4496, %v5702
        %v5787 = vadd.f32 %v4499, %v5705
        %v5788 = vadd.f32 %v4504, %v5710
        %v5789 = vadd.f32 %v4507, %v5713
        %v5790 = vadd.f32 %v4512, %v5718
        %v5791 = vadd.f32 %v4515, %v5721
        %v5792 = vadd.f32 %v4520, %v5726
        %v5793 = vadd.f32 %v4523, %v5729
        %v5794 = vadd.f32 %v4528, %v5734
        %v5795 = vadd.f32 %v4531, %v5737
        %v5796 = vadd.f32 %v4536, %v5742
        %v5797 = vadd.f32 %v4539, %v5745
        %v5798 = vadd.f32 %v4544, %v5750
        %v5799 = vadd.f32 %v4547, %v5753
        %v5800 = vadd.f32 %v4552, %v5758
        %v5801 = vadd.f32 %v4555, %v5761
        %v5802 = vadd.f32 %v4560, %v5766
        %v5803 = vadd.f32 %v4563, %v5769
        %5804 = vrot.lane.b32.xlu0 %v2168, 32
        %v5805 = vpop.permute.xlu0 %5804
        %5806 = vrot.lane.b32.xlu0 %v2169, 32
        %v5807 = vpop.permute.xlu0 %5806
        %5808 = vrot.lane.b32.xlu0 %v2170, 32
        %v5809 = vpop.permute.xlu0 %5808
        %5810 = vrot.lane.b32.xlu0 %v2171, 32
        %v5811 = vpop.permute.xlu0 %5810
        %5812 = vrot.lane.b32.xlu0 %v2172, 32
        %v5813 = vpop.permute.xlu0 %5812
        %5814 = vrot.lane.b32.xlu0 %v2173, 32
        %v5815 = vpop.permute.xlu0 %5814
        %5816 = vrot.lane.b32.xlu0 %v2174, 32
        %v5817 = vpop.permute.xlu0 %5816
        %5818 = vrot.lane.b32.xlu0 %v2175, 32
        %v5819 = vpop.permute.xlu0 %5818
        %5820 = vrot.lane.b32.xlu0 %v2184, 32
        %v5821 = vpop.permute.xlu0 %5820
        %5822 = vrot.lane.b32.xlu0 %v2185, 32
        %v5823 = vpop.permute.xlu0 %5822
        %5824 = vrot.lane.b32.xlu0 %v2186, 32
        %v5825 = vpop.permute.xlu0 %5824
        %5826 = vrot.lane.b32.xlu0 %v2187, 32
        %v5827 = vpop.permute.xlu0 %5826
        %5828 = vrot.lane.b32.xlu0 %v2188, 32
        %v5829 = vpop.permute.xlu0 %5828
        %5830 = vrot.lane.b32.xlu0 %v2189, 32
        %v5831 = vpop.permute.xlu0 %5830
        %5832 = vrot.lane.b32.xlu0 %v2190, 32
        %v5833 = vpop.permute.xlu0 %5832
        %5834 = vrot.lane.b32.xlu0 %v2191, 32
        %v5835 = vpop.permute.xlu0 %5834
        %v5837 = vsel %vm2216, %v5805, 0
        %v5840 = vsel %vm2216, %v5807, 0
        %v5843 = vsel %vm2216, %v5809, 0
        %v5846 = vsel %vm2216, %v5811, 0
        %v5849 = vsel %vm2216, %v5813, 0
        %v5852 = vsel %vm2216, %v5815, 0
        %v5855 = vsel %vm2216, %v5817, 0
        %v5858 = vsel %vm2216, %v5819, 0
        %v5861 = vsel %vm2216, %v5821, 0
        %v5864 = vsel %vm2216, %v5823, 0
        %v5867 = vsel %vm2216, %v5825, 0
        %v5870 = vsel %vm2216, %v5827, 0
        %v5873 = vsel %vm2216, %v5829, 0
        %v5876 = vsel %vm2216, %v5831, 0
        %v5879 = vsel %vm2216, %v5833, 0
        %v5882 = vsel %vm2216, %v5835, 0
        %5884 = vmatprep.subr.bf16.mxu0 0
        %5885 = vmatpush1.bf16.xpose.msra.mxu0 %v5861
        %5886 = vmatprep.subr.bf16.mxu0 0
        %5887 = vmatpush1.bf16.xpose.msra.mxu0 %v5864
        %5888 = vmatprep.subr.bf16.mxu0 0
        %5889 = vmatpush1.bf16.xpose.msra.mxu0 %v5867
        %5890 = vmatprep.subr.bf16.mxu0 0
        %5891 = vmatpush1.bf16.xpose.msra.mxu0 %v5870
        %5892 = vmatprep.subr.bf16.mxu0 0
        %5893 = vmatpush1.bf16.xpose.msra.mxu0 %v5873
        %5894 = vmatprep.subr.bf16.mxu0 0
        %5895 = vmatpush1.bf16.xpose.msra.mxu0 %v5876
        %5896 = vmatprep.subr.bf16.mxu0 0
        %5897 = vmatpush1.bf16.xpose.msra.mxu0 %v5879
        %5898 = vmatprep.subr.bf16.mxu0 0
        %5899 = vmatpush1.bf16.xpose.msra.mxu0 %v5882
        %5900 = vmatprep.subr.bf16.mxu0 0
        %5901 = vmatpush1.bf16.xpose.msra.mxu0 0
        %5902 = vmatprep.subr.bf16.mxu0 0
        %5903 = vmatpush1.bf16.xpose.msra.mxu0 0
        %5904 = vmatprep.subr.bf16.mxu0 0
        %5905 = vmatpush1.bf16.xpose.msra.mxu0 0
        %5906 = vmatprep.subr.bf16.mxu0 0
        %5907 = vmatpush1.bf16.xpose.msra.mxu0 0
        %5908 = vmatprep.subr.bf16.mxu0 0
        %5909 = vmatpush1.bf16.xpose.msra.mxu0 0
        %5910 = vmatprep.subr.bf16.mxu0 0
        %5911 = vmatpush1.bf16.xpose.msra.mxu0 0
        %5912 = vmatprep.subr.bf16.mxu0 0
        %5913 = vmatpush1.bf16.xpose.msra.mxu0 0
        %5914 = vmatprep.subr.bf16.mxu0 0
        %5915 = vmatpush1.bf16.xpose.msra.mxu0 0
        %5916 = vmatprep.mubr.bf16.mxu0 0
        %5917 = vmatmul.mubr.bf16.gmra.mrb[0].mxu0 %v5837
        %v5918 = vpop.f32.mrb[0].mxu0
        %v5919 = vadd.f32 0.0, %v5918
        %v5920 = vpop.f32.mrb[0].mxu0
        %v5921 = vpop.f32.mrb[0].mxu0
        %v5922 = vadd.f32 0.0, %v5921
        %v5923 = vpop.f32.mrb[0].mxu0
        %5924 = vmatprep.mubr.bf16.mxu0 0
        %5925 = vmatmul.mubr.bf16.gmra.mrb[0].mxu0 %v5840
        %v5926 = vpop.f32.mrb[0].mxu0
        %v5927 = vadd.f32 0.0, %v5926
        %v5928 = vpop.f32.mrb[0].mxu0
        %v5929 = vpop.f32.mrb[0].mxu0
        %v5930 = vadd.f32 0.0, %v5929
        %v5931 = vpop.f32.mrb[0].mxu0
        %5932 = vmatprep.mubr.bf16.mxu0 0
        %5933 = vmatmul.mubr.bf16.gmra.mrb[0].mxu0 %v5843
        %v5934 = vpop.f32.mrb[0].mxu0
        %v5935 = vadd.f32 0.0, %v5934
        %v5936 = vpop.f32.mrb[0].mxu0
        %v5937 = vpop.f32.mrb[0].mxu0
        %v5938 = vadd.f32 0.0, %v5937
        %v5939 = vpop.f32.mrb[0].mxu0
        %5940 = vmatprep.mubr.bf16.mxu0 0
        %5941 = vmatmul.mubr.bf16.gmra.mrb[0].mxu0 %v5846
        %v5942 = vpop.f32.mrb[0].mxu0
        %v5943 = vadd.f32 0.0, %v5942
        %v5944 = vpop.f32.mrb[0].mxu0
        %v5945 = vpop.f32.mrb[0].mxu0
        %v5946 = vadd.f32 0.0, %v5945
        %v5947 = vpop.f32.mrb[0].mxu0
        %5948 = vmatprep.mubr.bf16.mxu0 0
        %5949 = vmatmul.mubr.bf16.gmra.mrb[0].mxu0 %v5849
        %v5950 = vpop.f32.mrb[0].mxu0
        %v5951 = vadd.f32 0.0, %v5950
        %v5952 = vpop.f32.mrb[0].mxu0
        %v5953 = vpop.f32.mrb[0].mxu0
        %v5954 = vadd.f32 0.0, %v5953
        %v5955 = vpop.f32.mrb[0].mxu0
        %5956 = vmatprep.mubr.bf16.mxu0 0
        %5957 = vmatmul.mubr.bf16.gmra.mrb[0].mxu0 %v5852
        %v5958 = vpop.f32.mrb[0].mxu0
        %v5959 = vadd.f32 0.0, %v5958
        %v5960 = vpop.f32.mrb[0].mxu0
        %v5961 = vpop.f32.mrb[0].mxu0
        %v5962 = vadd.f32 0.0, %v5961
        %v5963 = vpop.f32.mrb[0].mxu0
        %5964 = vmatprep.mubr.bf16.mxu0 0
        %5965 = vmatmul.mubr.bf16.gmra.mrb[0].mxu0 %v5855
        %v5966 = vpop.f32.mrb[0].mxu0
        %v5967 = vadd.f32 0.0, %v5966
        %v5968 = vpop.f32.mrb[0].mxu0
        %v5969 = vpop.f32.mrb[0].mxu0
        %v5970 = vadd.f32 0.0, %v5969
        %v5971 = vpop.f32.mrb[0].mxu0
        %5972 = vmatprep.mubr.bf16.mxu0 0
        %5973 = vmatmul.mubr.bf16.gmra.mrb[0].mxu0 %v5858
        %v5974 = vpop.f32.mrb[0].mxu0
        %v5975 = vadd.f32 0.0, %v5974
        %v5976 = vpop.f32.mrb[0].mxu0
        %v5977 = vpop.f32.mrb[0].mxu0
        %v5978 = vadd.f32 0.0, %v5977
        %v5979 = vpop.f32.mrb[0].mxu0
        %5980 = vdwg.mxu0
        %5981 = vrot.lane.b32.xlu0 %v2176, 32
        %v5982 = vpop.permute.xlu0 %5981
        %5983 = vrot.lane.b32.xlu0 %v2177, 32
        %v5984 = vpop.permute.xlu0 %5983
        %5985 = vrot.lane.b32.xlu0 %v2178, 32
        %v5986 = vpop.permute.xlu0 %5985
        %5987 = vrot.lane.b32.xlu0 %v2179, 32
        %v5988 = vpop.permute.xlu0 %5987
        %5989 = vrot.lane.b32.xlu0 %v2180, 32
        %v5990 = vpop.permute.xlu0 %5989
        %5991 = vrot.lane.b32.xlu0 %v2181, 32
        %v5992 = vpop.permute.xlu0 %5991
        %5993 = vrot.lane.b32.xlu0 %v2182, 32
        %v5994 = vpop.permute.xlu0 %5993
        %5995 = vrot.lane.b32.xlu0 %v2183, 32
        %v5996 = vpop.permute.xlu0 %5995
        %5997 = vrot.lane.b32.xlu0 %v2192, 32
        %v5998 = vpop.permute.xlu0 %5997
        %5999 = vrot.lane.b32.xlu0 %v2193, 32
        %v6000 = vpop.permute.xlu0 %5999
        %6001 = vrot.lane.b32.xlu0 %v2194, 32
        %v6002 = vpop.permute.xlu0 %6001
        %6003 = vrot.lane.b32.xlu0 %v2195, 32
        %v6004 = vpop.permute.xlu0 %6003
        %6005 = vrot.lane.b32.xlu0 %v2196, 32
        %v6006 = vpop.permute.xlu0 %6005
        %6007 = vrot.lane.b32.xlu0 %v2197, 32
        %v6008 = vpop.permute.xlu0 %6007
        %6009 = vrot.lane.b32.xlu0 %v2198, 32
        %v6010 = vpop.permute.xlu0 %6009
        %6011 = vrot.lane.b32.xlu0 %v2199, 32
        %v6012 = vpop.permute.xlu0 %6011
        %v6014 = vsel %vm2216, %v5982, 0
        %v6017 = vsel %vm2216, %v5984, 0
        %v6020 = vsel %vm2216, %v5986, 0
        %v6023 = vsel %vm2216, %v5988, 0
        %v6026 = vsel %vm2216, %v5990, 0
        %v6029 = vsel %vm2216, %v5992, 0
        %v6032 = vsel %vm2216, %v5994, 0
        %v6035 = vsel %vm2216, %v5996, 0
        %v6038 = vsel %vm2216, %v5998, 0
        %v6041 = vsel %vm2216, %v6000, 0
        %v6044 = vsel %vm2216, %v6002, 0
        %v6047 = vsel %vm2216, %v6004, 0
        %v6050 = vsel %vm2216, %v6006, 0
        %v6053 = vsel %vm2216, %v6008, 0
        %v6056 = vsel %vm2216, %v6010, 0
        %v6059 = vsel %vm2216, %v6012, 0
        %6061 = vmatprep.subr.bf16.mxu0 0
        %6062 = vmatpush1.bf16.xpose.msra.mxu0 %v6038
        %6063 = vmatprep.subr.bf16.mxu0 0
        %6064 = vmatpush1.bf16.xpose.msra.mxu0 %v6041
        %6065 = vmatprep.subr.bf16.mxu0 0
        %6066 = vmatpush1.bf16.xpose.msra.mxu0 %v6044
        %6067 = vmatprep.subr.bf16.mxu0 0
        %6068 = vmatpush1.bf16.xpose.msra.mxu0 %v6047
        %6069 = vmatprep.subr.bf16.mxu0 0
        %6070 = vmatpush1.bf16.xpose.msra.mxu0 %v6050
        %6071 = vmatprep.subr.bf16.mxu0 0
        %6072 = vmatpush1.bf16.xpose.msra.mxu0 %v6053
        %6073 = vmatprep.subr.bf16.mxu0 0
        %6074 = vmatpush1.bf16.xpose.msra.mxu0 %v6056
        %6075 = vmatprep.subr.bf16.mxu0 0
        %6076 = vmatpush1.bf16.xpose.msra.mxu0 %v6059
        %6077 = vmatprep.subr.bf16.mxu0 0
        %6078 = vmatpush1.bf16.xpose.msra.mxu0 0
        %6079 = vmatprep.subr.bf16.mxu0 0
        %6080 = vmatpush1.bf16.xpose.msra.mxu0 0
        %6081 = vmatprep.subr.bf16.mxu0 0
        %6082 = vmatpush1.bf16.xpose.msra.mxu0 0
        %6083 = vmatprep.subr.bf16.mxu0 0
        %6084 = vmatpush1.bf16.xpose.msra.mxu0 0
        %6085 = vmatprep.subr.bf16.mxu0 0
        %6086 = vmatpush1.bf16.xpose.msra.mxu0 0
        %6087 = vmatprep.subr.bf16.mxu0 0
        %6088 = vmatpush1.bf16.xpose.msra.mxu0 0
        %6089 = vmatprep.subr.bf16.mxu0 0
        %6090 = vmatpush1.bf16.xpose.msra.mxu0 0
        %6091 = vmatprep.subr.bf16.mxu0 0
        %6092 = vmatpush1.bf16.xpose.msra.mxu0 0
        %6093 = vmatprep.mubr.bf16.mxu0 0
        %6094 = vmatmul.mubr.bf16.gmra.mrb[0].mxu0 %v6014
        %v6095 = vpop.f32.mrb[0].mxu0
        %v6096 = vadd.f32 0.0, %v6095
        %v6097 = vpop.f32.mrb[0].mxu0
        %v6098 = vpop.f32.mrb[0].mxu0
        %v6099 = vadd.f32 0.0, %v6098
        %v6100 = vpop.f32.mrb[0].mxu0
        %6101 = vmatprep.mubr.bf16.mxu0 0
        %6102 = vmatmul.mubr.bf16.gmra.mrb[0].mxu0 %v6017
        %v6103 = vpop.f32.mrb[0].mxu0
        %v6104 = vadd.f32 0.0, %v6103
        %v6105 = vpop.f32.mrb[0].mxu0
        %v6106 = vpop.f32.mrb[0].mxu0
        %v6107 = vadd.f32 0.0, %v6106
        %v6108 = vpop.f32.mrb[0].mxu0
        %6109 = vmatprep.mubr.bf16.mxu0 0
        %6110 = vmatmul.mubr.bf16.gmra.mrb[0].mxu0 %v6020
        %v6111 = vpop.f32.mrb[0].mxu0
        %v6112 = vadd.f32 0.0, %v6111
        %v6113 = vpop.f32.mrb[0].mxu0
        %v6114 = vpop.f32.mrb[0].mxu0
        %v6115 = vadd.f32 0.0, %v6114
        %v6116 = vpop.f32.mrb[0].mxu0
        %6117 = vmatprep.mubr.bf16.mxu0 0
        %6118 = vmatmul.mubr.bf16.gmra.mrb[0].mxu0 %v6023
        %v6119 = vpop.f32.mrb[0].mxu0
        %v6120 = vadd.f32 0.0, %v6119
        %v6121 = vpop.f32.mrb[0].mxu0
        %v6122 = vpop.f32.mrb[0].mxu0
        %v6123 = vadd.f32 0.0, %v6122
        %v6124 = vpop.f32.mrb[0].mxu0
        %6125 = vmatprep.mubr.bf16.mxu0 0
        %6126 = vmatmul.mubr.bf16.gmra.mrb[0].mxu0 %v6026
        %v6127 = vpop.f32.mrb[0].mxu0
        %v6128 = vadd.f32 0.0, %v6127
        %v6129 = vpop.f32.mrb[0].mxu0
        %v6130 = vpop.f32.mrb[0].mxu0
        %v6131 = vadd.f32 0.0, %v6130
        %v6132 = vpop.f32.mrb[0].mxu0
        %6133 = vmatprep.mubr.bf16.mxu0 0
        %6134 = vmatmul.mubr.bf16.gmra.mrb[0].mxu0 %v6029
        %v6135 = vpop.f32.mrb[0].mxu0
        %v6136 = vadd.f32 0.0, %v6135
        %v6137 = vpop.f32.mrb[0].mxu0
        %v6138 = vpop.f32.mrb[0].mxu0
        %v6139 = vadd.f32 0.0, %v6138
        %v6140 = vpop.f32.mrb[0].mxu0
        %6141 = vmatprep.mubr.bf16.mxu0 0
        %6142 = vmatmul.mubr.bf16.gmra.mrb[0].mxu0 %v6032
        %v6143 = vpop.f32.mrb[0].mxu0
        %v6144 = vadd.f32 0.0, %v6143
        %v6145 = vpop.f32.mrb[0].mxu0
        %v6146 = vpop.f32.mrb[0].mxu0
        %v6147 = vadd.f32 0.0, %v6146
        %v6148 = vpop.f32.mrb[0].mxu0
        %6149 = vmatprep.mubr.bf16.mxu0 0
        %6150 = vmatmul.mubr.bf16.gmra.mrb[0].mxu0 %v6035
        %v6151 = vpop.f32.mrb[0].mxu0
        %v6152 = vadd.f32 0.0, %v6151
        %v6153 = vpop.f32.mrb[0].mxu0
        %v6154 = vpop.f32.mrb[0].mxu0
        %v6155 = vadd.f32 0.0, %v6154
        %v6156 = vpop.f32.mrb[0].mxu0
        %6157 = vdwg.mxu0
        %v6158 = vmul.f32 %v5919, 0.35355338
        %v6159 = vmul.f32 %v5922, 0.35355338
        %v6160 = vmul.f32 %v5927, 0.35355338
        %v6161 = vmul.f32 %v5930, 0.35355338
        %v6162 = vmul.f32 %v5935, 0.35355338
        %v6163 = vmul.f32 %v5938, 0.35355338
        %v6164 = vmul.f32 %v5943, 0.35355338
        %v6165 = vmul.f32 %v5946, 0.35355338
        %v6166 = vmul.f32 %v5951, 0.35355338
        %v6167 = vmul.f32 %v5954, 0.35355338
        %v6168 = vmul.f32 %v5959, 0.35355338
        %v6169 = vmul.f32 %v5962, 0.35355338
        %v6170 = vmul.f32 %v5967, 0.35355338
        %v6171 = vmul.f32 %v5970, 0.35355338
        %v6172 = vmul.f32 %v5975, 0.35355338
        %v6173 = vmul.f32 %v5978, 0.35355338
        %v6174 = vmul.f32 %v6096, 0.35355338
        %v6175 = vmul.f32 %v6099, 0.35355338
        %v6176 = vmul.f32 %v6104, 0.35355338
        %v6177 = vmul.f32 %v6107, 0.35355338
        %v6178 = vmul.f32 %v6112, 0.35355338
        %v6179 = vmul.f32 %v6115, 0.35355338
        %v6180 = vmul.f32 %v6120, 0.35355338
        %v6181 = vmul.f32 %v6123, 0.35355338
        %v6182 = vmul.f32 %v6128, 0.35355338
        %v6183 = vmul.f32 %v6131, 0.35355338
        %v6184 = vmul.f32 %v6136, 0.35355338
        %v6185 = vmul.f32 %v6139, 0.35355338
        %v6186 = vmul.f32 %v6144, 0.35355338
        %v6187 = vmul.f32 %v6147, 0.35355338
        %v6188 = vmul.f32 %v6152, 0.35355338
        %v6189 = vmul.f32 %v6155, 0.35355338
        %v6190 = vsel %vm2540, %v6158, -1e+30
        %v6191 = vsel %vm2540, %v6159, -1e+30
        %v6192 = vsel %vm2540, %v6160, -1e+30
        %v6193 = vsel %vm2540, %v6161, -1e+30
        %v6194 = vsel %vm2540, %v6162, -1e+30
        %v6195 = vsel %vm2540, %v6163, -1e+30
        %v6196 = vsel %vm2540, %v6164, -1e+30
        %v6197 = vsel %vm2540, %v6165, -1e+30
        %v6198 = vsel %vm2540, %v6166, -1e+30
        %v6199 = vsel %vm2540, %v6167, -1e+30
        %v6200 = vsel %vm2540, %v6168, -1e+30
        %v6201 = vsel %vm2540, %v6169, -1e+30
        %v6202 = vsel %vm2540, %v6170, -1e+30
        %v6203 = vsel %vm2540, %v6171, -1e+30
        %v6204 = vsel %vm2540, %v6172, -1e+30
        %v6205 = vsel %vm2540, %v6173, -1e+30
        %v6206 = vsel %vm2540, %v6174, -1e+30
        %v6207 = vsel %vm2540, %v6175, -1e+30
        %v6208 = vsel %vm2540, %v6176, -1e+30
        %v6209 = vsel %vm2540, %v6177, -1e+30
        %v6210 = vsel %vm2540, %v6178, -1e+30
        %v6211 = vsel %vm2540, %v6179, -1e+30
        %v6212 = vsel %vm2540, %v6180, -1e+30
        %v6213 = vsel %vm2540, %v6181, -1e+30
        %v6214 = vsel %vm2540, %v6182, -1e+30
        %v6215 = vsel %vm2540, %v6183, -1e+30
        %v6216 = vsel %vm2540, %v6184, -1e+30
        %v6217 = vsel %vm2540, %v6185, -1e+30
        %v6218 = vsel %vm2540, %v6186, -1e+30
        %v6219 = vsel %vm2540, %v6187, -1e+30
        %v6220 = vsel %vm2540, %v6188, -1e+30
        %v6221 = vsel %vm2540, %v6189, -1e+30
        %6222 = vmax.xlane.f32.xlu0 %v6190
        %v6223 = vpop.xlane.xlu0 %6222
        %6224 = vmax.xlane.f32.xlu0 %v6191
        %v6225 = vpop.xlane.xlu0 %6224
        %6226 = vmax.xlane.f32.xlu0 %v6192
        %v6227 = vpop.xlane.xlu0 %6226
        %6228 = vmax.xlane.f32.xlu0 %v6193
        %v6229 = vpop.xlane.xlu0 %6228
        %6230 = vmax.xlane.f32.xlu0 %v6194
        %v6231 = vpop.xlane.xlu0 %6230
        %6232 = vmax.xlane.f32.xlu0 %v6195
        %v6233 = vpop.xlane.xlu0 %6232
        %6234 = vmax.xlane.f32.xlu0 %v6196
        %v6235 = vpop.xlane.xlu0 %6234
        %6236 = vmax.xlane.f32.xlu0 %v6197
        %v6237 = vpop.xlane.xlu0 %6236
        %6238 = vmax.xlane.f32.xlu0 %v6198
        %v6239 = vpop.xlane.xlu0 %6238
        %6240 = vmax.xlane.f32.xlu0 %v6199
        %v6241 = vpop.xlane.xlu0 %6240
        %6242 = vmax.xlane.f32.xlu0 %v6200
        %v6243 = vpop.xlane.xlu0 %6242
        %6244 = vmax.xlane.f32.xlu0 %v6201
        %v6245 = vpop.xlane.xlu0 %6244
        %6246 = vmax.xlane.f32.xlu0 %v6202
        %v6247 = vpop.xlane.xlu0 %6246
        %6248 = vmax.xlane.f32.xlu0 %v6203
        %v6249 = vpop.xlane.xlu0 %6248
        %6250 = vmax.xlane.f32.xlu0 %v6204
        %v6251 = vpop.xlane.xlu0 %6250
        %6252 = vmax.xlane.f32.xlu0 %v6205
        %v6253 = vpop.xlane.xlu0 %6252
        %6254 = vmax.xlane.f32.xlu0 %v6206
        %v6255 = vpop.xlane.xlu0 %6254
        %6256 = vmax.xlane.f32.xlu0 %v6207
        %v6257 = vpop.xlane.xlu0 %6256
        %6258 = vmax.xlane.f32.xlu0 %v6208
        %v6259 = vpop.xlane.xlu0 %6258
        %6260 = vmax.xlane.f32.xlu0 %v6209
        %v6261 = vpop.xlane.xlu0 %6260
        %6262 = vmax.xlane.f32.xlu0 %v6210
        %v6263 = vpop.xlane.xlu0 %6262
        %6264 = vmax.xlane.f32.xlu0 %v6211
        %v6265 = vpop.xlane.xlu0 %6264
        %6266 = vmax.xlane.f32.xlu0 %v6212
        %v6267 = vpop.xlane.xlu0 %6266
        %6268 = vmax.xlane.f32.xlu0 %v6213
        %v6269 = vpop.xlane.xlu0 %6268
        %6270 = vmax.xlane.f32.xlu0 %v6214
        %v6271 = vpop.xlane.xlu0 %6270
        %6272 = vmax.xlane.f32.xlu0 %v6215
        %v6273 = vpop.xlane.xlu0 %6272
        %6274 = vmax.xlane.f32.xlu0 %v6216
        %v6275 = vpop.xlane.xlu0 %6274
        %6276 = vmax.xlane.f32.xlu0 %v6217
        %v6277 = vpop.xlane.xlu0 %6276
        %6278 = vmax.xlane.f32.xlu0 %v6218
        %v6279 = vpop.xlane.xlu0 %6278
        %6280 = vmax.xlane.f32.xlu0 %v6219
        %v6281 = vpop.xlane.xlu0 %6280
        %6282 = vmax.xlane.f32.xlu0 %v6220
        %v6283 = vpop.xlane.xlu0 %6282
        %6284 = vmax.xlane.f32.xlu0 %v6221
        %v6285 = vpop.xlane.xlu0 %6284
        %v6286 = vsub.f32 %v6190, %v6223
        %v6287 = vsub.f32 %v6191, %v6225
        %v6288 = vsub.f32 %v6192, %v6227
        %v6289 = vsub.f32 %v6193, %v6229
        %v6290 = vsub.f32 %v6194, %v6231
        %v6291 = vsub.f32 %v6195, %v6233
        %v6292 = vsub.f32 %v6196, %v6235
        %v6293 = vsub.f32 %v6197, %v6237
        %v6294 = vsub.f32 %v6198, %v6239
        %v6295 = vsub.f32 %v6199, %v6241
        %v6296 = vsub.f32 %v6200, %v6243
        %v6297 = vsub.f32 %v6201, %v6245
        %v6298 = vsub.f32 %v6202, %v6247
        %v6299 = vsub.f32 %v6203, %v6249
        %v6300 = vsub.f32 %v6204, %v6251
        %v6301 = vsub.f32 %v6205, %v6253
        %v6302 = vsub.f32 %v6206, %v6255
        %v6303 = vsub.f32 %v6207, %v6257
        %v6304 = vsub.f32 %v6208, %v6259
        %v6305 = vsub.f32 %v6209, %v6261
        %v6306 = vsub.f32 %v6210, %v6263
        %v6307 = vsub.f32 %v6211, %v6265
        %v6308 = vsub.f32 %v6212, %v6267
        %v6309 = vsub.f32 %v6213, %v6269
        %v6310 = vsub.f32 %v6214, %v6271
        %v6311 = vsub.f32 %v6215, %v6273
        %v6312 = vsub.f32 %v6216, %v6275
        %v6313 = vsub.f32 %v6217, %v6277
        %v6314 = vsub.f32 %v6218, %v6279
        %v6315 = vsub.f32 %v6219, %v6281
        %v6316 = vsub.f32 %v6220, %v6283
        %v6317 = vsub.f32 %v6221, %v6285
        %v6318 = vmul.f32 %v6286, 1.442695
        %v6319 = vpow.pop %v6318
        %v6320 = vmul.f32 %v6287, 1.442695
        %v6321 = vpow.pop %v6320
        %v6322 = vmul.f32 %v6288, 1.442695
        %v6323 = vpow.pop %v6322
        %v6324 = vmul.f32 %v6289, 1.442695
        %v6325 = vpow.pop %v6324
        %v6326 = vmul.f32 %v6290, 1.442695
        %v6327 = vpow.pop %v6326
        %v6328 = vmul.f32 %v6291, 1.442695
        %v6329 = vpow.pop %v6328
        %v6330 = vmul.f32 %v6292, 1.442695
        %v6331 = vpow.pop %v6330
        %v6332 = vmul.f32 %v6293, 1.442695
        %v6333 = vpow.pop %v6332
        %v6334 = vmul.f32 %v6294, 1.442695
        %v6335 = vpow.pop %v6334
        %v6336 = vmul.f32 %v6295, 1.442695
        %v6337 = vpow.pop %v6336
        %v6338 = vmul.f32 %v6296, 1.442695
        %v6339 = vpow.pop %v6338
        %v6340 = vmul.f32 %v6297, 1.442695
        %v6341 = vpow.pop %v6340
        %v6342 = vmul.f32 %v6298, 1.442695
        %v6343 = vpow.pop %v6342
        %v6344 = vmul.f32 %v6299, 1.442695
        %v6345 = vpow.pop %v6344
        %v6346 = vmul.f32 %v6300, 1.442695
        %v6347 = vpow.pop %v6346
        %v6348 = vmul.f32 %v6301, 1.442695
        %v6349 = vpow.pop %v6348
        %v6350 = vmul.f32 %v6302, 1.442695
        %v6351 = vpow.pop %v6350
        %v6352 = vmul.f32 %v6303, 1.442695
        %v6353 = vpow.pop %v6352
        %v6354 = vmul.f32 %v6304, 1.442695
        %v6355 = vpow.pop %v6354
        %v6356 = vmul.f32 %v6305, 1.442695
        %v6357 = vpow.pop %v6356
        %v6358 = vmul.f32 %v6306, 1.442695
        %v6359 = vpow.pop %v6358
        %v6360 = vmul.f32 %v6307, 1.442695
        %v6361 = vpow.pop %v6360
        %v6362 = vmul.f32 %v6308, 1.442695
        %v6363 = vpow.pop %v6362
        %v6364 = vmul.f32 %v6309, 1.442695
        %v6365 = vpow.pop %v6364
        %v6366 = vmul.f32 %v6310, 1.442695
        %v6367 = vpow.pop %v6366
        %v6368 = vmul.f32 %v6311, 1.442695
        %v6369 = vpow.pop %v6368
        %v6370 = vmul.f32 %v6312, 1.442695
        %v6371 = vpow.pop %v6370
        %v6372 = vmul.f32 %v6313, 1.442695
        %v6373 = vpow.pop %v6372
        %v6374 = vmul.f32 %v6314, 1.442695
        %v6375 = vpow.pop %v6374
        %v6376 = vmul.f32 %v6315, 1.442695
        %v6377 = vpow.pop %v6376
        %v6378 = vmul.f32 %v6316, 1.442695
        %v6379 = vpow.pop %v6378
        %v6380 = vmul.f32 %v6317, 1.442695
        %v6381 = vpow.pop %v6380
        %6382 = vadd.xlane.f32.xlu0 %v6319
        %v6383 = vpop.xlane.xlu0 %6382
        %6384 = vadd.xlane.f32.xlu0 %v6321
        %v6385 = vpop.xlane.xlu0 %6384
        %6386 = vadd.xlane.f32.xlu0 %v6323
        %v6387 = vpop.xlane.xlu0 %6386
        %6388 = vadd.xlane.f32.xlu0 %v6325
        %v6389 = vpop.xlane.xlu0 %6388
        %6390 = vadd.xlane.f32.xlu0 %v6327
        %v6391 = vpop.xlane.xlu0 %6390
        %6392 = vadd.xlane.f32.xlu0 %v6329
        %v6393 = vpop.xlane.xlu0 %6392
        %6394 = vadd.xlane.f32.xlu0 %v6331
        %v6395 = vpop.xlane.xlu0 %6394
        %6396 = vadd.xlane.f32.xlu0 %v6333
        %v6397 = vpop.xlane.xlu0 %6396
        %6398 = vadd.xlane.f32.xlu0 %v6335
        %v6399 = vpop.xlane.xlu0 %6398
        %6400 = vadd.xlane.f32.xlu0 %v6337
        %v6401 = vpop.xlane.xlu0 %6400
        %6402 = vadd.xlane.f32.xlu0 %v6339
        %v6403 = vpop.xlane.xlu0 %6402
        %6404 = vadd.xlane.f32.xlu0 %v6341
        %v6405 = vpop.xlane.xlu0 %6404
        %6406 = vadd.xlane.f32.xlu0 %v6343
        %v6407 = vpop.xlane.xlu0 %6406
        %6408 = vadd.xlane.f32.xlu0 %v6345
        %v6409 = vpop.xlane.xlu0 %6408
        %6410 = vadd.xlane.f32.xlu0 %v6347
        %v6411 = vpop.xlane.xlu0 %6410
        %6412 = vadd.xlane.f32.xlu0 %v6349
        %v6413 = vpop.xlane.xlu0 %6412
        %6414 = vadd.xlane.f32.xlu0 %v6351
        %v6415 = vpop.xlane.xlu0 %6414
        %6416 = vadd.xlane.f32.xlu0 %v6353
        %v6417 = vpop.xlane.xlu0 %6416
        %6418 = vadd.xlane.f32.xlu0 %v6355
        %v6419 = vpop.xlane.xlu0 %6418
        %6420 = vadd.xlane.f32.xlu0 %v6357
        %v6421 = vpop.xlane.xlu0 %6420
        %6422 = vadd.xlane.f32.xlu0 %v6359
        %v6423 = vpop.xlane.xlu0 %6422
        %6424 = vadd.xlane.f32.xlu0 %v6361
        %v6425 = vpop.xlane.xlu0 %6424
        %6426 = vadd.xlane.f32.xlu0 %v6363
        %v6427 = vpop.xlane.xlu0 %6426
        %6428 = vadd.xlane.f32.xlu0 %v6365
        %v6429 = vpop.xlane.xlu0 %6428
        %6430 = vadd.xlane.f32.xlu0 %v6367
        %v6431 = vpop.xlane.xlu0 %6430
        %6432 = vadd.xlane.f32.xlu0 %v6369
        %v6433 = vpop.xlane.xlu0 %6432
        %6434 = vadd.xlane.f32.xlu0 %v6371
        %v6435 = vpop.xlane.xlu0 %6434
        %6436 = vadd.xlane.f32.xlu0 %v6373
        %v6437 = vpop.xlane.xlu0 %6436
        %6438 = vadd.xlane.f32.xlu0 %v6375
        %v6439 = vpop.xlane.xlu0 %6438
        %6440 = vadd.xlane.f32.xlu0 %v6377
        %v6441 = vpop.xlane.xlu0 %6440
        %6442 = vadd.xlane.f32.xlu0 %v6379
        %v6443 = vpop.xlane.xlu0 %6442
        %6444 = vadd.xlane.f32.xlu0 %v6381
        %v6445 = vpop.xlane.xlu0 %6444
        %v6446 = vrcp.pop %v6383
        %v6447 = vrcp.pop %v6385
        %v6448 = vrcp.pop %v6387
        %v6449 = vrcp.pop %v6389
        %v6450 = vrcp.pop %v6391
        %v6451 = vrcp.pop %v6393
        %v6452 = vrcp.pop %v6395
        %v6453 = vrcp.pop %v6397
        %v6454 = vrcp.pop %v6399
        %v6455 = vrcp.pop %v6401
        %v6456 = vrcp.pop %v6403
        %v6457 = vrcp.pop %v6405
        %v6458 = vrcp.pop %v6407
        %v6459 = vrcp.pop %v6409
        %v6460 = vrcp.pop %v6411
        %v6461 = vrcp.pop %v6413
        %v6462 = vrcp.pop %v6415
        %v6463 = vrcp.pop %v6417
        %v6464 = vrcp.pop %v6419
        %v6465 = vrcp.pop %v6421
        %v6466 = vrcp.pop %v6423
        %v6467 = vrcp.pop %v6425
        %v6468 = vrcp.pop %v6427
        %v6469 = vrcp.pop %v6429
        %v6470 = vrcp.pop %v6431
        %v6471 = vrcp.pop %v6433
        %v6472 = vrcp.pop %v6435
        %v6473 = vrcp.pop %v6437
        %v6474 = vrcp.pop %v6439
        %v6475 = vrcp.pop %v6441
        %v6476 = vrcp.pop %v6443
        %v6477 = vrcp.pop %v6445
        %v6478 = vmul.f32 %v6319, %v6446
        %v6479 = vmul.f32 %v6321, %v6447
        %v6480 = vmul.f32 %v6323, %v6448
        %v6481 = vmul.f32 %v6325, %v6449
        %v6482 = vmul.f32 %v6327, %v6450
        %v6483 = vmul.f32 %v6329, %v6451
        %v6484 = vmul.f32 %v6331, %v6452
        %v6485 = vmul.f32 %v6333, %v6453
        %v6486 = vmul.f32 %v6335, %v6454
        %v6487 = vmul.f32 %v6337, %v6455
        %v6488 = vmul.f32 %v6339, %v6456
        %v6489 = vmul.f32 %v6341, %v6457
        %v6490 = vmul.f32 %v6343, %v6458
        %v6491 = vmul.f32 %v6345, %v6459
        %v6492 = vmul.f32 %v6347, %v6460
        %v6493 = vmul.f32 %v6349, %v6461
        %v6494 = vmul.f32 %v6351, %v6462
        %v6495 = vmul.f32 %v6353, %v6463
        %v6496 = vmul.f32 %v6355, %v6464
        %v6497 = vmul.f32 %v6357, %v6465
        %v6498 = vmul.f32 %v6359, %v6466
        %v6499 = vmul.f32 %v6361, %v6467
        %v6500 = vmul.f32 %v6363, %v6468
        %v6501 = vmul.f32 %v6365, %v6469
        %v6502 = vmul.f32 %v6367, %v6470
        %v6503 = vmul.f32 %v6369, %v6471
        %v6504 = vmul.f32 %v6371, %v6472
        %v6505 = vmul.f32 %v6373, %v6473
        %v6506 = vmul.f32 %v6375, %v6474
        %v6507 = vmul.f32 %v6377, %v6475
        %v6508 = vmul.f32 %v6379, %v6476
        %v6509 = vmul.f32 %v6381, %v6477
        %v6510 = vpack.c.bf16 %v6479, %v6478
        %v6511 = vpack.c.bf16 %v6481, %v6480
        %v6512 = vpack.c.bf16 %v6483, %v6482
        %v6513 = vpack.c.bf16 %v6485, %v6484
        %v6514 = vpack.c.bf16 %v6487, %v6486
        %v6515 = vpack.c.bf16 %v6489, %v6488
        %v6516 = vpack.c.bf16 %v6491, %v6490
        %v6517 = vpack.c.bf16 %v6493, %v6492
        %v6518 = vpack.c.bf16 %v6495, %v6494
        %v6519 = vpack.c.bf16 %v6497, %v6496
        %v6520 = vpack.c.bf16 %v6499, %v6498
        %v6521 = vpack.c.bf16 %v6501, %v6500
        %v6522 = vpack.c.bf16 %v6503, %v6502
        %v6523 = vpack.c.bf16 %v6505, %v6504
        %v6524 = vpack.c.bf16 %v6507, %v6506
        %v6525 = vpack.c.bf16 %v6509, %v6508
        %6526 = vrot.lane.b32.xlu0 %v2200, 32
        %v6527 = vpop.permute.xlu0 %6526
        %6528 = vrot.lane.b32.xlu0 %v2201, 32
        %v6529 = vpop.permute.xlu0 %6528
        %6530 = vrot.lane.b32.xlu0 %v2202, 32
        %v6531 = vpop.permute.xlu0 %6530
        %6532 = vrot.lane.b32.xlu0 %v2203, 32
        %v6533 = vpop.permute.xlu0 %6532
        %6534 = vrot.lane.b32.xlu0 %v2204, 32
        %v6535 = vpop.permute.xlu0 %6534
        %6536 = vrot.lane.b32.xlu0 %v2205, 32
        %v6537 = vpop.permute.xlu0 %6536
        %6538 = vrot.lane.b32.xlu0 %v2206, 32
        %v6539 = vpop.permute.xlu0 %6538
        %6540 = vrot.lane.b32.xlu0 %v2207, 32
        %v6541 = vpop.permute.xlu0 %6540
        %6550 = vmatprep.subr.bf16.mxu0 0
        %6551 = vmatpush1.bf16.msra.mxu0 %v6527
        %6552 = vmatprep.subr.bf16.mxu0 0
        %6553 = vmatpush1.bf16.msra.mxu0 %v6529
        %6554 = vmatprep.subr.bf16.mxu0 0
        %6555 = vmatpush1.bf16.msra.mxu0 %v6531
        %6556 = vmatprep.subr.bf16.mxu0 0
        %6557 = vmatpush1.bf16.msra.mxu0 %v6533
        %6558 = vmatprep.subr.bf16.mxu0 0
        %6559 = vmatpush1.bf16.msra.mxu0 %v6535
        %6560 = vmatprep.subr.bf16.mxu0 0
        %6561 = vmatpush1.bf16.msra.mxu0 %v6537
        %6562 = vmatprep.subr.bf16.mxu0 0
        %6563 = vmatpush1.bf16.msra.mxu0 %v6539
        %6564 = vmatprep.subr.bf16.mxu0 0
        %6565 = vmatpush1.bf16.msra.mxu0 %v6541
        %6566 = vmatprep.subr.bf16.mxu0 0
        %6567 = vmatpush1.bf16.msra.mxu0 0
        %6568 = vmatprep.subr.bf16.mxu0 0
        %6569 = vmatpush1.bf16.msra.mxu0 0
        %6570 = vmatprep.subr.bf16.mxu0 0
        %6571 = vmatpush1.bf16.msra.mxu0 0
        %6572 = vmatprep.subr.bf16.mxu0 0
        %6573 = vmatpush1.bf16.msra.mxu0 0
        %6574 = vmatprep.subr.bf16.mxu0 0
        %6575 = vmatpush1.bf16.msra.mxu0 0
        %6576 = vmatprep.subr.bf16.mxu0 0
        %6577 = vmatpush1.bf16.msra.mxu0 0
        %6578 = vmatprep.subr.bf16.mxu0 0
        %6579 = vmatpush1.bf16.msra.mxu0 0
        %6580 = vmatprep.subr.bf16.mxu0 0
        %6581 = vmatpush1.bf16.msra.mxu0 0
        %6582 = vmatprep.mubr.bf16.mxu0 0
        %6583 = vmatmul.mubr.bf16.gmra.mrb[0].mxu0 %v6510
        %v6584 = vpop.f32.mrb[0].mxu0
        %v6585 = vadd.f32 0.0, %v6584
        %v6586 = vpop.f32.mrb[0].mxu0
        %v6587 = vpop.f32.mrb[0].mxu0
        %v6588 = vadd.f32 0.0, %v6587
        %v6589 = vpop.f32.mrb[0].mxu0
        %6590 = vmatprep.mubr.bf16.mxu0 0
        %6591 = vmatmul.mubr.bf16.gmra.mrb[0].mxu0 %v6511
        %v6592 = vpop.f32.mrb[0].mxu0
        %v6593 = vadd.f32 0.0, %v6592
        %v6594 = vpop.f32.mrb[0].mxu0
        %v6595 = vpop.f32.mrb[0].mxu0
        %v6596 = vadd.f32 0.0, %v6595
        %v6597 = vpop.f32.mrb[0].mxu0
        %6598 = vmatprep.mubr.bf16.mxu0 0
        %6599 = vmatmul.mubr.bf16.gmra.mrb[0].mxu0 %v6512
        %v6600 = vpop.f32.mrb[0].mxu0
        %v6601 = vadd.f32 0.0, %v6600
        %v6602 = vpop.f32.mrb[0].mxu0
        %v6603 = vpop.f32.mrb[0].mxu0
        %v6604 = vadd.f32 0.0, %v6603
        %v6605 = vpop.f32.mrb[0].mxu0
        %6606 = vmatprep.mubr.bf16.mxu0 0
        %6607 = vmatmul.mubr.bf16.gmra.mrb[0].mxu0 %v6513
        %v6608 = vpop.f32.mrb[0].mxu0
        %v6609 = vadd.f32 0.0, %v6608
        %v6610 = vpop.f32.mrb[0].mxu0
        %v6611 = vpop.f32.mrb[0].mxu0
        %v6612 = vadd.f32 0.0, %v6611
        %v6613 = vpop.f32.mrb[0].mxu0
        %6614 = vmatprep.mubr.bf16.mxu0 0
        %6615 = vmatmul.mubr.bf16.gmra.mrb[0].mxu0 %v6514
        %v6616 = vpop.f32.mrb[0].mxu0
        %v6617 = vadd.f32 0.0, %v6616
        %v6618 = vpop.f32.mrb[0].mxu0
        %v6619 = vpop.f32.mrb[0].mxu0
        %v6620 = vadd.f32 0.0, %v6619
        %v6621 = vpop.f32.mrb[0].mxu0
        %6622 = vmatprep.mubr.bf16.mxu0 0
        %6623 = vmatmul.mubr.bf16.gmra.mrb[0].mxu0 %v6515
        %v6624 = vpop.f32.mrb[0].mxu0
        %v6625 = vadd.f32 0.0, %v6624
        %v6626 = vpop.f32.mrb[0].mxu0
        %v6627 = vpop.f32.mrb[0].mxu0
        %v6628 = vadd.f32 0.0, %v6627
        %v6629 = vpop.f32.mrb[0].mxu0
        %6630 = vmatprep.mubr.bf16.mxu0 0
        %6631 = vmatmul.mubr.bf16.gmra.mrb[0].mxu0 %v6516
        %v6632 = vpop.f32.mrb[0].mxu0
        %v6633 = vadd.f32 0.0, %v6632
        %v6634 = vpop.f32.mrb[0].mxu0
        %v6635 = vpop.f32.mrb[0].mxu0
        %v6636 = vadd.f32 0.0, %v6635
        %v6637 = vpop.f32.mrb[0].mxu0
        %6638 = vmatprep.mubr.bf16.mxu0 0
        %6639 = vmatmul.mubr.bf16.gmra.mrb[0].mxu0 %v6517
        %v6640 = vpop.f32.mrb[0].mxu0
        %v6641 = vadd.f32 0.0, %v6640
        %v6642 = vpop.f32.mrb[0].mxu0
        %v6643 = vpop.f32.mrb[0].mxu0
        %v6644 = vadd.f32 0.0, %v6643
        %v6645 = vpop.f32.mrb[0].mxu0
        %6646 = vdwg.mxu0
        %6647 = vrot.lane.b32.xlu0 %v2208, 32
        %v6648 = vpop.permute.xlu0 %6647
        %6649 = vrot.lane.b32.xlu0 %v2209, 32
        %v6650 = vpop.permute.xlu0 %6649
        %6651 = vrot.lane.b32.xlu0 %v2210, 32
        %v6652 = vpop.permute.xlu0 %6651
        %6653 = vrot.lane.b32.xlu0 %v2211, 32
        %v6654 = vpop.permute.xlu0 %6653
        %6655 = vrot.lane.b32.xlu0 %v2212, 32
        %v6656 = vpop.permute.xlu0 %6655
        %6657 = vrot.lane.b32.xlu0 %v2213, 32
        %v6658 = vpop.permute.xlu0 %6657
        %6659 = vrot.lane.b32.xlu0 %v2214, 32
        %v6660 = vpop.permute.xlu0 %6659
        %6661 = vrot.lane.b32.xlu0 %v2215, 32
        %v6662 = vpop.permute.xlu0 %6661
        %6671 = vmatprep.subr.bf16.mxu0 0
        %6672 = vmatpush1.bf16.msra.mxu0 %v6648
        %6673 = vmatprep.subr.bf16.mxu0 0
        %6674 = vmatpush1.bf16.msra.mxu0 %v6650
        %6675 = vmatprep.subr.bf16.mxu0 0
        %6676 = vmatpush1.bf16.msra.mxu0 %v6652
        %6677 = vmatprep.subr.bf16.mxu0 0
        %6678 = vmatpush1.bf16.msra.mxu0 %v6654
        %6679 = vmatprep.subr.bf16.mxu0 0
        %6680 = vmatpush1.bf16.msra.mxu0 %v6656
        %6681 = vmatprep.subr.bf16.mxu0 0
        %6682 = vmatpush1.bf16.msra.mxu0 %v6658
        %6683 = vmatprep.subr.bf16.mxu0 0
        %6684 = vmatpush1.bf16.msra.mxu0 %v6660
        %6685 = vmatprep.subr.bf16.mxu0 0
        %6686 = vmatpush1.bf16.msra.mxu0 %v6662
        %6687 = vmatprep.subr.bf16.mxu0 0
        %6688 = vmatpush1.bf16.msra.mxu0 0
        %6689 = vmatprep.subr.bf16.mxu0 0
        %6690 = vmatpush1.bf16.msra.mxu0 0
        %6691 = vmatprep.subr.bf16.mxu0 0
        %6692 = vmatpush1.bf16.msra.mxu0 0
        %6693 = vmatprep.subr.bf16.mxu0 0
        %6694 = vmatpush1.bf16.msra.mxu0 0
        %6695 = vmatprep.subr.bf16.mxu0 0
        %6696 = vmatpush1.bf16.msra.mxu0 0
        %6697 = vmatprep.subr.bf16.mxu0 0
        %6698 = vmatpush1.bf16.msra.mxu0 0
        %6699 = vmatprep.subr.bf16.mxu0 0
        %6700 = vmatpush1.bf16.msra.mxu0 0
        %6701 = vmatprep.subr.bf16.mxu0 0
        %6702 = vmatpush1.bf16.msra.mxu0 0
        %6703 = vmatprep.mubr.bf16.mxu0 0
        %6704 = vmatmul.mubr.bf16.gmra.mrb[0].mxu0 %v6518
        %v6705 = vpop.f32.mrb[0].mxu0
        %v6706 = vadd.f32 0.0, %v6705
        %v6707 = vpop.f32.mrb[0].mxu0
        %v6708 = vpop.f32.mrb[0].mxu0
        %v6709 = vadd.f32 0.0, %v6708
        %v6710 = vpop.f32.mrb[0].mxu0
        %6711 = vmatprep.mubr.bf16.mxu0 0
        %6712 = vmatmul.mubr.bf16.gmra.mrb[0].mxu0 %v6519
        %v6713 = vpop.f32.mrb[0].mxu0
        %v6714 = vadd.f32 0.0, %v6713
        %v6715 = vpop.f32.mrb[0].mxu0
        %v6716 = vpop.f32.mrb[0].mxu0
        %v6717 = vadd.f32 0.0, %v6716
        %v6718 = vpop.f32.mrb[0].mxu0
        %6719 = vmatprep.mubr.bf16.mxu0 0
        %6720 = vmatmul.mubr.bf16.gmra.mrb[0].mxu0 %v6520
        %v6721 = vpop.f32.mrb[0].mxu0
        %v6722 = vadd.f32 0.0, %v6721
        %v6723 = vpop.f32.mrb[0].mxu0
        %v6724 = vpop.f32.mrb[0].mxu0
        %v6725 = vadd.f32 0.0, %v6724
        %v6726 = vpop.f32.mrb[0].mxu0
        %6727 = vmatprep.mubr.bf16.mxu0 0
        %6728 = vmatmul.mubr.bf16.gmra.mrb[0].mxu0 %v6521
        %v6729 = vpop.f32.mrb[0].mxu0
        %v6730 = vadd.f32 0.0, %v6729
        %v6731 = vpop.f32.mrb[0].mxu0
        %v6732 = vpop.f32.mrb[0].mxu0
        %v6733 = vadd.f32 0.0, %v6732
        %v6734 = vpop.f32.mrb[0].mxu0
        %6735 = vmatprep.mubr.bf16.mxu0 0
        %6736 = vmatmul.mubr.bf16.gmra.mrb[0].mxu0 %v6522
        %v6737 = vpop.f32.mrb[0].mxu0
        %v6738 = vadd.f32 0.0, %v6737
        %v6739 = vpop.f32.mrb[0].mxu0
        %v6740 = vpop.f32.mrb[0].mxu0
        %v6741 = vadd.f32 0.0, %v6740
        %v6742 = vpop.f32.mrb[0].mxu0
        %6743 = vmatprep.mubr.bf16.mxu0 0
        %6744 = vmatmul.mubr.bf16.gmra.mrb[0].mxu0 %v6523
        %v6745 = vpop.f32.mrb[0].mxu0
        %v6746 = vadd.f32 0.0, %v6745
        %v6747 = vpop.f32.mrb[0].mxu0
        %v6748 = vpop.f32.mrb[0].mxu0
        %v6749 = vadd.f32 0.0, %v6748
        %v6750 = vpop.f32.mrb[0].mxu0
        %6751 = vmatprep.mubr.bf16.mxu0 0
        %6752 = vmatmul.mubr.bf16.gmra.mrb[0].mxu0 %v6524
        %v6753 = vpop.f32.mrb[0].mxu0
        %v6754 = vadd.f32 0.0, %v6753
        %v6755 = vpop.f32.mrb[0].mxu0
        %v6756 = vpop.f32.mrb[0].mxu0
        %v6757 = vadd.f32 0.0, %v6756
        %v6758 = vpop.f32.mrb[0].mxu0
        %6759 = vmatprep.mubr.bf16.mxu0 0
        %6760 = vmatmul.mubr.bf16.gmra.mrb[0].mxu0 %v6525
        %v6761 = vpop.f32.mrb[0].mxu0
        %v6762 = vadd.f32 0.0, %v6761
        %v6763 = vpop.f32.mrb[0].mxu0
        %v6764 = vpop.f32.mrb[0].mxu0
        %v6765 = vadd.f32 0.0, %v6764
        %v6766 = vpop.f32.mrb[0].mxu0
        %6767 = vdwg.mxu0
        %v6768 = vpack.c.bf16 %v6588, %v6585
        %v6769 = vpack.c.bf16 %v6596, %v6593
        %v6770 = vpack.c.bf16 %v6604, %v6601
        %v6771 = vpack.c.bf16 %v6612, %v6609
        %v6772 = vpack.c.bf16 %v6620, %v6617
        %v6773 = vpack.c.bf16 %v6628, %v6625
        %v6774 = vpack.c.bf16 %v6636, %v6633
        %v6775 = vpack.c.bf16 %v6644, %v6641
        %v6776 = vpack.c.bf16 %v6709, %v6706
        %v6777 = vpack.c.bf16 %v6717, %v6714
        %v6778 = vpack.c.bf16 %v6725, %v6722
        %v6779 = vpack.c.bf16 %v6733, %v6730
        %v6780 = vpack.c.bf16 %v6741, %v6738
        %v6781 = vpack.c.bf16 %v6749, %v6746
        %v6782 = vpack.c.bf16 %v6757, %v6754
        %v6783 = vpack.c.bf16 %v6765, %v6762
        %s6784 = scalar_lea.vmem %s486, 48
        %v6785 = vld [vmem:[%s6784] sm:$0xf]
        %v6786 = vld [vmem:[%s6784 + $0x4] sm:$0xf]
        %v6787 = vld [vmem:[%s6784 + $0x8] sm:$0xf]
        %v6788 = vld [vmem:[%s6784 + $0xc] sm:$0xf]
        %v6793 = vunpack.c.l.b16 %v6785
        %v6794 = vunpack.c.l.b16 %v6786
        %v6795 = vunpack.c.l.b16 %v6787
        %v6796 = vunpack.c.l.b16 %v6788
        %v6797 = vpack.c.b16 %v6794, %v6793
        %v6798 = vpack.c.b16 %v6796, %v6795
        %v6802 = vsel %vm2216, %v6768, 0
        %v6805 = vsel %vm2216, %v6769, 0
        %v6808 = vsel %vm2216, %v6770, 0
        %v6811 = vsel %vm2216, %v6771, 0
        %v6814 = vsel %vm2216, %v6772, 0
        %v6817 = vsel %vm2216, %v6773, 0
        %v6820 = vsel %vm2216, %v6774, 0
        %v6823 = vsel %vm2216, %v6775, 0
        %v6826 = vsel %vm2216, %v6776, 0
        %v6829 = vsel %vm2216, %v6777, 0
        %v6832 = vsel %vm2216, %v6778, 0
        %v6835 = vsel %vm2216, %v6779, 0
        %v6838 = vsel %vm2216, %v6780, 0
        %v6841 = vsel %vm2216, %v6781, 0
        %v6844 = vsel %vm2216, %v6782, 0
        %v6847 = vsel %vm2216, %v6783, 0
        %6849 = vmatprep.subr.bf16.mxu0 0
        %6850 = vmatpush1.bf16.msra.mxu0 %v6797
        %6851 = vmatprep.subr.bf16.mxu0 0
        %6852 = vmatpush1.bf16.msra.mxu0 %v6798
        %6853 = vmatprep.subr.bf16.mxu0 0
        %6854 = vmatpush1.bf16.msra.mxu0 0
        %6855 = vmatprep.subr.bf16.mxu0 0
        %6856 = vmatpush1.bf16.msra.mxu0 0
        %6857 = vmatprep.subr.bf16.mxu0 0
        %6858 = vmatpush1.bf16.msra.mxu0 0
        %6859 = vmatprep.subr.bf16.mxu0 0
        %6860 = vmatpush1.bf16.msra.mxu0 0
        %6861 = vmatprep.subr.bf16.mxu0 0
        %6862 = vmatpush1.bf16.msra.mxu0 0
        %6863 = vmatprep.subr.bf16.mxu0 0
        %6864 = vmatpush1.bf16.msra.mxu0 0
        %6865 = vmatprep.subr.bf16.mxu0 0
        %6866 = vmatpush1.bf16.msra.mxu0 0
        %6867 = vmatprep.subr.bf16.mxu0 0
        %6868 = vmatpush1.bf16.msra.mxu0 0
        %6869 = vmatprep.subr.bf16.mxu0 0
        %6870 = vmatpush1.bf16.msra.mxu0 0
        %6871 = vmatprep.subr.bf16.mxu0 0
        %6872 = vmatpush1.bf16.msra.mxu0 0
        %6873 = vmatprep.subr.bf16.mxu0 0
        %6874 = vmatpush1.bf16.msra.mxu0 0
        %6875 = vmatprep.subr.bf16.mxu0 0
        %6876 = vmatpush1.bf16.msra.mxu0 0
        %6877 = vmatprep.subr.bf16.mxu0 0
        %6878 = vmatpush1.bf16.msra.mxu0 0
        %6879 = vmatprep.subr.bf16.mxu0 0
        %6880 = vmatpush1.bf16.msra.mxu0 0
        %6881 = vmatprep.mubr.bf16.mxu0 0
        %6882 = vmatmul.mubr.bf16.gmra.mrb[0].mxu0 %v6802
        %v6883 = vpop.f32.mrb[0].mxu0
        %v6884 = vadd.f32 0.0, %v6883
        %v6885 = vpop.f32.mrb[0].mxu0
        %v6886 = vpop.f32.mrb[0].mxu0
        %v6887 = vadd.f32 0.0, %v6886
        %v6888 = vpop.f32.mrb[0].mxu0
        %6889 = vmatprep.mubr.bf16.mxu0 0
        %6890 = vmatmul.mubr.bf16.gmra.mrb[0].mxu0 %v6805
        %v6891 = vpop.f32.mrb[0].mxu0
        %v6892 = vadd.f32 0.0, %v6891
        %v6893 = vpop.f32.mrb[0].mxu0
        %v6894 = vpop.f32.mrb[0].mxu0
        %v6895 = vadd.f32 0.0, %v6894
        %v6896 = vpop.f32.mrb[0].mxu0
        %6897 = vmatprep.mubr.bf16.mxu0 0
        %6898 = vmatmul.mubr.bf16.gmra.mrb[0].mxu0 %v6808
        %v6899 = vpop.f32.mrb[0].mxu0
        %v6900 = vadd.f32 0.0, %v6899
        %v6901 = vpop.f32.mrb[0].mxu0
        %v6902 = vpop.f32.mrb[0].mxu0
        %v6903 = vadd.f32 0.0, %v6902
        %v6904 = vpop.f32.mrb[0].mxu0
        %6905 = vmatprep.mubr.bf16.mxu0 0
        %6906 = vmatmul.mubr.bf16.gmra.mrb[0].mxu0 %v6811
        %v6907 = vpop.f32.mrb[0].mxu0
        %v6908 = vadd.f32 0.0, %v6907
        %v6909 = vpop.f32.mrb[0].mxu0
        %v6910 = vpop.f32.mrb[0].mxu0
        %v6911 = vadd.f32 0.0, %v6910
        %v6912 = vpop.f32.mrb[0].mxu0
        %6913 = vmatprep.mubr.bf16.mxu0 0
        %6914 = vmatmul.mubr.bf16.gmra.mrb[0].mxu0 %v6814
        %v6915 = vpop.f32.mrb[0].mxu0
        %v6916 = vadd.f32 0.0, %v6915
        %v6917 = vpop.f32.mrb[0].mxu0
        %v6918 = vpop.f32.mrb[0].mxu0
        %v6919 = vadd.f32 0.0, %v6918
        %v6920 = vpop.f32.mrb[0].mxu0
        %6921 = vmatprep.mubr.bf16.mxu0 0
        %6922 = vmatmul.mubr.bf16.gmra.mrb[0].mxu0 %v6817
        %v6923 = vpop.f32.mrb[0].mxu0
        %v6924 = vadd.f32 0.0, %v6923
        %v6925 = vpop.f32.mrb[0].mxu0
        %v6926 = vpop.f32.mrb[0].mxu0
        %v6927 = vadd.f32 0.0, %v6926
        %v6928 = vpop.f32.mrb[0].mxu0
        %6929 = vmatprep.mubr.bf16.mxu0 0
        %6930 = vmatmul.mubr.bf16.gmra.mrb[0].mxu0 %v6820
        %v6931 = vpop.f32.mrb[0].mxu0
        %v6932 = vadd.f32 0.0, %v6931
        %v6933 = vpop.f32.mrb[0].mxu0
        %v6934 = vpop.f32.mrb[0].mxu0
        %v6935 = vadd.f32 0.0, %v6934
        %v6936 = vpop.f32.mrb[0].mxu0
        %6937 = vmatprep.mubr.bf16.mxu0 0
        %6938 = vmatmul.mubr.bf16.gmra.mrb[0].mxu0 %v6823
        %v6939 = vpop.f32.mrb[0].mxu0
        %v6940 = vadd.f32 0.0, %v6939
        %v6941 = vpop.f32.mrb[0].mxu0
        %v6942 = vpop.f32.mrb[0].mxu0
        %v6943 = vadd.f32 0.0, %v6942
        %v6944 = vpop.f32.mrb[0].mxu0
        %6945 = vmatprep.mubr.bf16.mxu0 0
        %6946 = vmatmul.mubr.bf16.gmra.mrb[0].mxu0 %v6826
        %v6947 = vpop.f32.mrb[0].mxu0
        %v6948 = vadd.f32 0.0, %v6947
        %v6949 = vpop.f32.mrb[0].mxu0
        %v6950 = vpop.f32.mrb[0].mxu0
        %v6951 = vadd.f32 0.0, %v6950
        %v6952 = vpop.f32.mrb[0].mxu0
        %6953 = vmatprep.mubr.bf16.mxu0 0
        %6954 = vmatmul.mubr.bf16.gmra.mrb[0].mxu0 %v6829
        %v6955 = vpop.f32.mrb[0].mxu0
        %v6956 = vadd.f32 0.0, %v6955
        %v6957 = vpop.f32.mrb[0].mxu0
        %v6958 = vpop.f32.mrb[0].mxu0
        %v6959 = vadd.f32 0.0, %v6958
        %v6960 = vpop.f32.mrb[0].mxu0
        %6961 = vmatprep.mubr.bf16.mxu0 0
        %6962 = vmatmul.mubr.bf16.gmra.mrb[0].mxu0 %v6832
        %v6963 = vpop.f32.mrb[0].mxu0
        %v6964 = vadd.f32 0.0, %v6963
        %v6965 = vpop.f32.mrb[0].mxu0
        %v6966 = vpop.f32.mrb[0].mxu0
        %v6967 = vadd.f32 0.0, %v6966
        %v6968 = vpop.f32.mrb[0].mxu0
        %6969 = vmatprep.mubr.bf16.mxu0 0
        %6970 = vmatmul.mubr.bf16.gmra.mrb[0].mxu0 %v6835
        %v6971 = vpop.f32.mrb[0].mxu0
        %v6972 = vadd.f32 0.0, %v6971
        %v6973 = vpop.f32.mrb[0].mxu0
        %v6974 = vpop.f32.mrb[0].mxu0
        %v6975 = vadd.f32 0.0, %v6974
        %v6976 = vpop.f32.mrb[0].mxu0
        %6977 = vmatprep.mubr.bf16.mxu0 0
        %6978 = vmatmul.mubr.bf16.gmra.mrb[0].mxu0 %v6838
        %v6979 = vpop.f32.mrb[0].mxu0
        %v6980 = vadd.f32 0.0, %v6979
        %v6981 = vpop.f32.mrb[0].mxu0
        %v6982 = vpop.f32.mrb[0].mxu0
        %v6983 = vadd.f32 0.0, %v6982
        %v6984 = vpop.f32.mrb[0].mxu0
        %6985 = vmatprep.mubr.bf16.mxu0 0
        %6986 = vmatmul.mubr.bf16.gmra.mrb[0].mxu0 %v6841
        %v6987 = vpop.f32.mrb[0].mxu0
        %v6988 = vadd.f32 0.0, %v6987
        %v6989 = vpop.f32.mrb[0].mxu0
        %v6990 = vpop.f32.mrb[0].mxu0
        %v6991 = vadd.f32 0.0, %v6990
        %v6992 = vpop.f32.mrb[0].mxu0
        %6993 = vmatprep.mubr.bf16.mxu0 0
        %6994 = vmatmul.mubr.bf16.gmra.mrb[0].mxu0 %v6844
        %v6995 = vpop.f32.mrb[0].mxu0
        %v6996 = vadd.f32 0.0, %v6995
        %v6997 = vpop.f32.mrb[0].mxu0
        %v6998 = vpop.f32.mrb[0].mxu0
        %v6999 = vadd.f32 0.0, %v6998
        %v7000 = vpop.f32.mrb[0].mxu0
        %7001 = vmatprep.mubr.bf16.mxu0 0
        %7002 = vmatmul.mubr.bf16.gmra.mrb[0].mxu0 %v6847
        %v7003 = vpop.f32.mrb[0].mxu0
        %v7004 = vadd.f32 0.0, %v7003
        %v7005 = vpop.f32.mrb[0].mxu0
        %v7006 = vpop.f32.mrb[0].mxu0
        %v7007 = vadd.f32 0.0, %v7006
        %v7008 = vpop.f32.mrb[0].mxu0
        %7009 = vdwg.mxu0
        %v7010 = vadd.f32 %v5772, %v6884
        %v7011 = vadd.f32 %v5773, %v6887
        %v7012 = vadd.f32 %v5774, %v6892
        %v7013 = vadd.f32 %v5775, %v6895
        %v7014 = vadd.f32 %v5776, %v6900
        %v7015 = vadd.f32 %v5777, %v6903
        %v7016 = vadd.f32 %v5778, %v6908
        %v7017 = vadd.f32 %v5779, %v6911
        %v7018 = vadd.f32 %v5780, %v6916
        %v7019 = vadd.f32 %v5781, %v6919
        %v7020 = vadd.f32 %v5782, %v6924
        %v7021 = vadd.f32 %v5783, %v6927
        %v7022 = vadd.f32 %v5784, %v6932
        %v7023 = vadd.f32 %v5785, %v6935
        %v7024 = vadd.f32 %v5786, %v6940
        %v7025 = vadd.f32 %v5787, %v6943
        %v7026 = vadd.f32 %v5788, %v6948
        %v7027 = vadd.f32 %v5789, %v6951
        %v7028 = vadd.f32 %v5790, %v6956
        %v7029 = vadd.f32 %v5791, %v6959
        %v7030 = vadd.f32 %v5792, %v6964
        %v7031 = vadd.f32 %v5793, %v6967
        %v7032 = vadd.f32 %v5794, %v6972
        %v7033 = vadd.f32 %v5795, %v6975
        %v7034 = vadd.f32 %v5796, %v6980
        %v7035 = vadd.f32 %v5797, %v6983
        %v7036 = vadd.f32 %v5798, %v6988
        %v7037 = vadd.f32 %v5799, %v6991
        %v7038 = vadd.f32 %v5800, %v6996
        %v7039 = vadd.f32 %v5801, %v6999
        %v7040 = vadd.f32 %v5802, %v7004
        %v7041 = vadd.f32 %v5803, %v7007
        %v7042 = vadd.f32 %v1068, %v7010
        %v7043 = vadd.f32 %v1069, %v7011
        %v7044 = vadd.f32 %v1070, %v7012
        %v7045 = vadd.f32 %v1071, %v7013
        %v7046 = vadd.f32 %v1072, %v7014
        %v7047 = vadd.f32 %v1073, %v7015
        %v7048 = vadd.f32 %v1074, %v7016
        %v7049 = vadd.f32 %v1075, %v7017
        %v7050 = vadd.f32 %v1076, %v7018
        %v7051 = vadd.f32 %v1077, %v7019
        %v7052 = vadd.f32 %v1078, %v7020
        %v7053 = vadd.f32 %v1079, %v7021
        %v7054 = vadd.f32 %v1080, %v7022
        %v7055 = vadd.f32 %v1081, %v7023
        %v7056 = vadd.f32 %v1082, %v7024
        %v7057 = vadd.f32 %v1083, %v7025
        %v7058 = vadd.f32 %v1084, %v7026
        %v7059 = vadd.f32 %v1085, %v7027
        %v7060 = vadd.f32 %v1086, %v7028
        %v7061 = vadd.f32 %v1087, %v7029
        %v7062 = vadd.f32 %v1088, %v7030
        %v7063 = vadd.f32 %v1089, %v7031
        %v7064 = vadd.f32 %v1090, %v7032
        %v7065 = vadd.f32 %v1091, %v7033
        %v7066 = vadd.f32 %v1092, %v7034
        %v7067 = vadd.f32 %v1093, %v7035
        %v7068 = vadd.f32 %v1094, %v7036
        %v7069 = vadd.f32 %v1095, %v7037
        %v7070 = vadd.f32 %v1096, %v7038
        %v7071 = vadd.f32 %v1097, %v7039
        %v7072 = vadd.f32 %v1098, %v7040
        %v7073 = vadd.f32 %v1099, %v7041
        %v7074 = vlaneseq
        %v7075 = vshrl.u32 %v7074, 7
        %v7076 = vsub.s32 4, %v7075
        %v7077 = vrot.slane %v1100, %v7076
        %v7078 = vadd.f32 %v7042, %v7077
        %v7079 = vadd.f32 %v7043, %v7077
        %v7080 = vadd.f32 %v7044, %v7077
        %v7081 = vadd.f32 %v7045, %v7077
        %v7082 = vadd.f32 %v7046, %v7077
        %v7083 = vadd.f32 %v7047, %v7077
        %v7084 = vadd.f32 %v7048, %v7077
        %v7085 = vadd.f32 %v7049, %v7077
        %v7086 = vadd.f32 %v7050, %v7077
        %v7087 = vadd.f32 %v7051, %v7077
        %v7088 = vadd.f32 %v7052, %v7077
        %v7089 = vadd.f32 %v7053, %v7077
        %v7090 = vadd.f32 %v7054, %v7077
        %v7091 = vadd.f32 %v7055, %v7077
        %v7092 = vadd.f32 %v7056, %v7077
        %v7093 = vadd.f32 %v7057, %v7077
        %v7094 = vadd.f32 %v7058, %v7077
        %v7095 = vadd.f32 %v7059, %v7077
        %v7096 = vadd.f32 %v7060, %v7077
        %v7097 = vadd.f32 %v7061, %v7077
        %v7098 = vadd.f32 %v7062, %v7077
        %v7099 = vadd.f32 %v7063, %v7077
        %v7100 = vadd.f32 %v7064, %v7077
        %v7101 = vadd.f32 %v7065, %v7077
        %v7102 = vadd.f32 %v7066, %v7077
        %v7103 = vadd.f32 %v7067, %v7077
        %v7104 = vadd.f32 %v7068, %v7077
        %v7105 = vadd.f32 %v7069, %v7077
        %v7106 = vadd.f32 %v7070, %v7077
        %v7107 = vadd.f32 %v7071, %v7077
        %v7108 = vadd.f32 %v7072, %v7077
        %v7109 = vadd.f32 %v7073, %v7077
        %7110 = vadd.xlane.f32.xlu0 %v7078
        %v7111 = vpop.xlane.xlu0 %7110
        %7112 = vadd.xlane.f32.xlu0 %v7079
        %v7113 = vpop.xlane.xlu0 %7112
        %7114 = vadd.xlane.f32.xlu0 %v7080
        %v7115 = vpop.xlane.xlu0 %7114
        %7116 = vadd.xlane.f32.xlu0 %v7081
        %v7117 = vpop.xlane.xlu0 %7116
        %7118 = vadd.xlane.f32.xlu0 %v7082
        %v7119 = vpop.xlane.xlu0 %7118
        %7120 = vadd.xlane.f32.xlu0 %v7083
        %v7121 = vpop.xlane.xlu0 %7120
        %7122 = vadd.xlane.f32.xlu0 %v7084
        %v7123 = vpop.xlane.xlu0 %7122
        %7124 = vadd.xlane.f32.xlu0 %v7085
        %v7125 = vpop.xlane.xlu0 %7124
        %7126 = vadd.xlane.f32.xlu0 %v7086
        %v7127 = vpop.xlane.xlu0 %7126
        %7128 = vadd.xlane.f32.xlu0 %v7087
        %v7129 = vpop.xlane.xlu0 %7128
        %7130 = vadd.xlane.f32.xlu0 %v7088
        %v7131 = vpop.xlane.xlu0 %7130
        %7132 = vadd.xlane.f32.xlu0 %v7089
        %v7133 = vpop.xlane.xlu0 %7132
        %7134 = vadd.xlane.f32.xlu0 %v7090
        %v7135 = vpop.xlane.xlu0 %7134
        %7136 = vadd.xlane.f32.xlu0 %v7091
        %v7137 = vpop.xlane.xlu0 %7136
        %7138 = vadd.xlane.f32.xlu0 %v7092
        %v7139 = vpop.xlane.xlu0 %7138
        %7140 = vadd.xlane.f32.xlu0 %v7093
        %v7141 = vpop.xlane.xlu0 %7140
        %7142 = vadd.xlane.f32.xlu0 %v7094
        %v7143 = vpop.xlane.xlu0 %7142
        %7144 = vadd.xlane.f32.xlu0 %v7095
        %v7145 = vpop.xlane.xlu0 %7144
        %7146 = vadd.xlane.f32.xlu0 %v7096
        %v7147 = vpop.xlane.xlu0 %7146
        %7148 = vadd.xlane.f32.xlu0 %v7097
        %v7149 = vpop.xlane.xlu0 %7148
        %7150 = vadd.xlane.f32.xlu0 %v7098
        %v7151 = vpop.xlane.xlu0 %7150
        %7152 = vadd.xlane.f32.xlu0 %v7099
        %v7153 = vpop.xlane.xlu0 %7152
        %7154 = vadd.xlane.f32.xlu0 %v7100
        %v7155 = vpop.xlane.xlu0 %7154
        %7156 = vadd.xlane.f32.xlu0 %v7101
        %v7157 = vpop.xlane.xlu0 %7156
        %7158 = vadd.xlane.f32.xlu0 %v7102
        %v7159 = vpop.xlane.xlu0 %7158
        %7160 = vadd.xlane.f32.xlu0 %v7103
        %v7161 = vpop.xlane.xlu0 %7160
        %7162 = vadd.xlane.f32.xlu0 %v7104
        %v7163 = vpop.xlane.xlu0 %7162
        %7164 = vadd.xlane.f32.xlu0 %v7105
        %v7165 = vpop.xlane.xlu0 %7164
        %7166 = vadd.xlane.f32.xlu0 %v7106
        %v7167 = vpop.xlane.xlu0 %7166
        %7168 = vadd.xlane.f32.xlu0 %v7107
        %v7169 = vpop.xlane.xlu0 %7168
        %7170 = vadd.xlane.f32.xlu0 %v7108
        %v7171 = vpop.xlane.xlu0 %7170
        %7172 = vadd.xlane.f32.xlu0 %v7109
        %v7173 = vpop.xlane.xlu0 %7172
        %v7174 = vmul.f32 %v7111, 0.03125
        %v7175 = vmul.f32 %v7113, 0.03125
        %v7176 = vmul.f32 %v7115, 0.03125
        %v7177 = vmul.f32 %v7117, 0.03125
        %v7178 = vmul.f32 %v7119, 0.03125
        %v7179 = vmul.f32 %v7121, 0.03125
        %v7180 = vmul.f32 %v7123, 0.03125
        %v7181 = vmul.f32 %v7125, 0.03125
        %v7182 = vmul.f32 %v7127, 0.03125
        %v7183 = vmul.f32 %v7129, 0.03125
        %v7184 = vmul.f32 %v7131, 0.03125
        %v7185 = vmul.f32 %v7133, 0.03125
        %v7186 = vmul.f32 %v7135, 0.03125
        %v7187 = vmul.f32 %v7137, 0.03125
        %v7188 = vmul.f32 %v7139, 0.03125
        %v7189 = vmul.f32 %v7141, 0.03125
        %v7190 = vmul.f32 %v7143, 0.03125
        %v7191 = vmul.f32 %v7145, 0.03125
        %v7192 = vmul.f32 %v7147, 0.03125
        %v7193 = vmul.f32 %v7149, 0.03125
        %v7194 = vmul.f32 %v7151, 0.03125
        %v7195 = vmul.f32 %v7153, 0.03125
        %v7196 = vmul.f32 %v7155, 0.03125
        %v7197 = vmul.f32 %v7157, 0.03125
        %v7198 = vmul.f32 %v7159, 0.03125
        %v7199 = vmul.f32 %v7161, 0.03125
        %v7200 = vmul.f32 %v7163, 0.03125
        %v7201 = vmul.f32 %v7165, 0.03125
        %v7202 = vmul.f32 %v7167, 0.03125
        %v7203 = vmul.f32 %v7169, 0.03125
        %v7204 = vmul.f32 %v7171, 0.03125
        %v7205 = vmul.f32 %v7173, 0.03125
        %v7206 = vmul.f32 %v7078, %v7078
        %v7207 = vmul.f32 %v7079, %v7079
        %v7208 = vmul.f32 %v7080, %v7080
        %v7209 = vmul.f32 %v7081, %v7081
        %v7210 = vmul.f32 %v7082, %v7082
        %v7211 = vmul.f32 %v7083, %v7083
        %v7212 = vmul.f32 %v7084, %v7084
        %v7213 = vmul.f32 %v7085, %v7085
        %v7214 = vmul.f32 %v7086, %v7086
        %v7215 = vmul.f32 %v7087, %v7087
        %v7216 = vmul.f32 %v7088, %v7088
        %v7217 = vmul.f32 %v7089, %v7089
        %v7218 = vmul.f32 %v7090, %v7090
        %v7219 = vmul.f32 %v7091, %v7091
        %v7220 = vmul.f32 %v7092, %v7092
        %v7221 = vmul.f32 %v7093, %v7093
        %v7222 = vmul.f32 %v7094, %v7094
        %v7223 = vmul.f32 %v7095, %v7095
        %v7224 = vmul.f32 %v7096, %v7096
        %v7225 = vmul.f32 %v7097, %v7097
        %v7226 = vmul.f32 %v7098, %v7098
        %v7227 = vmul.f32 %v7099, %v7099
        %v7228 = vmul.f32 %v7100, %v7100
        %v7229 = vmul.f32 %v7101, %v7101
        %v7230 = vmul.f32 %v7102, %v7102
        %v7231 = vmul.f32 %v7103, %v7103
        %v7232 = vmul.f32 %v7104, %v7104
        %v7233 = vmul.f32 %v7105, %v7105
        %v7234 = vmul.f32 %v7106, %v7106
        %v7235 = vmul.f32 %v7107, %v7107
        %v7236 = vmul.f32 %v7108, %v7108
        %v7237 = vmul.f32 %v7109, %v7109
        %7238 = vadd.xlane.f32.xlu0 %v7206
        %v7239 = vpop.xlane.xlu0 %7238
        %7240 = vadd.xlane.f32.xlu0 %v7207
        %v7241 = vpop.xlane.xlu0 %7240
        %7242 = vadd.xlane.f32.xlu0 %v7208
        %v7243 = vpop.xlane.xlu0 %7242
        %7244 = vadd.xlane.f32.xlu0 %v7209
        %v7245 = vpop.xlane.xlu0 %7244
        %7246 = vadd.xlane.f32.xlu0 %v7210
        %v7247 = vpop.xlane.xlu0 %7246
        %7248 = vadd.xlane.f32.xlu0 %v7211
        %v7249 = vpop.xlane.xlu0 %7248
        %7250 = vadd.xlane.f32.xlu0 %v7212
        %v7251 = vpop.xlane.xlu0 %7250
        %7252 = vadd.xlane.f32.xlu0 %v7213
        %v7253 = vpop.xlane.xlu0 %7252
        %7254 = vadd.xlane.f32.xlu0 %v7214
        %v7255 = vpop.xlane.xlu0 %7254
        %7256 = vadd.xlane.f32.xlu0 %v7215
        %v7257 = vpop.xlane.xlu0 %7256
        %7258 = vadd.xlane.f32.xlu0 %v7216
        %v7259 = vpop.xlane.xlu0 %7258
        %7260 = vadd.xlane.f32.xlu0 %v7217
        %v7261 = vpop.xlane.xlu0 %7260
        %7262 = vadd.xlane.f32.xlu0 %v7218
        %v7263 = vpop.xlane.xlu0 %7262
        %7264 = vadd.xlane.f32.xlu0 %v7219
        %v7265 = vpop.xlane.xlu0 %7264
        %7266 = vadd.xlane.f32.xlu0 %v7220
        %v7267 = vpop.xlane.xlu0 %7266
        %7268 = vadd.xlane.f32.xlu0 %v7221
        %v7269 = vpop.xlane.xlu0 %7268
        %7270 = vadd.xlane.f32.xlu0 %v7222
        %v7271 = vpop.xlane.xlu0 %7270
        %7272 = vadd.xlane.f32.xlu0 %v7223
        %v7273 = vpop.xlane.xlu0 %7272
        %7274 = vadd.xlane.f32.xlu0 %v7224
        %v7275 = vpop.xlane.xlu0 %7274
        %7276 = vadd.xlane.f32.xlu0 %v7225
        %v7277 = vpop.xlane.xlu0 %7276
        %7278 = vadd.xlane.f32.xlu0 %v7226
        %v7279 = vpop.xlane.xlu0 %7278
        %7280 = vadd.xlane.f32.xlu0 %v7227
        %v7281 = vpop.xlane.xlu0 %7280
        %7282 = vadd.xlane.f32.xlu0 %v7228
        %v7283 = vpop.xlane.xlu0 %7282
        %7284 = vadd.xlane.f32.xlu0 %v7229
        %v7285 = vpop.xlane.xlu0 %7284
        %7286 = vadd.xlane.f32.xlu0 %v7230
        %v7287 = vpop.xlane.xlu0 %7286
        %7288 = vadd.xlane.f32.xlu0 %v7231
        %v7289 = vpop.xlane.xlu0 %7288
        %7290 = vadd.xlane.f32.xlu0 %v7232
        %v7291 = vpop.xlane.xlu0 %7290
        %7292 = vadd.xlane.f32.xlu0 %v7233
        %v7293 = vpop.xlane.xlu0 %7292
        %7294 = vadd.xlane.f32.xlu0 %v7234
        %v7295 = vpop.xlane.xlu0 %7294
        %7296 = vadd.xlane.f32.xlu0 %v7235
        %v7297 = vpop.xlane.xlu0 %7296
        %7298 = vadd.xlane.f32.xlu0 %v7236
        %v7299 = vpop.xlane.xlu0 %7298
        %7300 = vadd.xlane.f32.xlu0 %v7237
        %v7301 = vpop.xlane.xlu0 %7300
        %v7302 = vmul.f32 %v7239, 0.03125
        %v7303 = vmul.f32 %v7241, 0.03125
        %v7304 = vmul.f32 %v7243, 0.03125
        %v7305 = vmul.f32 %v7245, 0.03125
        %v7306 = vmul.f32 %v7247, 0.03125
        %v7307 = vmul.f32 %v7249, 0.03125
        %v7308 = vmul.f32 %v7251, 0.03125
        %v7309 = vmul.f32 %v7253, 0.03125
        %v7310 = vmul.f32 %v7255, 0.03125
        %v7311 = vmul.f32 %v7257, 0.03125
        %v7312 = vmul.f32 %v7259, 0.03125
        %v7313 = vmul.f32 %v7261, 0.03125
        %v7314 = vmul.f32 %v7263, 0.03125
        %v7315 = vmul.f32 %v7265, 0.03125
        %v7316 = vmul.f32 %v7267, 0.03125
        %v7317 = vmul.f32 %v7269, 0.03125
        %v7318 = vmul.f32 %v7271, 0.03125
        %v7319 = vmul.f32 %v7273, 0.03125
        %v7320 = vmul.f32 %v7275, 0.03125
        %v7321 = vmul.f32 %v7277, 0.03125
        %v7322 = vmul.f32 %v7279, 0.03125
        %v7323 = vmul.f32 %v7281, 0.03125
        %v7324 = vmul.f32 %v7283, 0.03125
        %v7325 = vmul.f32 %v7285, 0.03125
        %v7326 = vmul.f32 %v7287, 0.03125
        %v7327 = vmul.f32 %v7289, 0.03125
        %v7328 = vmul.f32 %v7291, 0.03125
        %v7329 = vmul.f32 %v7293, 0.03125
        %v7330 = vmul.f32 %v7295, 0.03125
        %v7331 = vmul.f32 %v7297, 0.03125
        %v7332 = vmul.f32 %v7299, 0.03125
        %v7333 = vmul.f32 %v7301, 0.03125
        %v7334 = vmul.f32 %v7174, %v7174
        %v7335 = vmul.f32 %v7175, %v7175
        %v7336 = vmul.f32 %v7176, %v7176
        %v7337 = vmul.f32 %v7177, %v7177
        %v7338 = vmul.f32 %v7178, %v7178
        %v7339 = vmul.f32 %v7179, %v7179
        %v7340 = vmul.f32 %v7180, %v7180
        %v7341 = vmul.f32 %v7181, %v7181
        %v7342 = vmul.f32 %v7182, %v7182
        %v7343 = vmul.f32 %v7183, %v7183
        %v7344 = vmul.f32 %v7184, %v7184
        %v7345 = vmul.f32 %v7185, %v7185
        %v7346 = vmul.f32 %v7186, %v7186
        %v7347 = vmul.f32 %v7187, %v7187
        %v7348 = vmul.f32 %v7188, %v7188
        %v7349 = vmul.f32 %v7189, %v7189
        %v7350 = vmul.f32 %v7190, %v7190
        %v7351 = vmul.f32 %v7191, %v7191
        %v7352 = vmul.f32 %v7192, %v7192
        %v7353 = vmul.f32 %v7193, %v7193
        %v7354 = vmul.f32 %v7194, %v7194
        %v7355 = vmul.f32 %v7195, %v7195
        %v7356 = vmul.f32 %v7196, %v7196
        %v7357 = vmul.f32 %v7197, %v7197
        %v7358 = vmul.f32 %v7198, %v7198
        %v7359 = vmul.f32 %v7199, %v7199
        %v7360 = vmul.f32 %v7200, %v7200
        %v7361 = vmul.f32 %v7201, %v7201
        %v7362 = vmul.f32 %v7202, %v7202
        %v7363 = vmul.f32 %v7203, %v7203
        %v7364 = vmul.f32 %v7204, %v7204
        %v7365 = vmul.f32 %v7205, %v7205
        %v7366 = vsub.f32 %v7302, %v7334
        %v7367 = vsub.f32 %v7303, %v7335
        %v7368 = vsub.f32 %v7304, %v7336
        %v7369 = vsub.f32 %v7305, %v7337
        %v7370 = vsub.f32 %v7306, %v7338
        %v7371 = vsub.f32 %v7307, %v7339
        %v7372 = vsub.f32 %v7308, %v7340
        %v7373 = vsub.f32 %v7309, %v7341
        %v7374 = vsub.f32 %v7310, %v7342
        %v7375 = vsub.f32 %v7311, %v7343
        %v7376 = vsub.f32 %v7312, %v7344
        %v7377 = vsub.f32 %v7313, %v7345
        %v7378 = vsub.f32 %v7314, %v7346
        %v7379 = vsub.f32 %v7315, %v7347
        %v7380 = vsub.f32 %v7316, %v7348
        %v7381 = vsub.f32 %v7317, %v7349
        %v7382 = vsub.f32 %v7318, %v7350
        %v7383 = vsub.f32 %v7319, %v7351
        %v7384 = vsub.f32 %v7320, %v7352
        %v7385 = vsub.f32 %v7321, %v7353
        %v7386 = vsub.f32 %v7322, %v7354
        %v7387 = vsub.f32 %v7323, %v7355
        %v7388 = vsub.f32 %v7324, %v7356
        %v7389 = vsub.f32 %v7325, %v7357
        %v7390 = vsub.f32 %v7326, %v7358
        %v7391 = vsub.f32 %v7327, %v7359
        %v7392 = vsub.f32 %v7328, %v7360
        %v7393 = vsub.f32 %v7329, %v7361
        %v7394 = vsub.f32 %v7330, %v7362
        %v7395 = vsub.f32 %v7331, %v7363
        %v7396 = vsub.f32 %v7332, %v7364
        %v7397 = vsub.f32 %v7333, %v7365
        %v7398 = vmax.f32 %v7366, 0.0
        %v7399 = vmax.f32 %v7367, 0.0
        %v7400 = vmax.f32 %v7368, 0.0
        %v7401 = vmax.f32 %v7369, 0.0
        %v7402 = vmax.f32 %v7370, 0.0
        %v7403 = vmax.f32 %v7371, 0.0
        %v7404 = vmax.f32 %v7372, 0.0
        %v7405 = vmax.f32 %v7373, 0.0
        %v7406 = vmax.f32 %v7374, 0.0
        %v7407 = vmax.f32 %v7375, 0.0
        %v7408 = vmax.f32 %v7376, 0.0
        %v7409 = vmax.f32 %v7377, 0.0
        %v7410 = vmax.f32 %v7378, 0.0
        %v7411 = vmax.f32 %v7379, 0.0
        %v7412 = vmax.f32 %v7380, 0.0
        %v7413 = vmax.f32 %v7381, 0.0
        %v7414 = vmax.f32 %v7382, 0.0
        %v7415 = vmax.f32 %v7383, 0.0
        %v7416 = vmax.f32 %v7384, 0.0
        %v7417 = vmax.f32 %v7385, 0.0
        %v7418 = vmax.f32 %v7386, 0.0
        %v7419 = vmax.f32 %v7387, 0.0
        %v7420 = vmax.f32 %v7388, 0.0
        %v7421 = vmax.f32 %v7389, 0.0
        %v7422 = vmax.f32 %v7390, 0.0
        %v7423 = vmax.f32 %v7391, 0.0
        %v7424 = vmax.f32 %v7392, 0.0
        %v7425 = vmax.f32 %v7393, 0.0
        %v7426 = vmax.f32 %v7394, 0.0
        %v7427 = vmax.f32 %v7395, 0.0
        %v7428 = vmax.f32 %v7396, 0.0
        %v7429 = vmax.f32 %v7397, 0.0
        %v7430 = vsub.f32 %v7078, %v7174
        %v7431 = vsub.f32 %v7079, %v7175
        %v7432 = vsub.f32 %v7080, %v7176
        %v7433 = vsub.f32 %v7081, %v7177
        %v7434 = vsub.f32 %v7082, %v7178
        %v7435 = vsub.f32 %v7083, %v7179
        %v7436 = vsub.f32 %v7084, %v7180
        %v7437 = vsub.f32 %v7085, %v7181
        %v7438 = vsub.f32 %v7086, %v7182
        %v7439 = vsub.f32 %v7087, %v7183
        %v7440 = vsub.f32 %v7088, %v7184
        %v7441 = vsub.f32 %v7089, %v7185
        %v7442 = vsub.f32 %v7090, %v7186
        %v7443 = vsub.f32 %v7091, %v7187
        %v7444 = vsub.f32 %v7092, %v7188
        %v7445 = vsub.f32 %v7093, %v7189
        %v7446 = vsub.f32 %v7094, %v7190
        %v7447 = vsub.f32 %v7095, %v7191
        %v7448 = vsub.f32 %v7096, %v7192
        %v7449 = vsub.f32 %v7097, %v7193
        %v7450 = vsub.f32 %v7098, %v7194
        %v7451 = vsub.f32 %v7099, %v7195
        %v7452 = vsub.f32 %v7100, %v7196
        %v7453 = vsub.f32 %v7101, %v7197
        %v7454 = vsub.f32 %v7102, %v7198
        %v7455 = vsub.f32 %v7103, %v7199
        %v7456 = vsub.f32 %v7104, %v7200
        %v7457 = vsub.f32 %v7105, %v7201
        %v7458 = vsub.f32 %v7106, %v7202
        %v7459 = vsub.f32 %v7107, %v7203
        %v7460 = vsub.f32 %v7108, %v7204
        %v7461 = vsub.f32 %v7109, %v7205
        %v7462 = vadd.f32 %v7398, 1e-05
        %v7463 = vadd.f32 %v7399, 1e-05
        %v7464 = vadd.f32 %v7400, 1e-05
        %v7465 = vadd.f32 %v7401, 1e-05
        %v7466 = vadd.f32 %v7402, 1e-05
        %v7467 = vadd.f32 %v7403, 1e-05
        %v7468 = vadd.f32 %v7404, 1e-05
        %v7469 = vadd.f32 %v7405, 1e-05
        %v7470 = vadd.f32 %v7406, 1e-05
        %v7471 = vadd.f32 %v7407, 1e-05
        %v7472 = vadd.f32 %v7408, 1e-05
        %v7473 = vadd.f32 %v7409, 1e-05
        %v7474 = vadd.f32 %v7410, 1e-05
        %v7475 = vadd.f32 %v7411, 1e-05
        %v7476 = vadd.f32 %v7412, 1e-05
        %v7477 = vadd.f32 %v7413, 1e-05
        %v7478 = vadd.f32 %v7414, 1e-05
        %v7479 = vadd.f32 %v7415, 1e-05
        %v7480 = vadd.f32 %v7416, 1e-05
        %v7481 = vadd.f32 %v7417, 1e-05
        %v7482 = vadd.f32 %v7418, 1e-05
        %v7483 = vadd.f32 %v7419, 1e-05
        %v7484 = vadd.f32 %v7420, 1e-05
        %v7485 = vadd.f32 %v7421, 1e-05
        %v7486 = vadd.f32 %v7422, 1e-05
        %v7487 = vadd.f32 %v7423, 1e-05
        %v7488 = vadd.f32 %v7424, 1e-05
        %v7489 = vadd.f32 %v7425, 1e-05
        %v7490 = vadd.f32 %v7426, 1e-05
        %v7491 = vadd.f32 %v7427, 1e-05
        %v7492 = vadd.f32 %v7428, 1e-05
        %v7493 = vadd.f32 %v7429, 1e-05
        %v7494 = vrsqrt.pop %v7462
        %v7495 = vrsqrt.pop %v7463
        %v7496 = vrsqrt.pop %v7464
        %v7497 = vrsqrt.pop %v7465
        %v7498 = vrsqrt.pop %v7466
        %v7499 = vrsqrt.pop %v7467
        %v7500 = vrsqrt.pop %v7468
        %v7501 = vrsqrt.pop %v7469
        %v7502 = vrsqrt.pop %v7470
        %v7503 = vrsqrt.pop %v7471
        %v7504 = vrsqrt.pop %v7472
        %v7505 = vrsqrt.pop %v7473
        %v7506 = vrsqrt.pop %v7474
        %v7507 = vrsqrt.pop %v7475
        %v7508 = vrsqrt.pop %v7476
        %v7509 = vrsqrt.pop %v7477
        %v7510 = vrsqrt.pop %v7478
        %v7511 = vrsqrt.pop %v7479
        %v7512 = vrsqrt.pop %v7480
        %v7513 = vrsqrt.pop %v7481
        %v7514 = vrsqrt.pop %v7482
        %v7515 = vrsqrt.pop %v7483
        %v7516 = vrsqrt.pop %v7484
        %v7517 = vrsqrt.pop %v7485
        %v7518 = vrsqrt.pop %v7486
        %v7519 = vrsqrt.pop %v7487
        %v7520 = vrsqrt.pop %v7488
        %v7521 = vrsqrt.pop %v7489
        %v7522 = vrsqrt.pop %v7490
        %v7523 = vrsqrt.pop %v7491
        %v7524 = vrsqrt.pop %v7492
        %v7525 = vrsqrt.pop %v7493
        %v7526 = vmul.f32 %v7430, %v7494
        %v7527 = vmul.f32 %v7431, %v7495
        %v7528 = vmul.f32 %v7432, %v7496
        %v7529 = vmul.f32 %v7433, %v7497
        %v7530 = vmul.f32 %v7434, %v7498
        %v7531 = vmul.f32 %v7435, %v7499
        %v7532 = vmul.f32 %v7436, %v7500
        %v7533 = vmul.f32 %v7437, %v7501
        %v7534 = vmul.f32 %v7438, %v7502
        %v7535 = vmul.f32 %v7439, %v7503
        %v7536 = vmul.f32 %v7440, %v7504
        %v7537 = vmul.f32 %v7441, %v7505
        %v7538 = vmul.f32 %v7442, %v7506
        %v7539 = vmul.f32 %v7443, %v7507
        %v7540 = vmul.f32 %v7444, %v7508
        %v7541 = vmul.f32 %v7445, %v7509
        %v7542 = vmul.f32 %v7446, %v7510
        %v7543 = vmul.f32 %v7447, %v7511
        %v7544 = vmul.f32 %v7448, %v7512
        %v7545 = vmul.f32 %v7449, %v7513
        %v7546 = vmul.f32 %v7450, %v7514
        %v7547 = vmul.f32 %v7451, %v7515
        %v7548 = vmul.f32 %v7452, %v7516
        %v7549 = vmul.f32 %v7453, %v7517
        %v7550 = vmul.f32 %v7454, %v7518
        %v7551 = vmul.f32 %v7455, %v7519
        %v7552 = vmul.f32 %v7456, %v7520
        %v7553 = vmul.f32 %v7457, %v7521
        %v7554 = vmul.f32 %v7458, %v7522
        %v7555 = vmul.f32 %v7459, %v7523
        %v7556 = vmul.f32 %v7460, %v7524
        %v7557 = vmul.f32 %v7461, %v7525
        %v7558 = vlaneseq
        %v7559 = vshrl.u32 %v7558, 7
        %v7560 = vsub.s32 2, %v7559
        %v7561 = vrot.slane %v1100, %v7560
        %v7562 = vmul.f32 %v7526, %v7561
        %v7563 = vmul.f32 %v7527, %v7561
        %v7564 = vmul.f32 %v7528, %v7561
        %v7565 = vmul.f32 %v7529, %v7561
        %v7566 = vmul.f32 %v7530, %v7561
        %v7567 = vmul.f32 %v7531, %v7561
        %v7568 = vmul.f32 %v7532, %v7561
        %v7569 = vmul.f32 %v7533, %v7561
        %v7570 = vmul.f32 %v7534, %v7561
        %v7571 = vmul.f32 %v7535, %v7561
        %v7572 = vmul.f32 %v7536, %v7561
        %v7573 = vmul.f32 %v7537, %v7561
        %v7574 = vmul.f32 %v7538, %v7561
        %v7575 = vmul.f32 %v7539, %v7561
        %v7576 = vmul.f32 %v7540, %v7561
        %v7577 = vmul.f32 %v7541, %v7561
        %v7578 = vmul.f32 %v7542, %v7561
        %v7579 = vmul.f32 %v7543, %v7561
        %v7580 = vmul.f32 %v7544, %v7561
        %v7581 = vmul.f32 %v7545, %v7561
        %v7582 = vmul.f32 %v7546, %v7561
        %v7583 = vmul.f32 %v7547, %v7561
        %v7584 = vmul.f32 %v7548, %v7561
        %v7585 = vmul.f32 %v7549, %v7561
        %v7586 = vmul.f32 %v7550, %v7561
        %v7587 = vmul.f32 %v7551, %v7561
        %v7588 = vmul.f32 %v7552, %v7561
        %v7589 = vmul.f32 %v7553, %v7561
        %v7590 = vmul.f32 %v7554, %v7561
        %v7591 = vmul.f32 %v7555, %v7561
        %v7592 = vmul.f32 %v7556, %v7561
        %v7593 = vmul.f32 %v7557, %v7561
        %v7594 = vlaneseq
        %v7595 = vshrl.u32 %v7594, 7
        %v7596 = vsub.s32 3, %v7595
        %v7597 = vrot.slane %v1100, %v7596
        %v7598 = vadd.f32 %v7562, %v7597
        %v7599 = vadd.f32 %v7563, %v7597
        %v7600 = vadd.f32 %v7564, %v7597
        %v7601 = vadd.f32 %v7565, %v7597
        %v7602 = vadd.f32 %v7566, %v7597
        %v7603 = vadd.f32 %v7567, %v7597
        %v7604 = vadd.f32 %v7568, %v7597
        %v7605 = vadd.f32 %v7569, %v7597
        %v7606 = vadd.f32 %v7570, %v7597
        %v7607 = vadd.f32 %v7571, %v7597
        %v7608 = vadd.f32 %v7572, %v7597
        %v7609 = vadd.f32 %v7573, %v7597
        %v7610 = vadd.f32 %v7574, %v7597
        %v7611 = vadd.f32 %v7575, %v7597
        %v7612 = vadd.f32 %v7576, %v7597
        %v7613 = vadd.f32 %v7577, %v7597
        %v7614 = vadd.f32 %v7578, %v7597
        %v7615 = vadd.f32 %v7579, %v7597
        %v7616 = vadd.f32 %v7580, %v7597
        %v7617 = vadd.f32 %v7581, %v7597
        %v7618 = vadd.f32 %v7582, %v7597
        %v7619 = vadd.f32 %v7583, %v7597
        %v7620 = vadd.f32 %v7584, %v7597
        %v7621 = vadd.f32 %v7585, %v7597
        %v7622 = vadd.f32 %v7586, %v7597
        %v7623 = vadd.f32 %v7587, %v7597
        %v7624 = vadd.f32 %v7588, %v7597
        %v7625 = vadd.f32 %v7589, %v7597
        %v7626 = vadd.f32 %v7590, %v7597
        %v7627 = vadd.f32 %v7591, %v7597
        %v7628 = vadd.f32 %v7592, %v7597
        %v7629 = vadd.f32 %v7593, %v7597
        %v7630 = vpack.c.bf16 %v7599, %v7598
        %v7631 = vpack.c.bf16 %v7601, %v7600
        %v7632 = vpack.c.bf16 %v7603, %v7602
        %v7633 = vpack.c.bf16 %v7605, %v7604
        %v7634 = vpack.c.bf16 %v7607, %v7606
        %v7635 = vpack.c.bf16 %v7609, %v7608
        %v7636 = vpack.c.bf16 %v7611, %v7610
        %v7637 = vpack.c.bf16 %v7613, %v7612
        %v7638 = vpack.c.bf16 %v7615, %v7614
        %v7639 = vpack.c.bf16 %v7617, %v7616
        %v7640 = vpack.c.bf16 %v7619, %v7618
        %v7641 = vpack.c.bf16 %v7621, %v7620
        %v7642 = vpack.c.bf16 %v7623, %v7622
        %v7643 = vpack.c.bf16 %v7625, %v7624
        %v7644 = vpack.c.bf16 %v7627, %v7626
        %v7645 = vpack.c.bf16 %v7629, %v7628
        %v7646 = vld [vmem:[%s491] sm:$0xf]
        %v7647 = vld [vmem:[%s491 + $0x4] sm:$0xf]
        %v7648 = vld [vmem:[%s491 + $0x8] sm:$0xf]
        %v7649 = vld [vmem:[%s491 + $0xc] sm:$0xf]
        %v7650 = vld [vmem:[%s491 + $0x10] sm:$0xf]
        %v7651 = vld [vmem:[%s491 + $0x14] sm:$0xf]
        %v7652 = vld [vmem:[%s491 + $0x18] sm:$0xf]
        %v7653 = vld [vmem:[%s491 + $0x1c] sm:$0xf]
        %v7654 = vld [vmem:[%s491 + $0x20] sm:$0xf]
        %v7655 = vld [vmem:[%s491 + $0x24] sm:$0xf]
        %v7656 = vld [vmem:[%s491 + $0x28] sm:$0xf]
        %v7657 = vld [vmem:[%s491 + $0x2c] sm:$0xf]
        %v7658 = vld [vmem:[%s491 + $0x30] sm:$0xf]
        %v7659 = vld [vmem:[%s491 + $0x34] sm:$0xf]
        %v7660 = vld [vmem:[%s491 + $0x38] sm:$0xf]
        %v7661 = vld [vmem:[%s491 + $0x3c] sm:$0xf]
        %v7662 = vlaneseq
        %v7663 = vshrl.u32 %v7662, 7
        %v7664 = vsub.s32 7, %v7663
        %v7665 = vrot.slane %v1100, %v7664
        %v7682 = vunpack.c.l.b16 %v7646
        %v7683 = vunpack.c.l.b16 %v7647
        %v7684 = vunpack.c.l.b16 %v7648
        %v7685 = vunpack.c.l.b16 %v7649
        %v7686 = vunpack.c.l.b16 %v7650
        %v7687 = vunpack.c.l.b16 %v7651
        %v7688 = vunpack.c.l.b16 %v7652
        %v7689 = vunpack.c.l.b16 %v7653
        %v7690 = vunpack.c.l.b16 %v7654
        %v7691 = vunpack.c.l.b16 %v7655
        %v7692 = vunpack.c.l.b16 %v7656
        %v7693 = vunpack.c.l.b16 %v7657
        %v7694 = vunpack.c.l.b16 %v7658
        %v7695 = vunpack.c.l.b16 %v7659
        %v7696 = vunpack.c.l.b16 %v7660
        %v7697 = vunpack.c.l.b16 %v7661
        %v7698 = vpack.c.b16 %v7683, %v7682
        %v7699 = vpack.c.b16 %v7685, %v7684
        %v7700 = vpack.c.b16 %v7687, %v7686
        %v7701 = vpack.c.b16 %v7689, %v7688
        %v7702 = vpack.c.b16 %v7691, %v7690
        %v7703 = vpack.c.b16 %v7693, %v7692
        %v7704 = vpack.c.b16 %v7695, %v7694
        %v7705 = vpack.c.b16 %v7697, %v7696
        %7714 = vmatprep.subr.bf16.mxu0 0
        %7715 = vmatpush1.bf16.msra.mxu0 %v7698
        %7716 = vmatprep.subr.bf16.mxu0 0
        %7717 = vmatpush1.bf16.msra.mxu0 %v7699
        %7718 = vmatprep.subr.bf16.mxu0 0
        %7719 = vmatpush1.bf16.msra.mxu0 %v7700
        %7720 = vmatprep.subr.bf16.mxu0 0
        %7721 = vmatpush1.bf16.msra.mxu0 %v7701
        %7722 = vmatprep.subr.bf16.mxu0 0
        %7723 = vmatpush1.bf16.msra.mxu0 %v7702
        %7724 = vmatprep.subr.bf16.mxu0 0
        %7725 = vmatpush1.bf16.msra.mxu0 %v7703
        %7726 = vmatprep.subr.bf16.mxu0 0
        %7727 = vmatpush1.bf16.msra.mxu0 %v7704
        %7728 = vmatprep.subr.bf16.mxu0 0
        %7729 = vmatpush1.bf16.msra.mxu0 %v7705
        %7730 = vmatprep.subr.bf16.mxu0 0
        %7731 = vmatpush1.bf16.msra.mxu0 0
        %7732 = vmatprep.subr.bf16.mxu0 0
        %7733 = vmatpush1.bf16.msra.mxu0 0
        %7734 = vmatprep.subr.bf16.mxu0 0
        %7735 = vmatpush1.bf16.msra.mxu0 0
        %7736 = vmatprep.subr.bf16.mxu0 0
        %7737 = vmatpush1.bf16.msra.mxu0 0
        %7738 = vmatprep.subr.bf16.mxu0 0
        %7739 = vmatpush1.bf16.msra.mxu0 0
        %7740 = vmatprep.subr.bf16.mxu0 0
        %7741 = vmatpush1.bf16.msra.mxu0 0
        %7742 = vmatprep.subr.bf16.mxu0 0
        %7743 = vmatpush1.bf16.msra.mxu0 0
        %7744 = vmatprep.subr.bf16.mxu0 0
        %7745 = vmatpush1.bf16.msra.mxu0 0
        %7746 = vmatprep.mubr.bf16.mxu0 0
        %7747 = vmatmul.mubr.bf16.gmra.mrb[0].mxu0 %v7630
        %v7748 = vpop.f32.mrb[0].mxu0
        %v7749 = vadd.f32 %v7665, %v7748
        %v7750 = vpop.f32.mrb[0].mxu0
        %v7751 = vpop.f32.mrb[0].mxu0
        %v7752 = vadd.f32 %v7665, %v7751
        %v7753 = vpop.f32.mrb[0].mxu0
        %7754 = vmatprep.mubr.bf16.mxu0 0
        %7755 = vmatmul.mubr.bf16.gmra.mrb[0].mxu0 %v7631
        %v7756 = vpop.f32.mrb[0].mxu0
        %v7757 = vadd.f32 %v7665, %v7756
        %v7758 = vpop.f32.mrb[0].mxu0
        %v7759 = vpop.f32.mrb[0].mxu0
        %v7760 = vadd.f32 %v7665, %v7759
        %v7761 = vpop.f32.mrb[0].mxu0
        %7762 = vmatprep.mubr.bf16.mxu0 0
        %7763 = vmatmul.mubr.bf16.gmra.mrb[0].mxu0 %v7632
        %v7764 = vpop.f32.mrb[0].mxu0
        %v7765 = vadd.f32 %v7665, %v7764
        %v7766 = vpop.f32.mrb[0].mxu0
        %v7767 = vpop.f32.mrb[0].mxu0
        %v7768 = vadd.f32 %v7665, %v7767
        %v7769 = vpop.f32.mrb[0].mxu0
        %7770 = vmatprep.mubr.bf16.mxu0 0
        %7771 = vmatmul.mubr.bf16.gmra.mrb[0].mxu0 %v7633
        %v7772 = vpop.f32.mrb[0].mxu0
        %v7773 = vadd.f32 %v7665, %v7772
        %v7774 = vpop.f32.mrb[0].mxu0
        %v7775 = vpop.f32.mrb[0].mxu0
        %v7776 = vadd.f32 %v7665, %v7775
        %v7777 = vpop.f32.mrb[0].mxu0
        %7778 = vmatprep.mubr.bf16.mxu0 0
        %7779 = vmatmul.mubr.bf16.gmra.mrb[0].mxu0 %v7634
        %v7780 = vpop.f32.mrb[0].mxu0
        %v7781 = vadd.f32 %v7665, %v7780
        %v7782 = vpop.f32.mrb[0].mxu0
        %v7783 = vpop.f32.mrb[0].mxu0
        %v7784 = vadd.f32 %v7665, %v7783
        %v7785 = vpop.f32.mrb[0].mxu0
        %7786 = vmatprep.mubr.bf16.mxu0 0
        %7787 = vmatmul.mubr.bf16.gmra.mrb[0].mxu0 %v7635
        %v7788 = vpop.f32.mrb[0].mxu0
        %v7789 = vadd.f32 %v7665, %v7788
        %v7790 = vpop.f32.mrb[0].mxu0
        %v7791 = vpop.f32.mrb[0].mxu0
        %v7792 = vadd.f32 %v7665, %v7791
        %v7793 = vpop.f32.mrb[0].mxu0
        %7794 = vmatprep.mubr.bf16.mxu0 0
        %7795 = vmatmul.mubr.bf16.gmra.mrb[0].mxu0 %v7636
        %v7796 = vpop.f32.mrb[0].mxu0
        %v7797 = vadd.f32 %v7665, %v7796
        %v7798 = vpop.f32.mrb[0].mxu0
        %v7799 = vpop.f32.mrb[0].mxu0
        %v7800 = vadd.f32 %v7665, %v7799
        %v7801 = vpop.f32.mrb[0].mxu0
        %7802 = vmatprep.mubr.bf16.mxu0 0
        %7803 = vmatmul.mubr.bf16.gmra.mrb[0].mxu0 %v7637
        %v7804 = vpop.f32.mrb[0].mxu0
        %v7805 = vadd.f32 %v7665, %v7804
        %v7806 = vpop.f32.mrb[0].mxu0
        %v7807 = vpop.f32.mrb[0].mxu0
        %v7808 = vadd.f32 %v7665, %v7807
        %v7809 = vpop.f32.mrb[0].mxu0
        %7810 = vmatprep.mubr.bf16.mxu0 0
        %7811 = vmatmul.mubr.bf16.gmra.mrb[0].mxu0 %v7638
        %v7812 = vpop.f32.mrb[0].mxu0
        %v7813 = vadd.f32 %v7665, %v7812
        %v7814 = vpop.f32.mrb[0].mxu0
        %v7815 = vpop.f32.mrb[0].mxu0
        %v7816 = vadd.f32 %v7665, %v7815
        %v7817 = vpop.f32.mrb[0].mxu0
        %7818 = vmatprep.mubr.bf16.mxu0 0
        %7819 = vmatmul.mubr.bf16.gmra.mrb[0].mxu0 %v7639
        %v7820 = vpop.f32.mrb[0].mxu0
        %v7821 = vadd.f32 %v7665, %v7820
        %v7822 = vpop.f32.mrb[0].mxu0
        %v7823 = vpop.f32.mrb[0].mxu0
        %v7824 = vadd.f32 %v7665, %v7823
        %v7825 = vpop.f32.mrb[0].mxu0
        %7826 = vmatprep.mubr.bf16.mxu0 0
        %7827 = vmatmul.mubr.bf16.gmra.mrb[0].mxu0 %v7640
        %v7828 = vpop.f32.mrb[0].mxu0
        %v7829 = vadd.f32 %v7665, %v7828
        %v7830 = vpop.f32.mrb[0].mxu0
        %v7831 = vpop.f32.mrb[0].mxu0
        %v7832 = vadd.f32 %v7665, %v7831
        %v7833 = vpop.f32.mrb[0].mxu0
        %7834 = vmatprep.mubr.bf16.mxu0 0
        %7835 = vmatmul.mubr.bf16.gmra.mrb[0].mxu0 %v7641
        %v7836 = vpop.f32.mrb[0].mxu0
        %v7837 = vadd.f32 %v7665, %v7836
        %v7838 = vpop.f32.mrb[0].mxu0
        %v7839 = vpop.f32.mrb[0].mxu0
        %v7840 = vadd.f32 %v7665, %v7839
        %v7841 = vpop.f32.mrb[0].mxu0
        %7842 = vmatprep.mubr.bf16.mxu0 0
        %7843 = vmatmul.mubr.bf16.gmra.mrb[0].mxu0 %v7642
        %v7844 = vpop.f32.mrb[0].mxu0
        %v7845 = vadd.f32 %v7665, %v7844
        %v7846 = vpop.f32.mrb[0].mxu0
        %v7847 = vpop.f32.mrb[0].mxu0
        %v7848 = vadd.f32 %v7665, %v7847
        %v7849 = vpop.f32.mrb[0].mxu0
        %7850 = vmatprep.mubr.bf16.mxu0 0
        %7851 = vmatmul.mubr.bf16.gmra.mrb[0].mxu0 %v7643
        %v7852 = vpop.f32.mrb[0].mxu0
        %v7853 = vadd.f32 %v7665, %v7852
        %v7854 = vpop.f32.mrb[0].mxu0
        %v7855 = vpop.f32.mrb[0].mxu0
        %v7856 = vadd.f32 %v7665, %v7855
        %v7857 = vpop.f32.mrb[0].mxu0
        %7858 = vmatprep.mubr.bf16.mxu0 0
        %7859 = vmatmul.mubr.bf16.gmra.mrb[0].mxu0 %v7644
        %v7860 = vpop.f32.mrb[0].mxu0
        %v7861 = vadd.f32 %v7665, %v7860
        %v7862 = vpop.f32.mrb[0].mxu0
        %v7863 = vpop.f32.mrb[0].mxu0
        %v7864 = vadd.f32 %v7665, %v7863
        %v7865 = vpop.f32.mrb[0].mxu0
        %7866 = vmatprep.mubr.bf16.mxu0 0
        %7867 = vmatmul.mubr.bf16.gmra.mrb[0].mxu0 %v7645
        %v7868 = vpop.f32.mrb[0].mxu0
        %v7869 = vadd.f32 %v7665, %v7868
        %v7870 = vpop.f32.mrb[0].mxu0
        %v7871 = vpop.f32.mrb[0].mxu0
        %v7872 = vadd.f32 %v7665, %v7871
        %v7873 = vpop.f32.mrb[0].mxu0
        %7874 = vdwg.mxu0
        %v7875 = vmul.f32 %v7749, %v7749
        %v7876 = vmul.f32 %v7752, %v7752
        %v7877 = vmul.f32 %v7757, %v7757
        %v7878 = vmul.f32 %v7760, %v7760
        %v7879 = vmul.f32 %v7765, %v7765
        %v7880 = vmul.f32 %v7768, %v7768
        %v7881 = vmul.f32 %v7773, %v7773
        %v7882 = vmul.f32 %v7776, %v7776
        %v7883 = vmul.f32 %v7781, %v7781
        %v7884 = vmul.f32 %v7784, %v7784
        %v7885 = vmul.f32 %v7789, %v7789
        %v7886 = vmul.f32 %v7792, %v7792
        %v7887 = vmul.f32 %v7797, %v7797
        %v7888 = vmul.f32 %v7800, %v7800
        %v7889 = vmul.f32 %v7805, %v7805
        %v7890 = vmul.f32 %v7808, %v7808
        %v7891 = vmul.f32 %v7813, %v7813
        %v7892 = vmul.f32 %v7816, %v7816
        %v7893 = vmul.f32 %v7821, %v7821
        %v7894 = vmul.f32 %v7824, %v7824
        %v7895 = vmul.f32 %v7829, %v7829
        %v7896 = vmul.f32 %v7832, %v7832
        %v7897 = vmul.f32 %v7837, %v7837
        %v7898 = vmul.f32 %v7840, %v7840
        %v7899 = vmul.f32 %v7845, %v7845
        %v7900 = vmul.f32 %v7848, %v7848
        %v7901 = vmul.f32 %v7853, %v7853
        %v7902 = vmul.f32 %v7856, %v7856
        %v7903 = vmul.f32 %v7861, %v7861
        %v7904 = vmul.f32 %v7864, %v7864
        %v7905 = vmul.f32 %v7869, %v7869
        %v7906 = vmul.f32 %v7872, %v7872
        %v7907 = vmul.f32 %v7749, %v7875
        %v7908 = vmul.f32 %v7752, %v7876
        %v7909 = vmul.f32 %v7757, %v7877
        %v7910 = vmul.f32 %v7760, %v7878
        %v7911 = vmul.f32 %v7765, %v7879
        %v7912 = vmul.f32 %v7768, %v7880
        %v7913 = vmul.f32 %v7773, %v7881
        %v7914 = vmul.f32 %v7776, %v7882
        %v7915 = vmul.f32 %v7781, %v7883
        %v7916 = vmul.f32 %v7784, %v7884
        %v7917 = vmul.f32 %v7789, %v7885
        %v7918 = vmul.f32 %v7792, %v7886
        %v7919 = vmul.f32 %v7797, %v7887
        %v7920 = vmul.f32 %v7800, %v7888
        %v7921 = vmul.f32 %v7805, %v7889
        %v7922 = vmul.f32 %v7808, %v7890
        %v7923 = vmul.f32 %v7813, %v7891
        %v7924 = vmul.f32 %v7816, %v7892
        %v7925 = vmul.f32 %v7821, %v7893
        %v7926 = vmul.f32 %v7824, %v7894
        %v7927 = vmul.f32 %v7829, %v7895
        %v7928 = vmul.f32 %v7832, %v7896
        %v7929 = vmul.f32 %v7837, %v7897
        %v7930 = vmul.f32 %v7840, %v7898
        %v7931 = vmul.f32 %v7845, %v7899
        %v7932 = vmul.f32 %v7848, %v7900
        %v7933 = vmul.f32 %v7853, %v7901
        %v7934 = vmul.f32 %v7856, %v7902
        %v7935 = vmul.f32 %v7861, %v7903
        %v7936 = vmul.f32 %v7864, %v7904
        %v7937 = vmul.f32 %v7869, %v7905
        %v7938 = vmul.f32 %v7872, %v7906
        %v7939 = vmul.f32 %v7907, 0.044715
        %v7940 = vmul.f32 %v7908, 0.044715
        %v7941 = vmul.f32 %v7909, 0.044715
        %v7942 = vmul.f32 %v7910, 0.044715
        %v7943 = vmul.f32 %v7911, 0.044715
        %v7944 = vmul.f32 %v7912, 0.044715
        %v7945 = vmul.f32 %v7913, 0.044715
        %v7946 = vmul.f32 %v7914, 0.044715
        %v7947 = vmul.f32 %v7915, 0.044715
        %v7948 = vmul.f32 %v7916, 0.044715
        %v7949 = vmul.f32 %v7917, 0.044715
        %v7950 = vmul.f32 %v7918, 0.044715
        %v7951 = vmul.f32 %v7919, 0.044715
        %v7952 = vmul.f32 %v7920, 0.044715
        %v7953 = vmul.f32 %v7921, 0.044715
        %v7954 = vmul.f32 %v7922, 0.044715
        %v7955 = vmul.f32 %v7923, 0.044715
        %v7956 = vmul.f32 %v7924, 0.044715
        %v7957 = vmul.f32 %v7925, 0.044715
        %v7958 = vmul.f32 %v7926, 0.044715
        %v7959 = vmul.f32 %v7927, 0.044715
        %v7960 = vmul.f32 %v7928, 0.044715
        %v7961 = vmul.f32 %v7929, 0.044715
        %v7962 = vmul.f32 %v7930, 0.044715
        %v7963 = vmul.f32 %v7931, 0.044715
        %v7964 = vmul.f32 %v7932, 0.044715
        %v7965 = vmul.f32 %v7933, 0.044715
        %v7966 = vmul.f32 %v7934, 0.044715
        %v7967 = vmul.f32 %v7935, 0.044715
        %v7968 = vmul.f32 %v7936, 0.044715
        %v7969 = vmul.f32 %v7937, 0.044715
        %v7970 = vmul.f32 %v7938, 0.044715
        %v7971 = vadd.f32 %v7749, %v7939
        %v7972 = vadd.f32 %v7752, %v7940
        %v7973 = vadd.f32 %v7757, %v7941
        %v7974 = vadd.f32 %v7760, %v7942
        %v7975 = vadd.f32 %v7765, %v7943
        %v7976 = vadd.f32 %v7768, %v7944
        %v7977 = vadd.f32 %v7773, %v7945
        %v7978 = vadd.f32 %v7776, %v7946
        %v7979 = vadd.f32 %v7781, %v7947
        %v7980 = vadd.f32 %v7784, %v7948
        %v7981 = vadd.f32 %v7789, %v7949
        %v7982 = vadd.f32 %v7792, %v7950
        %v7983 = vadd.f32 %v7797, %v7951
        %v7984 = vadd.f32 %v7800, %v7952
        %v7985 = vadd.f32 %v7805, %v7953
        %v7986 = vadd.f32 %v7808, %v7954
        %v7987 = vadd.f32 %v7813, %v7955
        %v7988 = vadd.f32 %v7816, %v7956
        %v7989 = vadd.f32 %v7821, %v7957
        %v7990 = vadd.f32 %v7824, %v7958
        %v7991 = vadd.f32 %v7829, %v7959
        %v7992 = vadd.f32 %v7832, %v7960
        %v7993 = vadd.f32 %v7837, %v7961
        %v7994 = vadd.f32 %v7840, %v7962
        %v7995 = vadd.f32 %v7845, %v7963
        %v7996 = vadd.f32 %v7848, %v7964
        %v7997 = vadd.f32 %v7853, %v7965
        %v7998 = vadd.f32 %v7856, %v7966
        %v7999 = vadd.f32 %v7861, %v7967
        %v8000 = vadd.f32 %v7864, %v7968
        %v8001 = vadd.f32 %v7869, %v7969
        %v8002 = vadd.f32 %v7872, %v7970
        %v8003 = vmul.f32 %v7971, 0.7978846
        %v8004 = vmul.f32 %v7972, 0.7978846
        %v8005 = vmul.f32 %v7973, 0.7978846
        %v8006 = vmul.f32 %v7974, 0.7978846
        %v8007 = vmul.f32 %v7975, 0.7978846
        %v8008 = vmul.f32 %v7976, 0.7978846
        %v8009 = vmul.f32 %v7977, 0.7978846
        %v8010 = vmul.f32 %v7978, 0.7978846
        %v8011 = vmul.f32 %v7979, 0.7978846
        %v8012 = vmul.f32 %v7980, 0.7978846
        %v8013 = vmul.f32 %v7981, 0.7978846
        %v8014 = vmul.f32 %v7982, 0.7978846
        %v8015 = vmul.f32 %v7983, 0.7978846
        %v8016 = vmul.f32 %v7984, 0.7978846
        %v8017 = vmul.f32 %v7985, 0.7978846
        %v8018 = vmul.f32 %v7986, 0.7978846
        %v8019 = vmul.f32 %v7987, 0.7978846
        %v8020 = vmul.f32 %v7988, 0.7978846
        %v8021 = vmul.f32 %v7989, 0.7978846
        %v8022 = vmul.f32 %v7990, 0.7978846
        %v8023 = vmul.f32 %v7991, 0.7978846
        %v8024 = vmul.f32 %v7992, 0.7978846
        %v8025 = vmul.f32 %v7993, 0.7978846
        %v8026 = vmul.f32 %v7994, 0.7978846
        %v8027 = vmul.f32 %v7995, 0.7978846
        %v8028 = vmul.f32 %v7996, 0.7978846
        %v8029 = vmul.f32 %v7997, 0.7978846
        %v8030 = vmul.f32 %v7998, 0.7978846
        %v8031 = vmul.f32 %v7999, 0.7978846
        %v8032 = vmul.f32 %v8000, 0.7978846
        %v8033 = vmul.f32 %v8001, 0.7978846
        %v8034 = vmul.f32 %v8002, 0.7978846
        %v8035 = vtanh.pop %v8003
        %v8036 = vtanh.pop %v8004
        %v8037 = vtanh.pop %v8005
        %v8038 = vtanh.pop %v8006
        %v8039 = vtanh.pop %v8007
        %v8040 = vtanh.pop %v8008
        %v8041 = vtanh.pop %v8009
        %v8042 = vtanh.pop %v8010
        %v8043 = vtanh.pop %v8011
        %v8044 = vtanh.pop %v8012
        %v8045 = vtanh.pop %v8013
        %v8046 = vtanh.pop %v8014
        %v8047 = vtanh.pop %v8015
        %v8048 = vtanh.pop %v8016
        %v8049 = vtanh.pop %v8017
        %v8050 = vtanh.pop %v8018
        %v8051 = vtanh.pop %v8019
        %v8052 = vtanh.pop %v8020
        %v8053 = vtanh.pop %v8021
        %v8054 = vtanh.pop %v8022
        %v8055 = vtanh.pop %v8023
        %v8056 = vtanh.pop %v8024
        %v8057 = vtanh.pop %v8025
        %v8058 = vtanh.pop %v8026
        %v8059 = vtanh.pop %v8027
        %v8060 = vtanh.pop %v8028
        %v8061 = vtanh.pop %v8029
        %v8062 = vtanh.pop %v8030
        %v8063 = vtanh.pop %v8031
        %v8064 = vtanh.pop %v8032
        %v8065 = vtanh.pop %v8033
        %v8066 = vtanh.pop %v8034
        %v8067 = vadd.f32 %v8035, 1.0
        %v8068 = vadd.f32 %v8036, 1.0
        %v8069 = vadd.f32 %v8037, 1.0
        %v8070 = vadd.f32 %v8038, 1.0
        %v8071 = vadd.f32 %v8039, 1.0
        %v8072 = vadd.f32 %v8040, 1.0
        %v8073 = vadd.f32 %v8041, 1.0
        %v8074 = vadd.f32 %v8042, 1.0
        %v8075 = vadd.f32 %v8043, 1.0
        %v8076 = vadd.f32 %v8044, 1.0
        %v8077 = vadd.f32 %v8045, 1.0
        %v8078 = vadd.f32 %v8046, 1.0
        %v8079 = vadd.f32 %v8047, 1.0
        %v8080 = vadd.f32 %v8048, 1.0
        %v8081 = vadd.f32 %v8049, 1.0
        %v8082 = vadd.f32 %v8050, 1.0
        %v8083 = vadd.f32 %v8051, 1.0
        %v8084 = vadd.f32 %v8052, 1.0
        %v8085 = vadd.f32 %v8053, 1.0
        %v8086 = vadd.f32 %v8054, 1.0
        %v8087 = vadd.f32 %v8055, 1.0
        %v8088 = vadd.f32 %v8056, 1.0
        %v8089 = vadd.f32 %v8057, 1.0
        %v8090 = vadd.f32 %v8058, 1.0
        %v8091 = vadd.f32 %v8059, 1.0
        %v8092 = vadd.f32 %v8060, 1.0
        %v8093 = vadd.f32 %v8061, 1.0
        %v8094 = vadd.f32 %v8062, 1.0
        %v8095 = vadd.f32 %v8063, 1.0
        %v8096 = vadd.f32 %v8064, 1.0
        %v8097 = vadd.f32 %v8065, 1.0
        %v8098 = vadd.f32 %v8066, 1.0
        %v8099 = vmul.f32 %v8067, 0.5
        %v8100 = vmul.f32 %v8068, 0.5
        %v8101 = vmul.f32 %v8069, 0.5
        %v8102 = vmul.f32 %v8070, 0.5
        %v8103 = vmul.f32 %v8071, 0.5
        %v8104 = vmul.f32 %v8072, 0.5
        %v8105 = vmul.f32 %v8073, 0.5
        %v8106 = vmul.f32 %v8074, 0.5
        %v8107 = vmul.f32 %v8075, 0.5
        %v8108 = vmul.f32 %v8076, 0.5
        %v8109 = vmul.f32 %v8077, 0.5
        %v8110 = vmul.f32 %v8078, 0.5
        %v8111 = vmul.f32 %v8079, 0.5
        %v8112 = vmul.f32 %v8080, 0.5
        %v8113 = vmul.f32 %v8081, 0.5
        %v8114 = vmul.f32 %v8082, 0.5
        %v8115 = vmul.f32 %v8083, 0.5
        %v8116 = vmul.f32 %v8084, 0.5
        %v8117 = vmul.f32 %v8085, 0.5
        %v8118 = vmul.f32 %v8086, 0.5
        %v8119 = vmul.f32 %v8087, 0.5
        %v8120 = vmul.f32 %v8088, 0.5
        %v8121 = vmul.f32 %v8089, 0.5
        %v8122 = vmul.f32 %v8090, 0.5
        %v8123 = vmul.f32 %v8091, 0.5
        %v8124 = vmul.f32 %v8092, 0.5
        %v8125 = vmul.f32 %v8093, 0.5
        %v8126 = vmul.f32 %v8094, 0.5
        %v8127 = vmul.f32 %v8095, 0.5
        %v8128 = vmul.f32 %v8096, 0.5
        %v8129 = vmul.f32 %v8097, 0.5
        %v8130 = vmul.f32 %v8098, 0.5
        %v8131 = vmul.f32 %v7749, %v8099
        %v8132 = vmul.f32 %v7752, %v8100
        %v8133 = vmul.f32 %v7757, %v8101
        %v8134 = vmul.f32 %v7760, %v8102
        %v8135 = vmul.f32 %v7765, %v8103
        %v8136 = vmul.f32 %v7768, %v8104
        %v8137 = vmul.f32 %v7773, %v8105
        %v8138 = vmul.f32 %v7776, %v8106
        %v8139 = vmul.f32 %v7781, %v8107
        %v8140 = vmul.f32 %v7784, %v8108
        %v8141 = vmul.f32 %v7789, %v8109
        %v8142 = vmul.f32 %v7792, %v8110
        %v8143 = vmul.f32 %v7797, %v8111
        %v8144 = vmul.f32 %v7800, %v8112
        %v8145 = vmul.f32 %v7805, %v8113
        %v8146 = vmul.f32 %v7808, %v8114
        %v8147 = vmul.f32 %v7813, %v8115
        %v8148 = vmul.f32 %v7816, %v8116
        %v8149 = vmul.f32 %v7821, %v8117
        %v8150 = vmul.f32 %v7824, %v8118
        %v8151 = vmul.f32 %v7829, %v8119
        %v8152 = vmul.f32 %v7832, %v8120
        %v8153 = vmul.f32 %v7837, %v8121
        %v8154 = vmul.f32 %v7840, %v8122
        %v8155 = vmul.f32 %v7845, %v8123
        %v8156 = vmul.f32 %v7848, %v8124
        %v8157 = vmul.f32 %v7853, %v8125
        %v8158 = vmul.f32 %v7856, %v8126
        %v8159 = vmul.f32 %v7861, %v8127
        %v8160 = vmul.f32 %v7864, %v8128
        %v8161 = vmul.f32 %v7869, %v8129
        %v8162 = vmul.f32 %v7872, %v8130
        %v8163 = vpack.c.bf16 %v8132, %v8131
        %v8164 = vpack.c.bf16 %v8134, %v8133
        %v8165 = vpack.c.bf16 %v8136, %v8135
        %v8166 = vpack.c.bf16 %v8138, %v8137
        %v8167 = vpack.c.bf16 %v8140, %v8139
        %v8168 = vpack.c.bf16 %v8142, %v8141
        %v8169 = vpack.c.bf16 %v8144, %v8143
        %v8170 = vpack.c.bf16 %v8146, %v8145
        %v8171 = vpack.c.bf16 %v8148, %v8147
        %v8172 = vpack.c.bf16 %v8150, %v8149
        %v8173 = vpack.c.bf16 %v8152, %v8151
        %v8174 = vpack.c.bf16 %v8154, %v8153
        %v8175 = vpack.c.bf16 %v8156, %v8155
        %v8176 = vpack.c.bf16 %v8158, %v8157
        %v8177 = vpack.c.bf16 %v8160, %v8159
        %v8178 = vpack.c.bf16 %v8162, %v8161
        %v8179 = vld [vmem:[%s496] sm:$0xf]
        %v8180 = vld [vmem:[%s496 + $0x4] sm:$0xf]
        %v8181 = vld [vmem:[%s496 + $0x8] sm:$0xf]
        %v8182 = vld [vmem:[%s496 + $0xc] sm:$0xf]
        %v8183 = vld [vmem:[%s496 + $0x10] sm:$0xf]
        %v8184 = vld [vmem:[%s496 + $0x14] sm:$0xf]
        %v8185 = vld [vmem:[%s496 + $0x18] sm:$0xf]
        %v8186 = vld [vmem:[%s496 + $0x1c] sm:$0xf]
        %v8187 = vld [vmem:[%s496 + $0x20] sm:$0xf]
        %v8188 = vld [vmem:[%s496 + $0x24] sm:$0xf]
        %v8189 = vld [vmem:[%s496 + $0x28] sm:$0xf]
        %v8190 = vld [vmem:[%s496 + $0x2c] sm:$0xf]
        %v8191 = vld [vmem:[%s496 + $0x30] sm:$0xf]
        %v8192 = vld [vmem:[%s496 + $0x34] sm:$0xf]
        %v8193 = vld [vmem:[%s496 + $0x38] sm:$0xf]
        %v8194 = vld [vmem:[%s496 + $0x3c] sm:$0xf]
        %v8195 = vlaneseq
        %v8196 = vshrl.u32 %v8195, 7
        %v8197 = vsub.s32 5, %v8196
        %v8198 = vrot.slane %v1100, %v8197
        %v8215 = vunpack.c.l.b16 %v8179
        %v8216 = vunpack.c.l.b16 %v8180
        %v8217 = vunpack.c.l.b16 %v8181
        %v8218 = vunpack.c.l.b16 %v8182
        %v8219 = vunpack.c.l.b16 %v8183
        %v8220 = vunpack.c.l.b16 %v8184
        %v8221 = vunpack.c.l.b16 %v8185
        %v8222 = vunpack.c.l.b16 %v8186
        %v8223 = vunpack.c.l.b16 %v8187
        %v8224 = vunpack.c.l.b16 %v8188
        %v8225 = vunpack.c.l.b16 %v8189
        %v8226 = vunpack.c.l.b16 %v8190
        %v8227 = vunpack.c.l.b16 %v8191
        %v8228 = vunpack.c.l.b16 %v8192
        %v8229 = vunpack.c.l.b16 %v8193
        %v8230 = vunpack.c.l.b16 %v8194
        %v8231 = vpack.c.b16 %v8216, %v8215
        %v8232 = vpack.c.b16 %v8218, %v8217
        %v8233 = vpack.c.b16 %v8220, %v8219
        %v8234 = vpack.c.b16 %v8222, %v8221
        %v8235 = vpack.c.b16 %v8224, %v8223
        %v8236 = vpack.c.b16 %v8226, %v8225
        %v8237 = vpack.c.b16 %v8228, %v8227
        %v8238 = vpack.c.b16 %v8230, %v8229
        %8247 = vmatprep.subr.bf16.mxu0 0
        %8248 = vmatpush1.bf16.msra.mxu0 %v8231
        %8249 = vmatprep.subr.bf16.mxu0 0
        %8250 = vmatpush1.bf16.msra.mxu0 %v8232
        %8251 = vmatprep.subr.bf16.mxu0 0
        %8252 = vmatpush1.bf16.msra.mxu0 %v8233
        %8253 = vmatprep.subr.bf16.mxu0 0
        %8254 = vmatpush1.bf16.msra.mxu0 %v8234
        %8255 = vmatprep.subr.bf16.mxu0 0
        %8256 = vmatpush1.bf16.msra.mxu0 %v8235
        %8257 = vmatprep.subr.bf16.mxu0 0
        %8258 = vmatpush1.bf16.msra.mxu0 %v8236
        %8259 = vmatprep.subr.bf16.mxu0 0
        %8260 = vmatpush1.bf16.msra.mxu0 %v8237
        %8261 = vmatprep.subr.bf16.mxu0 0
        %8262 = vmatpush1.bf16.msra.mxu0 %v8238
        %8263 = vmatprep.subr.bf16.mxu0 0
        %8264 = vmatpush1.bf16.msra.mxu0 0
        %8265 = vmatprep.subr.bf16.mxu0 0
        %8266 = vmatpush1.bf16.msra.mxu0 0
        %8267 = vmatprep.subr.bf16.mxu0 0
        %8268 = vmatpush1.bf16.msra.mxu0 0
        %8269 = vmatprep.subr.bf16.mxu0 0
        %8270 = vmatpush1.bf16.msra.mxu0 0
        %8271 = vmatprep.subr.bf16.mxu0 0
        %8272 = vmatpush1.bf16.msra.mxu0 0
        %8273 = vmatprep.subr.bf16.mxu0 0
        %8274 = vmatpush1.bf16.msra.mxu0 0
        %8275 = vmatprep.subr.bf16.mxu0 0
        %8276 = vmatpush1.bf16.msra.mxu0 0
        %8277 = vmatprep.subr.bf16.mxu0 0
        %8278 = vmatpush1.bf16.msra.mxu0 0
        %8279 = vmatprep.mubr.bf16.mxu0 0
        %8280 = vmatmul.mubr.bf16.gmra.mrb[0].mxu0 %v8163
        %v8281 = vpop.f32.mrb[0].mxu0
        %v8282 = vadd.f32 %v8198, %v8281
        %v8283 = vpop.f32.mrb[0].mxu0
        %v8284 = vpop.f32.mrb[0].mxu0
        %v8285 = vadd.f32 %v8198, %v8284
        %v8286 = vpop.f32.mrb[0].mxu0
        %8287 = vmatprep.mubr.bf16.mxu0 0
        %8288 = vmatmul.mubr.bf16.gmra.mrb[0].mxu0 %v8164
        %v8289 = vpop.f32.mrb[0].mxu0
        %v8290 = vadd.f32 %v8198, %v8289
        %v8291 = vpop.f32.mrb[0].mxu0
        %v8292 = vpop.f32.mrb[0].mxu0
        %v8293 = vadd.f32 %v8198, %v8292
        %v8294 = vpop.f32.mrb[0].mxu0
        %8295 = vmatprep.mubr.bf16.mxu0 0
        %8296 = vmatmul.mubr.bf16.gmra.mrb[0].mxu0 %v8165
        %v8297 = vpop.f32.mrb[0].mxu0
        %v8298 = vadd.f32 %v8198, %v8297
        %v8299 = vpop.f32.mrb[0].mxu0
        %v8300 = vpop.f32.mrb[0].mxu0
        %v8301 = vadd.f32 %v8198, %v8300
        %v8302 = vpop.f32.mrb[0].mxu0
        %8303 = vmatprep.mubr.bf16.mxu0 0
        %8304 = vmatmul.mubr.bf16.gmra.mrb[0].mxu0 %v8166
        %v8305 = vpop.f32.mrb[0].mxu0
        %v8306 = vadd.f32 %v8198, %v8305
        %v8307 = vpop.f32.mrb[0].mxu0
        %v8308 = vpop.f32.mrb[0].mxu0
        %v8309 = vadd.f32 %v8198, %v8308
        %v8310 = vpop.f32.mrb[0].mxu0
        %8311 = vmatprep.mubr.bf16.mxu0 0
        %8312 = vmatmul.mubr.bf16.gmra.mrb[0].mxu0 %v8167
        %v8313 = vpop.f32.mrb[0].mxu0
        %v8314 = vadd.f32 %v8198, %v8313
        %v8315 = vpop.f32.mrb[0].mxu0
        %v8316 = vpop.f32.mrb[0].mxu0
        %v8317 = vadd.f32 %v8198, %v8316
        %v8318 = vpop.f32.mrb[0].mxu0
        %8319 = vmatprep.mubr.bf16.mxu0 0
        %8320 = vmatmul.mubr.bf16.gmra.mrb[0].mxu0 %v8168
        %v8321 = vpop.f32.mrb[0].mxu0
        %v8322 = vadd.f32 %v8198, %v8321
        %v8323 = vpop.f32.mrb[0].mxu0
        %v8324 = vpop.f32.mrb[0].mxu0
        %v8325 = vadd.f32 %v8198, %v8324
        %v8326 = vpop.f32.mrb[0].mxu0
        %8327 = vmatprep.mubr.bf16.mxu0 0
        %8328 = vmatmul.mubr.bf16.gmra.mrb[0].mxu0 %v8169
        %v8329 = vpop.f32.mrb[0].mxu0
        %v8330 = vadd.f32 %v8198, %v8329
        %v8331 = vpop.f32.mrb[0].mxu0
        %v8332 = vpop.f32.mrb[0].mxu0
        %v8333 = vadd.f32 %v8198, %v8332
        %v8334 = vpop.f32.mrb[0].mxu0
        %8335 = vmatprep.mubr.bf16.mxu0 0
        %8336 = vmatmul.mubr.bf16.gmra.mrb[0].mxu0 %v8170
        %v8337 = vpop.f32.mrb[0].mxu0
        %v8338 = vadd.f32 %v8198, %v8337
        %v8339 = vpop.f32.mrb[0].mxu0
        %v8340 = vpop.f32.mrb[0].mxu0
        %v8341 = vadd.f32 %v8198, %v8340
        %v8342 = vpop.f32.mrb[0].mxu0
        %8343 = vmatprep.mubr.bf16.mxu0 0
        %8344 = vmatmul.mubr.bf16.gmra.mrb[0].mxu0 %v8171
        %v8345 = vpop.f32.mrb[0].mxu0
        %v8346 = vadd.f32 %v8198, %v8345
        %v8347 = vpop.f32.mrb[0].mxu0
        %v8348 = vpop.f32.mrb[0].mxu0
        %v8349 = vadd.f32 %v8198, %v8348
        %v8350 = vpop.f32.mrb[0].mxu0
        %8351 = vmatprep.mubr.bf16.mxu0 0
        %8352 = vmatmul.mubr.bf16.gmra.mrb[0].mxu0 %v8172
        %v8353 = vpop.f32.mrb[0].mxu0
        %v8354 = vadd.f32 %v8198, %v8353
        %v8355 = vpop.f32.mrb[0].mxu0
        %v8356 = vpop.f32.mrb[0].mxu0
        %v8357 = vadd.f32 %v8198, %v8356
        %v8358 = vpop.f32.mrb[0].mxu0
        %8359 = vmatprep.mubr.bf16.mxu0 0
        %8360 = vmatmul.mubr.bf16.gmra.mrb[0].mxu0 %v8173
        %v8361 = vpop.f32.mrb[0].mxu0
        %v8362 = vadd.f32 %v8198, %v8361
        %v8363 = vpop.f32.mrb[0].mxu0
        %v8364 = vpop.f32.mrb[0].mxu0
        %v8365 = vadd.f32 %v8198, %v8364
        %v8366 = vpop.f32.mrb[0].mxu0
        %8367 = vmatprep.mubr.bf16.mxu0 0
        %8368 = vmatmul.mubr.bf16.gmra.mrb[0].mxu0 %v8174
        %v8369 = vpop.f32.mrb[0].mxu0
        %v8370 = vadd.f32 %v8198, %v8369
        %v8371 = vpop.f32.mrb[0].mxu0
        %v8372 = vpop.f32.mrb[0].mxu0
        %v8373 = vadd.f32 %v8198, %v8372
        %v8374 = vpop.f32.mrb[0].mxu0
        %8375 = vmatprep.mubr.bf16.mxu0 0
        %8376 = vmatmul.mubr.bf16.gmra.mrb[0].mxu0 %v8175
        %v8377 = vpop.f32.mrb[0].mxu0
        %v8378 = vadd.f32 %v8198, %v8377
        %v8379 = vpop.f32.mrb[0].mxu0
        %v8380 = vpop.f32.mrb[0].mxu0
        %v8381 = vadd.f32 %v8198, %v8380
        %v8382 = vpop.f32.mrb[0].mxu0
        %8383 = vmatprep.mubr.bf16.mxu0 0
        %8384 = vmatmul.mubr.bf16.gmra.mrb[0].mxu0 %v8176
        %v8385 = vpop.f32.mrb[0].mxu0
        %v8386 = vadd.f32 %v8198, %v8385
        %v8387 = vpop.f32.mrb[0].mxu0
        %v8388 = vpop.f32.mrb[0].mxu0
        %v8389 = vadd.f32 %v8198, %v8388
        %v8390 = vpop.f32.mrb[0].mxu0
        %8391 = vmatprep.mubr.bf16.mxu0 0
        %8392 = vmatmul.mubr.bf16.gmra.mrb[0].mxu0 %v8177
        %v8393 = vpop.f32.mrb[0].mxu0
        %v8394 = vadd.f32 %v8198, %v8393
        %v8395 = vpop.f32.mrb[0].mxu0
        %v8396 = vpop.f32.mrb[0].mxu0
        %v8397 = vadd.f32 %v8198, %v8396
        %v8398 = vpop.f32.mrb[0].mxu0
        %8399 = vmatprep.mubr.bf16.mxu0 0
        %8400 = vmatmul.mubr.bf16.gmra.mrb[0].mxu0 %v8178
        %v8401 = vpop.f32.mrb[0].mxu0
        %v8402 = vadd.f32 %v8198, %v8401
        %v8403 = vpop.f32.mrb[0].mxu0
        %v8404 = vpop.f32.mrb[0].mxu0
        %v8405 = vadd.f32 %v8198, %v8404
        %v8406 = vpop.f32.mrb[0].mxu0
        %8407 = vdwg.mxu0
        %v8408 = vadd.f32 %v7078, %v8282
        %v8409 = vadd.f32 %v7079, %v8285
        %v8410 = vadd.f32 %v7080, %v8290
        %v8411 = vadd.f32 %v7081, %v8293
        %v8412 = vadd.f32 %v7082, %v8298
        %v8413 = vadd.f32 %v7083, %v8301
        %v8414 = vadd.f32 %v7084, %v8306
        %v8415 = vadd.f32 %v7085, %v8309
        %v8416 = vadd.f32 %v7086, %v8314
        %v8417 = vadd.f32 %v7087, %v8317
        %v8418 = vadd.f32 %v7088, %v8322
        %v8419 = vadd.f32 %v7089, %v8325
        %v8420 = vadd.f32 %v7090, %v8330
        %v8421 = vadd.f32 %v7091, %v8333
        %v8422 = vadd.f32 %v7092, %v8338
        %v8423 = vadd.f32 %v7093, %v8341
        %v8424 = vadd.f32 %v7094, %v8346
        %v8425 = vadd.f32 %v7095, %v8349
        %v8426 = vadd.f32 %v7096, %v8354
        %v8427 = vadd.f32 %v7097, %v8357
        %v8428 = vadd.f32 %v7098, %v8362
        %v8429 = vadd.f32 %v7099, %v8365
        %v8430 = vadd.f32 %v7100, %v8370
        %v8431 = vadd.f32 %v7101, %v8373
        %v8432 = vadd.f32 %v7102, %v8378
        %v8433 = vadd.f32 %v7103, %v8381
        %v8434 = vadd.f32 %v7104, %v8386
        %v8435 = vadd.f32 %v7105, %v8389
        %v8436 = vadd.f32 %v7106, %v8394
        %v8437 = vadd.f32 %v7107, %v8397
        %v8438 = vadd.f32 %v7108, %v8402
        %v8439 = vadd.f32 %v7109, %v8405
        %v8440 = vlaneseq
        %v8441 = vshrl.u32 %v8440, 7
        %v8442 = vadd.s32 %v8441, 8
        %v8443 = vadd.s32 %v8441, 16
        %v8444 = vadd.s32 %v8441, 24
        %v8445 = vadd.s32 %v8441, 32
        %v8446 = vadd.s32 %v8441, 40
        %v8447 = vadd.s32 %v8441, 48
        %v8448 = vadd.s32 %v8441, 56
        %v8449 = vadd.s32 %v8441, 64
        %v8450 = vadd.s32 %v8441, 72
        %v8451 = vadd.s32 %v8441, 80
        %v8452 = vadd.s32 %v8441, 88
        %v8453 = vadd.s32 %v8441, 96
        %v8454 = vadd.s32 %v8441, 104
        %v8455 = vadd.s32 %v8441, 112
        %v8456 = vadd.s32 %v8441, 120
        %vm8457 = vcmp.lt.s32.totalorder %v8441, 5
        %vm8458 = vcmp.lt.s32.totalorder %v8442, 5
        %vm8459 = vcmp.lt.s32.totalorder %v8443, 5
        %vm8460 = vcmp.lt.s32.totalorder %v8444, 5
        %vm8461 = vcmp.lt.s32.totalorder %v8445, 5
        %vm8462 = vcmp.lt.s32.totalorder %v8446, 5
        %vm8463 = vcmp.lt.s32.totalorder %v8447, 5
        %vm8464 = vcmp.lt.s32.totalorder %v8448, 5
        %vm8465 = vcmp.lt.s32.totalorder %v8449, 5
        %vm8466 = vcmp.lt.s32.totalorder %v8450, 5
        %vm8467 = vcmp.lt.s32.totalorder %v8451, 5
        %vm8468 = vcmp.lt.s32.totalorder %v8452, 5
        %vm8469 = vcmp.lt.s32.totalorder %v8453, 5
        %vm8470 = vcmp.lt.s32.totalorder %v8454, 5
        %vm8471 = vcmp.lt.s32.totalorder %v8455, 5
        %vm8472 = vcmp.lt.s32.totalorder %v8456, 5
        %v8473 = vsel %vm8457, 1, 0
        %v8474 = vsel %vm8458, 1, 0
        %v8475 = vsel %vm8459, 1, 0
        %v8476 = vsel %vm8460, 1, 0
        %v8477 = vsel %vm8461, 1, 0
        %v8478 = vsel %vm8462, 1, 0
        %v8479 = vsel %vm8463, 1, 0
        %v8480 = vsel %vm8464, 1, 0
        %v8481 = vsel %vm8465, 1, 0
        %v8482 = vsel %vm8466, 1, 0
        %v8483 = vsel %vm8467, 1, 0
        %v8484 = vsel %vm8468, 1, 0
        %v8485 = vsel %vm8469, 1, 0
        %v8486 = vsel %vm8470, 1, 0
        %v8487 = vsel %vm8471, 1, 0
        %v8488 = vsel %vm8472, 1, 0
        %vm8489 = vcmp.eq.s32.totalorder %v8473, 1
        %vm8490 = vcmp.eq.s32.totalorder %v8474, 1
        %vm8491 = vcmp.eq.s32.totalorder %v8475, 1
        %vm8492 = vcmp.eq.s32.totalorder %v8476, 1
        %vm8493 = vcmp.eq.s32.totalorder %v8477, 1
        %vm8494 = vcmp.eq.s32.totalorder %v8478, 1
        %vm8495 = vcmp.eq.s32.totalorder %v8479, 1
        %vm8496 = vcmp.eq.s32.totalorder %v8480, 1
        %vm8497 = vcmp.eq.s32.totalorder %v8481, 1
        %vm8498 = vcmp.eq.s32.totalorder %v8482, 1
        %vm8499 = vcmp.eq.s32.totalorder %v8483, 1
        %vm8500 = vcmp.eq.s32.totalorder %v8484, 1
        %vm8501 = vcmp.eq.s32.totalorder %v8485, 1
        %vm8502 = vcmp.eq.s32.totalorder %v8486, 1
        %vm8503 = vcmp.eq.s32.totalorder %v8487, 1
        %vm8504 = vcmp.eq.s32.totalorder %v8488, 1
        %v8505 = vsel %vm8489, %v8408, 0.0
        %v8506 = vsel %vm8490, %v8409, 0.0
        %v8507 = vsel %vm8491, %v8410, 0.0
        %v8508 = vsel %vm8492, %v8411, 0.0
        %v8509 = vsel %vm8493, %v8412, 0.0
        %v8510 = vsel %vm8494, %v8413, 0.0
        %v8511 = vsel %vm8495, %v8414, 0.0
        %v8512 = vsel %vm8496, %v8415, 0.0
        %v8513 = vsel %vm8497, %v8416, 0.0
        %v8514 = vsel %vm8498, %v8417, 0.0
        %v8515 = vsel %vm8499, %v8418, 0.0
        %v8516 = vsel %vm8500, %v8419, 0.0
        %v8517 = vsel %vm8501, %v8420, 0.0
        %v8518 = vsel %vm8502, %v8421, 0.0
        %v8519 = vsel %vm8503, %v8422, 0.0
        %v8520 = vsel %vm8504, %v8423, 0.0
        %v8521 = vsel %vm8489, %v8424, 0.0
        %v8522 = vsel %vm8490, %v8425, 0.0
        %v8523 = vsel %vm8491, %v8426, 0.0
        %v8524 = vsel %vm8492, %v8427, 0.0
        %v8525 = vsel %vm8493, %v8428, 0.0
        %v8526 = vsel %vm8494, %v8429, 0.0
        %v8527 = vsel %vm8495, %v8430, 0.0
        %v8528 = vsel %vm8496, %v8431, 0.0
        %v8529 = vsel %vm8497, %v8432, 0.0
        %v8530 = vsel %vm8498, %v8433, 0.0
        %v8531 = vsel %vm8499, %v8434, 0.0
        %v8532 = vsel %vm8500, %v8435, 0.0
        %v8533 = vsel %vm8501, %v8436, 0.0
        %v8534 = vsel %vm8502, %v8437, 0.0
        %v8535 = vsel %vm8503, %v8438, 0.0
        %v8536 = vsel %vm8504, %v8439, 0.0
        %8537 = vst [vmem:[#allocation2] sm:$0xff] %v8505
        %8538 = vst [vmem:[#allocation2 + $0x8] sm:$0xff] %v8506
        %8539 = vst [vmem:[#allocation2 + $0x10] sm:$0xff] %v8507
        %8540 = vst [vmem:[#allocation2 + $0x18] sm:$0xff] %v8508
        %8541 = vst [vmem:[#allocation2 + $0x20] sm:$0xff] %v8509
        %8542 = vst [vmem:[#allocation2 + $0x28] sm:$0xff] %v8510
        %8543 = vst [vmem:[#allocation2 + $0x30] sm:$0xff] %v8511
        %8544 = vst [vmem:[#allocation2 + $0x38] sm:$0xff] %v8512
        %8545 = vst [vmem:[#allocation2 + $0x40] sm:$0xff] %v8513
        %8546 = vst [vmem:[#allocation2 + $0x48] sm:$0xff] %v8514
        %8547 = vst [vmem:[#allocation2 + $0x50] sm:$0xff] %v8515
        %8548 = vst [vmem:[#allocation2 + $0x58] sm:$0xff] %v8516
        %8549 = vst [vmem:[#allocation2 + $0x60] sm:$0xff] %v8517
        %8550 = vst [vmem:[#allocation2 + $0x68] sm:$0xff] %v8518
        %8551 = vst [vmem:[#allocation2 + $0x70] sm:$0xff] %v8519
        %8552 = vst [vmem:[#allocation2 + $0x78] sm:$0xff] %v8520
        %8553 = vst [vmem:[#allocation2 + $0x80] sm:$0xff] %v8521
        %8554 = vst [vmem:[#allocation2 + $0x88] sm:$0xff] %v8522
        %8555 = vst [vmem:[#allocation2 + $0x90] sm:$0xff] %v8523
        %8556 = vst [vmem:[#allocation2 + $0x98] sm:$0xff] %v8524
        %8557 = vst [vmem:[#allocation2 + $0xa0] sm:$0xff] %v8525
        %8558 = vst [vmem:[#allocation2 + $0xa8] sm:$0xff] %v8526
        %8559 = vst [vmem:[#allocation2 + $0xb0] sm:$0xff] %v8527
        %8560 = vst [vmem:[#allocation2 + $0xb8] sm:$0xff] %v8528
        %8561 = vst [vmem:[#allocation2 + $0xc0] sm:$0xff] %v8529
        %8562 = vst [vmem:[#allocation2 + $0xc8] sm:$0xff] %v8530
        %8563 = vst [vmem:[#allocation2 + $0xd0] sm:$0xff] %v8531
        %8564 = vst [vmem:[#allocation2 + $0xd8] sm:$0xff] %v8532
        %8565 = vst [vmem:[#allocation2 + $0xe0] sm:$0xff] %v8533
        %8566 = vst [vmem:[#allocation2 + $0xe8] sm:$0xff] %v8534
        %8567 = vst [vmem:[#allocation2 + $0xf0] sm:$0xff] %v8535
        %8568 = vst [vmem:[#allocation2 + $0xf8] sm:$0xff] %v8536
        %p8569 = scmp.eq.s32.totalorder %s30, 1
        // Predicated region
        $region69: #{vit_forward.1} parent=63 // pred_check
          %p8570 = pneg %p8569
        $region70: #{vit_forward.1} parent=63 // pred_check_branch
          %8572 = sbr.rel (%p8570) target = $region72
        $region71: #{vit_forward.1} parent=63 // pred_region
          %v8574 = vrot.slane %v8521, 7
          %vm8576 = vcmask 1040384
          %v8577 = vsel %vm8576, %v8505, %v8574
          %v8578 = vld [vmem:[%s8] sm:$0x3]
          %vm8579 = vcmask 1041408
          %v8580 = vsel %vm8579, %v8577, 0.0
          %8581 = vadd.xlane.f32.xlu0 %v8580
          %v8582 = vpop.xlane.xlu0 %8581
          %v8583 = vmul.f32 %v8582, 0.03125
          %v8584 = vmul.f32 %v8577, %v8577
          %v8585 = vsel %vm8579, %v8584, 0.0
          %8586 = vadd.xlane.f32.xlu0 %v8585
          %v8587 = vpop.xlane.xlu0 %8586
          %v8588 = vmul.f32 %v8587, 0.03125
          %v8589 = vmul.f32 %v8583, %v8583
          %v8590 = vsub.f32 %v8588, %v8589
          %v8591 = vmax.f32 %v8590, 0.0
          %v8592 = vsub.f32 %v8577, %v8583
          %v8593 = vadd.f32 %v8591, 1e-05
          %v8594 = vrsqrt.pop %v8593
          %v8595 = vmul.f32 %v8592, %v8594
          %v8596 = vlaneseq
          %v8597 = vshrl.u32 %v8596, 7
          %v8598 = vsub.s32 0, %v8597
          %v8599 = vrot.slane %v8578, %v8598
          %v8600 = vmul.f32 %v8595, %v8599
          %v8601 = vlaneseq
          %v8602 = vshrl.u32 %v8601, 7
          %v8603 = vsub.s32 1, %v8602
          %v8604 = vrot.slane %v8578, %v8603
          %v8605 = vadd.f32 %v8600, %v8604
          %v8606 = vpack.c.bf16 %v8605, %v8605
          %v8607 = vld [vmem:[%s9] sm:$0xf]
          %v8608 = vld [vmem:[%s9 + $0x4] sm:$0xf]
          %v8609 = vld [vmem:[%s9 + $0x8] sm:$0xf]
          %v8610 = vld [vmem:[%s9 + $0xc] sm:$0xf]
          %v8611 = vld [vmem:[%s9 + $0x10] sm:$0xf]
          %v8612 = vld [vmem:[%s9 + $0x14] sm:$0xf]
          %v8613 = vld [vmem:[%s9 + $0x18] sm:$0xf]
          %v8614 = vld [vmem:[%s9 + $0x1c] sm:$0xf]
          %v8615 = vld [vmem:[%s9 + $0x20] sm:$0xf]
          %v8616 = vld [vmem:[%s9 + $0x24] sm:$0xf]
          %v8617 = vld [vmem:[%s9 + $0x28] sm:$0xf]
          %v8618 = vld [vmem:[%s9 + $0x2c] sm:$0xf]
          %v8619 = vld [vmem:[%s9 + $0x30] sm:$0xf]
          %v8620 = vld [vmem:[%s9 + $0x34] sm:$0xf]
          %v8621 = vld [vmem:[%s9 + $0x38] sm:$0xf]
          %v8622 = vld [vmem:[%s9 + $0x3c] sm:$0xf]
          %v8623 = vld [vmem:[%s10] sm:$0x1]
          %v8625 = vlaneseq
          %v8626 = vshrl.u32 %v8625, 7
          %v8627 = vsub.s32 0, %v8626
          %v8628 = vrot.slane %v8623, %v8627
          %v8646 = vunpack.c.l.b16 %v8607
          %v8647 = vunpack.c.l.b16 %v8608
          %v8648 = vunpack.c.l.b16 %v8609
          %v8649 = vunpack.c.l.b16 %v8610
          %v8650 = vunpack.c.l.b16 %v8611
          %v8651 = vunpack.c.l.b16 %v8612
          %v8652 = vunpack.c.l.b16 %v8613
          %v8653 = vunpack.c.l.b16 %v8614
          %v8654 = vunpack.c.l.b16 %v8615
          %v8655 = vunpack.c.l.b16 %v8616
          %v8656 = vunpack.c.l.b16 %v8617
          %v8657 = vunpack.c.l.b16 %v8618
          %v8658 = vunpack.c.l.b16 %v8619
          %v8659 = vunpack.c.l.b16 %v8620
          %v8660 = vunpack.c.l.b16 %v8621
          %v8661 = vunpack.c.l.b16 %v8622
          %v8662 = vpack.c.b16 %v8647, %v8646
          %v8663 = vpack.c.b16 %v8649, %v8648
          %v8664 = vpack.c.b16 %v8651, %v8650
          %v8665 = vpack.c.b16 %v8653, %v8652
          %v8666 = vpack.c.b16 %v8655, %v8654
          %v8667 = vpack.c.b16 %v8657, %v8656
          %v8668 = vpack.c.b16 %v8659, %v8658
          %v8669 = vpack.c.b16 %v8661, %v8660
          %8678 = vmatprep.subr.bf16.mxu0 0
          %8679 = vmatpush1.bf16.msra.mxu0 %v8662
          %8680 = vmatprep.subr.bf16.mxu0 0
          %8681 = vmatpush1.bf16.msra.mxu0 %v8663
          %8682 = vmatprep.subr.bf16.mxu0 0
          %8683 = vmatpush1.bf16.msra.mxu0 %v8664
          %8684 = vmatprep.subr.bf16.mxu0 0
          %8685 = vmatpush1.bf16.msra.mxu0 %v8665
          %8686 = vmatprep.subr.bf16.mxu0 0
          %8687 = vmatpush1.bf16.msra.mxu0 %v8666
          %8688 = vmatprep.subr.bf16.mxu0 0
          %8689 = vmatpush1.bf16.msra.mxu0 %v8667
          %8690 = vmatprep.subr.bf16.mxu0 0
          %8691 = vmatpush1.bf16.msra.mxu0 %v8668
          %8692 = vmatprep.subr.bf16.mxu0 0
          %8693 = vmatpush1.bf16.msra.mxu0 %v8669
          %8694 = vmatprep.subr.bf16.mxu0 0
          %8695 = vmatpush1.bf16.msra.mxu0 0
          %8696 = vmatprep.subr.bf16.mxu0 0
          %8697 = vmatpush1.bf16.msra.mxu0 0
          %8698 = vmatprep.subr.bf16.mxu0 0
          %8699 = vmatpush1.bf16.msra.mxu0 0
          %8700 = vmatprep.subr.bf16.mxu0 0
          %8701 = vmatpush1.bf16.msra.mxu0 0
          %8702 = vmatprep.subr.bf16.mxu0 0
          %8703 = vmatpush1.bf16.msra.mxu0 0
          %8704 = vmatprep.subr.bf16.mxu0 0
          %8705 = vmatpush1.bf16.msra.mxu0 0
          %8706 = vmatprep.subr.bf16.mxu0 0
          %8707 = vmatpush1.bf16.msra.mxu0 0
          %8708 = vmatprep.subr.bf16.mxu0 0
          %8709 = vmatpush1.bf16.msra.mxu0 0
          %8710 = vmatprep.mubr.bf16.mxu0 0
          %8711 = vmatmul.mubr.bf16.gmra.mrb[0].mxu0 %v8606
          %v8712 = vpop.f32.mrb[0].mxu0
          %v8713 = vadd.f32 %v8628, %v8712
          %v8714 = vpop.f32.mrb[0].mxu0
          %v8715 = vpop.f32.mrb[0].mxu0
          %v8716 = vpop.f32.mrb[0].mxu0
          %8717 = vdwg.mxu0
          %8718 = vst [vmem:[%s469] sm:$0x3] %v8713
        $region72: #{vit_forward.1} parent=63 // pred_fallthru
          _
        %s8719 = sand.u32 %s306, 1
        %s8720 = scalar_lea.sflag [#allocation4], %s8719
        %s8721 = sand.u32 %s306, 1
        %s8722 = smul.addr %s8721, 2
        %s8723 = scalar_lea.vmem [#allocation3], %s8722
        // Predicated region
        $region73: #{vit_forward.1} parent=63 // pred_check
          %p8724 = pneg %p316
        $region74: #{vit_forward.1} parent=63 // pred_check_branch
          %8726 = sbr.rel (%p8724) target = $region76
        $region75: #{vit_forward.1} parent=63 // pred_region
          %s8728 = ssub.s32 32, 32
          %8729 = vsyncadd %s8720, %s8728
          %s8730 = smul.addr %s29, 32
          %s8731 = scalar_lea.hbm %s11, %s8730
          %s8733 = sshll.u32 %s8723, 4
          %s8734 = int_to_ptr.vmem [resolvable:$true] %s8733
          %8736 = dma.vmem_to_hbm [thread:$0]  %s8734, 32, %s8731, %s8720
        $region76: #{vit_forward.1} parent=63 // pred_fallthru
          _
      $region64: #{vit_forward.1} parent=5 // pred_fallthru
        _
      %p8737 = scmp.le.s32.totalorder 2, %s20
      // Predicated region
      $region77: #{vit_forward.1} parent=5 // pred_check
        %p8738 = pneg %p8737
      $region78: #{vit_forward.1} parent=5 // pred_check_branch
        %8740 = sbr.rel (%p8738) target = $region80
      $region79: #{vit_forward.1} parent=5 // pred_region
        %s8741 = ssub.s32 %s20, 2
        // Predicated region
        $region81: #{vit_forward.1} parent=79 // pred_check
          %p8742 = pneg %p322
        $region82: #{vit_forward.1} parent=79 // pred_check_branch
          %8744 = sbr.rel (%p8742) target = $region84
        $region83: #{vit_forward.1} parent=79 // pred_region
          %s8745 = sand.u32 %s307, 1
          %s8746 = scalar_lea.sflag [#allocation4], %s8745
          %s8747 = sand.u32 %s307, 1
          %s8748 = smul.addr %s8747, 2
          %s8749 = scalar_lea.vmem [#allocation3], %s8748
          %8750 = dma.done %s8746, 32
        $region84: #{vit_forward.1} parent=79 // pred_fallthru
          _
      $region80: #{vit_forward.1} parent=5 // pred_fallthru
        _
    $region6: #{vit_forward.1} parent=1 // loop_footer
      %s24 = sadd.s32 1, %s20
    $region7: #{vit_forward.1} parent=1 // loop_footer_branch
      %19 = sbr.rel target = $region3
    $region8: #{vit_forward.1} parent=1 // loop_exit
      _
    %8751 = vsyncpa [#allocation4], 1
    %s8752 = scalar_lea.sflag [#allocation4], 1
    %8753 = vsyncpa %s8752, 1

</llo_original>
